<compile_context>
chip_gen: v7x
topology: tpu7x:2x2x1
jax: 0.10.0
libtpu: 0.0.40
codegen_flags: <defaults>
</compile_context>

<pallas_src>
import functools

import jax
import jax.numpy as jnp
import numpy as np
from jax.experimental import pallas as pl
from jax.experimental.pallas import tpu as pltpu


def _round_up(x, m):
    return ((x + m - 1) // m) * m


# ----------------------------- Pallas kernels -------------------------------

def _conv_relu_pool_kernel(a00_ref, a01_ref, a10_ref, a11_ref, w_ref, b_ref,
                           o_ref):
    """Fused conv (im2col matmul) + bias + ReLU + 2x2 max-pool.

    a_pq holds the im2col rows for conv-output positions (2i+p, 2j+q), i.e.
    the four taps of each pool window.  pool(relu(x+b)) == relu(max_pq(x)+b).
    """
    w = w_ref[...]
    acc = jnp.dot(a00_ref[...], w, preferred_element_type=jnp.float32)
    acc = jnp.maximum(
        acc, jnp.dot(a01_ref[...], w, preferred_element_type=jnp.float32))
    acc = jnp.maximum(
        acc, jnp.dot(a10_ref[...], w, preferred_element_type=jnp.float32))
    acc = jnp.maximum(
        acc, jnp.dot(a11_ref[...], w, preferred_element_type=jnp.float32))
    o_ref[...] = jnp.maximum(acc + b_ref[...], 0.0).astype(o_ref.dtype)


def _fc_stack_kernel(x_ref, w1_ref, b1_ref, w2_ref, b2_ref, w3_ref, b3_ref,
                     o_ref, *, valid_out):
    """Fused classifier: relu(x@w1+b1) -> relu(.@w2+b2) -> .@w3+b3 -> log_softmax."""
    h = jnp.dot(x_ref[...], w1_ref[...], preferred_element_type=jnp.float32)
    h = jnp.maximum(h + b1_ref[...], 0.0)
    h = jnp.dot(h, w2_ref[...], preferred_element_type=jnp.float32)
    h = jnp.maximum(h + b2_ref[...], 0.0)
    z = jnp.dot(h, w3_ref[...], preferred_element_type=jnp.float32)
    z = z + b3_ref[...]
    # Mask padded logit columns before the softmax reduction.
    col = jax.lax.broadcasted_iota(jnp.int32, z.shape, 1)
    z = jnp.where(col < valid_out, z, jnp.float32(-1e30))
    m = jnp.max(z, axis=-1, keepdims=True)
    s = z - m
    lse = jnp.log(jnp.sum(jnp.exp(s), axis=-1, keepdims=True))
    o_ref[...] = (s - lse).astype(o_ref.dtype)


# ----------------------------- wrappers --------------------------------------

def conv_relu_pool(x_nhwc, w_oihw, b, padding):
    """PyTorch-style Conv2d(stride 1) + ReLU + MaxPool2d(2,2), fully fused."""
    cout, cin, kh, kw = w_oihw.shape
    if padding:
        x_nhwc = jnp.pad(
            x_nhwc, ((0, 0), (padding, padding), (padding, padding), (0, 0)))
    N, H, W, C = x_nhwc.shape
    OH, OW = H - kh + 1, W - kw + 1
    PH, PW = OH // 2, OW // 2
    K = kh * kw * C
    Kp = _round_up(K, 128)
    Cp = _round_up(cout, 128)
    Mout = N * PH * PW

    def tap(p, q):
        # im2col rows for conv-output positions (2i+p, 2j+q); feature order
        # (kh, kw, cin), built straight from the padded input (no full-patches
        # intermediate), K lane-padded to Kp.
        cols = [x_nhwc[:, p + di:p + di + 2 * PH:2, q + dj:q + dj + 2 * PW:2, :]
                for di in range(kh) for dj in range(kw)]
        t = jnp.stack(cols, axis=3).reshape(Mout, K)
        return jnp.pad(t, ((0, 0), (0, Kp - K)))

    a00, a01, a10, a11 = tap(0, 0), tap(0, 1), tap(1, 0), tap(1, 1)

    # weight (cout,cin,kh,kw) -> (kh,kw,cin,cout) -> (K, cout), zero-padded.
    wmat = jnp.transpose(w_oihw, (2, 3, 1, 0)).reshape(K, cout)
    wmat = jnp.pad(wmat, ((0, Kp - K), (0, Cp - cout)))
    bmat = jnp.pad(b.reshape(1, cout), ((0, 0), (0, Cp - cout)))

    # Big tiles for the large layer (keeps a >=2 parallel grid for v7x);
    # tiny layers run as a single full block.
    tm = 1024 if (Mout > 1024 and Mout % 1024 == 0) else Mout
    grid = (Mout // tm,)

    a_spec = pl.BlockSpec((tm, Kp), lambda i: (i, 0))
    out = pl.pallas_call(
        _conv_relu_pool_kernel,
        out_shape=jax.ShapeDtypeStruct((Mout, Cp), jnp.float32),
        grid=grid,
        in_specs=[a_spec, a_spec, a_spec, a_spec,
                  pl.BlockSpec((Kp, Cp), lambda i: (0, 0)),
                  pl.BlockSpec((1, Cp), lambda i: (0, 0))],
        out_specs=pl.BlockSpec((tm, Cp), lambda i: (i, 0)),
        compiler_params=pltpu.CompilerParams(
            dimension_semantics=("parallel",)),
    )(a00, a01, a10, a11, wmat, bmat)
    return out[:, :cout].reshape(N, PH, PW, cout)


def fc_stack(x_flat, p):
    """Fused f1(relu) -> f2(relu) -> f3 -> log_softmax in one pallas_call."""
    N, K = x_flat.shape
    H1, H2, H3 = p["f1w"].shape[0], p["f2w"].shape[0], p["f3w"].shape[0]
    Kp = _round_up(K, 128)
    H1p, H2p, H3p = _round_up(H1, 128), _round_up(H2, 128), _round_up(H3, 128)

    xp = jnp.pad(x_flat, ((0, 0), (0, Kp - K)))
    w1 = jnp.pad(p["f1w"].T, ((0, Kp - K), (0, H1p - H1)))
    b1 = jnp.pad(p["f1b"].reshape(1, H1), ((0, 0), (0, H1p - H1)))
    w2 = jnp.pad(p["f2w"].T, ((0, H1p - H1), (0, H2p - H2)))
    b2 = jnp.pad(p["f2b"].reshape(1, H2), ((0, 0), (0, H2p - H2)))
    w3 = jnp.pad(p["f3w"].T, ((0, H2p - H2), (0, H3p - H3)))
    b3 = jnp.pad(p["f3b"].reshape(1, H3), ((0, 0), (0, H3p - H3)))

    out = pl.pallas_call(
        functools.partial(_fc_stack_kernel, valid_out=H3),
        out_shape=jax.ShapeDtypeStruct((N, H3p), jnp.float32),
        grid=(1,),
        in_specs=[pl.BlockSpec((N, Kp), lambda i: (0, 0)),
                  pl.BlockSpec((Kp, H1p), lambda i: (0, 0)),
                  pl.BlockSpec((1, H1p), lambda i: (0, 0)),
                  pl.BlockSpec((H1p, H2p), lambda i: (0, 0)),
                  pl.BlockSpec((1, H2p), lambda i: (0, 0)),
                  pl.BlockSpec((H2p, H3p), lambda i: (0, 0)),
                  pl.BlockSpec((1, H3p), lambda i: (0, 0))],
        out_specs=pl.BlockSpec((N, H3p), lambda i: (0, 0)),
        compiler_params=pltpu.CompilerParams(
            dimension_semantics=("arbitrary",)),
    )(xp, w1, b1, w2, b2, w3, b3)
    return out[:, :H3]


def net_forward(x_nchw, p):
    x = jnp.transpose(x_nchw, (0, 2, 3, 1))                       # NCHW -> NHWC
    x = conv_relu_pool(x, p["c1w"], p["c1b"], padding=2)          # (N,32,32,6)
    x = conv_relu_pool(x, p["c2w"], p["c2b"], padding=0)          # (N,14,14,16)
    x = conv_relu_pool(x, p["c3w"], p["c3b"], padding=0)          # (N,5,5,16)
    # flatten in NCHW order to match PyTorch x.view(N, -1)
    x = jnp.transpose(x, (0, 3, 1, 2)).reshape(x.shape[0], -1)    # (N, 400)
    return fc_stack(x, p)                                         # (N, 2)


# ----------------------------- pure-JAX reference ----------------------------

def net_reference(x, p):
    def conv(x, w, b, pad):
        y = jax.lax.conv_general_dilated(
            x, w, window_strides=(1, 1), padding=[(pad, pad), (pad, pad)],
            dimension_numbers=("NCHW", "OIHW", "NCHW"))
        return y + b[None, :, None, None]

    def pool(x):
        return jax.lax.reduce_window(x, -jnp.inf, jax.lax.max,
                                     (1, 1, 2, 2), (1, 1, 2, 2), "VALID")

    x = pool(jax.nn.relu(conv(x, p["c1w"], p["c1b"], 2)))
    x = pool(jax.nn.relu(conv(x, p["c2w"], p["c2b"], 0)))
    x = pool(jax.nn.relu(conv(x, p["c3w"], p["c3b"], 0)))
    x = x.reshape(x.shape[0], -1)
    x = jax.nn.relu(x @ p["f1w"].T + p["f1b"])
    x = jax.nn.relu(x @ p["f2w"].T + p["f2b"])
    x = x @ p["f3w"].T + p["f3b"]
    return jax.nn.log_softmax(x, axis=1)


# ----------------------------- params / main ---------------------------------

def init_params(key):
    shapes = {
        "c1w": (6, 3, 5, 5), "c1b": (6,),
        "c2w": (16, 6, 5, 5), "c2b": (16,),
        "c3w": (16, 16, 5, 5), "c3b": (16,),
        "f1w": (120, 16 * 5 * 5), "f1b": (120,),
        "f2w": (84, 120), "f2b": (84,),
        "f3w": (2, 84), "f3b": (2,),
    }
    params = {}
    keys = jax.random.split(key, len(shapes))
    for k_rand, (name, shape) in zip(keys, sorted(shapes.items())):
        params[name] = 0.05 * jax.random.normal(k_rand, shape, jnp.float32)
    return params


if __name__ == "__main__":
    key = jax.random.PRNGKey(0)
    k_x, k_p = jax.random.split(key)
    # Net's feature stack implies a 64x64 input (-> 16*5*5 flatten); batch=2.
    x = jax.random.normal(k_x, (2, 3, 64, 64), jnp.float32)
    params = init_params(k_p)

    fwd = jax.jit(net_forward)
    out = jax.block_until_ready(fwd(x, params))
    ref = jax.block_until_ready(net_reference(x, params))

    assert out.shape == (2, 2) and out.dtype == jnp.float32
    np.testing.assert_allclose(np.asarray(out), np.asarray(ref),
                               atol=5e-2, rtol=5e-2)
    print("KERNEL_OK")
</pallas_src>

<mosaic_0001>
module attributes {stable_mosaic.version = 11 : i64} {
  func.func @_conv_relu_pool_kernel(%arg0: i32, %arg1: memref<1024x128xf32, #tpu.memory_space<vmem>>, %arg2: memref<1024x128xf32, #tpu.memory_space<vmem>>, %arg3: memref<1024x128xf32, #tpu.memory_space<vmem>>, %arg4: memref<1024x128xf32, #tpu.memory_space<vmem>>, %arg5: memref<128x128xf32, #tpu.memory_space<vmem>>, %arg6: memref<1x128xf32, #tpu.memory_space<vmem>>, %arg7: memref<1024x128xf32, #tpu.memory_space<vmem>>) attributes {dimension_semantics = [#tpu.dimension_semantics<parallel>], iteration_bounds = array<i64: 2>, scalar_prefetch = 0 : i64, scratch_operands = 0 : i64, tpu.core_type = #tpu.core_type<tc>, window_params = [{transform_indices = @transform_0, window_bounds = array<i64: 1024, 128>}, {transform_indices = @transform_1, window_bounds = array<i64: 1024, 128>}, {transform_indices = @transform_2, window_bounds = array<i64: 1024, 128>}, {transform_indices = @transform_3, window_bounds = array<i64: 1024, 128>}, {pipeline_mode = #tpu.pipeline_mode<synchronous>, transform_indices = @transform_4, window_bounds = array<i64: 128, 128>}, {pipeline_mode = #tpu.pipeline_mode<synchronous>, transform_indices = @transform_5, window_bounds = array<i64: 1, 128>}, {transform_indices = @transform_6, window_bounds = array<i64: 1024, 128>}]} {
    %c0 = arith.constant 0 : index
    %c0_0 = arith.constant 0 : index
    %0 = vector.load %arg5[%c0, %c0_0] : memref<128x128xf32, #tpu.memory_space<vmem>>, vector<128x128xf32>
    %c0_1 = arith.constant 0 : index
    %c0_2 = arith.constant 0 : index
    %1 = vector.load %arg1[%c0_1, %c0_2] : memref<1024x128xf32, #tpu.memory_space<vmem>>, vector<1024x128xf32>
    %cst = arith.constant dense<0.000000e+00> : vector<1024x128xf32>
    %2 = tpu.matmul %1, %0, %cst {dimension_numbers = #tpu.dot_dimension_numbers<[1], [0], [0], [1], [0, 0, 1, 1], [], []>} : vector<1024x128xf32>, vector<128x128xf32>, vector<1024x128xf32> -> vector<1024x128xf32>
    %c0_3 = arith.constant 0 : index
    %c0_4 = arith.constant 0 : index
    %3 = vector.load %arg2[%c0_3, %c0_4] : memref<1024x128xf32, #tpu.memory_space<vmem>>, vector<1024x128xf32>
    %cst_5 = arith.constant dense<0.000000e+00> : vector<1024x128xf32>
    %4 = tpu.matmul %3, %0, %cst_5 {dimension_numbers = #tpu.dot_dimension_numbers<[1], [0], [0], [1], [0, 0, 1, 1], [], []>} : vector<1024x128xf32>, vector<128x128xf32>, vector<1024x128xf32> -> vector<1024x128xf32>
    %5 = arith.maximumf %2, %4 : vector<1024x128xf32>
    %c0_6 = arith.constant 0 : index
    %c0_7 = arith.constant 0 : index
    %6 = vector.load %arg3[%c0_6, %c0_7] : memref<1024x128xf32, #tpu.memory_space<vmem>>, vector<1024x128xf32>
    %cst_8 = arith.constant dense<0.000000e+00> : vector<1024x128xf32>
    %7 = tpu.matmul %6, %0, %cst_8 {dimension_numbers = #tpu.dot_dimension_numbers<[1], [0], [0], [1], [0, 0, 1, 1], [], []>} : vector<1024x128xf32>, vector<128x128xf32>, vector<1024x128xf32> -> vector<1024x128xf32>
    %8 = arith.maximumf %5, %7 : vector<1024x128xf32>
    %c0_9 = arith.constant 0 : index
    %c0_10 = arith.constant 0 : index
    %9 = vector.load %arg4[%c0_9, %c0_10] : memref<1024x128xf32, #tpu.memory_space<vmem>>, vector<1024x128xf32>
    %cst_11 = arith.constant dense<0.000000e+00> : vector<1024x128xf32>
    %10 = tpu.matmul %9, %0, %cst_11 {dimension_numbers = #tpu.dot_dimension_numbers<[1], [0], [0], [1], [0, 0, 1, 1], [], []>} : vector<1024x128xf32>, vector<128x128xf32>, vector<1024x128xf32> -> vector<1024x128xf32>
    %11 = arith.maximumf %8, %10 : vector<1024x128xf32>
    %c0_12 = arith.constant 0 : index
    %c0_13 = arith.constant 0 : index
    %12 = vector.load %arg6[%c0_12, %c0_13] : memref<1x128xf32, #tpu.memory_space<vmem>>, vector<1x128xf32>
    %13 = vector.broadcast %12 : vector<1x128xf32> to vector<1024x128xf32>
    %14 = arith.addf %11, %13 : vector<1024x128xf32>
    %cst_14 = arith.constant 0.000000e+00 : f32
    %15 = vector.broadcast %cst_14 : f32 to vector<1024x128xf32>
    %16 = arith.maximumf %14, %15 : vector<1024x128xf32>
    %c0_15 = arith.constant 0 : index
    %c0_16 = arith.constant 0 : index
    %17 = vector.load %arg7[%c0_15, %c0_16] : memref<1024x128xf32, #tpu.memory_space<vmem>>, vector<1024x128xf32>
    tpu.vector_store %arg7[%c0_15, %c0_16], %16 {strides = array<i32>} : memref<1024x128xf32, #tpu.memory_space<vmem>>, vector<1024x128xf32>,
    return
  }
  func.func @transform_0(%arg0: i32) -> (i32, i32) {
    %c0_i32 = arith.constant 0 : i32
    %c0_i32_0 = arith.constant 0 : i32
    return %arg0, %c0_i32 : i32, i32
  }
  func.func @transform_1(%arg0: i32) -> (i32, i32) {
    %c0_i32 = arith.constant 0 : i32
    %c0_i32_0 = arith.constant 0 : i32
    return %arg0, %c0_i32 : i32, i32
  }
  func.func @transform_2(%arg0: i32) -> (i32, i32) {
    %c0_i32 = arith.constant 0 : i32
    %c0_i32_0 = arith.constant 0 : i32
    return %arg0, %c0_i32 : i32, i32
  }
  func.func @transform_3(%arg0: i32) -> (i32, i32) {
    %c0_i32 = arith.constant 0 : i32
    %c0_i32_0 = arith.constant 0 : i32
    return %arg0, %c0_i32 : i32, i32
  }
  func.func @transform_4(%arg0: i32) -> (i32, i32) {
    %c0_i32 = arith.constant 0 : i32
    %c0_i32_0 = arith.constant 0 : i32
    %c0_i32_1 = arith.constant 0 : i32
    return %c0_i32, %c0_i32_0 : i32, i32
  }
  func.func @transform_5(%arg0: i32) -> (i32, i32) {
    %c0_i32 = arith.constant 0 : i32
    %c0_i32_0 = arith.constant 0 : i32
    %c0_i32_1 = arith.constant 0 : i32
    return %c0_i32, %c0_i32_0 : i32, i32
  }
  func.func @transform_6(%arg0: i32) -> (i32, i32) {
    %c0_i32 = arith.constant 0 : i32
    %c0_i32_0 = arith.constant 0 : i32
    return %arg0, %c0_i32 : i32, i32
  }
}

module attributes {stable_mosaic.version = 11 : i64} {
  func.func @_conv_relu_pool_kernel(%arg0: i32, %arg1: memref<392x256xf32, #tpu.memory_space<vmem>>, %arg2: memref<392x256xf32, #tpu.memory_space<vmem>>, %arg3: memref<392x256xf32, #tpu.memory_space<vmem>>, %arg4: memref<392x256xf32, #tpu.memory_space<vmem>>, %arg5: memref<256x128xf32, #tpu.memory_space<vmem>>, %arg6: memref<1x128xf32, #tpu.memory_space<vmem>>, %arg7: memref<392x128xf32, #tpu.memory_space<vmem>>) attributes {dimension_semantics = [#tpu.dimension_semantics<parallel>], iteration_bounds = array<i64: 1>, scalar_prefetch = 0 : i64, scratch_operands = 0 : i64, tpu.core_type = #tpu.core_type<tc>, window_params = [{transform_indices = @transform_0, window_bounds = array<i64: 392, 256>}, {transform_indices = @transform_1, window_bounds = array<i64: 392, 256>}, {transform_indices = @transform_2, window_bounds = array<i64: 392, 256>}, {transform_indices = @transform_3, window_bounds = array<i64: 392, 256>}, {pipeline_mode = #tpu.pipeline_mode<synchronous>, transform_indices = @transform_4, window_bounds = array<i64: 256, 128>}, {pipeline_mode = #tpu.pipeline_mode<synchronous>, transform_indices = @transform_5, window_bounds = array<i64: 1, 128>}, {transform_indices = @transform_6, window_bounds = array<i64: 392, 128>}]} {
    %c0 = arith.constant 0 : index
    %c0_0 = arith.constant 0 : index
    %0 = vector.load %arg5[%c0, %c0_0] : memref<256x128xf32, #tpu.memory_space<vmem>>, vector<256x128xf32>
    %c0_1 = arith.constant 0 : index
    %c0_2 = arith.constant 0 : index
    %1 = vector.load %arg1[%c0_1, %c0_2] : memref<392x256xf32, #tpu.memory_space<vmem>>, vector<392x256xf32>
    %cst = arith.constant dense<0.000000e+00> : vector<392x128xf32>
    %2 = tpu.matmul %1, %0, %cst {dimension_numbers = #tpu.dot_dimension_numbers<[1], [0], [0], [1], [0, 0, 1, 1], [], []>} : vector<392x256xf32>, vector<256x128xf32>, vector<392x128xf32> -> vector<392x128xf32>
    %c0_3 = arith.constant 0 : index
    %c0_4 = arith.constant 0 : index
    %3 = vector.load %arg2[%c0_3, %c0_4] : memref<392x256xf32, #tpu.memory_space<vmem>>, vector<392x256xf32>
    %cst_5 = arith.constant dense<0.000000e+00> : vector<392x128xf32>
    %4 = tpu.matmul %3, %0, %cst_5 {dimension_numbers = #tpu.dot_dimension_numbers<[1], [0], [0], [1], [0, 0, 1, 1], [], []>} : vector<392x256xf32>, vector<256x128xf32>, vector<392x128xf32> -> vector<392x128xf32>
    %5 = arith.maximumf %2, %4 : vector<392x128xf32>
    %c0_6 = arith.constant 0 : index
    %c0_7 = arith.constant 0 : index
    %6 = vector.load %arg3[%c0_6, %c0_7] : memref<392x256xf32, #tpu.memory_space<vmem>>, vector<392x256xf32>
    %cst_8 = arith.constant dense<0.000000e+00> : vector<392x128xf32>
    %7 = tpu.matmul %6, %0, %cst_8 {dimension_numbers = #tpu.dot_dimension_numbers<[1], [0], [0], [1], [0, 0, 1, 1], [], []>} : vector<392x256xf32>, vector<256x128xf32>, vector<392x128xf32> -> vector<392x128xf32>
    %8 = arith.maximumf %5, %7 : vector<392x128xf32>
    %c0_9 = arith.constant 0 : index
    %c0_10 = arith.constant 0 : index
    %9 = vector.load %arg4[%c0_9, %c0_10] : memref<392x256xf32, #tpu.memory_space<vmem>>, vector<392x256xf32>
    %cst_11 = arith.constant dense<0.000000e+00> : vector<392x128xf32>
    %10 = tpu.matmul %9, %0, %cst_11 {dimension_numbers = #tpu.dot_dimension_numbers<[1], [0], [0], [1], [0, 0, 1, 1], [], []>} : vector<392x256xf32>, vector<256x128xf32>, vector<392x128xf32> -> vector<392x128xf32>
    %11 = arith.maximumf %8, %10 : vector<392x128xf32>
    %c0_12 = arith.constant 0 : index
    %c0_13 = arith.constant 0 : index
    %12 = vector.load %arg6[%c0_12, %c0_13] : memref<1x128xf32, #tpu.memory_space<vmem>>, vector<1x128xf32>
    %13 = vector.broadcast %12 : vector<1x128xf32> to vector<392x128xf32>
    %14 = arith.addf %11, %13 : vector<392x128xf32>
    %cst_14 = arith.constant 0.000000e+00 : f32
    %15 = vector.broadcast %cst_14 : f32 to vector<392x128xf32>
    %16 = arith.maximumf %14, %15 : vector<392x128xf32>
    %c0_15 = arith.constant 0 : index
    %c0_16 = arith.constant 0 : index
    %17 = vector.load %arg7[%c0_15, %c0_16] : memref<392x128xf32, #tpu.memory_space<vmem>>, vector<392x128xf32>
    tpu.vector_store %arg7[%c0_15, %c0_16], %16 {strides = array<i32>} : memref<392x128xf32, #tpu.memory_space<vmem>>, vector<392x128xf32>,
    return
  }
  func.func @transform_0(%arg0: i32) -> (i32, i32) {
    %c0_i32 = arith.constant 0 : i32
    %c0_i32_0 = arith.constant 0 : i32
    return %arg0, %c0_i32 : i32, i32
  }
  func.func @transform_1(%arg0: i32) -> (i32, i32) {
    %c0_i32 = arith.constant 0 : i32
    %c0_i32_0 = arith.constant 0 : i32
    return %arg0, %c0_i32 : i32, i32
  }
  func.func @transform_2(%arg0: i32) -> (i32, i32) {
    %c0_i32 = arith.constant 0 : i32
    %c0_i32_0 = arith.constant 0 : i32
    return %arg0, %c0_i32 : i32, i32
  }
  func.func @transform_3(%arg0: i32) -> (i32, i32) {
    %c0_i32 = arith.constant 0 : i32
    %c0_i32_0 = arith.constant 0 : i32
    return %arg0, %c0_i32 : i32, i32
  }
  func.func @transform_4(%arg0: i32) -> (i32, i32) {
    %c0_i32 = arith.constant 0 : i32
    %c0_i32_0 = arith.constant 0 : i32
    %c0_i32_1 = arith.constant 0 : i32
    return %c0_i32, %c0_i32_0 : i32, i32
  }
  func.func @transform_5(%arg0: i32) -> (i32, i32) {
    %c0_i32 = arith.constant 0 : i32
    %c0_i32_0 = arith.constant 0 : i32
    %c0_i32_1 = arith.constant 0 : i32
    return %c0_i32, %c0_i32_0 : i32, i32
  }
  func.func @transform_6(%arg0: i32) -> (i32, i32) {
    %c0_i32 = arith.constant 0 : i32
    %c0_i32_0 = arith.constant 0 : i32
    return %arg0, %c0_i32 : i32, i32
  }
}

module attributes {stable_mosaic.version = 11 : i64} {
  func.func @_conv_relu_pool_kernel(%arg0: i32, %arg1: memref<50x512xf32, #tpu.memory_space<vmem>>, %arg2: memref<50x512xf32, #tpu.memory_space<vmem>>, %arg3: memref<50x512xf32, #tpu.memory_space<vmem>>, %arg4: memref<50x512xf32, #tpu.memory_space<vmem>>, %arg5: memref<512x128xf32, #tpu.memory_space<vmem>>, %arg6: memref<1x128xf32, #tpu.memory_space<vmem>>, %arg7: memref<50x128xf32, #tpu.memory_space<vmem>>) attributes {dimension_semantics = [#tpu.dimension_semantics<parallel>], iteration_bounds = array<i64: 1>, scalar_prefetch = 0 : i64, scratch_operands = 0 : i64, tpu.core_type = #tpu.core_type<tc>, window_params = [{transform_indices = @transform_0, window_bounds = array<i64: 50, 512>}, {transform_indices = @transform_1, window_bounds = array<i64: 50, 512>}, {transform_indices = @transform_2, window_bounds = array<i64: 50, 512>}, {transform_indices = @transform_3, window_bounds = array<i64: 50, 512>}, {pipeline_mode = #tpu.pipeline_mode<synchronous>, transform_indices = @transform_4, window_bounds = array<i64: 512, 128>}, {pipeline_mode = #tpu.pipeline_mode<synchronous>, transform_indices = @transform_5, window_bounds = array<i64: 1, 128>}, {transform_indices = @transform_6, window_bounds = array<i64: 50, 128>}]} {
    %c0 = arith.constant 0 : index
    %c0_0 = arith.constant 0 : index
    %0 = vector.load %arg5[%c0, %c0_0] : memref<512x128xf32, #tpu.memory_space<vmem>>, vector<512x128xf32>
    %c0_1 = arith.constant 0 : index
    %c0_2 = arith.constant 0 : index
    %1 = vector.load %arg1[%c0_1, %c0_2] : memref<50x512xf32, #tpu.memory_space<vmem>>, vector<50x512xf32>
    %cst = arith.constant dense<0.000000e+00> : vector<50x128xf32>
    %2 = tpu.matmul %1, %0, %cst {dimension_numbers = #tpu.dot_dimension_numbers<[1], [0], [0], [1], [0, 0, 1, 1], [], []>} : vector<50x512xf32>, vector<512x128xf32>, vector<50x128xf32> -> vector<50x128xf32>
    %c0_3 = arith.constant 0 : index
    %c0_4 = arith.constant 0 : index
    %3 = vector.load %arg2[%c0_3, %c0_4] : memref<50x512xf32, #tpu.memory_space<vmem>>, vector<50x512xf32>
    %cst_5 = arith.constant dense<0.000000e+00> : vector<50x128xf32>
    %4 = tpu.matmul %3, %0, %cst_5 {dimension_numbers = #tpu.dot_dimension_numbers<[1], [0], [0], [1], [0, 0, 1, 1], [], []>} : vector<50x512xf32>, vector<512x128xf32>, vector<50x128xf32> -> vector<50x128xf32>
    %5 = arith.maximumf %2, %4 : vector<50x128xf32>
    %c0_6 = arith.constant 0 : index
    %c0_7 = arith.constant 0 : index
    %6 = vector.load %arg3[%c0_6, %c0_7] : memref<50x512xf32, #tpu.memory_space<vmem>>, vector<50x512xf32>
    %cst_8 = arith.constant dense<0.000000e+00> : vector<50x128xf32>
    %7 = tpu.matmul %6, %0, %cst_8 {dimension_numbers = #tpu.dot_dimension_numbers<[1], [0], [0], [1], [0, 0, 1, 1], [], []>} : vector<50x512xf32>, vector<512x128xf32>, vector<50x128xf32> -> vector<50x128xf32>
    %8 = arith.maximumf %5, %7 : vector<50x128xf32>
    %c0_9 = arith.constant 0 : index
    %c0_10 = arith.constant 0 : index
    %9 = vector.load %arg4[%c0_9, %c0_10] : memref<50x512xf32, #tpu.memory_space<vmem>>, vector<50x512xf32>
    %cst_11 = arith.constant dense<0.000000e+00> : vector<50x128xf32>
    %10 = tpu.matmul %9, %0, %cst_11 {dimension_numbers = #tpu.dot_dimension_numbers<[1], [0], [0], [1], [0, 0, 1, 1], [], []>} : vector<50x512xf32>, vector<512x128xf32>, vector<50x128xf32> -> vector<50x128xf32>
    %11 = arith.maximumf %8, %10 : vector<50x128xf32>
    %c0_12 = arith.constant 0 : index
    %c0_13 = arith.constant 0 : index
    %12 = vector.load %arg6[%c0_12, %c0_13] : memref<1x128xf32, #tpu.memory_space<vmem>>, vector<1x128xf32>
    %13 = vector.broadcast %12 : vector<1x128xf32> to vector<50x128xf32>
    %14 = arith.addf %11, %13 : vector<50x128xf32>
    %cst_14 = arith.constant 0.000000e+00 : f32
    %15 = vector.broadcast %cst_14 : f32 to vector<50x128xf32>
    %16 = arith.maximumf %14, %15 : vector<50x128xf32>
    %c0_15 = arith.constant 0 : index
    %c0_16 = arith.constant 0 : index
    %17 = vector.load %arg7[%c0_15, %c0_16] : memref<50x128xf32, #tpu.memory_space<vmem>>, vector<50x128xf32>
    tpu.vector_store %arg7[%c0_15, %c0_16], %16 {strides = array<i32>} : memref<50x128xf32, #tpu.memory_space<vmem>>, vector<50x128xf32>,
    return
  }
  func.func @transform_0(%arg0: i32) -> (i32, i32) {
    %c0_i32 = arith.constant 0 : i32
    %c0_i32_0 = arith.constant 0 : i32
    return %arg0, %c0_i32 : i32, i32
  }
  func.func @transform_1(%arg0: i32) -> (i32, i32) {
    %c0_i32 = arith.constant 0 : i32
    %c0_i32_0 = arith.constant 0 : i32
    return %arg0, %c0_i32 : i32, i32
  }
  func.func @transform_2(%arg0: i32) -> (i32, i32) {
    %c0_i32 = arith.constant 0 : i32
    %c0_i32_0 = arith.constant 0 : i32
    return %arg0, %c0_i32 : i32, i32
  }
  func.func @transform_3(%arg0: i32) -> (i32, i32) {
    %c0_i32 = arith.constant 0 : i32
    %c0_i32_0 = arith.constant 0 : i32
    return %arg0, %c0_i32 : i32, i32
  }
  func.func @transform_4(%arg0: i32) -> (i32, i32) {
    %c0_i32 = arith.constant 0 : i32
    %c0_i32_0 = arith.constant 0 : i32
    %c0_i32_1 = arith.constant 0 : i32
    return %c0_i32, %c0_i32_0 : i32, i32
  }
  func.func @transform_5(%arg0: i32) -> (i32, i32) {
    %c0_i32 = arith.constant 0 : i32
    %c0_i32_0 = arith.constant 0 : i32
    %c0_i32_1 = arith.constant 0 : i32
    return %c0_i32, %c0_i32_0 : i32, i32
  }
  func.func @transform_6(%arg0: i32) -> (i32, i32) {
    %c0_i32 = arith.constant 0 : i32
    %c0_i32_0 = arith.constant 0 : i32
    return %arg0, %c0_i32 : i32, i32
  }
}

module attributes {stable_mosaic.version = 11 : i64} {
  func.func @_fc_stack_kernel(%arg0: i32, %arg1: memref<2x512xf32, #tpu.memory_space<vmem>>, %arg2: memref<512x128xf32, #tpu.memory_space<vmem>>, %arg3: memref<1x128xf32, #tpu.memory_space<vmem>>, %arg4: memref<128x128xf32, #tpu.memory_space<vmem>>, %arg5: memref<1x128xf32, #tpu.memory_space<vmem>>, %arg6: memref<128x128xf32, #tpu.memory_space<vmem>>, %arg7: memref<1x128xf32, #tpu.memory_space<vmem>>, %arg8: memref<2x128xf32, #tpu.memory_space<vmem>>) attributes {dimension_semantics = [#tpu.dimension_semantics<arbitrary>], iteration_bounds = array<i64: 1>, scalar_prefetch = 0 : i64, scratch_operands = 0 : i64, tpu.core_type = #tpu.core_type<tc>, window_params = [{pipeline_mode = #tpu.pipeline_mode<synchronous>, transform_indices = @transform_0, window_bounds = array<i64: 2, 512>}, {pipeline_mode = #tpu.pipeline_mode<synchronous>, transform_indices = @transform_1, window_bounds = array<i64: 512, 128>}, {pipeline_mode = #tpu.pipeline_mode<synchronous>, transform_indices = @transform_2, window_bounds = array<i64: 1, 128>}, {pipeline_mode = #tpu.pipeline_mode<synchronous>, transform_indices = @transform_3, window_bounds = array<i64: 128, 128>}, {pipeline_mode = #tpu.pipeline_mode<synchronous>, transform_indices = @transform_4, window_bounds = array<i64: 1, 128>}, {pipeline_mode = #tpu.pipeline_mode<synchronous>, transform_indices = @transform_5, window_bounds = array<i64: 128, 128>}, {pipeline_mode = #tpu.pipeline_mode<synchronous>, transform_indices = @transform_6, window_bounds = array<i64: 1, 128>}, {pipeline_mode = #tpu.pipeline_mode<synchronous>, transform_indices = @transform_7, window_bounds = array<i64: 2, 128>}]} {
    %c0 = arith.constant 0 : index
    %c0_0 = arith.constant 0 : index
    %0 = vector.load %arg1[%c0, %c0_0] : memref<2x512xf32, #tpu.memory_space<vmem>>, vector<2x512xf32>
    %c0_1 = arith.constant 0 : index
    %c0_2 = arith.constant 0 : index
    %1 = vector.load %arg2[%c0_1, %c0_2] : memref<512x128xf32, #tpu.memory_space<vmem>>, vector<512x128xf32>
    %cst = arith.constant dense<0.000000e+00> : vector<2x128xf32>
    %2 = tpu.matmul %0, %1, %cst {dimension_numbers = #tpu.dot_dimension_numbers<[1], [0], [0], [1], [0, 0, 1, 1], [], []>} : vector<2x512xf32>, vector<512x128xf32>, vector<2x128xf32> -> vector<2x128xf32>
    %c0_3 = arith.constant 0 : index
    %c0_4 = arith.constant 0 : index
    %3 = vector.load %arg3[%c0_3, %c0_4] : memref<1x128xf32, #tpu.memory_space<vmem>>, vector<1x128xf32>
    %4 = vector.broadcast %3 : vector<1x128xf32> to vector<2x128xf32>
    %5 = arith.addf %2, %4 : vector<2x128xf32>
    %cst_5 = arith.constant 0.000000e+00 : f32
    %6 = vector.broadcast %cst_5 : f32 to vector<2x128xf32>
    %7 = arith.maximumf %5, %6 : vector<2x128xf32>
    %c0_6 = arith.constant 0 : index
    %c0_7 = arith.constant 0 : index
    %8 = vector.load %arg4[%c0_6, %c0_7] : memref<128x128xf32, #tpu.memory_space<vmem>>, vector<128x128xf32>
    %cst_8 = arith.constant dense<0.000000e+00> : vector<2x128xf32>
    %9 = tpu.matmul %7, %8, %cst_8 {dimension_numbers = #tpu.dot_dimension_numbers<[1], [0], [0], [1], [0, 0, 1, 1], [], []>} : vector<2x128xf32>, vector<128x128xf32>, vector<2x128xf32> -> vector<2x128xf32>
    %c0_9 = arith.constant 0 : index
    %c0_10 = arith.constant 0 : index
    %10 = vector.load %arg5[%c0_9, %c0_10] : memref<1x128xf32, #tpu.memory_space<vmem>>, vector<1x128xf32>
    %11 = vector.broadcast %10 : vector<1x128xf32> to vector<2x128xf32>
    %12 = arith.addf %9, %11 : vector<2x128xf32>
    %cst_11 = arith.constant 0.000000e+00 : f32
    %13 = vector.broadcast %cst_11 : f32 to vector<2x128xf32>
    %14 = arith.maximumf %12, %13 : vector<2x128xf32>
    %c0_12 = arith.constant 0 : index
    %c0_13 = arith.constant 0 : index
    %15 = vector.load %arg6[%c0_12, %c0_13] : memref<128x128xf32, #tpu.memory_space<vmem>>, vector<128x128xf32>
    %cst_14 = arith.constant dense<0.000000e+00> : vector<2x128xf32>
    %16 = tpu.matmul %14, %15, %cst_14 {dimension_numbers = #tpu.dot_dimension_numbers<[1], [0], [0], [1], [0, 0, 1, 1], [], []>} : vector<2x128xf32>, vector<128x128xf32>, vector<2x128xf32> -> vector<2x128xf32>
    %c0_15 = arith.constant 0 : index
    %c0_16 = arith.constant 0 : index
    %17 = vector.load %arg7[%c0_15, %c0_16] : memref<1x128xf32, #tpu.memory_space<vmem>>, vector<1x128xf32>
    %18 = vector.broadcast %17 : vector<1x128xf32> to vector<2x128xf32>
    %19 = arith.addf %16, %18 : vector<2x128xf32>
    %20 = tpu.iota {dimensions = array<i32: 1>} : vector<2x128xi32>
    %c2_i32 = arith.constant 2 : i32
    %21 = vector.broadcast %c2_i32 : i32 to vector<2x128xi32>
    %22 = arith.cmpi slt, %20, %21 : vector<2x128xi32>
    %cst_17 = arith.constant -1.000000e+30 : f32
    %23 = vector.broadcast %cst_17 : f32 to vector<2x128xf32>
    %24 = arith.select %22, %19, %23 : vector<2x128xi1>, vector<2x128xf32>
    %cst_18 = arith.constant dense<0xFF800000> : vector<2xf32>
    %25 = vector.multi_reduction <maximumf>, %24, %cst_18 [1] : vector<2x128xf32> to vector<2xf32>
    %26 = vector.shape_cast %25 : vector<2xf32> to vector<2x1xf32>
    %27 = vector.broadcast %26 : vector<2x1xf32> to vector<2x128xf32>
    %28 = arith.subf %24, %27 : vector<2x128xf32>
    %29 = math.exp %28 : vector<2x128xf32>
    %cst_19 = arith.constant dense<0.000000e+00> : vector<2xf32>
    %30 = vector.multi_reduction <add>, %29, %cst_19 [1] : vector<2x128xf32> to vector<2xf32>
    %31 = vector.shape_cast %30 : vector<2xf32> to vector<2x1xf32>
    %32 = math.log %31 : vector<2x1xf32>
    %33 = vector.broadcast %32 : vector<2x1xf32> to vector<2x128xf32>
    %34 = arith.subf %28, %33 : vector<2x128xf32>
    %c0_20 = arith.constant 0 : index
    %c0_21 = arith.constant 0 : index
    %35 = vector.load %arg8[%c0_20, %c0_21] : memref<2x128xf32, #tpu.memory_space<vmem>>, vector<2x128xf32>
    tpu.vector_store %arg8[%c0_20, %c0_21], %34 {strides = array<i32>} : memref<2x128xf32, #tpu.memory_space<vmem>>, vector<2x128xf32>,
    return
  }
  func.func @transform_0(%arg0: i32) -> (i32, i32) {
    %c0_i32 = arith.constant 0 : i32
    %c0_i32_0 = arith.constant 0 : i32
    %c0_i32_1 = arith.constant 0 : i32
    return %c0_i32, %c0_i32_0 : i32, i32
  }
  func.func @transform_1(%arg0: i32) -> (i32, i32) {
    %c0_i32 = arith.constant 0 : i32
    %c0_i32_0 = arith.constant 0 : i32
    %c0_i32_1 = arith.constant 0 : i32
    return %c0_i32, %c0_i32_0 : i32, i32
  }
  func.func @transform_2(%arg0: i32) -> (i32, i32) {
    %c0_i32 = arith.constant 0 : i32
    %c0_i32_0 = arith.constant 0 : i32
    %c0_i32_1 = arith.constant 0 : i32
    return %c0_i32, %c0_i32_0 : i32, i32
  }
  func.func @transform_3(%arg0: i32) -> (i32, i32) {
    %c0_i32 = arith.constant 0 : i32
    %c0_i32_0 = arith.constant 0 : i32
    %c0_i32_1 = arith.constant 0 : i32
    return %c0_i32, %c0_i32_0 : i32, i32
  }
  func.func @transform_4(%arg0: i32) -> (i32, i32) {
    %c0_i32 = arith.constant 0 : i32
    %c0_i32_0 = arith.constant 0 : i32
    %c0_i32_1 = arith.constant 0 : i32
    return %c0_i32, %c0_i32_0 : i32, i32
  }
  func.func @transform_5(%arg0: i32) -> (i32, i32) {
    %c0_i32 = arith.constant 0 : i32
    %c0_i32_0 = arith.constant 0 : i32
    %c0_i32_1 = arith.constant 0 : i32
    return %c0_i32, %c0_i32_0 : i32, i32
  }
  func.func @transform_6(%arg0: i32) -> (i32, i32) {
    %c0_i32 = arith.constant 0 : i32
    %c0_i32_0 = arith.constant 0 : i32
    %c0_i32_1 = arith.constant 0 : i32
    return %c0_i32, %c0_i32_0 : i32, i32
  }
  func.func @transform_7(%arg0: i32) -> (i32, i32) {
    %c0_i32 = arith.constant 0 : i32
    %c0_i32_0 = arith.constant 0 : i32
    %c0_i32_1 = arith.constant 0 : i32
    return %c0_i32, %c0_i32_0 : i32, i32
  }
}

</mosaic_0001>

<llo_original>
// kernel: net_forward.4
$region0: #{net_forward.4}
  #allocation0 [shape = 'u32[]', space=smem, size = 0x4, offset = 0x4, fixed_abs, tag = 'smem constant byte address 0x4 - core index']
  #allocation1 [shape = 'u32[144,128]{1,0:T(1,128)}', space=vmem, size = 0x12000, scoped, tag = 'internal scratch']
  %s0 = inlined_call_operand.vmem [shape: f32[2048,128], index: 0, kind: input, shape index: {}]
  %s1 = inlined_call_operand.vmem [shape: f32[2048,128], index: 1, kind: input, shape index: {}]
  %s2 = inlined_call_operand.vmem [shape: f32[2048,128], index: 2, kind: input, shape index: {}]
  %s3 = inlined_call_operand.vmem [shape: f32[2048,128], index: 3, kind: input, shape index: {}]
  %s4 = inlined_call_operand.vmem [shape: f32[128,128], index: 4, kind: input, shape index: {}]
  %s5 = inlined_call_operand.vmem [shape: f32[1,128], index: 5, kind: input, shape index: {}]
  %s6 = inlined_call_operand.vmem [shape: f32[2048,128], index: 6, kind: output, shape index: {}]
  %s7 = sld [smem:[#allocation0]]
  $region57: #{net_forward.4} parent=0
    _
  %s9 = ssub.s32 1, %s7
  %s10 = scalar_select 0, %s9, %s7
  loop: start=0, step=1, limit=4
  $region2: #{net_forward.4} parent=0 // loop_pre_header
    _
  $region3: #{net_forward.4} parent=0 // loop_header
    %s12 = sphi 0, %s16
    %p13 = scmp.ge.s32.totalorder %s12, 4
    %s22 = sphi 0, %s24
    %s25 = sphi 0, %s22
    %s26 = sphi 0, %s25
    %s42 = sphi 0, %s26
    %s48 = sphi 0, %s50
    %s51 = sphi 0, %s48
    %s52 = sphi 0, %s51
    %s68 = sphi 0, %s52
    %s74 = sphi 0, %s76
    %s77 = sphi 0, %s74
    %s78 = sphi 0, %s77
    %s94 = sphi 0, %s78
    %s100 = sphi 0, %s102
    %s103 = sphi 0, %s100
    %s104 = sphi 0, %s103
    %s120 = sphi 0, %s104
    %s124 = sphi 0, %s124
    %s126 = sphi 0, %s124
    %s127 = sphi 0, %s126
    %s141 = sphi 0, %s127
    %s145 = sphi 0, %s145
    %s147 = sphi 0, %s145
    %s148 = sphi 0, %s147
    %s162 = sphi 0, %s148
    %s168 = sphi 0, %s170
    %s171 = sphi 0, %s168
    %s172 = sphi 0, %s171
    %s188 = sphi 0, %s172
  $region4: #{net_forward.4} parent=0 // loop_header_branch
    %15 = sbr.rel (%p13) target = $region8
  $region5: #{net_forward.4} parent=0 // loop_body
    %s17 = ssub.s32 %s12, 1
    %s18 = ssub.s32 %s12, 2
    %s19 = sadd.s32 %s12, 1
    %s20 = ssub.s32 %s12, %s19
    %p21 = scmp.eq.s32.totalorder %s20, 0
    %s23 = sadd.s32 %s22, 1
    %s24 = scalar_select %p21, %s22, %s23
    %p27 = pneg %p21
    %p28 = scmp.eq.s32.totalorder %s12, 1
    %p29 = por %p27, %p28
    %p30 = scmp.ne.s32.totalorder %s22, %s25
    %p31 = scmp.eq.s32.totalorder %s12, 0
    %p32 = por %p30, %p31
    %p33 = scmp.ne.s32.totalorder %s22, %s25
    %p34 = scmp.eq.s32.totalorder %s17, 1
    %p35 = por %p33, %p34
    %p36 = scmp.ne.s32.totalorder %s25, %s26
    %p37 = scmp.eq.s32.totalorder %s17, 0
    %p38 = por %p36, %p37
    %p39 = scmp.ne.s32.totalorder %s25, %s26
    %p40 = scmp.eq.s32.totalorder %s18, 1
    %p41 = por %p39, %p40
    %p43 = scmp.ne.s32.totalorder %s26, %s42
    %p44 = scmp.eq.s32.totalorder %s18, 0
    %p45 = por %p43, %p44
    %s46 = ssub.s32 %s12, %s19
    %p47 = scmp.eq.s32.totalorder %s46, 0
    %s49 = sadd.s32 %s48, 1
    %s50 = scalar_select %p47, %s48, %s49
    %p53 = pneg %p47
    %p54 = scmp.eq.s32.totalorder %s12, 1
    %p55 = por %p53, %p54
    %p56 = scmp.ne.s32.totalorder %s48, %s51
    %p57 = scmp.eq.s32.totalorder %s12, 0
    %p58 = por %p56, %p57
    %p59 = scmp.ne.s32.totalorder %s48, %s51
    %p60 = scmp.eq.s32.totalorder %s17, 1
    %p61 = por %p59, %p60
    %p62 = scmp.ne.s32.totalorder %s51, %s52
    %p63 = scmp.eq.s32.totalorder %s17, 0
    %p64 = por %p62, %p63
    %p65 = scmp.ne.s32.totalorder %s51, %s52
    %p66 = scmp.eq.s32.totalorder %s18, 1
    %p67 = por %p65, %p66
    %p69 = scmp.ne.s32.totalorder %s52, %s68
    %p70 = scmp.eq.s32.totalorder %s18, 0
    %p71 = por %p69, %p70
    %s72 = ssub.s32 %s12, %s19
    %p73 = scmp.eq.s32.totalorder %s72, 0
    %s75 = sadd.s32 %s74, 1
    %s76 = scalar_select %p73, %s74, %s75
    %p79 = pneg %p73
    %p80 = scmp.eq.s32.totalorder %s12, 1
    %p81 = por %p79, %p80
    %p82 = scmp.ne.s32.totalorder %s74, %s77
    %p83 = scmp.eq.s32.totalorder %s12, 0
    %p84 = por %p82, %p83
    %p85 = scmp.ne.s32.totalorder %s74, %s77
    %p86 = scmp.eq.s32.totalorder %s17, 1
    %p87 = por %p85, %p86
    %p88 = scmp.ne.s32.totalorder %s77, %s78
    %p89 = scmp.eq.s32.totalorder %s17, 0
    %p90 = por %p88, %p89
    %p91 = scmp.ne.s32.totalorder %s77, %s78
    %p92 = scmp.eq.s32.totalorder %s18, 1
    %p93 = por %p91, %p92
    %p95 = scmp.ne.s32.totalorder %s78, %s94
    %p96 = scmp.eq.s32.totalorder %s18, 0
    %p97 = por %p95, %p96
    %s98 = ssub.s32 %s12, %s19
    %p99 = scmp.eq.s32.totalorder %s98, 0
    %s101 = sadd.s32 %s100, 1
    %s102 = scalar_select %p99, %s100, %s101
    %p105 = pneg %p99
    %p106 = scmp.eq.s32.totalorder %s12, 1
    %p107 = por %p105, %p106
    %p108 = scmp.ne.s32.totalorder %s100, %s103
    %p109 = scmp.eq.s32.totalorder %s12, 0
    %p110 = por %p108, %p109
    %p111 = scmp.ne.s32.totalorder %s100, %s103
    %p112 = scmp.eq.s32.totalorder %s17, 1
    %p113 = por %p111, %p112
    %p114 = scmp.ne.s32.totalorder %s103, %s104
    %p115 = scmp.eq.s32.totalorder %s17, 0
    %p116 = por %p114, %p115
    %p117 = scmp.ne.s32.totalorder %s103, %s104
    %p118 = scmp.eq.s32.totalorder %s18, 1
    %p119 = por %p117, %p118
    %p121 = scmp.ne.s32.totalorder %s104, %s120
    %p122 = scmp.eq.s32.totalorder %s18, 0
    %p123 = por %p121, %p122
    %s125 = sadd.s32 %s124, 1
    %p128 = scmp.eq.s32.totalorder %s12, 1
    %p129 = scmp.ne.s32.totalorder %s124, %s126
    %p130 = scmp.eq.s32.totalorder %s12, 0
    %p131 = por %p129, %p130
    %p132 = scmp.ne.s32.totalorder %s124, %s126
    %p133 = scmp.eq.s32.totalorder %s17, 1
    %p134 = por %p132, %p133
    %p135 = scmp.ne.s32.totalorder %s126, %s127
    %p136 = scmp.eq.s32.totalorder %s17, 0
    %p137 = por %p135, %p136
    %p138 = scmp.ne.s32.totalorder %s126, %s127
    %p139 = scmp.eq.s32.totalorder %s18, 1
    %p140 = por %p138, %p139
    %p142 = scmp.ne.s32.totalorder %s127, %s141
    %p143 = scmp.eq.s32.totalorder %s18, 0
    %p144 = por %p142, %p143
    %s146 = sadd.s32 %s145, 1
    %p149 = scmp.eq.s32.totalorder %s12, 1
    %p150 = scmp.ne.s32.totalorder %s145, %s147
    %p151 = scmp.eq.s32.totalorder %s12, 0
    %p152 = por %p150, %p151
    %p153 = scmp.ne.s32.totalorder %s145, %s147
    %p154 = scmp.eq.s32.totalorder %s17, 1
    %p155 = por %p153, %p154
    %p156 = scmp.ne.s32.totalorder %s147, %s148
    %p157 = scmp.eq.s32.totalorder %s17, 0
    %p158 = por %p156, %p157
    %p159 = scmp.ne.s32.totalorder %s147, %s148
    %p160 = scmp.eq.s32.totalorder %s18, 1
    %p161 = por %p159, %p160
    %p163 = scmp.ne.s32.totalorder %s148, %s162
    %p164 = scmp.eq.s32.totalorder %s18, 0
    %p165 = por %p163, %p164
    %s166 = ssub.s32 %s12, %s19
    %p167 = scmp.eq.s32.totalorder %s166, 0
    %s169 = sadd.s32 %s168, 1
    %s170 = scalar_select %p167, %s168, %s169
    %p173 = pneg %p167
    %p174 = scmp.eq.s32.totalorder %s12, 1
    %p175 = por %p173, %p174
    %p176 = scmp.ne.s32.totalorder %s168, %s171
    %p177 = scmp.eq.s32.totalorder %s12, 0
    %p178 = por %p176, %p177
    %p179 = scmp.ne.s32.totalorder %s168, %s171
    %p180 = scmp.eq.s32.totalorder %s17, 1
    %p181 = por %p179, %p180
    %p182 = scmp.ne.s32.totalorder %s171, %s172
    %p183 = scmp.eq.s32.totalorder %s17, 0
    %p184 = por %p182, %p183
    %p185 = scmp.ne.s32.totalorder %s171, %s172
    %p186 = scmp.eq.s32.totalorder %s18, 1
    %p187 = por %p185, %p186
    %p189 = scmp.ne.s32.totalorder %s172, %s188
    %p190 = scmp.eq.s32.totalorder %s18, 0
    %p191 = por %p189, %p190
    %p192 = scmp.le.s32.totalorder 1, %s12
    %p193 = scmp.lt.s32.totalorder %s12, 3
    %p194 = pnand %p192, %p193
    %p195 = pneg %p194
    // Predicated region
    $region9: #{net_forward.4} parent=5 // pred_check
      _
    $region10: #{net_forward.4} parent=5 // pred_check_branch
      %197 = sbr.rel (%p194) target = $region12
    $region11: #{net_forward.4} parent=5 // pred_region
      %s198 = ssub.s32 %s12, 1
      // Predicated region
      $region13: #{net_forward.4} parent=11 // pred_check
        %p199 = pneg %p137
      $region14: #{net_forward.4} parent=11 // pred_check_branch
        %201 = sbr.rel (%p199) target = $region16
      $region15: #{net_forward.4} parent=11 // pred_region
        _
      $region16: #{net_forward.4} parent=11 // pred_fallthru
        _
      // Predicated region
      $region17: #{net_forward.4} parent=11 // pred_check
        %p202 = pneg %p158
      $region18: #{net_forward.4} parent=11 // pred_check_branch
        %204 = sbr.rel (%p202) target = $region20
      $region19: #{net_forward.4} parent=11 // pred_region
        _
      $region20: #{net_forward.4} parent=11 // pred_fallthru
        _
    $region12: #{net_forward.4} parent=5 // pred_fallthru
      _
    %p205 = scmp.lt.s32.totalorder %s12, 2
    // Predicated region
    $region21: #{net_forward.4} parent=5 // pred_check
      %p206 = pneg %p205
    $region22: #{net_forward.4} parent=5 // pred_check_branch
      %208 = sbr.rel (%p206) target = $region24
    $region23: #{net_forward.4} parent=5 // pred_region
      // Predicated region
      $region25: #{net_forward.4} parent=23 // pred_check
        %p209 = pneg %p32
      $region26: #{net_forward.4} parent=23 // pred_check_branch
        %211 = sbr.rel (%p209) target = $region28
      $region27: #{net_forward.4} parent=23 // pred_region
        %s212 = smul.u32 128, %s12
        %p213 = scmp.lt.s32.totalorder %s212, 255
        %s214 = scalar_select %p213, %s212, 255
        %s215 = smul.addr %s214, 8
        %s216 = scalar_lea.vmem %s0, %s215
        %s217 = smul.u32 128, %s12
      $region28: #{net_forward.4} parent=23 // pred_fallthru
        _
      // Predicated region
      $region29: #{net_forward.4} parent=23 // pred_check
        %p218 = pneg %p58
      $region30: #{net_forward.4} parent=23 // pred_check_branch
        %220 = sbr.rel (%p218) target = $region32
      $region31: #{net_forward.4} parent=23 // pred_region
        %s221 = smul.u32 128, %s12
        %p222 = scmp.lt.s32.totalorder %s221, 255
        %s223 = scalar_select %p222, %s221, 255
        %s224 = smul.addr %s223, 8
        %s225 = scalar_lea.vmem %s1, %s224
        %s226 = smul.u32 128, %s12
      $region32: #{net_forward.4} parent=23 // pred_fallthru
        _
      // Predicated region
      $region33: #{net_forward.4} parent=23 // pred_check
        %p227 = pneg %p84
      $region34: #{net_forward.4} parent=23 // pred_check_branch
        %229 = sbr.rel (%p227) target = $region36
      $region35: #{net_forward.4} parent=23 // pred_region
        %s230 = smul.u32 128, %s12
        %p231 = scmp.lt.s32.totalorder %s230, 255
        %s232 = scalar_select %p231, %s230, 255
        %s233 = smul.addr %s232, 8
        %s234 = scalar_lea.vmem %s2, %s233
        %s235 = smul.u32 128, %s12
      $region36: #{net_forward.4} parent=23 // pred_fallthru
        _
      // Predicated region
      $region37: #{net_forward.4} parent=23 // pred_check
        %p236 = pneg %p110
      $region38: #{net_forward.4} parent=23 // pred_check_branch
        %238 = sbr.rel (%p236) target = $region40
      $region39: #{net_forward.4} parent=23 // pred_region
        %s239 = smul.u32 128, %s12
        %p240 = scmp.lt.s32.totalorder %s239, 255
        %s241 = scalar_select %p240, %s239, 255
        %s242 = smul.addr %s241, 8
        %s243 = scalar_lea.vmem %s3, %s242
        %s244 = smul.u32 128, %s12
      $region40: #{net_forward.4} parent=23 // pred_fallthru
        _
    $region24: #{net_forward.4} parent=5 // pred_fallthru
      _
    %p245 = scmp.le.s32.totalorder 1, %s12
    %p246 = scmp.lt.s32.totalorder %s12, 3
    %p247 = pnand %p245, %p246
    %p248 = pneg %p247
    // Predicated region
    $region41: #{net_forward.4} parent=5 // pred_check
      _
    $region42: #{net_forward.4} parent=5 // pred_check_branch
      %250 = sbr.rel (%p247) target = $region44
    $region43: #{net_forward.4} parent=5 // pred_region
      %s251 = ssub.s32 %s12, 1
      %s252 = smul.u32 128, %s17
      %p253 = scmp.lt.s32.totalorder %s252, 255
      %s254 = scalar_select %p253, %s252, 255
      %s255 = smul.addr %s254, 8
      %s256 = scalar_lea.vmem %s0, %s255
      %p257 = pneg %p38
      %p258 = pneg %p35
      %s259 = smul.u32 128, %s17
      %p260 = scmp.lt.s32.totalorder %s259, 255
      %s261 = scalar_select %p260, %s259, 255
      %s262 = smul.addr %s261, 8
      %s263 = scalar_lea.vmem %s1, %s262
      %p264 = pneg %p64
      %p265 = pneg %p61
      %s266 = smul.u32 128, %s17
      %p267 = scmp.lt.s32.totalorder %s266, 255
      %s268 = scalar_select %p267, %s266, 255
      %s269 = smul.addr %s268, 8
      %s270 = scalar_lea.vmem %s2, %s269
      %p271 = pneg %p90
      %p272 = pneg %p87
      %s273 = smul.u32 128, %s17
      %p274 = scmp.lt.s32.totalorder %s273, 255
      %s275 = scalar_select %p274, %s273, 255
      %s276 = smul.addr %s275, 8
      %s277 = scalar_lea.vmem %s3, %s276
      %p278 = pneg %p116
      %p279 = pneg %p113
      %p280 = pneg %p137
      %p281 = pneg %p134
      %p282 = pneg %p158
      %p283 = pneg %p155
      %p284 = pneg %p184
      %p285 = pneg %p181
      %s286 = smul.u32 128, %s17
      %p287 = scmp.lt.s32.totalorder %s286, 255
      %s288 = scalar_select %p287, %s286, 255
      %s289 = smul.addr %s288, 8
      %s290 = scalar_lea.vmem %s6, %s289
      %s291 = smul.u32 128, %s17
      %p292 = scmp.lt.s32.totalorder %s291, 255
      %s293 = scalar_select %p292, %s291, 255
      %s294 = smul.addr %s293, 8
      %s295 = scalar_lea.vmem %s0, %s294
      %s296 = smul.u32 128, %s17
      %s297 = smul.u32 128, %s17
      %p298 = scmp.lt.s32.totalorder %s297, 255
      %s299 = scalar_select %p298, %s297, 255
      %s300 = smul.addr %s299, 8
      %s301 = scalar_lea.vmem %s1, %s300
      %s302 = smul.u32 128, %s17
      %s303 = smul.u32 128, %s17
      %p304 = scmp.lt.s32.totalorder %s303, 255
      %s305 = scalar_select %p304, %s303, 255
      %s306 = smul.addr %s305, 8
      %s307 = scalar_lea.vmem %s2, %s306
      %s308 = smul.u32 128, %s17
      %s309 = smul.u32 128, %s17
      %p310 = scmp.lt.s32.totalorder %s309, 255
      %s311 = scalar_select %p310, %s309, 255
      %s312 = smul.addr %s311, 8
      %s313 = scalar_lea.vmem %s3, %s312
      %s314 = smul.u32 128, %s17
      %s315 = smul.u32 128, %s17
      %p316 = scmp.lt.s32.totalorder %s315, 255
      %s317 = scalar_select %p316, %s315, 255
      %s318 = smul.addr %s317, 8
      %s319 = scalar_lea.vmem %s6, %s318
      %s320 = smul.u32 128, %s17
      %v321 = vld [vmem:[%s4] sm:$0xff]
      %v322 = vld [vmem:[%s4 + $0x8] sm:$0xff]
      %v323 = vld [vmem:[%s4 + $0x10] sm:$0xff]
      %v324 = vld [vmem:[%s4 + $0x18] sm:$0xff]
      %v325 = vld [vmem:[%s4 + $0x20] sm:$0xff]
      %v326 = vld [vmem:[%s4 + $0x28] sm:$0xff]
      %v327 = vld [vmem:[%s4 + $0x30] sm:$0xff]
      %v328 = vld [vmem:[%s4 + $0x38] sm:$0xff]
      %v329 = vld [vmem:[%s4 + $0x40] sm:$0xff]
      %v330 = vld [vmem:[%s4 + $0x48] sm:$0xff]
      %v331 = vld [vmem:[%s4 + $0x50] sm:$0xff]
      %v332 = vld [vmem:[%s4 + $0x58] sm:$0xff]
      %v333 = vld [vmem:[%s4 + $0x60] sm:$0xff]
      %v334 = vld [vmem:[%s4 + $0x68] sm:$0xff]
      %v335 = vld [vmem:[%s4 + $0x70] sm:$0xff]
      %v336 = vld [vmem:[%s4 + $0x78] sm:$0xff]
      %v337 = vld [vmem:[%s295] sm:$0xff]
      %v338 = vld [vmem:[%s295 + $0x8] sm:$0xff]
      %v339 = vld [vmem:[%s295 + $0x10] sm:$0xff]
      %v340 = vld [vmem:[%s295 + $0x18] sm:$0xff]
      %v341 = vld [vmem:[%s295 + $0x20] sm:$0xff]
      %v342 = vld [vmem:[%s295 + $0x28] sm:$0xff]
      %v343 = vld [vmem:[%s295 + $0x30] sm:$0xff]
      %v344 = vld [vmem:[%s295 + $0x38] sm:$0xff]
      %v345 = vld [vmem:[%s295 + $0x40] sm:$0xff]
      %v346 = vld [vmem:[%s295 + $0x48] sm:$0xff]
      %v347 = vld [vmem:[%s295 + $0x50] sm:$0xff]
      %v348 = vld [vmem:[%s295 + $0x58] sm:$0xff]
      %v349 = vld [vmem:[%s295 + $0x60] sm:$0xff]
      %v350 = vld [vmem:[%s295 + $0x68] sm:$0xff]
      %v351 = vld [vmem:[%s295 + $0x70] sm:$0xff]
      %v352 = vld [vmem:[%s295 + $0x78] sm:$0xff]
      %v353 = vld [vmem:[%s295 + $0x80] sm:$0xff]
      %v354 = vld [vmem:[%s295 + $0x88] sm:$0xff]
      %v355 = vld [vmem:[%s295 + $0x90] sm:$0xff]
      %v356 = vld [vmem:[%s295 + $0x98] sm:$0xff]
      %v357 = vld [vmem:[%s295 + $0xa0] sm:$0xff]
      %v358 = vld [vmem:[%s295 + $0xa8] sm:$0xff]
      %v359 = vld [vmem:[%s295 + $0xb0] sm:$0xff]
      %v360 = vld [vmem:[%s295 + $0xb8] sm:$0xff]
      %v361 = vld [vmem:[%s295 + $0xc0] sm:$0xff]
      %v362 = vld [vmem:[%s295 + $0xc8] sm:$0xff]
      %v363 = vld [vmem:[%s295 + $0xd0] sm:$0xff]
      %v364 = vld [vmem:[%s295 + $0xd8] sm:$0xff]
      %v365 = vld [vmem:[%s295 + $0xe0] sm:$0xff]
      %v366 = vld [vmem:[%s295 + $0xe8] sm:$0xff]
      %v367 = vld [vmem:[%s295 + $0xf0] sm:$0xff]
      %v368 = vld [vmem:[%s295 + $0xf8] sm:$0xff]
      %v369 = vld [vmem:[%s295 + $0x100] sm:$0xff]
      %v370 = vld [vmem:[%s295 + $0x108] sm:$0xff]
      %v371 = vld [vmem:[%s295 + $0x110] sm:$0xff]
      %v372 = vld [vmem:[%s295 + $0x118] sm:$0xff]
      %v373 = vld [vmem:[%s295 + $0x120] sm:$0xff]
      %v374 = vld [vmem:[%s295 + $0x128] sm:$0xff]
      %v375 = vld [vmem:[%s295 + $0x130] sm:$0xff]
      %v376 = vld [vmem:[%s295 + $0x138] sm:$0xff]
      %v377 = vld [vmem:[%s295 + $0x140] sm:$0xff]
      %v378 = vld [vmem:[%s295 + $0x148] sm:$0xff]
      %v379 = vld [vmem:[%s295 + $0x150] sm:$0xff]
      %v380 = vld [vmem:[%s295 + $0x158] sm:$0xff]
      %v381 = vld [vmem:[%s295 + $0x160] sm:$0xff]
      %v382 = vld [vmem:[%s295 + $0x168] sm:$0xff]
      %v383 = vld [vmem:[%s295 + $0x170] sm:$0xff]
      %v384 = vld [vmem:[%s295 + $0x178] sm:$0xff]
      %v385 = vld [vmem:[%s295 + $0x180] sm:$0xff]
      %v386 = vld [vmem:[%s295 + $0x188] sm:$0xff]
      %v387 = vld [vmem:[%s295 + $0x190] sm:$0xff]
      %v388 = vld [vmem:[%s295 + $0x198] sm:$0xff]
      %v389 = vld [vmem:[%s295 + $0x1a0] sm:$0xff]
      %v390 = vld [vmem:[%s295 + $0x1a8] sm:$0xff]
      %v391 = vld [vmem:[%s295 + $0x1b0] sm:$0xff]
      %v392 = vld [vmem:[%s295 + $0x1b8] sm:$0xff]
      %v393 = vld [vmem:[%s295 + $0x1c0] sm:$0xff]
      %v394 = vld [vmem:[%s295 + $0x1c8] sm:$0xff]
      %v395 = vld [vmem:[%s295 + $0x1d0] sm:$0xff]
      %v396 = vld [vmem:[%s295 + $0x1d8] sm:$0xff]
      %v397 = vld [vmem:[%s295 + $0x1e0] sm:$0xff]
      %v398 = vld [vmem:[%s295 + $0x1e8] sm:$0xff]
      %v399 = vld [vmem:[%s295 + $0x1f0] sm:$0xff]
      %v400 = vld [vmem:[%s295 + $0x1f8] sm:$0xff]
      %v401 = vld [vmem:[%s295 + $0x200] sm:$0xff]
      %v402 = vld [vmem:[%s295 + $0x208] sm:$0xff]
      %v403 = vld [vmem:[%s295 + $0x210] sm:$0xff]
      %v404 = vld [vmem:[%s295 + $0x218] sm:$0xff]
      %v405 = vld [vmem:[%s295 + $0x220] sm:$0xff]
      %v406 = vld [vmem:[%s295 + $0x228] sm:$0xff]
      %v407 = vld [vmem:[%s295 + $0x230] sm:$0xff]
      %v408 = vld [vmem:[%s295 + $0x238] sm:$0xff]
      %v409 = vld [vmem:[%s295 + $0x240] sm:$0xff]
      %v410 = vld [vmem:[%s295 + $0x248] sm:$0xff]
      %v411 = vld [vmem:[%s295 + $0x250] sm:$0xff]
      %v412 = vld [vmem:[%s295 + $0x258] sm:$0xff]
      %v413 = vld [vmem:[%s295 + $0x260] sm:$0xff]
      %v414 = vld [vmem:[%s295 + $0x268] sm:$0xff]
      %v415 = vld [vmem:[%s295 + $0x270] sm:$0xff]
      %v416 = vld [vmem:[%s295 + $0x278] sm:$0xff]
      %v417 = vld [vmem:[%s295 + $0x280] sm:$0xff]
      %v418 = vld [vmem:[%s295 + $0x288] sm:$0xff]
      %v419 = vld [vmem:[%s295 + $0x290] sm:$0xff]
      %v420 = vld [vmem:[%s295 + $0x298] sm:$0xff]
      %v421 = vld [vmem:[%s295 + $0x2a0] sm:$0xff]
      %v422 = vld [vmem:[%s295 + $0x2a8] sm:$0xff]
      %v423 = vld [vmem:[%s295 + $0x2b0] sm:$0xff]
      %v424 = vld [vmem:[%s295 + $0x2b8] sm:$0xff]
      %v425 = vld [vmem:[%s295 + $0x2c0] sm:$0xff]
      %v426 = vld [vmem:[%s295 + $0x2c8] sm:$0xff]
      %v427 = vld [vmem:[%s295 + $0x2d0] sm:$0xff]
      %v428 = vld [vmem:[%s295 + $0x2d8] sm:$0xff]
      %v429 = vld [vmem:[%s295 + $0x2e0] sm:$0xff]
      %v430 = vld [vmem:[%s295 + $0x2e8] sm:$0xff]
      %v431 = vld [vmem:[%s295 + $0x2f0] sm:$0xff]
      %v432 = vld [vmem:[%s295 + $0x2f8] sm:$0xff]
      %v433 = vld [vmem:[%s295 + $0x300] sm:$0xff]
      %v434 = vld [vmem:[%s295 + $0x308] sm:$0xff]
      %v435 = vld [vmem:[%s295 + $0x310] sm:$0xff]
      %v436 = vld [vmem:[%s295 + $0x318] sm:$0xff]
      %v437 = vld [vmem:[%s295 + $0x320] sm:$0xff]
      %v438 = vld [vmem:[%s295 + $0x328] sm:$0xff]
      %v439 = vld [vmem:[%s295 + $0x330] sm:$0xff]
      %v440 = vld [vmem:[%s295 + $0x338] sm:$0xff]
      %v441 = vld [vmem:[%s295 + $0x340] sm:$0xff]
      %v442 = vld [vmem:[%s295 + $0x348] sm:$0xff]
      %v443 = vld [vmem:[%s295 + $0x350] sm:$0xff]
      %v444 = vld [vmem:[%s295 + $0x358] sm:$0xff]
      %v445 = vld [vmem:[%s295 + $0x360] sm:$0xff]
      %v446 = vld [vmem:[%s295 + $0x368] sm:$0xff]
      %v447 = vld [vmem:[%s295 + $0x370] sm:$0xff]
      %v448 = vld [vmem:[%s295 + $0x378] sm:$0xff]
      %v449 = vld [vmem:[%s295 + $0x380] sm:$0xff]
      %v450 = vld [vmem:[%s295 + $0x388] sm:$0xff]
      %v451 = vld [vmem:[%s295 + $0x390] sm:$0xff]
      %v452 = vld [vmem:[%s295 + $0x398] sm:$0xff]
      %v453 = vld [vmem:[%s295 + $0x3a0] sm:$0xff]
      %v454 = vld [vmem:[%s295 + $0x3a8] sm:$0xff]
      %v455 = vld [vmem:[%s295 + $0x3b0] sm:$0xff]
      %v456 = vld [vmem:[%s295 + $0x3b8] sm:$0xff]
      %v457 = vld [vmem:[%s295 + $0x3c0] sm:$0xff]
      %v458 = vld [vmem:[%s295 + $0x3c8] sm:$0xff]
      %v459 = vld [vmem:[%s295 + $0x3d0] sm:$0xff]
      %v460 = vld [vmem:[%s295 + $0x3d8] sm:$0xff]
      %v461 = vld [vmem:[%s295 + $0x3e0] sm:$0xff]
      %v462 = vld [vmem:[%s295 + $0x3e8] sm:$0xff]
      %v463 = vld [vmem:[%s295 + $0x3f0] sm:$0xff]
      %v464 = vld [vmem:[%s295 + $0x3f8] sm:$0xff]
      %465 = vmatprep.subr.mxu0 0.0
      %466 = vmatpush1.msra.mxu0 %v321
      %467 = vmatprep.subr.mxu0 0.0
      %468 = vmatpush1.msra.mxu0 %v322
      %469 = vmatprep.subr.mxu0 0.0
      %470 = vmatpush1.msra.mxu0 %v323
      %471 = vmatprep.subr.mxu0 0.0
      %472 = vmatpush1.msra.mxu0 %v324
      %473 = vmatprep.subr.mxu0 0.0
      %474 = vmatpush1.msra.mxu0 %v325
      %475 = vmatprep.subr.mxu0 0.0
      %476 = vmatpush1.msra.mxu0 %v326
      %477 = vmatprep.subr.mxu0 0.0
      %478 = vmatpush1.msra.mxu0 %v327
      %479 = vmatprep.subr.mxu0 0.0
      %480 = vmatpush1.msra.mxu0 %v328
      %481 = vmatprep.subr.mxu0 0.0
      %482 = vmatpush1.msra.mxu0 %v329
      %483 = vmatprep.subr.mxu0 0.0
      %484 = vmatpush1.msra.mxu0 %v330
      %485 = vmatprep.subr.mxu0 0.0
      %486 = vmatpush1.msra.mxu0 %v331
      %487 = vmatprep.subr.mxu0 0.0
      %488 = vmatpush1.msra.mxu0 %v332
      %489 = vmatprep.subr.mxu0 0.0
      %490 = vmatpush1.msra.mxu0 %v333
      %491 = vmatprep.subr.mxu0 0.0
      %492 = vmatpush1.msra.mxu0 %v334
      %493 = vmatprep.subr.mxu0 0.0
      %494 = vmatpush1.msra.mxu0 %v335
      %495 = vmatprep.subr.mxu0 0.0
      %496 = vmatpush1.msra.mxu0 %v336
      %497 = vmatprep.subr.mxu0 0.0
      %498 = vmatpush1.msra.mxu0 0.0
      %499 = vmatprep.subr.mxu0 0.0
      %500 = vmatpush1.msra.mxu0 0.0
      %501 = vmatprep.subr.mxu0 0.0
      %502 = vmatpush1.msra.mxu0 0.0
      %503 = vmatprep.subr.mxu0 0.0
      %504 = vmatpush1.msra.mxu0 0.0
      %505 = vmatprep.subr.mxu0 0.0
      %506 = vmatpush1.msra.mxu0 0.0
      %507 = vmatprep.subr.mxu0 0.0
      %508 = vmatpush1.msra.mxu0 0.0
      %509 = vmatprep.subr.mxu0 0.0
      %510 = vmatpush1.msra.mxu0 0.0
      %511 = vmatprep.subr.mxu0 0.0
      %512 = vmatpush1.msra.mxu0 0.0
      %513 = vmatprep.subr.mxu0 0.0
      %514 = vmatpush1.msra.mxu0 0.0
      %515 = vmatprep.subr.mxu0 0.0
      %516 = vmatpush1.msra.mxu0 0.0
      %517 = vmatprep.subr.mxu0 0.0
      %518 = vmatpush1.msra.mxu0 0.0
      %519 = vmatprep.subr.mxu0 0.0
      %520 = vmatpush1.msra.mxu0 0.0
      %521 = vmatprep.subr.mxu0 0.0
      %522 = vmatpush1.msra.mxu0 0.0
      %523 = vmatprep.subr.mxu0 0.0
      %524 = vmatpush1.msra.mxu0 0.0
      %525 = vmatprep.subr.mxu0 0.0
      %526 = vmatpush1.msra.mxu0 0.0
      %527 = vmatprep.subr.mxu0 0.0
      %528 = vmatpush1.msra.mxu0 0.0
      %529 = vmatprep.mubr.f32.mxu0 0.0
      %530 = vmatmul.mubr.f32.gmra.mrb[0].mxu0 %v337
      %v531 = vpop.f32.mrb[0].mxu0
      %v532 = vadd.f32 0.0, %v531
      %v533 = vpop.f32.mrb[0].mxu0
      %534 = vmatprep.mubr.f32.mxu0 0.0
      %535 = vmatmul.mubr.f32.gmra.mrb[0].mxu0 %v338
      %v536 = vpop.f32.mrb[0].mxu0
      %v537 = vadd.f32 0.0, %v536
      %v538 = vpop.f32.mrb[0].mxu0
      %539 = vmatprep.mubr.f32.mxu0 0.0
      %540 = vmatmul.mubr.f32.gmra.mrb[0].mxu0 %v339
      %v541 = vpop.f32.mrb[0].mxu0
      %v542 = vadd.f32 0.0, %v541
      %v543 = vpop.f32.mrb[0].mxu0
      %544 = vmatprep.mubr.f32.mxu0 0.0
      %545 = vmatmul.mubr.f32.gmra.mrb[0].mxu0 %v340
      %v546 = vpop.f32.mrb[0].mxu0
      %v547 = vadd.f32 0.0, %v546
      %v548 = vpop.f32.mrb[0].mxu0
      %549 = vmatprep.mubr.f32.mxu0 0.0
      %550 = vmatmul.mubr.f32.gmra.mrb[0].mxu0 %v341
      %v551 = vpop.f32.mrb[0].mxu0
      %v552 = vadd.f32 0.0, %v551
      %v553 = vpop.f32.mrb[0].mxu0
      %554 = vmatprep.mubr.f32.mxu0 0.0
      %555 = vmatmul.mubr.f32.gmra.mrb[0].mxu0 %v342
      %v556 = vpop.f32.mrb[0].mxu0
      %v557 = vadd.f32 0.0, %v556
      %v558 = vpop.f32.mrb[0].mxu0
      %559 = vmatprep.mubr.f32.mxu0 0.0
      %560 = vmatmul.mubr.f32.gmra.mrb[0].mxu0 %v343
      %v561 = vpop.f32.mrb[0].mxu0
      %v562 = vadd.f32 0.0, %v561
      %v563 = vpop.f32.mrb[0].mxu0
      %564 = vmatprep.mubr.f32.mxu0 0.0
      %565 = vmatmul.mubr.f32.gmra.mrb[0].mxu0 %v344
      %v566 = vpop.f32.mrb[0].mxu0
      %v567 = vadd.f32 0.0, %v566
      %v568 = vpop.f32.mrb[0].mxu0
      %569 = vmatprep.mubr.f32.mxu0 0.0
      %570 = vmatmul.mubr.f32.gmra.mrb[0].mxu0 %v345
      %v571 = vpop.f32.mrb[0].mxu0
      %v572 = vadd.f32 0.0, %v571
      %v573 = vpop.f32.mrb[0].mxu0
      %574 = vmatprep.mubr.f32.mxu0 0.0
      %575 = vmatmul.mubr.f32.gmra.mrb[0].mxu0 %v346
      %v576 = vpop.f32.mrb[0].mxu0
      %v577 = vadd.f32 0.0, %v576
      %v578 = vpop.f32.mrb[0].mxu0
      %579 = vmatprep.mubr.f32.mxu0 0.0
      %580 = vmatmul.mubr.f32.gmra.mrb[0].mxu0 %v347
      %v581 = vpop.f32.mrb[0].mxu0
      %v582 = vadd.f32 0.0, %v581
      %v583 = vpop.f32.mrb[0].mxu0
      %584 = vmatprep.mubr.f32.mxu0 0.0
      %585 = vmatmul.mubr.f32.gmra.mrb[0].mxu0 %v348
      %v586 = vpop.f32.mrb[0].mxu0
      %v587 = vadd.f32 0.0, %v586
      %v588 = vpop.f32.mrb[0].mxu0
      %589 = vmatprep.mubr.f32.mxu0 0.0
      %590 = vmatmul.mubr.f32.gmra.mrb[0].mxu0 %v349
      %v591 = vpop.f32.mrb[0].mxu0
      %v592 = vadd.f32 0.0, %v591
      %v593 = vpop.f32.mrb[0].mxu0
      %594 = vmatprep.mubr.f32.mxu0 0.0
      %595 = vmatmul.mubr.f32.gmra.mrb[0].mxu0 %v350
      %v596 = vpop.f32.mrb[0].mxu0
      %v597 = vadd.f32 0.0, %v596
      %v598 = vpop.f32.mrb[0].mxu0
      %599 = vmatprep.mubr.f32.mxu0 0.0
      %600 = vmatmul.mubr.f32.gmra.mrb[0].mxu0 %v351
      %v601 = vpop.f32.mrb[0].mxu0
      %v602 = vadd.f32 0.0, %v601
      %v603 = vpop.f32.mrb[0].mxu0
      %604 = vmatprep.mubr.f32.mxu0 0.0
      %605 = vmatmul.mubr.f32.gmra.mrb[0].mxu0 %v352
      %v606 = vpop.f32.mrb[0].mxu0
      %v607 = vadd.f32 0.0, %v606
      %v608 = vpop.f32.mrb[0].mxu0
      %609 = vmatprep.mubr.f32.mxu0 0.0
      %610 = vmatmul.mubr.f32.gmra.mrb[0].mxu0 %v353
      %v611 = vpop.f32.mrb[0].mxu0
      %v612 = vadd.f32 0.0, %v611
      %v613 = vpop.f32.mrb[0].mxu0
      %614 = vmatprep.mubr.f32.mxu0 0.0
      %615 = vmatmul.mubr.f32.gmra.mrb[0].mxu0 %v354
      %v616 = vpop.f32.mrb[0].mxu0
      %v617 = vadd.f32 0.0, %v616
      %v618 = vpop.f32.mrb[0].mxu0
      %619 = vmatprep.mubr.f32.mxu0 0.0
      %620 = vmatmul.mubr.f32.gmra.mrb[0].mxu0 %v355
      %v621 = vpop.f32.mrb[0].mxu0
      %v622 = vadd.f32 0.0, %v621
      %v623 = vpop.f32.mrb[0].mxu0
      %624 = vmatprep.mubr.f32.mxu0 0.0
      %625 = vmatmul.mubr.f32.gmra.mrb[0].mxu0 %v356
      %v626 = vpop.f32.mrb[0].mxu0
      %v627 = vadd.f32 0.0, %v626
      %v628 = vpop.f32.mrb[0].mxu0
      %629 = vmatprep.mubr.f32.mxu0 0.0
      %630 = vmatmul.mubr.f32.gmra.mrb[0].mxu0 %v357
      %v631 = vpop.f32.mrb[0].mxu0
      %v632 = vadd.f32 0.0, %v631
      %v633 = vpop.f32.mrb[0].mxu0
      %634 = vmatprep.mubr.f32.mxu0 0.0
      %635 = vmatmul.mubr.f32.gmra.mrb[0].mxu0 %v358
      %v636 = vpop.f32.mrb[0].mxu0
      %v637 = vadd.f32 0.0, %v636
      %v638 = vpop.f32.mrb[0].mxu0
      %639 = vmatprep.mubr.f32.mxu0 0.0
      %640 = vmatmul.mubr.f32.gmra.mrb[0].mxu0 %v359
      %v641 = vpop.f32.mrb[0].mxu0
      %v642 = vadd.f32 0.0, %v641
      %v643 = vpop.f32.mrb[0].mxu0
      %644 = vmatprep.mubr.f32.mxu0 0.0
      %645 = vmatmul.mubr.f32.gmra.mrb[0].mxu0 %v360
      %v646 = vpop.f32.mrb[0].mxu0
      %v647 = vadd.f32 0.0, %v646
      %v648 = vpop.f32.mrb[0].mxu0
      %649 = vmatprep.mubr.f32.mxu0 0.0
      %650 = vmatmul.mubr.f32.gmra.mrb[0].mxu0 %v361
      %v651 = vpop.f32.mrb[0].mxu0
      %v652 = vadd.f32 0.0, %v651
      %v653 = vpop.f32.mrb[0].mxu0
      %654 = vmatprep.mubr.f32.mxu0 0.0
      %655 = vmatmul.mubr.f32.gmra.mrb[0].mxu0 %v362
      %v656 = vpop.f32.mrb[0].mxu0
      %v657 = vadd.f32 0.0, %v656
      %v658 = vpop.f32.mrb[0].mxu0
      %659 = vmatprep.mubr.f32.mxu0 0.0
      %660 = vmatmul.mubr.f32.gmra.mrb[0].mxu0 %v363
      %v661 = vpop.f32.mrb[0].mxu0
      %v662 = vadd.f32 0.0, %v661
      %v663 = vpop.f32.mrb[0].mxu0
      %664 = vmatprep.mubr.f32.mxu0 0.0
      %665 = vmatmul.mubr.f32.gmra.mrb[0].mxu0 %v364
      %v666 = vpop.f32.mrb[0].mxu0
      %v667 = vadd.f32 0.0, %v666
      %v668 = vpop.f32.mrb[0].mxu0
      %669 = vmatprep.mubr.f32.mxu0 0.0
      %670 = vmatmul.mubr.f32.gmra.mrb[0].mxu0 %v365
      %v671 = vpop.f32.mrb[0].mxu0
      %v672 = vadd.f32 0.0, %v671
      %v673 = vpop.f32.mrb[0].mxu0
      %674 = vmatprep.mubr.f32.mxu0 0.0
      %675 = vmatmul.mubr.f32.gmra.mrb[0].mxu0 %v366
      %v676 = vpop.f32.mrb[0].mxu0
      %v677 = vadd.f32 0.0, %v676
      %v678 = vpop.f32.mrb[0].mxu0
      %679 = vmatprep.mubr.f32.mxu0 0.0
      %680 = vmatmul.mubr.f32.gmra.mrb[0].mxu0 %v367
      %v681 = vpop.f32.mrb[0].mxu0
      %v682 = vadd.f32 0.0, %v681
      %v683 = vpop.f32.mrb[0].mxu0
      %684 = vmatprep.mubr.f32.mxu0 0.0
      %685 = vmatmul.mubr.f32.gmra.mrb[0].mxu0 %v368
      %v686 = vpop.f32.mrb[0].mxu0
      %v687 = vadd.f32 0.0, %v686
      %v688 = vpop.f32.mrb[0].mxu0
      %689 = vmatprep.mubr.f32.mxu0 0.0
      %690 = vmatmul.mubr.f32.gmra.mrb[0].mxu0 %v369
      %v691 = vpop.f32.mrb[0].mxu0
      %v692 = vadd.f32 0.0, %v691
      %v693 = vpop.f32.mrb[0].mxu0
      %694 = vmatprep.mubr.f32.mxu0 0.0
      %695 = vmatmul.mubr.f32.gmra.mrb[0].mxu0 %v370
      %v696 = vpop.f32.mrb[0].mxu0
      %v697 = vadd.f32 0.0, %v696
      %v698 = vpop.f32.mrb[0].mxu0
      %699 = vmatprep.mubr.f32.mxu0 0.0
      %700 = vmatmul.mubr.f32.gmra.mrb[0].mxu0 %v371
      %v701 = vpop.f32.mrb[0].mxu0
      %v702 = vadd.f32 0.0, %v701
      %v703 = vpop.f32.mrb[0].mxu0
      %704 = vmatprep.mubr.f32.mxu0 0.0
      %705 = vmatmul.mubr.f32.gmra.mrb[0].mxu0 %v372
      %v706 = vpop.f32.mrb[0].mxu0
      %v707 = vadd.f32 0.0, %v706
      %v708 = vpop.f32.mrb[0].mxu0
      %709 = vmatprep.mubr.f32.mxu0 0.0
      %710 = vmatmul.mubr.f32.gmra.mrb[0].mxu0 %v373
      %v711 = vpop.f32.mrb[0].mxu0
      %v712 = vadd.f32 0.0, %v711
      %v713 = vpop.f32.mrb[0].mxu0
      %714 = vmatprep.mubr.f32.mxu0 0.0
      %715 = vmatmul.mubr.f32.gmra.mrb[0].mxu0 %v374
      %v716 = vpop.f32.mrb[0].mxu0
      %v717 = vadd.f32 0.0, %v716
      %v718 = vpop.f32.mrb[0].mxu0
      %719 = vmatprep.mubr.f32.mxu0 0.0
      %720 = vmatmul.mubr.f32.gmra.mrb[0].mxu0 %v375
      %v721 = vpop.f32.mrb[0].mxu0
      %v722 = vadd.f32 0.0, %v721
      %v723 = vpop.f32.mrb[0].mxu0
      %724 = vmatprep.mubr.f32.mxu0 0.0
      %725 = vmatmul.mubr.f32.gmra.mrb[0].mxu0 %v376
      %v726 = vpop.f32.mrb[0].mxu0
      %v727 = vadd.f32 0.0, %v726
      %v728 = vpop.f32.mrb[0].mxu0
      %729 = vmatprep.mubr.f32.mxu0 0.0
      %730 = vmatmul.mubr.f32.gmra.mrb[0].mxu0 %v377
      %v731 = vpop.f32.mrb[0].mxu0
      %v732 = vadd.f32 0.0, %v731
      %v733 = vpop.f32.mrb[0].mxu0
      %734 = vmatprep.mubr.f32.mxu0 0.0
      %735 = vmatmul.mubr.f32.gmra.mrb[0].mxu0 %v378
      %v736 = vpop.f32.mrb[0].mxu0
      %v737 = vadd.f32 0.0, %v736
      %v738 = vpop.f32.mrb[0].mxu0
      %739 = vmatprep.mubr.f32.mxu0 0.0
      %740 = vmatmul.mubr.f32.gmra.mrb[0].mxu0 %v379
      %v741 = vpop.f32.mrb[0].mxu0
      %v742 = vadd.f32 0.0, %v741
      %v743 = vpop.f32.mrb[0].mxu0
      %744 = vmatprep.mubr.f32.mxu0 0.0
      %745 = vmatmul.mubr.f32.gmra.mrb[0].mxu0 %v380
      %v746 = vpop.f32.mrb[0].mxu0
      %v747 = vadd.f32 0.0, %v746
      %v748 = vpop.f32.mrb[0].mxu0
      %749 = vmatprep.mubr.f32.mxu0 0.0
      %750 = vmatmul.mubr.f32.gmra.mrb[0].mxu0 %v381
      %v751 = vpop.f32.mrb[0].mxu0
      %v752 = vadd.f32 0.0, %v751
      %v753 = vpop.f32.mrb[0].mxu0
      %754 = vmatprep.mubr.f32.mxu0 0.0
      %755 = vmatmul.mubr.f32.gmra.mrb[0].mxu0 %v382
      %v756 = vpop.f32.mrb[0].mxu0
      %v757 = vadd.f32 0.0, %v756
      %v758 = vpop.f32.mrb[0].mxu0
      %759 = vmatprep.mubr.f32.mxu0 0.0
      %760 = vmatmul.mubr.f32.gmra.mrb[0].mxu0 %v383
      %v761 = vpop.f32.mrb[0].mxu0
      %v762 = vadd.f32 0.0, %v761
      %v763 = vpop.f32.mrb[0].mxu0
      %764 = vmatprep.mubr.f32.mxu0 0.0
      %765 = vmatmul.mubr.f32.gmra.mrb[0].mxu0 %v384
      %v766 = vpop.f32.mrb[0].mxu0
      %v767 = vadd.f32 0.0, %v766
      %v768 = vpop.f32.mrb[0].mxu0
      %769 = vmatprep.mubr.f32.mxu0 0.0
      %770 = vmatmul.mubr.f32.gmra.mrb[0].mxu0 %v385
      %v771 = vpop.f32.mrb[0].mxu0
      %v772 = vadd.f32 0.0, %v771
      %v773 = vpop.f32.mrb[0].mxu0
      %774 = vmatprep.mubr.f32.mxu0 0.0
      %775 = vmatmul.mubr.f32.gmra.mrb[0].mxu0 %v386
      %v776 = vpop.f32.mrb[0].mxu0
      %v777 = vadd.f32 0.0, %v776
      %v778 = vpop.f32.mrb[0].mxu0
      %779 = vmatprep.mubr.f32.mxu0 0.0
      %780 = vmatmul.mubr.f32.gmra.mrb[0].mxu0 %v387
      %v781 = vpop.f32.mrb[0].mxu0
      %v782 = vadd.f32 0.0, %v781
      %v783 = vpop.f32.mrb[0].mxu0
      %784 = vmatprep.mubr.f32.mxu0 0.0
      %785 = vmatmul.mubr.f32.gmra.mrb[0].mxu0 %v388
      %v786 = vpop.f32.mrb[0].mxu0
      %v787 = vadd.f32 0.0, %v786
      %v788 = vpop.f32.mrb[0].mxu0
      %789 = vmatprep.mubr.f32.mxu0 0.0
      %790 = vmatmul.mubr.f32.gmra.mrb[0].mxu0 %v389
      %v791 = vpop.f32.mrb[0].mxu0
      %v792 = vadd.f32 0.0, %v791
      %v793 = vpop.f32.mrb[0].mxu0
      %794 = vmatprep.mubr.f32.mxu0 0.0
      %795 = vmatmul.mubr.f32.gmra.mrb[0].mxu0 %v390
      %v796 = vpop.f32.mrb[0].mxu0
      %v797 = vadd.f32 0.0, %v796
      %v798 = vpop.f32.mrb[0].mxu0
      %799 = vmatprep.mubr.f32.mxu0 0.0
      %800 = vmatmul.mubr.f32.gmra.mrb[0].mxu0 %v391
      %v801 = vpop.f32.mrb[0].mxu0
      %v802 = vadd.f32 0.0, %v801
      %v803 = vpop.f32.mrb[0].mxu0
      %804 = vmatprep.mubr.f32.mxu0 0.0
      %805 = vmatmul.mubr.f32.gmra.mrb[0].mxu0 %v392
      %v806 = vpop.f32.mrb[0].mxu0
      %v807 = vadd.f32 0.0, %v806
      %v808 = vpop.f32.mrb[0].mxu0
      %809 = vmatprep.mubr.f32.mxu0 0.0
      %810 = vmatmul.mubr.f32.gmra.mrb[0].mxu0 %v393
      %v811 = vpop.f32.mrb[0].mxu0
      %v812 = vadd.f32 0.0, %v811
      %v813 = vpop.f32.mrb[0].mxu0
      %814 = vmatprep.mubr.f32.mxu0 0.0
      %815 = vmatmul.mubr.f32.gmra.mrb[0].mxu0 %v394
      %v816 = vpop.f32.mrb[0].mxu0
      %v817 = vadd.f32 0.0, %v816
      %v818 = vpop.f32.mrb[0].mxu0
      %819 = vmatprep.mubr.f32.mxu0 0.0
      %820 = vmatmul.mubr.f32.gmra.mrb[0].mxu0 %v395
      %v821 = vpop.f32.mrb[0].mxu0
      %v822 = vadd.f32 0.0, %v821
      %v823 = vpop.f32.mrb[0].mxu0
      %824 = vmatprep.mubr.f32.mxu0 0.0
      %825 = vmatmul.mubr.f32.gmra.mrb[0].mxu0 %v396
      %v826 = vpop.f32.mrb[0].mxu0
      %v827 = vadd.f32 0.0, %v826
      %v828 = vpop.f32.mrb[0].mxu0
      %829 = vmatprep.mubr.f32.mxu0 0.0
      %830 = vmatmul.mubr.f32.gmra.mrb[0].mxu0 %v397
      %v831 = vpop.f32.mrb[0].mxu0
      %v832 = vadd.f32 0.0, %v831
      %v833 = vpop.f32.mrb[0].mxu0
      %834 = vmatprep.mubr.f32.mxu0 0.0
      %835 = vmatmul.mubr.f32.gmra.mrb[0].mxu0 %v398
      %v836 = vpop.f32.mrb[0].mxu0
      %v837 = vadd.f32 0.0, %v836
      %v838 = vpop.f32.mrb[0].mxu0
      %839 = vmatprep.mubr.f32.mxu0 0.0
      %840 = vmatmul.mubr.f32.gmra.mrb[0].mxu0 %v399
      %v841 = vpop.f32.mrb[0].mxu0
      %v842 = vadd.f32 0.0, %v841
      %v843 = vpop.f32.mrb[0].mxu0
      %844 = vmatprep.mubr.f32.mxu0 0.0
      %845 = vmatmul.mubr.f32.gmra.mrb[0].mxu0 %v400
      %v846 = vpop.f32.mrb[0].mxu0
      %v847 = vadd.f32 0.0, %v846
      %v848 = vpop.f32.mrb[0].mxu0
      %849 = vmatprep.mubr.f32.mxu0 0.0
      %850 = vmatmul.mubr.f32.gmra.mrb[0].mxu0 %v401
      %v851 = vpop.f32.mrb[0].mxu0
      %v852 = vadd.f32 0.0, %v851
      %v853 = vpop.f32.mrb[0].mxu0
      %854 = vmatprep.mubr.f32.mxu0 0.0
      %855 = vmatmul.mubr.f32.gmra.mrb[0].mxu0 %v402
      %v856 = vpop.f32.mrb[0].mxu0
      %v857 = vadd.f32 0.0, %v856
      %v858 = vpop.f32.mrb[0].mxu0
      %859 = vmatprep.mubr.f32.mxu0 0.0
      %860 = vmatmul.mubr.f32.gmra.mrb[0].mxu0 %v403
      %v861 = vpop.f32.mrb[0].mxu0
      %v862 = vadd.f32 0.0, %v861
      %v863 = vpop.f32.mrb[0].mxu0
      %864 = vmatprep.mubr.f32.mxu0 0.0
      %865 = vmatmul.mubr.f32.gmra.mrb[0].mxu0 %v404
      %v866 = vpop.f32.mrb[0].mxu0
      %v867 = vadd.f32 0.0, %v866
      %v868 = vpop.f32.mrb[0].mxu0
      %869 = vmatprep.mubr.f32.mxu0 0.0
      %870 = vmatmul.mubr.f32.gmra.mrb[0].mxu0 %v405
      %v871 = vpop.f32.mrb[0].mxu0
      %v872 = vadd.f32 0.0, %v871
      %v873 = vpop.f32.mrb[0].mxu0
      %874 = vmatprep.mubr.f32.mxu0 0.0
      %875 = vmatmul.mubr.f32.gmra.mrb[0].mxu0 %v406
      %v876 = vpop.f32.mrb[0].mxu0
      %v877 = vadd.f32 0.0, %v876
      %v878 = vpop.f32.mrb[0].mxu0
      %879 = vmatprep.mubr.f32.mxu0 0.0
      %880 = vmatmul.mubr.f32.gmra.mrb[0].mxu0 %v407
      %v881 = vpop.f32.mrb[0].mxu0
      %v882 = vadd.f32 0.0, %v881
      %v883 = vpop.f32.mrb[0].mxu0
      %884 = vmatprep.mubr.f32.mxu0 0.0
      %885 = vmatmul.mubr.f32.gmra.mrb[0].mxu0 %v408
      %v886 = vpop.f32.mrb[0].mxu0
      %v887 = vadd.f32 0.0, %v886
      %v888 = vpop.f32.mrb[0].mxu0
      %889 = vmatprep.mubr.f32.mxu0 0.0
      %890 = vmatmul.mubr.f32.gmra.mrb[0].mxu0 %v409
      %v891 = vpop.f32.mrb[0].mxu0
      %v892 = vadd.f32 0.0, %v891
      %v893 = vpop.f32.mrb[0].mxu0
      %894 = vmatprep.mubr.f32.mxu0 0.0
      %895 = vmatmul.mubr.f32.gmra.mrb[0].mxu0 %v410
      %v896 = vpop.f32.mrb[0].mxu0
      %v897 = vadd.f32 0.0, %v896
      %v898 = vpop.f32.mrb[0].mxu0
      %899 = vmatprep.mubr.f32.mxu0 0.0
      %900 = vmatmul.mubr.f32.gmra.mrb[0].mxu0 %v411
      %v901 = vpop.f32.mrb[0].mxu0
      %v902 = vadd.f32 0.0, %v901
      %v903 = vpop.f32.mrb[0].mxu0
      %904 = vmatprep.mubr.f32.mxu0 0.0
      %905 = vmatmul.mubr.f32.gmra.mrb[0].mxu0 %v412
      %v906 = vpop.f32.mrb[0].mxu0
      %v907 = vadd.f32 0.0, %v906
      %v908 = vpop.f32.mrb[0].mxu0
      %909 = vmatprep.mubr.f32.mxu0 0.0
      %910 = vmatmul.mubr.f32.gmra.mrb[0].mxu0 %v413
      %v911 = vpop.f32.mrb[0].mxu0
      %v912 = vadd.f32 0.0, %v911
      %v913 = vpop.f32.mrb[0].mxu0
      %914 = vmatprep.mubr.f32.mxu0 0.0
      %915 = vmatmul.mubr.f32.gmra.mrb[0].mxu0 %v414
      %v916 = vpop.f32.mrb[0].mxu0
      %v917 = vadd.f32 0.0, %v916
      %v918 = vpop.f32.mrb[0].mxu0
      %919 = vmatprep.mubr.f32.mxu0 0.0
      %920 = vmatmul.mubr.f32.gmra.mrb[0].mxu0 %v415
      %v921 = vpop.f32.mrb[0].mxu0
      %v922 = vadd.f32 0.0, %v921
      %v923 = vpop.f32.mrb[0].mxu0
      %924 = vmatprep.mubr.f32.mxu0 0.0
      %925 = vmatmul.mubr.f32.gmra.mrb[0].mxu0 %v416
      %v926 = vpop.f32.mrb[0].mxu0
      %v927 = vadd.f32 0.0, %v926
      %v928 = vpop.f32.mrb[0].mxu0
      %929 = vmatprep.mubr.f32.mxu0 0.0
      %930 = vmatmul.mubr.f32.gmra.mrb[0].mxu0 %v417
      %v931 = vpop.f32.mrb[0].mxu0
      %v932 = vadd.f32 0.0, %v931
      %v933 = vpop.f32.mrb[0].mxu0
      %934 = vmatprep.mubr.f32.mxu0 0.0
      %935 = vmatmul.mubr.f32.gmra.mrb[0].mxu0 %v418
      %v936 = vpop.f32.mrb[0].mxu0
      %v937 = vadd.f32 0.0, %v936
      %v938 = vpop.f32.mrb[0].mxu0
      %939 = vmatprep.mubr.f32.mxu0 0.0
      %940 = vmatmul.mubr.f32.gmra.mrb[0].mxu0 %v419
      %v941 = vpop.f32.mrb[0].mxu0
      %v942 = vadd.f32 0.0, %v941
      %v943 = vpop.f32.mrb[0].mxu0
      %944 = vmatprep.mubr.f32.mxu0 0.0
      %945 = vmatmul.mubr.f32.gmra.mrb[0].mxu0 %v420
      %v946 = vpop.f32.mrb[0].mxu0
      %v947 = vadd.f32 0.0, %v946
      %v948 = vpop.f32.mrb[0].mxu0
      %949 = vmatprep.mubr.f32.mxu0 0.0
      %950 = vmatmul.mubr.f32.gmra.mrb[0].mxu0 %v421
      %v951 = vpop.f32.mrb[0].mxu0
      %v952 = vadd.f32 0.0, %v951
      %v953 = vpop.f32.mrb[0].mxu0
      %954 = vmatprep.mubr.f32.mxu0 0.0
      %955 = vmatmul.mubr.f32.gmra.mrb[0].mxu0 %v422
      %v956 = vpop.f32.mrb[0].mxu0
      %v957 = vadd.f32 0.0, %v956
      %v958 = vpop.f32.mrb[0].mxu0
      %959 = vmatprep.mubr.f32.mxu0 0.0
      %960 = vmatmul.mubr.f32.gmra.mrb[0].mxu0 %v423
      %v961 = vpop.f32.mrb[0].mxu0
      %v962 = vadd.f32 0.0, %v961
      %v963 = vpop.f32.mrb[0].mxu0
      %964 = vmatprep.mubr.f32.mxu0 0.0
      %965 = vmatmul.mubr.f32.gmra.mrb[0].mxu0 %v424
      %v966 = vpop.f32.mrb[0].mxu0
      %v967 = vadd.f32 0.0, %v966
      %v968 = vpop.f32.mrb[0].mxu0
      %969 = vmatprep.mubr.f32.mxu0 0.0
      %970 = vmatmul.mubr.f32.gmra.mrb[0].mxu0 %v425
      %v971 = vpop.f32.mrb[0].mxu0
      %v972 = vadd.f32 0.0, %v971
      %v973 = vpop.f32.mrb[0].mxu0
      %974 = vmatprep.mubr.f32.mxu0 0.0
      %975 = vmatmul.mubr.f32.gmra.mrb[0].mxu0 %v426
      %v976 = vpop.f32.mrb[0].mxu0
      %v977 = vadd.f32 0.0, %v976
      %v978 = vpop.f32.mrb[0].mxu0
      %979 = vmatprep.mubr.f32.mxu0 0.0
      %980 = vmatmul.mubr.f32.gmra.mrb[0].mxu0 %v427
      %v981 = vpop.f32.mrb[0].mxu0
      %v982 = vadd.f32 0.0, %v981
      %v983 = vpop.f32.mrb[0].mxu0
      %984 = vmatprep.mubr.f32.mxu0 0.0
      %985 = vmatmul.mubr.f32.gmra.mrb[0].mxu0 %v428
      %v986 = vpop.f32.mrb[0].mxu0
      %v987 = vadd.f32 0.0, %v986
      %v988 = vpop.f32.mrb[0].mxu0
      %989 = vmatprep.mubr.f32.mxu0 0.0
      %990 = vmatmul.mubr.f32.gmra.mrb[0].mxu0 %v429
      %v991 = vpop.f32.mrb[0].mxu0
      %v992 = vadd.f32 0.0, %v991
      %v993 = vpop.f32.mrb[0].mxu0
      %994 = vmatprep.mubr.f32.mxu0 0.0
      %995 = vmatmul.mubr.f32.gmra.mrb[0].mxu0 %v430
      %v996 = vpop.f32.mrb[0].mxu0
      %v997 = vadd.f32 0.0, %v996
      %v998 = vpop.f32.mrb[0].mxu0
      %999 = vmatprep.mubr.f32.mxu0 0.0
      %1000 = vmatmul.mubr.f32.gmra.mrb[0].mxu0 %v431
      %v1001 = vpop.f32.mrb[0].mxu0
      %v1002 = vadd.f32 0.0, %v1001
      %v1003 = vpop.f32.mrb[0].mxu0
      %1004 = vmatprep.mubr.f32.mxu0 0.0
      %1005 = vmatmul.mubr.f32.gmra.mrb[0].mxu0 %v432
      %v1006 = vpop.f32.mrb[0].mxu0
      %v1007 = vadd.f32 0.0, %v1006
      %v1008 = vpop.f32.mrb[0].mxu0
      %1009 = vmatprep.mubr.f32.mxu0 0.0
      %1010 = vmatmul.mubr.f32.gmra.mrb[0].mxu0 %v433
      %v1011 = vpop.f32.mrb[0].mxu0
      %v1012 = vadd.f32 0.0, %v1011
      %v1013 = vpop.f32.mrb[0].mxu0
      %1014 = vmatprep.mubr.f32.mxu0 0.0
      %1015 = vmatmul.mubr.f32.gmra.mrb[0].mxu0 %v434
      %v1016 = vpop.f32.mrb[0].mxu0
      %v1017 = vadd.f32 0.0, %v1016
      %v1018 = vpop.f32.mrb[0].mxu0
      %1019 = vmatprep.mubr.f32.mxu0 0.0
      %1020 = vmatmul.mubr.f32.gmra.mrb[0].mxu0 %v435
      %v1021 = vpop.f32.mrb[0].mxu0
      %v1022 = vadd.f32 0.0, %v1021
      %v1023 = vpop.f32.mrb[0].mxu0
      %1024 = vmatprep.mubr.f32.mxu0 0.0
      %1025 = vmatmul.mubr.f32.gmra.mrb[0].mxu0 %v436
      %v1026 = vpop.f32.mrb[0].mxu0
      %v1027 = vadd.f32 0.0, %v1026
      %v1028 = vpop.f32.mrb[0].mxu0
      %1029 = vmatprep.mubr.f32.mxu0 0.0
      %1030 = vmatmul.mubr.f32.gmra.mrb[0].mxu0 %v437
      %v1031 = vpop.f32.mrb[0].mxu0
      %v1032 = vadd.f32 0.0, %v1031
      %v1033 = vpop.f32.mrb[0].mxu0
      %1034 = vmatprep.mubr.f32.mxu0 0.0
      %1035 = vmatmul.mubr.f32.gmra.mrb[0].mxu0 %v438
      %v1036 = vpop.f32.mrb[0].mxu0
      %v1037 = vadd.f32 0.0, %v1036
      %v1038 = vpop.f32.mrb[0].mxu0
      %1039 = vmatprep.mubr.f32.mxu0 0.0
      %1040 = vmatmul.mubr.f32.gmra.mrb[0].mxu0 %v439
      %v1041 = vpop.f32.mrb[0].mxu0
      %v1042 = vadd.f32 0.0, %v1041
      %v1043 = vpop.f32.mrb[0].mxu0
      %1044 = vmatprep.mubr.f32.mxu0 0.0
      %1045 = vmatmul.mubr.f32.gmra.mrb[0].mxu0 %v440
      %v1046 = vpop.f32.mrb[0].mxu0
      %v1047 = vadd.f32 0.0, %v1046
      %v1048 = vpop.f32.mrb[0].mxu0
      %1049 = vmatprep.mubr.f32.mxu0 0.0
      %1050 = vmatmul.mubr.f32.gmra.mrb[0].mxu0 %v441
      %v1051 = vpop.f32.mrb[0].mxu0
      %v1052 = vadd.f32 0.0, %v1051
      %v1053 = vpop.f32.mrb[0].mxu0
      %1054 = vmatprep.mubr.f32.mxu0 0.0
      %1055 = vmatmul.mubr.f32.gmra.mrb[0].mxu0 %v442
      %v1056 = vpop.f32.mrb[0].mxu0
      %v1057 = vadd.f32 0.0, %v1056
      %v1058 = vpop.f32.mrb[0].mxu0
      %1059 = vmatprep.mubr.f32.mxu0 0.0
      %1060 = vmatmul.mubr.f32.gmra.mrb[0].mxu0 %v443
      %v1061 = vpop.f32.mrb[0].mxu0
      %v1062 = vadd.f32 0.0, %v1061
      %v1063 = vpop.f32.mrb[0].mxu0
      %1064 = vmatprep.mubr.f32.mxu0 0.0
      %1065 = vmatmul.mubr.f32.gmra.mrb[0].mxu0 %v444
      %v1066 = vpop.f32.mrb[0].mxu0
      %v1067 = vadd.f32 0.0, %v1066
      %v1068 = vpop.f32.mrb[0].mxu0
      %1069 = vmatprep.mubr.f32.mxu0 0.0
      %1070 = vmatmul.mubr.f32.gmra.mrb[0].mxu0 %v445
      %v1071 = vpop.f32.mrb[0].mxu0
      %v1072 = vadd.f32 0.0, %v1071
      %v1073 = vpop.f32.mrb[0].mxu0
      %1074 = vmatprep.mubr.f32.mxu0 0.0
      %1075 = vmatmul.mubr.f32.gmra.mrb[0].mxu0 %v446
      %v1076 = vpop.f32.mrb[0].mxu0
      %v1077 = vadd.f32 0.0, %v1076
      %v1078 = vpop.f32.mrb[0].mxu0
      %1079 = vmatprep.mubr.f32.mxu0 0.0
      %1080 = vmatmul.mubr.f32.gmra.mrb[0].mxu0 %v447
      %v1081 = vpop.f32.mrb[0].mxu0
      %v1082 = vadd.f32 0.0, %v1081
      %v1083 = vpop.f32.mrb[0].mxu0
      %1084 = vmatprep.mubr.f32.mxu0 0.0
      %1085 = vmatmul.mubr.f32.gmra.mrb[0].mxu0 %v448
      %v1086 = vpop.f32.mrb[0].mxu0
      %v1087 = vadd.f32 0.0, %v1086
      %v1088 = vpop.f32.mrb[0].mxu0
      %1089 = vmatprep.mubr.f32.mxu0 0.0
      %1090 = vmatmul.mubr.f32.gmra.mrb[0].mxu0 %v449
      %v1091 = vpop.f32.mrb[0].mxu0
      %v1092 = vadd.f32 0.0, %v1091
      %v1093 = vpop.f32.mrb[0].mxu0
      %1094 = vmatprep.mubr.f32.mxu0 0.0
      %1095 = vmatmul.mubr.f32.gmra.mrb[0].mxu0 %v450
      %v1096 = vpop.f32.mrb[0].mxu0
      %v1097 = vadd.f32 0.0, %v1096
      %v1098 = vpop.f32.mrb[0].mxu0
      %1099 = vmatprep.mubr.f32.mxu0 0.0
      %1100 = vmatmul.mubr.f32.gmra.mrb[0].mxu0 %v451
      %v1101 = vpop.f32.mrb[0].mxu0
      %v1102 = vadd.f32 0.0, %v1101
      %v1103 = vpop.f32.mrb[0].mxu0
      %1104 = vmatprep.mubr.f32.mxu0 0.0
      %1105 = vmatmul.mubr.f32.gmra.mrb[0].mxu0 %v452
      %v1106 = vpop.f32.mrb[0].mxu0
      %v1107 = vadd.f32 0.0, %v1106
      %v1108 = vpop.f32.mrb[0].mxu0
      %1109 = vmatprep.mubr.f32.mxu0 0.0
      %1110 = vmatmul.mubr.f32.gmra.mrb[0].mxu0 %v453
      %v1111 = vpop.f32.mrb[0].mxu0
      %v1112 = vadd.f32 0.0, %v1111
      %v1113 = vpop.f32.mrb[0].mxu0
      %1114 = vmatprep.mubr.f32.mxu0 0.0
      %1115 = vmatmul.mubr.f32.gmra.mrb[0].mxu0 %v454
      %v1116 = vpop.f32.mrb[0].mxu0
      %v1117 = vadd.f32 0.0, %v1116
      %v1118 = vpop.f32.mrb[0].mxu0
      %1119 = vmatprep.mubr.f32.mxu0 0.0
      %1120 = vmatmul.mubr.f32.gmra.mrb[0].mxu0 %v455
      %v1121 = vpop.f32.mrb[0].mxu0
      %v1122 = vadd.f32 0.0, %v1121
      %v1123 = vpop.f32.mrb[0].mxu0
      %1124 = vmatprep.mubr.f32.mxu0 0.0
      %1125 = vmatmul.mubr.f32.gmra.mrb[0].mxu0 %v456
      %v1126 = vpop.f32.mrb[0].mxu0
      %v1127 = vadd.f32 0.0, %v1126
      %v1128 = vpop.f32.mrb[0].mxu0
      %1129 = vmatprep.mubr.f32.mxu0 0.0
      %1130 = vmatmul.mubr.f32.gmra.mrb[0].mxu0 %v457
      %v1131 = vpop.f32.mrb[0].mxu0
      %v1132 = vadd.f32 0.0, %v1131
      %v1133 = vpop.f32.mrb[0].mxu0
      %1134 = vmatprep.mubr.f32.mxu0 0.0
      %1135 = vmatmul.mubr.f32.gmra.mrb[0].mxu0 %v458
      %v1136 = vpop.f32.mrb[0].mxu0
      %v1137 = vadd.f32 0.0, %v1136
      %v1138 = vpop.f32.mrb[0].mxu0
      %1139 = vmatprep.mubr.f32.mxu0 0.0
      %1140 = vmatmul.mubr.f32.gmra.mrb[0].mxu0 %v459
      %v1141 = vpop.f32.mrb[0].mxu0
      %v1142 = vadd.f32 0.0, %v1141
      %v1143 = vpop.f32.mrb[0].mxu0
      %1144 = vmatprep.mubr.f32.mxu0 0.0
      %1145 = vmatmul.mubr.f32.gmra.mrb[0].mxu0 %v460
      %v1146 = vpop.f32.mrb[0].mxu0
      %v1147 = vadd.f32 0.0, %v1146
      %v1148 = vpop.f32.mrb[0].mxu0
      %1149 = vmatprep.mubr.f32.mxu0 0.0
      %1150 = vmatmul.mubr.f32.gmra.mrb[0].mxu0 %v461
      %v1151 = vpop.f32.mrb[0].mxu0
      %v1152 = vadd.f32 0.0, %v1151
      %v1153 = vpop.f32.mrb[0].mxu0
      %1154 = vmatprep.mubr.f32.mxu0 0.0
      %1155 = vmatmul.mubr.f32.gmra.mrb[0].mxu0 %v462
      %v1156 = vpop.f32.mrb[0].mxu0
      %v1157 = vadd.f32 0.0, %v1156
      %v1158 = vpop.f32.mrb[0].mxu0
      %1159 = vmatprep.mubr.f32.mxu0 0.0
      %1160 = vmatmul.mubr.f32.gmra.mrb[0].mxu0 %v463
      %v1161 = vpop.f32.mrb[0].mxu0
      %v1162 = vadd.f32 0.0, %v1161
      %v1163 = vpop.f32.mrb[0].mxu0
      %1164 = vmatprep.mubr.f32.mxu0 0.0
      %1165 = vmatmul.mubr.f32.gmra.mrb[0].mxu0 %v464
      %v1166 = vpop.f32.mrb[0].mxu0
      %v1167 = vadd.f32 0.0, %v1166
      %v1168 = vpop.f32.mrb[0].mxu0
      %1169 = vdwg.mxu0
      %v1170 = vld [vmem:[%s301] sm:$0xff]
      %v1171 = vld [vmem:[%s301 + $0x8] sm:$0xff]
      %v1172 = vld [vmem:[%s301 + $0x10] sm:$0xff]
      %v1173 = vld [vmem:[%s301 + $0x18] sm:$0xff]
      %v1174 = vld [vmem:[%s301 + $0x20] sm:$0xff]
      %v1175 = vld [vmem:[%s301 + $0x28] sm:$0xff]
      %v1176 = vld [vmem:[%s301 + $0x30] sm:$0xff]
      %v1177 = vld [vmem:[%s301 + $0x38] sm:$0xff]
      %v1178 = vld [vmem:[%s301 + $0x40] sm:$0xff]
      %v1179 = vld [vmem:[%s301 + $0x48] sm:$0xff]
      %v1180 = vld [vmem:[%s301 + $0x50] sm:$0xff]
      %v1181 = vld [vmem:[%s301 + $0x58] sm:$0xff]
      %v1182 = vld [vmem:[%s301 + $0x60] sm:$0xff]
      %v1183 = vld [vmem:[%s301 + $0x68] sm:$0xff]
      %v1184 = vld [vmem:[%s301 + $0x70] sm:$0xff]
      %v1185 = vld [vmem:[%s301 + $0x78] sm:$0xff]
      %v1186 = vld [vmem:[%s301 + $0x80] sm:$0xff]
      %v1187 = vld [vmem:[%s301 + $0x88] sm:$0xff]
      %v1188 = vld [vmem:[%s301 + $0x90] sm:$0xff]
      %v1189 = vld [vmem:[%s301 + $0x98] sm:$0xff]
      %v1190 = vld [vmem:[%s301 + $0xa0] sm:$0xff]
      %v1191 = vld [vmem:[%s301 + $0xa8] sm:$0xff]
      %v1192 = vld [vmem:[%s301 + $0xb0] sm:$0xff]
      %v1193 = vld [vmem:[%s301 + $0xb8] sm:$0xff]
      %v1194 = vld [vmem:[%s301 + $0xc0] sm:$0xff]
      %v1195 = vld [vmem:[%s301 + $0xc8] sm:$0xff]
      %v1196 = vld [vmem:[%s301 + $0xd0] sm:$0xff]
      %v1197 = vld [vmem:[%s301 + $0xd8] sm:$0xff]
      %v1198 = vld [vmem:[%s301 + $0xe0] sm:$0xff]
      %v1199 = vld [vmem:[%s301 + $0xe8] sm:$0xff]
      %v1200 = vld [vmem:[%s301 + $0xf0] sm:$0xff]
      %v1201 = vld [vmem:[%s301 + $0xf8] sm:$0xff]
      %v1202 = vld [vmem:[%s301 + $0x100] sm:$0xff]
      %v1203 = vld [vmem:[%s301 + $0x108] sm:$0xff]
      %v1204 = vld [vmem:[%s301 + $0x110] sm:$0xff]
      %v1205 = vld [vmem:[%s301 + $0x118] sm:$0xff]
      %v1206 = vld [vmem:[%s301 + $0x120] sm:$0xff]
      %v1207 = vld [vmem:[%s301 + $0x128] sm:$0xff]
      %v1208 = vld [vmem:[%s301 + $0x130] sm:$0xff]
      %v1209 = vld [vmem:[%s301 + $0x138] sm:$0xff]
      %v1210 = vld [vmem:[%s301 + $0x140] sm:$0xff]
      %v1211 = vld [vmem:[%s301 + $0x148] sm:$0xff]
      %v1212 = vld [vmem:[%s301 + $0x150] sm:$0xff]
      %v1213 = vld [vmem:[%s301 + $0x158] sm:$0xff]
      %v1214 = vld [vmem:[%s301 + $0x160] sm:$0xff]
      %v1215 = vld [vmem:[%s301 + $0x168] sm:$0xff]
      %v1216 = vld [vmem:[%s301 + $0x170] sm:$0xff]
      %v1217 = vld [vmem:[%s301 + $0x178] sm:$0xff]
      %v1218 = vld [vmem:[%s301 + $0x180] sm:$0xff]
      %v1219 = vld [vmem:[%s301 + $0x188] sm:$0xff]
      %v1220 = vld [vmem:[%s301 + $0x190] sm:$0xff]
      %v1221 = vld [vmem:[%s301 + $0x198] sm:$0xff]
      %v1222 = vld [vmem:[%s301 + $0x1a0] sm:$0xff]
      %v1223 = vld [vmem:[%s301 + $0x1a8] sm:$0xff]
      %v1224 = vld [vmem:[%s301 + $0x1b0] sm:$0xff]
      %v1225 = vld [vmem:[%s301 + $0x1b8] sm:$0xff]
      %v1226 = vld [vmem:[%s301 + $0x1c0] sm:$0xff]
      %v1227 = vld [vmem:[%s301 + $0x1c8] sm:$0xff]
      %v1228 = vld [vmem:[%s301 + $0x1d0] sm:$0xff]
      %v1229 = vld [vmem:[%s301 + $0x1d8] sm:$0xff]
      %v1230 = vld [vmem:[%s301 + $0x1e0] sm:$0xff]
      %v1231 = vld [vmem:[%s301 + $0x1e8] sm:$0xff]
      %v1232 = vld [vmem:[%s301 + $0x1f0] sm:$0xff]
      %v1233 = vld [vmem:[%s301 + $0x1f8] sm:$0xff]
      %v1234 = vld [vmem:[%s301 + $0x200] sm:$0xff]
      %v1235 = vld [vmem:[%s301 + $0x208] sm:$0xff]
      %v1236 = vld [vmem:[%s301 + $0x210] sm:$0xff]
      %v1237 = vld [vmem:[%s301 + $0x218] sm:$0xff]
      %v1238 = vld [vmem:[%s301 + $0x220] sm:$0xff]
      %v1239 = vld [vmem:[%s301 + $0x228] sm:$0xff]
      %v1240 = vld [vmem:[%s301 + $0x230] sm:$0xff]
      %v1241 = vld [vmem:[%s301 + $0x238] sm:$0xff]
      %v1242 = vld [vmem:[%s301 + $0x240] sm:$0xff]
      %v1243 = vld [vmem:[%s301 + $0x248] sm:$0xff]
      %v1244 = vld [vmem:[%s301 + $0x250] sm:$0xff]
      %v1245 = vld [vmem:[%s301 + $0x258] sm:$0xff]
      %v1246 = vld [vmem:[%s301 + $0x260] sm:$0xff]
      %v1247 = vld [vmem:[%s301 + $0x268] sm:$0xff]
      %v1248 = vld [vmem:[%s301 + $0x270] sm:$0xff]
      %v1249 = vld [vmem:[%s301 + $0x278] sm:$0xff]
      %v1250 = vld [vmem:[%s301 + $0x280] sm:$0xff]
      %v1251 = vld [vmem:[%s301 + $0x288] sm:$0xff]
      %v1252 = vld [vmem:[%s301 + $0x290] sm:$0xff]
      %v1253 = vld [vmem:[%s301 + $0x298] sm:$0xff]
      %v1254 = vld [vmem:[%s301 + $0x2a0] sm:$0xff]
      %v1255 = vld [vmem:[%s301 + $0x2a8] sm:$0xff]
      %v1256 = vld [vmem:[%s301 + $0x2b0] sm:$0xff]
      %v1257 = vld [vmem:[%s301 + $0x2b8] sm:$0xff]
      %v1258 = vld [vmem:[%s301 + $0x2c0] sm:$0xff]
      %v1259 = vld [vmem:[%s301 + $0x2c8] sm:$0xff]
      %v1260 = vld [vmem:[%s301 + $0x2d0] sm:$0xff]
      %v1261 = vld [vmem:[%s301 + $0x2d8] sm:$0xff]
      %v1262 = vld [vmem:[%s301 + $0x2e0] sm:$0xff]
      %v1263 = vld [vmem:[%s301 + $0x2e8] sm:$0xff]
      %v1264 = vld [vmem:[%s301 + $0x2f0] sm:$0xff]
      %v1265 = vld [vmem:[%s301 + $0x2f8] sm:$0xff]
      %v1266 = vld [vmem:[%s301 + $0x300] sm:$0xff]
      %v1267 = vld [vmem:[%s301 + $0x308] sm:$0xff]
      %v1268 = vld [vmem:[%s301 + $0x310] sm:$0xff]
      %v1269 = vld [vmem:[%s301 + $0x318] sm:$0xff]
      %v1270 = vld [vmem:[%s301 + $0x320] sm:$0xff]
      %v1271 = vld [vmem:[%s301 + $0x328] sm:$0xff]
      %v1272 = vld [vmem:[%s301 + $0x330] sm:$0xff]
      %v1273 = vld [vmem:[%s301 + $0x338] sm:$0xff]
      %v1274 = vld [vmem:[%s301 + $0x340] sm:$0xff]
      %v1275 = vld [vmem:[%s301 + $0x348] sm:$0xff]
      %v1276 = vld [vmem:[%s301 + $0x350] sm:$0xff]
      %v1277 = vld [vmem:[%s301 + $0x358] sm:$0xff]
      %v1278 = vld [vmem:[%s301 + $0x360] sm:$0xff]
      %v1279 = vld [vmem:[%s301 + $0x368] sm:$0xff]
      %v1280 = vld [vmem:[%s301 + $0x370] sm:$0xff]
      %v1281 = vld [vmem:[%s301 + $0x378] sm:$0xff]
      %v1282 = vld [vmem:[%s301 + $0x380] sm:$0xff]
      %v1283 = vld [vmem:[%s301 + $0x388] sm:$0xff]
      %v1284 = vld [vmem:[%s301 + $0x390] sm:$0xff]
      %v1285 = vld [vmem:[%s301 + $0x398] sm:$0xff]
      %v1286 = vld [vmem:[%s301 + $0x3a0] sm:$0xff]
      %v1287 = vld [vmem:[%s301 + $0x3a8] sm:$0xff]
      %v1288 = vld [vmem:[%s301 + $0x3b0] sm:$0xff]
      %v1289 = vld [vmem:[%s301 + $0x3b8] sm:$0xff]
      %v1290 = vld [vmem:[%s301 + $0x3c0] sm:$0xff]
      %v1291 = vld [vmem:[%s301 + $0x3c8] sm:$0xff]
      %v1292 = vld [vmem:[%s301 + $0x3d0] sm:$0xff]
      %v1293 = vld [vmem:[%s301 + $0x3d8] sm:$0xff]
      %v1294 = vld [vmem:[%s301 + $0x3e0] sm:$0xff]
      %v1295 = vld [vmem:[%s301 + $0x3e8] sm:$0xff]
      %v1296 = vld [vmem:[%s301 + $0x3f0] sm:$0xff]
      %v1297 = vld [vmem:[%s301 + $0x3f8] sm:$0xff]
      %1298 = vmatprep.subr.mxu0 0.0
      %1299 = vmatpush1.msra.mxu0 %v321
      %1300 = vmatprep.subr.mxu0 0.0
      %1301 = vmatpush1.msra.mxu0 %v322
      %1302 = vmatprep.subr.mxu0 0.0
      %1303 = vmatpush1.msra.mxu0 %v323
      %1304 = vmatprep.subr.mxu0 0.0
      %1305 = vmatpush1.msra.mxu0 %v324
      %1306 = vmatprep.subr.mxu0 0.0
      %1307 = vmatpush1.msra.mxu0 %v325
      %1308 = vmatprep.subr.mxu0 0.0
      %1309 = vmatpush1.msra.mxu0 %v326
      %1310 = vmatprep.subr.mxu0 0.0
      %1311 = vmatpush1.msra.mxu0 %v327
      %1312 = vmatprep.subr.mxu0 0.0
      %1313 = vmatpush1.msra.mxu0 %v328
      %1314 = vmatprep.subr.mxu0 0.0
      %1315 = vmatpush1.msra.mxu0 %v329
      %1316 = vmatprep.subr.mxu0 0.0
      %1317 = vmatpush1.msra.mxu0 %v330
      %1318 = vmatprep.subr.mxu0 0.0
      %1319 = vmatpush1.msra.mxu0 %v331
      %1320 = vmatprep.subr.mxu0 0.0
      %1321 = vmatpush1.msra.mxu0 %v332
      %1322 = vmatprep.subr.mxu0 0.0
      %1323 = vmatpush1.msra.mxu0 %v333
      %1324 = vmatprep.subr.mxu0 0.0
      %1325 = vmatpush1.msra.mxu0 %v334
      %1326 = vmatprep.subr.mxu0 0.0
      %1327 = vmatpush1.msra.mxu0 %v335
      %1328 = vmatprep.subr.mxu0 0.0
      %1329 = vmatpush1.msra.mxu0 %v336
      %1330 = vmatprep.subr.mxu0 0.0
      %1331 = vmatpush1.msra.mxu0 0.0
      %1332 = vmatprep.subr.mxu0 0.0
      %1333 = vmatpush1.msra.mxu0 0.0
      %1334 = vmatprep.subr.mxu0 0.0
      %1335 = vmatpush1.msra.mxu0 0.0
      %1336 = vmatprep.subr.mxu0 0.0
      %1337 = vmatpush1.msra.mxu0 0.0
      %1338 = vmatprep.subr.mxu0 0.0
      %1339 = vmatpush1.msra.mxu0 0.0
      %1340 = vmatprep.subr.mxu0 0.0
      %1341 = vmatpush1.msra.mxu0 0.0
      %1342 = vmatprep.subr.mxu0 0.0
      %1343 = vmatpush1.msra.mxu0 0.0
      %1344 = vmatprep.subr.mxu0 0.0
      %1345 = vmatpush1.msra.mxu0 0.0
      %1346 = vmatprep.subr.mxu0 0.0
      %1347 = vmatpush1.msra.mxu0 0.0
      %1348 = vmatprep.subr.mxu0 0.0
      %1349 = vmatpush1.msra.mxu0 0.0
      %1350 = vmatprep.subr.mxu0 0.0
      %1351 = vmatpush1.msra.mxu0 0.0
      %1352 = vmatprep.subr.mxu0 0.0
      %1353 = vmatpush1.msra.mxu0 0.0
      %1354 = vmatprep.subr.mxu0 0.0
      %1355 = vmatpush1.msra.mxu0 0.0
      %1356 = vmatprep.subr.mxu0 0.0
      %1357 = vmatpush1.msra.mxu0 0.0
      %1358 = vmatprep.subr.mxu0 0.0
      %1359 = vmatpush1.msra.mxu0 0.0
      %1360 = vmatprep.subr.mxu0 0.0
      %1361 = vmatpush1.msra.mxu0 0.0
      %1362 = vmatprep.mubr.f32.mxu0 0.0
      %1363 = vmatmul.mubr.f32.gmra.mrb[0].mxu0 %v1170
      %v1364 = vpop.f32.mrb[0].mxu0
      %v1365 = vadd.f32 0.0, %v1364
      %v1366 = vpop.f32.mrb[0].mxu0
      %1367 = vmatprep.mubr.f32.mxu0 0.0
      %1368 = vmatmul.mubr.f32.gmra.mrb[0].mxu0 %v1171
      %v1369 = vpop.f32.mrb[0].mxu0
      %v1370 = vadd.f32 0.0, %v1369
      %v1371 = vpop.f32.mrb[0].mxu0
      %1372 = vmatprep.mubr.f32.mxu0 0.0
      %1373 = vmatmul.mubr.f32.gmra.mrb[0].mxu0 %v1172
      %v1374 = vpop.f32.mrb[0].mxu0
      %v1375 = vadd.f32 0.0, %v1374
      %v1376 = vpop.f32.mrb[0].mxu0
      %1377 = vmatprep.mubr.f32.mxu0 0.0
      %1378 = vmatmul.mubr.f32.gmra.mrb[0].mxu0 %v1173
      %v1379 = vpop.f32.mrb[0].mxu0
      %v1380 = vadd.f32 0.0, %v1379
      %v1381 = vpop.f32.mrb[0].mxu0
      %1382 = vmatprep.mubr.f32.mxu0 0.0
      %1383 = vmatmul.mubr.f32.gmra.mrb[0].mxu0 %v1174
      %v1384 = vpop.f32.mrb[0].mxu0
      %v1385 = vadd.f32 0.0, %v1384
      %v1386 = vpop.f32.mrb[0].mxu0
      %1387 = vmatprep.mubr.f32.mxu0 0.0
      %1388 = vmatmul.mubr.f32.gmra.mrb[0].mxu0 %v1175
      %v1389 = vpop.f32.mrb[0].mxu0
      %v1390 = vadd.f32 0.0, %v1389
      %v1391 = vpop.f32.mrb[0].mxu0
      %1392 = vmatprep.mubr.f32.mxu0 0.0
      %1393 = vmatmul.mubr.f32.gmra.mrb[0].mxu0 %v1176
      %v1394 = vpop.f32.mrb[0].mxu0
      %v1395 = vadd.f32 0.0, %v1394
      %v1396 = vpop.f32.mrb[0].mxu0
      %1397 = vmatprep.mubr.f32.mxu0 0.0
      %1398 = vmatmul.mubr.f32.gmra.mrb[0].mxu0 %v1177
      %v1399 = vpop.f32.mrb[0].mxu0
      %v1400 = vadd.f32 0.0, %v1399
      %v1401 = vpop.f32.mrb[0].mxu0
      %1402 = vmatprep.mubr.f32.mxu0 0.0
      %1403 = vmatmul.mubr.f32.gmra.mrb[0].mxu0 %v1178
      %v1404 = vpop.f32.mrb[0].mxu0
      %v1405 = vadd.f32 0.0, %v1404
      %v1406 = vpop.f32.mrb[0].mxu0
      %1407 = vmatprep.mubr.f32.mxu0 0.0
      %1408 = vmatmul.mubr.f32.gmra.mrb[0].mxu0 %v1179
      %v1409 = vpop.f32.mrb[0].mxu0
      %v1410 = vadd.f32 0.0, %v1409
      %v1411 = vpop.f32.mrb[0].mxu0
      %1412 = vmatprep.mubr.f32.mxu0 0.0
      %1413 = vmatmul.mubr.f32.gmra.mrb[0].mxu0 %v1180
      %v1414 = vpop.f32.mrb[0].mxu0
      %v1415 = vadd.f32 0.0, %v1414
      %v1416 = vpop.f32.mrb[0].mxu0
      %1417 = vmatprep.mubr.f32.mxu0 0.0
      %1418 = vmatmul.mubr.f32.gmra.mrb[0].mxu0 %v1181
      %v1419 = vpop.f32.mrb[0].mxu0
      %v1420 = vadd.f32 0.0, %v1419
      %v1421 = vpop.f32.mrb[0].mxu0
      %1422 = vmatprep.mubr.f32.mxu0 0.0
      %1423 = vmatmul.mubr.f32.gmra.mrb[0].mxu0 %v1182
      %v1424 = vpop.f32.mrb[0].mxu0
      %v1425 = vadd.f32 0.0, %v1424
      %v1426 = vpop.f32.mrb[0].mxu0
      %1427 = vmatprep.mubr.f32.mxu0 0.0
      %1428 = vmatmul.mubr.f32.gmra.mrb[0].mxu0 %v1183
      %v1429 = vpop.f32.mrb[0].mxu0
      %v1430 = vadd.f32 0.0, %v1429
      %v1431 = vpop.f32.mrb[0].mxu0
      %1432 = vmatprep.mubr.f32.mxu0 0.0
      %1433 = vmatmul.mubr.f32.gmra.mrb[0].mxu0 %v1184
      %v1434 = vpop.f32.mrb[0].mxu0
      %v1435 = vadd.f32 0.0, %v1434
      %v1436 = vpop.f32.mrb[0].mxu0
      %1437 = vmatprep.mubr.f32.mxu0 0.0
      %1438 = vmatmul.mubr.f32.gmra.mrb[0].mxu0 %v1185
      %v1439 = vpop.f32.mrb[0].mxu0
      %v1440 = vadd.f32 0.0, %v1439
      %v1441 = vpop.f32.mrb[0].mxu0
      %1442 = vmatprep.mubr.f32.mxu0 0.0
      %1443 = vmatmul.mubr.f32.gmra.mrb[0].mxu0 %v1186
      %v1444 = vpop.f32.mrb[0].mxu0
      %v1445 = vadd.f32 0.0, %v1444
      %v1446 = vpop.f32.mrb[0].mxu0
      %1447 = vmatprep.mubr.f32.mxu0 0.0
      %1448 = vmatmul.mubr.f32.gmra.mrb[0].mxu0 %v1187
      %v1449 = vpop.f32.mrb[0].mxu0
      %v1450 = vadd.f32 0.0, %v1449
      %v1451 = vpop.f32.mrb[0].mxu0
      %1452 = vmatprep.mubr.f32.mxu0 0.0
      %1453 = vmatmul.mubr.f32.gmra.mrb[0].mxu0 %v1188
      %v1454 = vpop.f32.mrb[0].mxu0
      %v1455 = vadd.f32 0.0, %v1454
      %v1456 = vpop.f32.mrb[0].mxu0
      %1457 = vmatprep.mubr.f32.mxu0 0.0
      %1458 = vmatmul.mubr.f32.gmra.mrb[0].mxu0 %v1189
      %v1459 = vpop.f32.mrb[0].mxu0
      %v1460 = vadd.f32 0.0, %v1459
      %v1461 = vpop.f32.mrb[0].mxu0
      %1462 = vmatprep.mubr.f32.mxu0 0.0
      %1463 = vmatmul.mubr.f32.gmra.mrb[0].mxu0 %v1190
      %v1464 = vpop.f32.mrb[0].mxu0
      %v1465 = vadd.f32 0.0, %v1464
      %v1466 = vpop.f32.mrb[0].mxu0
      %1467 = vmatprep.mubr.f32.mxu0 0.0
      %1468 = vmatmul.mubr.f32.gmra.mrb[0].mxu0 %v1191
      %v1469 = vpop.f32.mrb[0].mxu0
      %v1470 = vadd.f32 0.0, %v1469
      %v1471 = vpop.f32.mrb[0].mxu0
      %1472 = vmatprep.mubr.f32.mxu0 0.0
      %1473 = vmatmul.mubr.f32.gmra.mrb[0].mxu0 %v1192
      %v1474 = vpop.f32.mrb[0].mxu0
      %v1475 = vadd.f32 0.0, %v1474
      %v1476 = vpop.f32.mrb[0].mxu0
      %1477 = vmatprep.mubr.f32.mxu0 0.0
      %1478 = vmatmul.mubr.f32.gmra.mrb[0].mxu0 %v1193
      %v1479 = vpop.f32.mrb[0].mxu0
      %v1480 = vadd.f32 0.0, %v1479
      %v1481 = vpop.f32.mrb[0].mxu0
      %1482 = vmatprep.mubr.f32.mxu0 0.0
      %1483 = vmatmul.mubr.f32.gmra.mrb[0].mxu0 %v1194
      %v1484 = vpop.f32.mrb[0].mxu0
      %v1485 = vadd.f32 0.0, %v1484
      %v1486 = vpop.f32.mrb[0].mxu0
      %1487 = vmatprep.mubr.f32.mxu0 0.0
      %1488 = vmatmul.mubr.f32.gmra.mrb[0].mxu0 %v1195
      %v1489 = vpop.f32.mrb[0].mxu0
      %v1490 = vadd.f32 0.0, %v1489
      %v1491 = vpop.f32.mrb[0].mxu0
      %1492 = vmatprep.mubr.f32.mxu0 0.0
      %1493 = vmatmul.mubr.f32.gmra.mrb[0].mxu0 %v1196
      %v1494 = vpop.f32.mrb[0].mxu0
      %v1495 = vadd.f32 0.0, %v1494
      %v1496 = vpop.f32.mrb[0].mxu0
      %1497 = vmatprep.mubr.f32.mxu0 0.0
      %1498 = vmatmul.mubr.f32.gmra.mrb[0].mxu0 %v1197
      %v1499 = vpop.f32.mrb[0].mxu0
      %v1500 = vadd.f32 0.0, %v1499
      %v1501 = vpop.f32.mrb[0].mxu0
      %1502 = vmatprep.mubr.f32.mxu0 0.0
      %1503 = vmatmul.mubr.f32.gmra.mrb[0].mxu0 %v1198
      %v1504 = vpop.f32.mrb[0].mxu0
      %v1505 = vadd.f32 0.0, %v1504
      %v1506 = vpop.f32.mrb[0].mxu0
      %1507 = vmatprep.mubr.f32.mxu0 0.0
      %1508 = vmatmul.mubr.f32.gmra.mrb[0].mxu0 %v1199
      %v1509 = vpop.f32.mrb[0].mxu0
      %v1510 = vadd.f32 0.0, %v1509
      %v1511 = vpop.f32.mrb[0].mxu0
      %1512 = vmatprep.mubr.f32.mxu0 0.0
      %1513 = vmatmul.mubr.f32.gmra.mrb[0].mxu0 %v1200
      %v1514 = vpop.f32.mrb[0].mxu0
      %v1515 = vadd.f32 0.0, %v1514
      %v1516 = vpop.f32.mrb[0].mxu0
      %1517 = vmatprep.mubr.f32.mxu0 0.0
      %1518 = vmatmul.mubr.f32.gmra.mrb[0].mxu0 %v1201
      %v1519 = vpop.f32.mrb[0].mxu0
      %v1520 = vadd.f32 0.0, %v1519
      %v1521 = vpop.f32.mrb[0].mxu0
      %1522 = vmatprep.mubr.f32.mxu0 0.0
      %1523 = vmatmul.mubr.f32.gmra.mrb[0].mxu0 %v1202
      %v1524 = vpop.f32.mrb[0].mxu0
      %v1525 = vadd.f32 0.0, %v1524
      %v1526 = vpop.f32.mrb[0].mxu0
      %1527 = vmatprep.mubr.f32.mxu0 0.0
      %1528 = vmatmul.mubr.f32.gmra.mrb[0].mxu0 %v1203
      %v1529 = vpop.f32.mrb[0].mxu0
      %v1530 = vadd.f32 0.0, %v1529
      %v1531 = vpop.f32.mrb[0].mxu0
      %1532 = vmatprep.mubr.f32.mxu0 0.0
      %1533 = vmatmul.mubr.f32.gmra.mrb[0].mxu0 %v1204
      %v1534 = vpop.f32.mrb[0].mxu0
      %v1535 = vadd.f32 0.0, %v1534
      %v1536 = vpop.f32.mrb[0].mxu0
      %1537 = vmatprep.mubr.f32.mxu0 0.0
      %1538 = vmatmul.mubr.f32.gmra.mrb[0].mxu0 %v1205
      %v1539 = vpop.f32.mrb[0].mxu0
      %v1540 = vadd.f32 0.0, %v1539
      %v1541 = vpop.f32.mrb[0].mxu0
      %1542 = vmatprep.mubr.f32.mxu0 0.0
      %1543 = vmatmul.mubr.f32.gmra.mrb[0].mxu0 %v1206
      %v1544 = vpop.f32.mrb[0].mxu0
      %v1545 = vadd.f32 0.0, %v1544
      %v1546 = vpop.f32.mrb[0].mxu0
      %1547 = vmatprep.mubr.f32.mxu0 0.0
      %1548 = vmatmul.mubr.f32.gmra.mrb[0].mxu0 %v1207
      %v1549 = vpop.f32.mrb[0].mxu0
      %v1550 = vadd.f32 0.0, %v1549
      %v1551 = vpop.f32.mrb[0].mxu0
      %1552 = vmatprep.mubr.f32.mxu0 0.0
      %1553 = vmatmul.mubr.f32.gmra.mrb[0].mxu0 %v1208
      %v1554 = vpop.f32.mrb[0].mxu0
      %v1555 = vadd.f32 0.0, %v1554
      %v1556 = vpop.f32.mrb[0].mxu0
      %1557 = vmatprep.mubr.f32.mxu0 0.0
      %1558 = vmatmul.mubr.f32.gmra.mrb[0].mxu0 %v1209
      %v1559 = vpop.f32.mrb[0].mxu0
      %v1560 = vadd.f32 0.0, %v1559
      %v1561 = vpop.f32.mrb[0].mxu0
      %1562 = vmatprep.mubr.f32.mxu0 0.0
      %1563 = vmatmul.mubr.f32.gmra.mrb[0].mxu0 %v1210
      %v1564 = vpop.f32.mrb[0].mxu0
      %v1565 = vadd.f32 0.0, %v1564
      %v1566 = vpop.f32.mrb[0].mxu0
      %1567 = vmatprep.mubr.f32.mxu0 0.0
      %1568 = vmatmul.mubr.f32.gmra.mrb[0].mxu0 %v1211
      %v1569 = vpop.f32.mrb[0].mxu0
      %v1570 = vadd.f32 0.0, %v1569
      %v1571 = vpop.f32.mrb[0].mxu0
      %1572 = vmatprep.mubr.f32.mxu0 0.0
      %1573 = vmatmul.mubr.f32.gmra.mrb[0].mxu0 %v1212
      %v1574 = vpop.f32.mrb[0].mxu0
      %v1575 = vadd.f32 0.0, %v1574
      %v1576 = vpop.f32.mrb[0].mxu0
      %1577 = vmatprep.mubr.f32.mxu0 0.0
      %1578 = vmatmul.mubr.f32.gmra.mrb[0].mxu0 %v1213
      %v1579 = vpop.f32.mrb[0].mxu0
      %v1580 = vadd.f32 0.0, %v1579
      %v1581 = vpop.f32.mrb[0].mxu0
      %1582 = vmatprep.mubr.f32.mxu0 0.0
      %1583 = vmatmul.mubr.f32.gmra.mrb[0].mxu0 %v1214
      %v1584 = vpop.f32.mrb[0].mxu0
      %v1585 = vadd.f32 0.0, %v1584
      %v1586 = vpop.f32.mrb[0].mxu0
      %1587 = vmatprep.mubr.f32.mxu0 0.0
      %1588 = vmatmul.mubr.f32.gmra.mrb[0].mxu0 %v1215
      %v1589 = vpop.f32.mrb[0].mxu0
      %v1590 = vadd.f32 0.0, %v1589
      %v1591 = vpop.f32.mrb[0].mxu0
      %1592 = vmatprep.mubr.f32.mxu0 0.0
      %1593 = vmatmul.mubr.f32.gmra.mrb[0].mxu0 %v1216
      %v1594 = vpop.f32.mrb[0].mxu0
      %v1595 = vadd.f32 0.0, %v1594
      %v1596 = vpop.f32.mrb[0].mxu0
      %1597 = vmatprep.mubr.f32.mxu0 0.0
      %1598 = vmatmul.mubr.f32.gmra.mrb[0].mxu0 %v1217
      %v1599 = vpop.f32.mrb[0].mxu0
      %v1600 = vadd.f32 0.0, %v1599
      %v1601 = vpop.f32.mrb[0].mxu0
      %1602 = vmatprep.mubr.f32.mxu0 0.0
      %1603 = vmatmul.mubr.f32.gmra.mrb[0].mxu0 %v1218
      %v1604 = vpop.f32.mrb[0].mxu0
      %v1605 = vadd.f32 0.0, %v1604
      %v1606 = vpop.f32.mrb[0].mxu0
      %1607 = vmatprep.mubr.f32.mxu0 0.0
      %1608 = vmatmul.mubr.f32.gmra.mrb[0].mxu0 %v1219
      %v1609 = vpop.f32.mrb[0].mxu0
      %v1610 = vadd.f32 0.0, %v1609
      %v1611 = vpop.f32.mrb[0].mxu0
      %1612 = vmatprep.mubr.f32.mxu0 0.0
      %1613 = vmatmul.mubr.f32.gmra.mrb[0].mxu0 %v1220
      %v1614 = vpop.f32.mrb[0].mxu0
      %v1615 = vadd.f32 0.0, %v1614
      %v1616 = vpop.f32.mrb[0].mxu0
      %1617 = vmatprep.mubr.f32.mxu0 0.0
      %1618 = vmatmul.mubr.f32.gmra.mrb[0].mxu0 %v1221
      %v1619 = vpop.f32.mrb[0].mxu0
      %v1620 = vadd.f32 0.0, %v1619
      %v1621 = vpop.f32.mrb[0].mxu0
      %1622 = vmatprep.mubr.f32.mxu0 0.0
      %1623 = vmatmul.mubr.f32.gmra.mrb[0].mxu0 %v1222
      %v1624 = vpop.f32.mrb[0].mxu0
      %v1625 = vadd.f32 0.0, %v1624
      %v1626 = vpop.f32.mrb[0].mxu0
      %1627 = vmatprep.mubr.f32.mxu0 0.0
      %1628 = vmatmul.mubr.f32.gmra.mrb[0].mxu0 %v1223
      %v1629 = vpop.f32.mrb[0].mxu0
      %v1630 = vadd.f32 0.0, %v1629
      %v1631 = vpop.f32.mrb[0].mxu0
      %1632 = vmatprep.mubr.f32.mxu0 0.0
      %1633 = vmatmul.mubr.f32.gmra.mrb[0].mxu0 %v1224
      %v1634 = vpop.f32.mrb[0].mxu0
      %v1635 = vadd.f32 0.0, %v1634
      %v1636 = vpop.f32.mrb[0].mxu0
      %1637 = vmatprep.mubr.f32.mxu0 0.0
      %1638 = vmatmul.mubr.f32.gmra.mrb[0].mxu0 %v1225
      %v1639 = vpop.f32.mrb[0].mxu0
      %v1640 = vadd.f32 0.0, %v1639
      %v1641 = vpop.f32.mrb[0].mxu0
      %1642 = vmatprep.mubr.f32.mxu0 0.0
      %1643 = vmatmul.mubr.f32.gmra.mrb[0].mxu0 %v1226
      %v1644 = vpop.f32.mrb[0].mxu0
      %v1645 = vadd.f32 0.0, %v1644
      %v1646 = vpop.f32.mrb[0].mxu0
      %1647 = vmatprep.mubr.f32.mxu0 0.0
      %1648 = vmatmul.mubr.f32.gmra.mrb[0].mxu0 %v1227
      %v1649 = vpop.f32.mrb[0].mxu0
      %v1650 = vadd.f32 0.0, %v1649
      %v1651 = vpop.f32.mrb[0].mxu0
      %1652 = vmatprep.mubr.f32.mxu0 0.0
      %1653 = vmatmul.mubr.f32.gmra.mrb[0].mxu0 %v1228
      %v1654 = vpop.f32.mrb[0].mxu0
      %v1655 = vadd.f32 0.0, %v1654
      %v1656 = vpop.f32.mrb[0].mxu0
      %1657 = vmatprep.mubr.f32.mxu0 0.0
      %1658 = vmatmul.mubr.f32.gmra.mrb[0].mxu0 %v1229
      %v1659 = vpop.f32.mrb[0].mxu0
      %v1660 = vadd.f32 0.0, %v1659
      %v1661 = vpop.f32.mrb[0].mxu0
      %1662 = vmatprep.mubr.f32.mxu0 0.0
      %1663 = vmatmul.mubr.f32.gmra.mrb[0].mxu0 %v1230
      %v1664 = vpop.f32.mrb[0].mxu0
      %v1665 = vadd.f32 0.0, %v1664
      %v1666 = vpop.f32.mrb[0].mxu0
      %1667 = vmatprep.mubr.f32.mxu0 0.0
      %1668 = vmatmul.mubr.f32.gmra.mrb[0].mxu0 %v1231
      %v1669 = vpop.f32.mrb[0].mxu0
      %v1670 = vadd.f32 0.0, %v1669
      %v1671 = vpop.f32.mrb[0].mxu0
      %1672 = vmatprep.mubr.f32.mxu0 0.0
      %1673 = vmatmul.mubr.f32.gmra.mrb[0].mxu0 %v1232
      %v1674 = vpop.f32.mrb[0].mxu0
      %v1675 = vadd.f32 0.0, %v1674
      %v1676 = vpop.f32.mrb[0].mxu0
      %1677 = vmatprep.mubr.f32.mxu0 0.0
      %1678 = vmatmul.mubr.f32.gmra.mrb[0].mxu0 %v1233
      %v1679 = vpop.f32.mrb[0].mxu0
      %v1680 = vadd.f32 0.0, %v1679
      %v1681 = vpop.f32.mrb[0].mxu0
      %1682 = vmatprep.mubr.f32.mxu0 0.0
      %1683 = vmatmul.mubr.f32.gmra.mrb[0].mxu0 %v1234
      %v1684 = vpop.f32.mrb[0].mxu0
      %v1685 = vadd.f32 0.0, %v1684
      %v1686 = vpop.f32.mrb[0].mxu0
      %1687 = vmatprep.mubr.f32.mxu0 0.0
      %1688 = vmatmul.mubr.f32.gmra.mrb[0].mxu0 %v1235
      %v1689 = vpop.f32.mrb[0].mxu0
      %v1690 = vadd.f32 0.0, %v1689
      %v1691 = vpop.f32.mrb[0].mxu0
      %1692 = vmatprep.mubr.f32.mxu0 0.0
      %1693 = vmatmul.mubr.f32.gmra.mrb[0].mxu0 %v1236
      %v1694 = vpop.f32.mrb[0].mxu0
      %v1695 = vadd.f32 0.0, %v1694
      %v1696 = vpop.f32.mrb[0].mxu0
      %1697 = vmatprep.mubr.f32.mxu0 0.0
      %1698 = vmatmul.mubr.f32.gmra.mrb[0].mxu0 %v1237
      %v1699 = vpop.f32.mrb[0].mxu0
      %v1700 = vadd.f32 0.0, %v1699
      %v1701 = vpop.f32.mrb[0].mxu0
      %1702 = vmatprep.mubr.f32.mxu0 0.0
      %1703 = vmatmul.mubr.f32.gmra.mrb[0].mxu0 %v1238
      %v1704 = vpop.f32.mrb[0].mxu0
      %v1705 = vadd.f32 0.0, %v1704
      %v1706 = vpop.f32.mrb[0].mxu0
      %1707 = vmatprep.mubr.f32.mxu0 0.0
      %1708 = vmatmul.mubr.f32.gmra.mrb[0].mxu0 %v1239
      %v1709 = vpop.f32.mrb[0].mxu0
      %v1710 = vadd.f32 0.0, %v1709
      %v1711 = vpop.f32.mrb[0].mxu0
      %1712 = vmatprep.mubr.f32.mxu0 0.0
      %1713 = vmatmul.mubr.f32.gmra.mrb[0].mxu0 %v1240
      %v1714 = vpop.f32.mrb[0].mxu0
      %v1715 = vadd.f32 0.0, %v1714
      %v1716 = vpop.f32.mrb[0].mxu0
      %1717 = vmatprep.mubr.f32.mxu0 0.0
      %1718 = vmatmul.mubr.f32.gmra.mrb[0].mxu0 %v1241
      %v1719 = vpop.f32.mrb[0].mxu0
      %v1720 = vadd.f32 0.0, %v1719
      %v1721 = vpop.f32.mrb[0].mxu0
      %1722 = vmatprep.mubr.f32.mxu0 0.0
      %1723 = vmatmul.mubr.f32.gmra.mrb[0].mxu0 %v1242
      %v1724 = vpop.f32.mrb[0].mxu0
      %v1725 = vadd.f32 0.0, %v1724
      %v1726 = vpop.f32.mrb[0].mxu0
      %1727 = vmatprep.mubr.f32.mxu0 0.0
      %1728 = vmatmul.mubr.f32.gmra.mrb[0].mxu0 %v1243
      %v1729 = vpop.f32.mrb[0].mxu0
      %v1730 = vadd.f32 0.0, %v1729
      %v1731 = vpop.f32.mrb[0].mxu0
      %1732 = vmatprep.mubr.f32.mxu0 0.0
      %1733 = vmatmul.mubr.f32.gmra.mrb[0].mxu0 %v1244
      %v1734 = vpop.f32.mrb[0].mxu0
      %v1735 = vadd.f32 0.0, %v1734
      %v1736 = vpop.f32.mrb[0].mxu0
      %1737 = vmatprep.mubr.f32.mxu0 0.0
      %1738 = vmatmul.mubr.f32.gmra.mrb[0].mxu0 %v1245
      %v1739 = vpop.f32.mrb[0].mxu0
      %v1740 = vadd.f32 0.0, %v1739
      %v1741 = vpop.f32.mrb[0].mxu0
      %1742 = vmatprep.mubr.f32.mxu0 0.0
      %1743 = vmatmul.mubr.f32.gmra.mrb[0].mxu0 %v1246
      %v1744 = vpop.f32.mrb[0].mxu0
      %v1745 = vadd.f32 0.0, %v1744
      %v1746 = vpop.f32.mrb[0].mxu0
      %1747 = vmatprep.mubr.f32.mxu0 0.0
      %1748 = vmatmul.mubr.f32.gmra.mrb[0].mxu0 %v1247
      %v1749 = vpop.f32.mrb[0].mxu0
      %v1750 = vadd.f32 0.0, %v1749
      %v1751 = vpop.f32.mrb[0].mxu0
      %1752 = vmatprep.mubr.f32.mxu0 0.0
      %1753 = vmatmul.mubr.f32.gmra.mrb[0].mxu0 %v1248
      %v1754 = vpop.f32.mrb[0].mxu0
      %v1755 = vadd.f32 0.0, %v1754
      %v1756 = vpop.f32.mrb[0].mxu0
      %1757 = vmatprep.mubr.f32.mxu0 0.0
      %1758 = vmatmul.mubr.f32.gmra.mrb[0].mxu0 %v1249
      %v1759 = vpop.f32.mrb[0].mxu0
      %v1760 = vadd.f32 0.0, %v1759
      %v1761 = vpop.f32.mrb[0].mxu0
      %1762 = vmatprep.mubr.f32.mxu0 0.0
      %1763 = vmatmul.mubr.f32.gmra.mrb[0].mxu0 %v1250
      %v1764 = vpop.f32.mrb[0].mxu0
      %v1765 = vadd.f32 0.0, %v1764
      %v1766 = vpop.f32.mrb[0].mxu0
      %1767 = vmatprep.mubr.f32.mxu0 0.0
      %1768 = vmatmul.mubr.f32.gmra.mrb[0].mxu0 %v1251
      %v1769 = vpop.f32.mrb[0].mxu0
      %v1770 = vadd.f32 0.0, %v1769
      %v1771 = vpop.f32.mrb[0].mxu0
      %1772 = vmatprep.mubr.f32.mxu0 0.0
      %1773 = vmatmul.mubr.f32.gmra.mrb[0].mxu0 %v1252
      %v1774 = vpop.f32.mrb[0].mxu0
      %v1775 = vadd.f32 0.0, %v1774
      %v1776 = vpop.f32.mrb[0].mxu0
      %1777 = vmatprep.mubr.f32.mxu0 0.0
      %1778 = vmatmul.mubr.f32.gmra.mrb[0].mxu0 %v1253
      %v1779 = vpop.f32.mrb[0].mxu0
      %v1780 = vadd.f32 0.0, %v1779
      %v1781 = vpop.f32.mrb[0].mxu0
      %1782 = vmatprep.mubr.f32.mxu0 0.0
      %1783 = vmatmul.mubr.f32.gmra.mrb[0].mxu0 %v1254
      %v1784 = vpop.f32.mrb[0].mxu0
      %v1785 = vadd.f32 0.0, %v1784
      %v1786 = vpop.f32.mrb[0].mxu0
      %1787 = vmatprep.mubr.f32.mxu0 0.0
      %1788 = vmatmul.mubr.f32.gmra.mrb[0].mxu0 %v1255
      %v1789 = vpop.f32.mrb[0].mxu0
      %v1790 = vadd.f32 0.0, %v1789
      %v1791 = vpop.f32.mrb[0].mxu0
      %1792 = vmatprep.mubr.f32.mxu0 0.0
      %1793 = vmatmul.mubr.f32.gmra.mrb[0].mxu0 %v1256
      %v1794 = vpop.f32.mrb[0].mxu0
      %v1795 = vadd.f32 0.0, %v1794
      %v1796 = vpop.f32.mrb[0].mxu0
      %1797 = vmatprep.mubr.f32.mxu0 0.0
      %1798 = vmatmul.mubr.f32.gmra.mrb[0].mxu0 %v1257
      %v1799 = vpop.f32.mrb[0].mxu0
      %v1800 = vadd.f32 0.0, %v1799
      %v1801 = vpop.f32.mrb[0].mxu0
      %1802 = vmatprep.mubr.f32.mxu0 0.0
      %1803 = vmatmul.mubr.f32.gmra.mrb[0].mxu0 %v1258
      %v1804 = vpop.f32.mrb[0].mxu0
      %v1805 = vadd.f32 0.0, %v1804
      %v1806 = vpop.f32.mrb[0].mxu0
      %1807 = vmatprep.mubr.f32.mxu0 0.0
      %1808 = vmatmul.mubr.f32.gmra.mrb[0].mxu0 %v1259
      %v1809 = vpop.f32.mrb[0].mxu0
      %v1810 = vadd.f32 0.0, %v1809
      %v1811 = vpop.f32.mrb[0].mxu0
      %1812 = vmatprep.mubr.f32.mxu0 0.0
      %1813 = vmatmul.mubr.f32.gmra.mrb[0].mxu0 %v1260
      %v1814 = vpop.f32.mrb[0].mxu0
      %v1815 = vadd.f32 0.0, %v1814
      %v1816 = vpop.f32.mrb[0].mxu0
      %1817 = vmatprep.mubr.f32.mxu0 0.0
      %1818 = vmatmul.mubr.f32.gmra.mrb[0].mxu0 %v1261
      %v1819 = vpop.f32.mrb[0].mxu0
      %v1820 = vadd.f32 0.0, %v1819
      %v1821 = vpop.f32.mrb[0].mxu0
      %1822 = vmatprep.mubr.f32.mxu0 0.0
      %1823 = vmatmul.mubr.f32.gmra.mrb[0].mxu0 %v1262
      %v1824 = vpop.f32.mrb[0].mxu0
      %v1825 = vadd.f32 0.0, %v1824
      %v1826 = vpop.f32.mrb[0].mxu0
      %1827 = vmatprep.mubr.f32.mxu0 0.0
      %1828 = vmatmul.mubr.f32.gmra.mrb[0].mxu0 %v1263
      %v1829 = vpop.f32.mrb[0].mxu0
      %v1830 = vadd.f32 0.0, %v1829
      %v1831 = vpop.f32.mrb[0].mxu0
      %1832 = vmatprep.mubr.f32.mxu0 0.0
      %1833 = vmatmul.mubr.f32.gmra.mrb[0].mxu0 %v1264
      %v1834 = vpop.f32.mrb[0].mxu0
      %v1835 = vadd.f32 0.0, %v1834
      %v1836 = vpop.f32.mrb[0].mxu0
      %1837 = vmatprep.mubr.f32.mxu0 0.0
      %1838 = vmatmul.mubr.f32.gmra.mrb[0].mxu0 %v1265
      %v1839 = vpop.f32.mrb[0].mxu0
      %v1840 = vadd.f32 0.0, %v1839
      %v1841 = vpop.f32.mrb[0].mxu0
      %1842 = vmatprep.mubr.f32.mxu0 0.0
      %1843 = vmatmul.mubr.f32.gmra.mrb[0].mxu0 %v1266
      %v1844 = vpop.f32.mrb[0].mxu0
      %v1845 = vadd.f32 0.0, %v1844
      %v1846 = vpop.f32.mrb[0].mxu0
      %1847 = vmatprep.mubr.f32.mxu0 0.0
      %1848 = vmatmul.mubr.f32.gmra.mrb[0].mxu0 %v1267
      %v1849 = vpop.f32.mrb[0].mxu0
      %v1850 = vadd.f32 0.0, %v1849
      %v1851 = vpop.f32.mrb[0].mxu0
      %1852 = vmatprep.mubr.f32.mxu0 0.0
      %1853 = vmatmul.mubr.f32.gmra.mrb[0].mxu0 %v1268
      %v1854 = vpop.f32.mrb[0].mxu0
      %v1855 = vadd.f32 0.0, %v1854
      %v1856 = vpop.f32.mrb[0].mxu0
      %1857 = vmatprep.mubr.f32.mxu0 0.0
      %1858 = vmatmul.mubr.f32.gmra.mrb[0].mxu0 %v1269
      %v1859 = vpop.f32.mrb[0].mxu0
      %v1860 = vadd.f32 0.0, %v1859
      %v1861 = vpop.f32.mrb[0].mxu0
      %1862 = vmatprep.mubr.f32.mxu0 0.0
      %1863 = vmatmul.mubr.f32.gmra.mrb[0].mxu0 %v1270
      %v1864 = vpop.f32.mrb[0].mxu0
      %v1865 = vadd.f32 0.0, %v1864
      %v1866 = vpop.f32.mrb[0].mxu0
      %1867 = vmatprep.mubr.f32.mxu0 0.0
      %1868 = vmatmul.mubr.f32.gmra.mrb[0].mxu0 %v1271
      %v1869 = vpop.f32.mrb[0].mxu0
      %v1870 = vadd.f32 0.0, %v1869
      %v1871 = vpop.f32.mrb[0].mxu0
      %1872 = vmatprep.mubr.f32.mxu0 0.0
      %1873 = vmatmul.mubr.f32.gmra.mrb[0].mxu0 %v1272
      %v1874 = vpop.f32.mrb[0].mxu0
      %v1875 = vadd.f32 0.0, %v1874
      %v1876 = vpop.f32.mrb[0].mxu0
      %1877 = vmatprep.mubr.f32.mxu0 0.0
      %1878 = vmatmul.mubr.f32.gmra.mrb[0].mxu0 %v1273
      %v1879 = vpop.f32.mrb[0].mxu0
      %v1880 = vadd.f32 0.0, %v1879
      %v1881 = vpop.f32.mrb[0].mxu0
      %1882 = vmatprep.mubr.f32.mxu0 0.0
      %1883 = vmatmul.mubr.f32.gmra.mrb[0].mxu0 %v1274
      %v1884 = vpop.f32.mrb[0].mxu0
      %v1885 = vadd.f32 0.0, %v1884
      %v1886 = vpop.f32.mrb[0].mxu0
      %1887 = vmatprep.mubr.f32.mxu0 0.0
      %1888 = vmatmul.mubr.f32.gmra.mrb[0].mxu0 %v1275
      %v1889 = vpop.f32.mrb[0].mxu0
      %v1890 = vadd.f32 0.0, %v1889
      %v1891 = vpop.f32.mrb[0].mxu0
      %1892 = vmatprep.mubr.f32.mxu0 0.0
      %1893 = vmatmul.mubr.f32.gmra.mrb[0].mxu0 %v1276
      %v1894 = vpop.f32.mrb[0].mxu0
      %v1895 = vadd.f32 0.0, %v1894
      %v1896 = vpop.f32.mrb[0].mxu0
      %1897 = vmatprep.mubr.f32.mxu0 0.0
      %1898 = vmatmul.mubr.f32.gmra.mrb[0].mxu0 %v1277
      %v1899 = vpop.f32.mrb[0].mxu0
      %v1900 = vadd.f32 0.0, %v1899
      %v1901 = vpop.f32.mrb[0].mxu0
      %1902 = vmatprep.mubr.f32.mxu0 0.0
      %1903 = vmatmul.mubr.f32.gmra.mrb[0].mxu0 %v1278
      %v1904 = vpop.f32.mrb[0].mxu0
      %v1905 = vadd.f32 0.0, %v1904
      %v1906 = vpop.f32.mrb[0].mxu0
      %1907 = vmatprep.mubr.f32.mxu0 0.0
      %1908 = vmatmul.mubr.f32.gmra.mrb[0].mxu0 %v1279
      %v1909 = vpop.f32.mrb[0].mxu0
      %v1910 = vadd.f32 0.0, %v1909
      %v1911 = vpop.f32.mrb[0].mxu0
      %1912 = vmatprep.mubr.f32.mxu0 0.0
      %1913 = vmatmul.mubr.f32.gmra.mrb[0].mxu0 %v1280
      %v1914 = vpop.f32.mrb[0].mxu0
      %v1915 = vadd.f32 0.0, %v1914
      %v1916 = vpop.f32.mrb[0].mxu0
      %1917 = vmatprep.mubr.f32.mxu0 0.0
      %1918 = vmatmul.mubr.f32.gmra.mrb[0].mxu0 %v1281
      %v1919 = vpop.f32.mrb[0].mxu0
      %v1920 = vadd.f32 0.0, %v1919
      %v1921 = vpop.f32.mrb[0].mxu0
      %1922 = vmatprep.mubr.f32.mxu0 0.0
      %1923 = vmatmul.mubr.f32.gmra.mrb[0].mxu0 %v1282
      %v1924 = vpop.f32.mrb[0].mxu0
      %v1925 = vadd.f32 0.0, %v1924
      %v1926 = vpop.f32.mrb[0].mxu0
      %1927 = vmatprep.mubr.f32.mxu0 0.0
      %1928 = vmatmul.mubr.f32.gmra.mrb[0].mxu0 %v1283
      %v1929 = vpop.f32.mrb[0].mxu0
      %v1930 = vadd.f32 0.0, %v1929
      %v1931 = vpop.f32.mrb[0].mxu0
      %1932 = vmatprep.mubr.f32.mxu0 0.0
      %1933 = vmatmul.mubr.f32.gmra.mrb[0].mxu0 %v1284
      %v1934 = vpop.f32.mrb[0].mxu0
      %v1935 = vadd.f32 0.0, %v1934
      %v1936 = vpop.f32.mrb[0].mxu0
      %1937 = vmatprep.mubr.f32.mxu0 0.0
      %1938 = vmatmul.mubr.f32.gmra.mrb[0].mxu0 %v1285
      %v1939 = vpop.f32.mrb[0].mxu0
      %v1940 = vadd.f32 0.0, %v1939
      %v1941 = vpop.f32.mrb[0].mxu0
      %1942 = vmatprep.mubr.f32.mxu0 0.0
      %1943 = vmatmul.mubr.f32.gmra.mrb[0].mxu0 %v1286
      %v1944 = vpop.f32.mrb[0].mxu0
      %v1945 = vadd.f32 0.0, %v1944
      %v1946 = vpop.f32.mrb[0].mxu0
      %1947 = vmatprep.mubr.f32.mxu0 0.0
      %1948 = vmatmul.mubr.f32.gmra.mrb[0].mxu0 %v1287
      %v1949 = vpop.f32.mrb[0].mxu0
      %v1950 = vadd.f32 0.0, %v1949
      %v1951 = vpop.f32.mrb[0].mxu0
      %1952 = vmatprep.mubr.f32.mxu0 0.0
      %1953 = vmatmul.mubr.f32.gmra.mrb[0].mxu0 %v1288
      %v1954 = vpop.f32.mrb[0].mxu0
      %v1955 = vadd.f32 0.0, %v1954
      %v1956 = vpop.f32.mrb[0].mxu0
      %1957 = vmatprep.mubr.f32.mxu0 0.0
      %1958 = vmatmul.mubr.f32.gmra.mrb[0].mxu0 %v1289
      %v1959 = vpop.f32.mrb[0].mxu0
      %v1960 = vadd.f32 0.0, %v1959
      %v1961 = vpop.f32.mrb[0].mxu0
      %1962 = vmatprep.mubr.f32.mxu0 0.0
      %1963 = vmatmul.mubr.f32.gmra.mrb[0].mxu0 %v1290
      %v1964 = vpop.f32.mrb[0].mxu0
      %v1965 = vadd.f32 0.0, %v1964
      %v1966 = vpop.f32.mrb[0].mxu0
      %1967 = vmatprep.mubr.f32.mxu0 0.0
      %1968 = vmatmul.mubr.f32.gmra.mrb[0].mxu0 %v1291
      %v1969 = vpop.f32.mrb[0].mxu0
      %v1970 = vadd.f32 0.0, %v1969
      %v1971 = vpop.f32.mrb[0].mxu0
      %1972 = vmatprep.mubr.f32.mxu0 0.0
      %1973 = vmatmul.mubr.f32.gmra.mrb[0].mxu0 %v1292
      %v1974 = vpop.f32.mrb[0].mxu0
      %v1975 = vadd.f32 0.0, %v1974
      %v1976 = vpop.f32.mrb[0].mxu0
      %1977 = vmatprep.mubr.f32.mxu0 0.0
      %1978 = vmatmul.mubr.f32.gmra.mrb[0].mxu0 %v1293
      %v1979 = vpop.f32.mrb[0].mxu0
      %v1980 = vadd.f32 0.0, %v1979
      %v1981 = vpop.f32.mrb[0].mxu0
      %1982 = vmatprep.mubr.f32.mxu0 0.0
      %1983 = vmatmul.mubr.f32.gmra.mrb[0].mxu0 %v1294
      %v1984 = vpop.f32.mrb[0].mxu0
      %v1985 = vadd.f32 0.0, %v1984
      %v1986 = vpop.f32.mrb[0].mxu0
      %1987 = vmatprep.mubr.f32.mxu0 0.0
      %1988 = vmatmul.mubr.f32.gmra.mrb[0].mxu0 %v1295
      %v1989 = vpop.f32.mrb[0].mxu0
      %v1990 = vadd.f32 0.0, %v1989
      %v1991 = vpop.f32.mrb[0].mxu0
      %1992 = vmatprep.mubr.f32.mxu0 0.0
      %1993 = vmatmul.mubr.f32.gmra.mrb[0].mxu0 %v1296
      %v1994 = vpop.f32.mrb[0].mxu0
      %v1995 = vadd.f32 0.0, %v1994
      %v1996 = vpop.f32.mrb[0].mxu0
      %1997 = vmatprep.mubr.f32.mxu0 0.0
      %1998 = vmatmul.mubr.f32.gmra.mrb[0].mxu0 %v1297
      %v1999 = vpop.f32.mrb[0].mxu0
      %v2000 = vadd.f32 0.0, %v1999
      %v2001 = vpop.f32.mrb[0].mxu0
      %2002 = vdwg.mxu0
      %v2003 = vmax.f32 %v532, %v1365
      %v2004 = vmax.f32 %v537, %v1370
      %v2005 = vmax.f32 %v542, %v1375
      %v2006 = vmax.f32 %v547, %v1380
      %v2007 = vmax.f32 %v552, %v1385
      %v2008 = vmax.f32 %v557, %v1390
      %v2009 = vmax.f32 %v562, %v1395
      %v2010 = vmax.f32 %v567, %v1400
      %v2011 = vmax.f32 %v572, %v1405
      %v2012 = vmax.f32 %v577, %v1410
      %v2013 = vmax.f32 %v582, %v1415
      %v2014 = vmax.f32 %v587, %v1420
      %v2015 = vmax.f32 %v592, %v1425
      %v2016 = vmax.f32 %v597, %v1430
      %v2017 = vmax.f32 %v602, %v1435
      %v2018 = vmax.f32 %v607, %v1440
      %v2019 = vmax.f32 %v612, %v1445
      %v2020 = vmax.f32 %v617, %v1450
      %v2021 = vmax.f32 %v622, %v1455
      %v2022 = vmax.f32 %v627, %v1460
      %v2023 = vmax.f32 %v632, %v1465
      %v2024 = vmax.f32 %v637, %v1470
      %v2025 = vmax.f32 %v642, %v1475
      %v2026 = vmax.f32 %v647, %v1480
      %v2027 = vmax.f32 %v652, %v1485
      %v2028 = vmax.f32 %v657, %v1490
      %v2029 = vmax.f32 %v662, %v1495
      %v2030 = vmax.f32 %v667, %v1500
      %v2031 = vmax.f32 %v672, %v1505
      %v2032 = vmax.f32 %v677, %v1510
      %v2033 = vmax.f32 %v682, %v1515
      %v2034 = vmax.f32 %v687, %v1520
      %v2035 = vmax.f32 %v692, %v1525
      %v2036 = vmax.f32 %v697, %v1530
      %v2037 = vmax.f32 %v702, %v1535
      %v2038 = vmax.f32 %v707, %v1540
      %v2039 = vmax.f32 %v712, %v1545
      %v2040 = vmax.f32 %v717, %v1550
      %v2041 = vmax.f32 %v722, %v1555
      %v2042 = vmax.f32 %v727, %v1560
      %v2043 = vmax.f32 %v732, %v1565
      %v2044 = vmax.f32 %v737, %v1570
      %v2045 = vmax.f32 %v742, %v1575
      %v2046 = vmax.f32 %v747, %v1580
      %v2047 = vmax.f32 %v752, %v1585
      %v2048 = vmax.f32 %v757, %v1590
      %v2049 = vmax.f32 %v762, %v1595
      %v2050 = vmax.f32 %v767, %v1600
      %v2051 = vmax.f32 %v772, %v1605
      %v2052 = vmax.f32 %v777, %v1610
      %v2053 = vmax.f32 %v782, %v1615
      %v2054 = vmax.f32 %v787, %v1620
      %v2055 = vmax.f32 %v792, %v1625
      %v2056 = vmax.f32 %v797, %v1630
      %v2057 = vmax.f32 %v802, %v1635
      %v2058 = vmax.f32 %v807, %v1640
      %v2059 = vmax.f32 %v812, %v1645
      %v2060 = vmax.f32 %v817, %v1650
      %v2061 = vmax.f32 %v822, %v1655
      %v2062 = vmax.f32 %v827, %v1660
      %v2063 = vmax.f32 %v832, %v1665
      %v2064 = vmax.f32 %v837, %v1670
      %v2065 = vmax.f32 %v842, %v1675
      %v2066 = vmax.f32 %v847, %v1680
      %v2067 = vmax.f32 %v852, %v1685
      %v2068 = vmax.f32 %v857, %v1690
      %v2069 = vmax.f32 %v862, %v1695
      %v2070 = vmax.f32 %v867, %v1700
      %v2071 = vmax.f32 %v872, %v1705
      %v2072 = vmax.f32 %v877, %v1710
      %v2073 = vmax.f32 %v882, %v1715
      %v2074 = vmax.f32 %v887, %v1720
      %v2075 = vmax.f32 %v892, %v1725
      %v2076 = vmax.f32 %v897, %v1730
      %v2077 = vmax.f32 %v902, %v1735
      %v2078 = vmax.f32 %v907, %v1740
      %v2079 = vmax.f32 %v912, %v1745
      %v2080 = vmax.f32 %v917, %v1750
      %v2081 = vmax.f32 %v922, %v1755
      %v2082 = vmax.f32 %v927, %v1760
      %v2083 = vmax.f32 %v932, %v1765
      %v2084 = vmax.f32 %v937, %v1770
      %v2085 = vmax.f32 %v942, %v1775
      %v2086 = vmax.f32 %v947, %v1780
      %v2087 = vmax.f32 %v952, %v1785
      %v2088 = vmax.f32 %v957, %v1790
      %v2089 = vmax.f32 %v962, %v1795
      %v2090 = vmax.f32 %v967, %v1800
      %v2091 = vmax.f32 %v972, %v1805
      %v2092 = vmax.f32 %v977, %v1810
      %v2093 = vmax.f32 %v982, %v1815
      %v2094 = vmax.f32 %v987, %v1820
      %v2095 = vmax.f32 %v992, %v1825
      %v2096 = vmax.f32 %v997, %v1830
      %v2097 = vmax.f32 %v1002, %v1835
      %v2098 = vmax.f32 %v1007, %v1840
      %v2099 = vmax.f32 %v1012, %v1845
      %v2100 = vmax.f32 %v1017, %v1850
      %v2101 = vmax.f32 %v1022, %v1855
      %v2102 = vmax.f32 %v1027, %v1860
      %v2103 = vmax.f32 %v1032, %v1865
      %v2104 = vmax.f32 %v1037, %v1870
      %v2105 = vmax.f32 %v1042, %v1875
      %v2106 = vmax.f32 %v1047, %v1880
      %v2107 = vmax.f32 %v1052, %v1885
      %v2108 = vmax.f32 %v1057, %v1890
      %v2109 = vmax.f32 %v1062, %v1895
      %v2110 = vmax.f32 %v1067, %v1900
      %v2111 = vmax.f32 %v1072, %v1905
      %v2112 = vmax.f32 %v1077, %v1910
      %v2113 = vmax.f32 %v1082, %v1915
      %v2114 = vmax.f32 %v1087, %v1920
      %v2115 = vmax.f32 %v1092, %v1925
      %v2116 = vmax.f32 %v1097, %v1930
      %v2117 = vmax.f32 %v1102, %v1935
      %v2118 = vmax.f32 %v1107, %v1940
      %v2119 = vmax.f32 %v1112, %v1945
      %v2120 = vmax.f32 %v1117, %v1950
      %v2121 = vmax.f32 %v1122, %v1955
      %v2122 = vmax.f32 %v1127, %v1960
      %v2123 = vmax.f32 %v1132, %v1965
      %v2124 = vmax.f32 %v1137, %v1970
      %v2125 = vmax.f32 %v1142, %v1975
      %v2126 = vmax.f32 %v1147, %v1980
      %v2127 = vmax.f32 %v1152, %v1985
      %v2128 = vmax.f32 %v1157, %v1990
      %v2129 = vmax.f32 %v1162, %v1995
      %v2130 = vmax.f32 %v1167, %v2000
      %v2131 = vld [vmem:[%s307] sm:$0xff]
      %v2132 = vld [vmem:[%s307 + $0x8] sm:$0xff]
      %v2133 = vld [vmem:[%s307 + $0x10] sm:$0xff]
      %v2134 = vld [vmem:[%s307 + $0x18] sm:$0xff]
      %v2135 = vld [vmem:[%s307 + $0x20] sm:$0xff]
      %v2136 = vld [vmem:[%s307 + $0x28] sm:$0xff]
      %v2137 = vld [vmem:[%s307 + $0x30] sm:$0xff]
      %v2138 = vld [vmem:[%s307 + $0x38] sm:$0xff]
      %v2139 = vld [vmem:[%s307 + $0x40] sm:$0xff]
      %v2140 = vld [vmem:[%s307 + $0x48] sm:$0xff]
      %v2141 = vld [vmem:[%s307 + $0x50] sm:$0xff]
      %v2142 = vld [vmem:[%s307 + $0x58] sm:$0xff]
      %v2143 = vld [vmem:[%s307 + $0x60] sm:$0xff]
      %v2144 = vld [vmem:[%s307 + $0x68] sm:$0xff]
      %v2145 = vld [vmem:[%s307 + $0x70] sm:$0xff]
      %v2146 = vld [vmem:[%s307 + $0x78] sm:$0xff]
      %v2147 = vld [vmem:[%s307 + $0x80] sm:$0xff]
      %v2148 = vld [vmem:[%s307 + $0x88] sm:$0xff]
      %v2149 = vld [vmem:[%s307 + $0x90] sm:$0xff]
      %v2150 = vld [vmem:[%s307 + $0x98] sm:$0xff]
      %v2151 = vld [vmem:[%s307 + $0xa0] sm:$0xff]
      %v2152 = vld [vmem:[%s307 + $0xa8] sm:$0xff]
      %v2153 = vld [vmem:[%s307 + $0xb0] sm:$0xff]
      %v2154 = vld [vmem:[%s307 + $0xb8] sm:$0xff]
      %v2155 = vld [vmem:[%s307 + $0xc0] sm:$0xff]
      %v2156 = vld [vmem:[%s307 + $0xc8] sm:$0xff]
      %v2157 = vld [vmem:[%s307 + $0xd0] sm:$0xff]
      %v2158 = vld [vmem:[%s307 + $0xd8] sm:$0xff]
      %v2159 = vld [vmem:[%s307 + $0xe0] sm:$0xff]
      %v2160 = vld [vmem:[%s307 + $0xe8] sm:$0xff]
      %v2161 = vld [vmem:[%s307 + $0xf0] sm:$0xff]
      %v2162 = vld [vmem:[%s307 + $0xf8] sm:$0xff]
      %v2163 = vld [vmem:[%s307 + $0x100] sm:$0xff]
      %v2164 = vld [vmem:[%s307 + $0x108] sm:$0xff]
      %v2165 = vld [vmem:[%s307 + $0x110] sm:$0xff]
      %v2166 = vld [vmem:[%s307 + $0x118] sm:$0xff]
      %v2167 = vld [vmem:[%s307 + $0x120] sm:$0xff]
      %v2168 = vld [vmem:[%s307 + $0x128] sm:$0xff]
      %v2169 = vld [vmem:[%s307 + $0x130] sm:$0xff]
      %v2170 = vld [vmem:[%s307 + $0x138] sm:$0xff]
      %v2171 = vld [vmem:[%s307 + $0x140] sm:$0xff]
      %v2172 = vld [vmem:[%s307 + $0x148] sm:$0xff]
      %v2173 = vld [vmem:[%s307 + $0x150] sm:$0xff]
      %v2174 = vld [vmem:[%s307 + $0x158] sm:$0xff]
      %v2175 = vld [vmem:[%s307 + $0x160] sm:$0xff]
      %v2176 = vld [vmem:[%s307 + $0x168] sm:$0xff]
      %v2177 = vld [vmem:[%s307 + $0x170] sm:$0xff]
      %v2178 = vld [vmem:[%s307 + $0x178] sm:$0xff]
      %v2179 = vld [vmem:[%s307 + $0x180] sm:$0xff]
      %v2180 = vld [vmem:[%s307 + $0x188] sm:$0xff]
      %v2181 = vld [vmem:[%s307 + $0x190] sm:$0xff]
      %v2182 = vld [vmem:[%s307 + $0x198] sm:$0xff]
      %v2183 = vld [vmem:[%s307 + $0x1a0] sm:$0xff]
      %v2184 = vld [vmem:[%s307 + $0x1a8] sm:$0xff]
      %v2185 = vld [vmem:[%s307 + $0x1b0] sm:$0xff]
      %v2186 = vld [vmem:[%s307 + $0x1b8] sm:$0xff]
      %v2187 = vld [vmem:[%s307 + $0x1c0] sm:$0xff]
      %v2188 = vld [vmem:[%s307 + $0x1c8] sm:$0xff]
      %v2189 = vld [vmem:[%s307 + $0x1d0] sm:$0xff]
      %v2190 = vld [vmem:[%s307 + $0x1d8] sm:$0xff]
      %v2191 = vld [vmem:[%s307 + $0x1e0] sm:$0xff]
      %v2192 = vld [vmem:[%s307 + $0x1e8] sm:$0xff]
      %v2193 = vld [vmem:[%s307 + $0x1f0] sm:$0xff]
      %v2194 = vld [vmem:[%s307 + $0x1f8] sm:$0xff]
      %v2195 = vld [vmem:[%s307 + $0x200] sm:$0xff]
      %v2196 = vld [vmem:[%s307 + $0x208] sm:$0xff]
      %v2197 = vld [vmem:[%s307 + $0x210] sm:$0xff]
      %v2198 = vld [vmem:[%s307 + $0x218] sm:$0xff]
      %v2199 = vld [vmem:[%s307 + $0x220] sm:$0xff]
      %v2200 = vld [vmem:[%s307 + $0x228] sm:$0xff]
      %v2201 = vld [vmem:[%s307 + $0x230] sm:$0xff]
      %v2202 = vld [vmem:[%s307 + $0x238] sm:$0xff]
      %v2203 = vld [vmem:[%s307 + $0x240] sm:$0xff]
      %v2204 = vld [vmem:[%s307 + $0x248] sm:$0xff]
      %v2205 = vld [vmem:[%s307 + $0x250] sm:$0xff]
      %v2206 = vld [vmem:[%s307 + $0x258] sm:$0xff]
      %v2207 = vld [vmem:[%s307 + $0x260] sm:$0xff]
      %v2208 = vld [vmem:[%s307 + $0x268] sm:$0xff]
      %v2209 = vld [vmem:[%s307 + $0x270] sm:$0xff]
      %v2210 = vld [vmem:[%s307 + $0x278] sm:$0xff]
      %v2211 = vld [vmem:[%s307 + $0x280] sm:$0xff]
      %v2212 = vld [vmem:[%s307 + $0x288] sm:$0xff]
      %v2213 = vld [vmem:[%s307 + $0x290] sm:$0xff]
      %v2214 = vld [vmem:[%s307 + $0x298] sm:$0xff]
      %v2215 = vld [vmem:[%s307 + $0x2a0] sm:$0xff]
      %v2216 = vld [vmem:[%s307 + $0x2a8] sm:$0xff]
      %v2217 = vld [vmem:[%s307 + $0x2b0] sm:$0xff]
      %v2218 = vld [vmem:[%s307 + $0x2b8] sm:$0xff]
      %v2219 = vld [vmem:[%s307 + $0x2c0] sm:$0xff]
      %v2220 = vld [vmem:[%s307 + $0x2c8] sm:$0xff]
      %v2221 = vld [vmem:[%s307 + $0x2d0] sm:$0xff]
      %v2222 = vld [vmem:[%s307 + $0x2d8] sm:$0xff]
      %v2223 = vld [vmem:[%s307 + $0x2e0] sm:$0xff]
      %v2224 = vld [vmem:[%s307 + $0x2e8] sm:$0xff]
      %v2225 = vld [vmem:[%s307 + $0x2f0] sm:$0xff]
      %v2226 = vld [vmem:[%s307 + $0x2f8] sm:$0xff]
      %v2227 = vld [vmem:[%s307 + $0x300] sm:$0xff]
      %v2228 = vld [vmem:[%s307 + $0x308] sm:$0xff]
      %v2229 = vld [vmem:[%s307 + $0x310] sm:$0xff]
      %v2230 = vld [vmem:[%s307 + $0x318] sm:$0xff]
      %v2231 = vld [vmem:[%s307 + $0x320] sm:$0xff]
      %v2232 = vld [vmem:[%s307 + $0x328] sm:$0xff]
      %v2233 = vld [vmem:[%s307 + $0x330] sm:$0xff]
      %v2234 = vld [vmem:[%s307 + $0x338] sm:$0xff]
      %v2235 = vld [vmem:[%s307 + $0x340] sm:$0xff]
      %v2236 = vld [vmem:[%s307 + $0x348] sm:$0xff]
      %v2237 = vld [vmem:[%s307 + $0x350] sm:$0xff]
      %v2238 = vld [vmem:[%s307 + $0x358] sm:$0xff]
      %v2239 = vld [vmem:[%s307 + $0x360] sm:$0xff]
      %v2240 = vld [vmem:[%s307 + $0x368] sm:$0xff]
      %v2241 = vld [vmem:[%s307 + $0x370] sm:$0xff]
      %v2242 = vld [vmem:[%s307 + $0x378] sm:$0xff]
      %v2243 = vld [vmem:[%s307 + $0x380] sm:$0xff]
      %v2244 = vld [vmem:[%s307 + $0x388] sm:$0xff]
      %v2245 = vld [vmem:[%s307 + $0x390] sm:$0xff]
      %v2246 = vld [vmem:[%s307 + $0x398] sm:$0xff]
      %v2247 = vld [vmem:[%s307 + $0x3a0] sm:$0xff]
      %v2248 = vld [vmem:[%s307 + $0x3a8] sm:$0xff]
      %v2249 = vld [vmem:[%s307 + $0x3b0] sm:$0xff]
      %v2250 = vld [vmem:[%s307 + $0x3b8] sm:$0xff]
      %v2251 = vld [vmem:[%s307 + $0x3c0] sm:$0xff]
      %v2252 = vld [vmem:[%s307 + $0x3c8] sm:$0xff]
      %v2253 = vld [vmem:[%s307 + $0x3d0] sm:$0xff]
      %v2254 = vld [vmem:[%s307 + $0x3d8] sm:$0xff]
      %v2255 = vld [vmem:[%s307 + $0x3e0] sm:$0xff]
      %v2256 = vld [vmem:[%s307 + $0x3e8] sm:$0xff]
      %v2257 = vld [vmem:[%s307 + $0x3f0] sm:$0xff]
      %v2258 = vld [vmem:[%s307 + $0x3f8] sm:$0xff]
      %2259 = vmatprep.subr.mxu0 0.0
      %2260 = vmatpush1.msra.mxu0 %v321
      %2261 = vmatprep.subr.mxu0 0.0
      %2262 = vmatpush1.msra.mxu0 %v322
      %2263 = vmatprep.subr.mxu0 0.0
      %2264 = vmatpush1.msra.mxu0 %v323
      %2265 = vmatprep.subr.mxu0 0.0
      %2266 = vmatpush1.msra.mxu0 %v324
      %2267 = vmatprep.subr.mxu0 0.0
      %2268 = vmatpush1.msra.mxu0 %v325
      %2269 = vmatprep.subr.mxu0 0.0
      %2270 = vmatpush1.msra.mxu0 %v326
      %2271 = vmatprep.subr.mxu0 0.0
      %2272 = vmatpush1.msra.mxu0 %v327
      %2273 = vmatprep.subr.mxu0 0.0
      %2274 = vmatpush1.msra.mxu0 %v328
      %2275 = vmatprep.subr.mxu0 0.0
      %2276 = vmatpush1.msra.mxu0 %v329
      %2277 = vmatprep.subr.mxu0 0.0
      %2278 = vmatpush1.msra.mxu0 %v330
      %2279 = vmatprep.subr.mxu0 0.0
      %2280 = vmatpush1.msra.mxu0 %v331
      %2281 = vmatprep.subr.mxu0 0.0
      %2282 = vmatpush1.msra.mxu0 %v332
      %2283 = vmatprep.subr.mxu0 0.0
      %2284 = vmatpush1.msra.mxu0 %v333
      %2285 = vmatprep.subr.mxu0 0.0
      %2286 = vmatpush1.msra.mxu0 %v334
      %2287 = vmatprep.subr.mxu0 0.0
      %2288 = vmatpush1.msra.mxu0 %v335
      %2289 = vmatprep.subr.mxu0 0.0
      %2290 = vmatpush1.msra.mxu0 %v336
      %2291 = vmatprep.subr.mxu0 0.0
      %2292 = vmatpush1.msra.mxu0 0.0
      %2293 = vmatprep.subr.mxu0 0.0
      %2294 = vmatpush1.msra.mxu0 0.0
      %2295 = vmatprep.subr.mxu0 0.0
      %2296 = vmatpush1.msra.mxu0 0.0
      %2297 = vmatprep.subr.mxu0 0.0
      %2298 = vmatpush1.msra.mxu0 0.0
      %2299 = vmatprep.subr.mxu0 0.0
      %2300 = vmatpush1.msra.mxu0 0.0
      %2301 = vmatprep.subr.mxu0 0.0
      %2302 = vmatpush1.msra.mxu0 0.0
      %2303 = vmatprep.subr.mxu0 0.0
      %2304 = vmatpush1.msra.mxu0 0.0
      %2305 = vmatprep.subr.mxu0 0.0
      %2306 = vmatpush1.msra.mxu0 0.0
      %2307 = vmatprep.subr.mxu0 0.0
      %2308 = vmatpush1.msra.mxu0 0.0
      %2309 = vmatprep.subr.mxu0 0.0
      %2310 = vmatpush1.msra.mxu0 0.0
      %2311 = vmatprep.subr.mxu0 0.0
      %2312 = vmatpush1.msra.mxu0 0.0
      %2313 = vmatprep.subr.mxu0 0.0
      %2314 = vmatpush1.msra.mxu0 0.0
      %2315 = vmatprep.subr.mxu0 0.0
      %2316 = vmatpush1.msra.mxu0 0.0
      %2317 = vmatprep.subr.mxu0 0.0
      %2318 = vmatpush1.msra.mxu0 0.0
      %2319 = vmatprep.subr.mxu0 0.0
      %2320 = vmatpush1.msra.mxu0 0.0
      %2321 = vmatprep.subr.mxu0 0.0
      %2322 = vmatpush1.msra.mxu0 0.0
      %2323 = vmatprep.mubr.f32.mxu0 0.0
      %2324 = vmatmul.mubr.f32.gmra.mrb[0].mxu0 %v2131
      %v2325 = vpop.f32.mrb[0].mxu0
      %v2326 = vadd.f32 0.0, %v2325
      %v2327 = vpop.f32.mrb[0].mxu0
      %2328 = vmatprep.mubr.f32.mxu0 0.0
      %2329 = vmatmul.mubr.f32.gmra.mrb[0].mxu0 %v2132
      %v2330 = vpop.f32.mrb[0].mxu0
      %v2331 = vadd.f32 0.0, %v2330
      %v2332 = vpop.f32.mrb[0].mxu0
      %2333 = vmatprep.mubr.f32.mxu0 0.0
      %2334 = vmatmul.mubr.f32.gmra.mrb[0].mxu0 %v2133
      %v2335 = vpop.f32.mrb[0].mxu0
      %v2336 = vadd.f32 0.0, %v2335
      %v2337 = vpop.f32.mrb[0].mxu0
      %2338 = vmatprep.mubr.f32.mxu0 0.0
      %2339 = vmatmul.mubr.f32.gmra.mrb[0].mxu0 %v2134
      %v2340 = vpop.f32.mrb[0].mxu0
      %v2341 = vadd.f32 0.0, %v2340
      %v2342 = vpop.f32.mrb[0].mxu0
      %2343 = vmatprep.mubr.f32.mxu0 0.0
      %2344 = vmatmul.mubr.f32.gmra.mrb[0].mxu0 %v2135
      %v2345 = vpop.f32.mrb[0].mxu0
      %v2346 = vadd.f32 0.0, %v2345
      %v2347 = vpop.f32.mrb[0].mxu0
      %2348 = vmatprep.mubr.f32.mxu0 0.0
      %2349 = vmatmul.mubr.f32.gmra.mrb[0].mxu0 %v2136
      %v2350 = vpop.f32.mrb[0].mxu0
      %v2351 = vadd.f32 0.0, %v2350
      %v2352 = vpop.f32.mrb[0].mxu0
      %2353 = vmatprep.mubr.f32.mxu0 0.0
      %2354 = vmatmul.mubr.f32.gmra.mrb[0].mxu0 %v2137
      %v2355 = vpop.f32.mrb[0].mxu0
      %v2356 = vadd.f32 0.0, %v2355
      %v2357 = vpop.f32.mrb[0].mxu0
      %2358 = vmatprep.mubr.f32.mxu0 0.0
      %2359 = vmatmul.mubr.f32.gmra.mrb[0].mxu0 %v2138
      %v2360 = vpop.f32.mrb[0].mxu0
      %v2361 = vadd.f32 0.0, %v2360
      %v2362 = vpop.f32.mrb[0].mxu0
      %2363 = vmatprep.mubr.f32.mxu0 0.0
      %2364 = vmatmul.mubr.f32.gmra.mrb[0].mxu0 %v2139
      %v2365 = vpop.f32.mrb[0].mxu0
      %v2366 = vadd.f32 0.0, %v2365
      %v2367 = vpop.f32.mrb[0].mxu0
      %2368 = vmatprep.mubr.f32.mxu0 0.0
      %2369 = vmatmul.mubr.f32.gmra.mrb[0].mxu0 %v2140
      %v2370 = vpop.f32.mrb[0].mxu0
      %v2371 = vadd.f32 0.0, %v2370
      %v2372 = vpop.f32.mrb[0].mxu0
      %2373 = vmatprep.mubr.f32.mxu0 0.0
      %2374 = vmatmul.mubr.f32.gmra.mrb[0].mxu0 %v2141
      %v2375 = vpop.f32.mrb[0].mxu0
      %v2376 = vadd.f32 0.0, %v2375
      %v2377 = vpop.f32.mrb[0].mxu0
      %2378 = vmatprep.mubr.f32.mxu0 0.0
      %2379 = vmatmul.mubr.f32.gmra.mrb[0].mxu0 %v2142
      %v2380 = vpop.f32.mrb[0].mxu0
      %v2381 = vadd.f32 0.0, %v2380
      %v2382 = vpop.f32.mrb[0].mxu0
      %2383 = vmatprep.mubr.f32.mxu0 0.0
      %2384 = vmatmul.mubr.f32.gmra.mrb[0].mxu0 %v2143
      %v2385 = vpop.f32.mrb[0].mxu0
      %v2386 = vadd.f32 0.0, %v2385
      %v2387 = vpop.f32.mrb[0].mxu0
      %2388 = vmatprep.mubr.f32.mxu0 0.0
      %2389 = vmatmul.mubr.f32.gmra.mrb[0].mxu0 %v2144
      %v2390 = vpop.f32.mrb[0].mxu0
      %v2391 = vadd.f32 0.0, %v2390
      %v2392 = vpop.f32.mrb[0].mxu0
      %2393 = vmatprep.mubr.f32.mxu0 0.0
      %2394 = vmatmul.mubr.f32.gmra.mrb[0].mxu0 %v2145
      %v2395 = vpop.f32.mrb[0].mxu0
      %v2396 = vadd.f32 0.0, %v2395
      %v2397 = vpop.f32.mrb[0].mxu0
      %2398 = vmatprep.mubr.f32.mxu0 0.0
      %2399 = vmatmul.mubr.f32.gmra.mrb[0].mxu0 %v2146
      %v2400 = vpop.f32.mrb[0].mxu0
      %v2401 = vadd.f32 0.0, %v2400
      %v2402 = vpop.f32.mrb[0].mxu0
      %2403 = vmatprep.mubr.f32.mxu0 0.0
      %2404 = vmatmul.mubr.f32.gmra.mrb[0].mxu0 %v2147
      %v2405 = vpop.f32.mrb[0].mxu0
      %v2406 = vadd.f32 0.0, %v2405
      %v2407 = vpop.f32.mrb[0].mxu0
      %2408 = vmatprep.mubr.f32.mxu0 0.0
      %2409 = vmatmul.mubr.f32.gmra.mrb[0].mxu0 %v2148
      %v2410 = vpop.f32.mrb[0].mxu0
      %v2411 = vadd.f32 0.0, %v2410
      %v2412 = vpop.f32.mrb[0].mxu0
      %2413 = vmatprep.mubr.f32.mxu0 0.0
      %2414 = vmatmul.mubr.f32.gmra.mrb[0].mxu0 %v2149
      %v2415 = vpop.f32.mrb[0].mxu0
      %v2416 = vadd.f32 0.0, %v2415
      %v2417 = vpop.f32.mrb[0].mxu0
      %2418 = vmatprep.mubr.f32.mxu0 0.0
      %2419 = vmatmul.mubr.f32.gmra.mrb[0].mxu0 %v2150
      %v2420 = vpop.f32.mrb[0].mxu0
      %v2421 = vadd.f32 0.0, %v2420
      %v2422 = vpop.f32.mrb[0].mxu0
      %2423 = vmatprep.mubr.f32.mxu0 0.0
      %2424 = vmatmul.mubr.f32.gmra.mrb[0].mxu0 %v2151
      %v2425 = vpop.f32.mrb[0].mxu0
      %v2426 = vadd.f32 0.0, %v2425
      %v2427 = vpop.f32.mrb[0].mxu0
      %2428 = vmatprep.mubr.f32.mxu0 0.0
      %2429 = vmatmul.mubr.f32.gmra.mrb[0].mxu0 %v2152
      %v2430 = vpop.f32.mrb[0].mxu0
      %v2431 = vadd.f32 0.0, %v2430
      %v2432 = vpop.f32.mrb[0].mxu0
      %2433 = vmatprep.mubr.f32.mxu0 0.0
      %2434 = vmatmul.mubr.f32.gmra.mrb[0].mxu0 %v2153
      %v2435 = vpop.f32.mrb[0].mxu0
      %v2436 = vadd.f32 0.0, %v2435
      %v2437 = vpop.f32.mrb[0].mxu0
      %2438 = vmatprep.mubr.f32.mxu0 0.0
      %2439 = vmatmul.mubr.f32.gmra.mrb[0].mxu0 %v2154
      %v2440 = vpop.f32.mrb[0].mxu0
      %v2441 = vadd.f32 0.0, %v2440
      %v2442 = vpop.f32.mrb[0].mxu0
      %2443 = vmatprep.mubr.f32.mxu0 0.0
      %2444 = vmatmul.mubr.f32.gmra.mrb[0].mxu0 %v2155
      %v2445 = vpop.f32.mrb[0].mxu0
      %v2446 = vadd.f32 0.0, %v2445
      %v2447 = vpop.f32.mrb[0].mxu0
      %2448 = vmatprep.mubr.f32.mxu0 0.0
      %2449 = vmatmul.mubr.f32.gmra.mrb[0].mxu0 %v2156
      %v2450 = vpop.f32.mrb[0].mxu0
      %v2451 = vadd.f32 0.0, %v2450
      %v2452 = vpop.f32.mrb[0].mxu0
      %2453 = vmatprep.mubr.f32.mxu0 0.0
      %2454 = vmatmul.mubr.f32.gmra.mrb[0].mxu0 %v2157
      %v2455 = vpop.f32.mrb[0].mxu0
      %v2456 = vadd.f32 0.0, %v2455
      %v2457 = vpop.f32.mrb[0].mxu0
      %2458 = vmatprep.mubr.f32.mxu0 0.0
      %2459 = vmatmul.mubr.f32.gmra.mrb[0].mxu0 %v2158
      %v2460 = vpop.f32.mrb[0].mxu0
      %v2461 = vadd.f32 0.0, %v2460
      %v2462 = vpop.f32.mrb[0].mxu0
      %2463 = vmatprep.mubr.f32.mxu0 0.0
      %2464 = vmatmul.mubr.f32.gmra.mrb[0].mxu0 %v2159
      %v2465 = vpop.f32.mrb[0].mxu0
      %v2466 = vadd.f32 0.0, %v2465
      %v2467 = vpop.f32.mrb[0].mxu0
      %2468 = vmatprep.mubr.f32.mxu0 0.0
      %2469 = vmatmul.mubr.f32.gmra.mrb[0].mxu0 %v2160
      %v2470 = vpop.f32.mrb[0].mxu0
      %v2471 = vadd.f32 0.0, %v2470
      %v2472 = vpop.f32.mrb[0].mxu0
      %2473 = vmatprep.mubr.f32.mxu0 0.0
      %2474 = vmatmul.mubr.f32.gmra.mrb[0].mxu0 %v2161
      %v2475 = vpop.f32.mrb[0].mxu0
      %v2476 = vadd.f32 0.0, %v2475
      %v2477 = vpop.f32.mrb[0].mxu0
      %2478 = vmatprep.mubr.f32.mxu0 0.0
      %2479 = vmatmul.mubr.f32.gmra.mrb[0].mxu0 %v2162
      %v2480 = vpop.f32.mrb[0].mxu0
      %v2481 = vadd.f32 0.0, %v2480
      %v2482 = vpop.f32.mrb[0].mxu0
      %2483 = vmatprep.mubr.f32.mxu0 0.0
      %2484 = vmatmul.mubr.f32.gmra.mrb[0].mxu0 %v2163
      %v2485 = vpop.f32.mrb[0].mxu0
      %v2486 = vadd.f32 0.0, %v2485
      %v2487 = vpop.f32.mrb[0].mxu0
      %2488 = vmatprep.mubr.f32.mxu0 0.0
      %2489 = vmatmul.mubr.f32.gmra.mrb[0].mxu0 %v2164
      %v2490 = vpop.f32.mrb[0].mxu0
      %v2491 = vadd.f32 0.0, %v2490
      %v2492 = vpop.f32.mrb[0].mxu0
      %2493 = vmatprep.mubr.f32.mxu0 0.0
      %2494 = vmatmul.mubr.f32.gmra.mrb[0].mxu0 %v2165
      %v2495 = vpop.f32.mrb[0].mxu0
      %v2496 = vadd.f32 0.0, %v2495
      %v2497 = vpop.f32.mrb[0].mxu0
      %2498 = vmatprep.mubr.f32.mxu0 0.0
      %2499 = vmatmul.mubr.f32.gmra.mrb[0].mxu0 %v2166
      %v2500 = vpop.f32.mrb[0].mxu0
      %v2501 = vadd.f32 0.0, %v2500
      %v2502 = vpop.f32.mrb[0].mxu0
      %2503 = vmatprep.mubr.f32.mxu0 0.0
      %2504 = vmatmul.mubr.f32.gmra.mrb[0].mxu0 %v2167
      %v2505 = vpop.f32.mrb[0].mxu0
      %v2506 = vadd.f32 0.0, %v2505
      %v2507 = vpop.f32.mrb[0].mxu0
      %2508 = vmatprep.mubr.f32.mxu0 0.0
      %2509 = vmatmul.mubr.f32.gmra.mrb[0].mxu0 %v2168
      %v2510 = vpop.f32.mrb[0].mxu0
      %v2511 = vadd.f32 0.0, %v2510
      %v2512 = vpop.f32.mrb[0].mxu0
      %2513 = vmatprep.mubr.f32.mxu0 0.0
      %2514 = vmatmul.mubr.f32.gmra.mrb[0].mxu0 %v2169
      %v2515 = vpop.f32.mrb[0].mxu0
      %v2516 = vadd.f32 0.0, %v2515
      %v2517 = vpop.f32.mrb[0].mxu0
      %2518 = vmatprep.mubr.f32.mxu0 0.0
      %2519 = vmatmul.mubr.f32.gmra.mrb[0].mxu0 %v2170
      %v2520 = vpop.f32.mrb[0].mxu0
      %v2521 = vadd.f32 0.0, %v2520
      %v2522 = vpop.f32.mrb[0].mxu0
      %2523 = vmatprep.mubr.f32.mxu0 0.0
      %2524 = vmatmul.mubr.f32.gmra.mrb[0].mxu0 %v2171
      %v2525 = vpop.f32.mrb[0].mxu0
      %v2526 = vadd.f32 0.0, %v2525
      %v2527 = vpop.f32.mrb[0].mxu0
      %2528 = vmatprep.mubr.f32.mxu0 0.0
      %2529 = vmatmul.mubr.f32.gmra.mrb[0].mxu0 %v2172
      %v2530 = vpop.f32.mrb[0].mxu0
      %v2531 = vadd.f32 0.0, %v2530
      %v2532 = vpop.f32.mrb[0].mxu0
      %2533 = vmatprep.mubr.f32.mxu0 0.0
      %2534 = vmatmul.mubr.f32.gmra.mrb[0].mxu0 %v2173
      %v2535 = vpop.f32.mrb[0].mxu0
      %v2536 = vadd.f32 0.0, %v2535
      %v2537 = vpop.f32.mrb[0].mxu0
      %2538 = vmatprep.mubr.f32.mxu0 0.0
      %2539 = vmatmul.mubr.f32.gmra.mrb[0].mxu0 %v2174
      %v2540 = vpop.f32.mrb[0].mxu0
      %v2541 = vadd.f32 0.0, %v2540
      %v2542 = vpop.f32.mrb[0].mxu0
      %2543 = vmatprep.mubr.f32.mxu0 0.0
      %2544 = vmatmul.mubr.f32.gmra.mrb[0].mxu0 %v2175
      %v2545 = vpop.f32.mrb[0].mxu0
      %v2546 = vadd.f32 0.0, %v2545
      %v2547 = vpop.f32.mrb[0].mxu0
      %2548 = vmatprep.mubr.f32.mxu0 0.0
      %2549 = vmatmul.mubr.f32.gmra.mrb[0].mxu0 %v2176
      %v2550 = vpop.f32.mrb[0].mxu0
      %v2551 = vadd.f32 0.0, %v2550
      %v2552 = vpop.f32.mrb[0].mxu0
      %2553 = vmatprep.mubr.f32.mxu0 0.0
      %2554 = vmatmul.mubr.f32.gmra.mrb[0].mxu0 %v2177
      %v2555 = vpop.f32.mrb[0].mxu0
      %v2556 = vadd.f32 0.0, %v2555
      %v2557 = vpop.f32.mrb[0].mxu0
      %2558 = vmatprep.mubr.f32.mxu0 0.0
      %2559 = vmatmul.mubr.f32.gmra.mrb[0].mxu0 %v2178
      %v2560 = vpop.f32.mrb[0].mxu0
      %v2561 = vadd.f32 0.0, %v2560
      %v2562 = vpop.f32.mrb[0].mxu0
      %2563 = vmatprep.mubr.f32.mxu0 0.0
      %2564 = vmatmul.mubr.f32.gmra.mrb[0].mxu0 %v2179
      %v2565 = vpop.f32.mrb[0].mxu0
      %v2566 = vadd.f32 0.0, %v2565
      %v2567 = vpop.f32.mrb[0].mxu0
      %2568 = vmatprep.mubr.f32.mxu0 0.0
      %2569 = vmatmul.mubr.f32.gmra.mrb[0].mxu0 %v2180
      %v2570 = vpop.f32.mrb[0].mxu0
      %v2571 = vadd.f32 0.0, %v2570
      %v2572 = vpop.f32.mrb[0].mxu0
      %2573 = vmatprep.mubr.f32.mxu0 0.0
      %2574 = vmatmul.mubr.f32.gmra.mrb[0].mxu0 %v2181
      %v2575 = vpop.f32.mrb[0].mxu0
      %v2576 = vadd.f32 0.0, %v2575
      %v2577 = vpop.f32.mrb[0].mxu0
      %2578 = vmatprep.mubr.f32.mxu0 0.0
      %2579 = vmatmul.mubr.f32.gmra.mrb[0].mxu0 %v2182
      %v2580 = vpop.f32.mrb[0].mxu0
      %v2581 = vadd.f32 0.0, %v2580
      %v2582 = vpop.f32.mrb[0].mxu0
      %2583 = vmatprep.mubr.f32.mxu0 0.0
      %2584 = vmatmul.mubr.f32.gmra.mrb[0].mxu0 %v2183
      %v2585 = vpop.f32.mrb[0].mxu0
      %v2586 = vadd.f32 0.0, %v2585
      %v2587 = vpop.f32.mrb[0].mxu0
      %2588 = vmatprep.mubr.f32.mxu0 0.0
      %2589 = vmatmul.mubr.f32.gmra.mrb[0].mxu0 %v2184
      %v2590 = vpop.f32.mrb[0].mxu0
      %v2591 = vadd.f32 0.0, %v2590
      %v2592 = vpop.f32.mrb[0].mxu0
      %2593 = vmatprep.mubr.f32.mxu0 0.0
      %2594 = vmatmul.mubr.f32.gmra.mrb[0].mxu0 %v2185
      %v2595 = vpop.f32.mrb[0].mxu0
      %v2596 = vadd.f32 0.0, %v2595
      %v2597 = vpop.f32.mrb[0].mxu0
      %2598 = vmatprep.mubr.f32.mxu0 0.0
      %2599 = vmatmul.mubr.f32.gmra.mrb[0].mxu0 %v2186
      %v2600 = vpop.f32.mrb[0].mxu0
      %v2601 = vadd.f32 0.0, %v2600
      %v2602 = vpop.f32.mrb[0].mxu0
      %2603 = vmatprep.mubr.f32.mxu0 0.0
      %2604 = vmatmul.mubr.f32.gmra.mrb[0].mxu0 %v2187
      %v2605 = vpop.f32.mrb[0].mxu0
      %v2606 = vadd.f32 0.0, %v2605
      %v2607 = vpop.f32.mrb[0].mxu0
      %2608 = vmatprep.mubr.f32.mxu0 0.0
      %2609 = vmatmul.mubr.f32.gmra.mrb[0].mxu0 %v2188
      %v2610 = vpop.f32.mrb[0].mxu0
      %v2611 = vadd.f32 0.0, %v2610
      %v2612 = vpop.f32.mrb[0].mxu0
      %2613 = vmatprep.mubr.f32.mxu0 0.0
      %2614 = vmatmul.mubr.f32.gmra.mrb[0].mxu0 %v2189
      %v2615 = vpop.f32.mrb[0].mxu0
      %v2616 = vadd.f32 0.0, %v2615
      %v2617 = vpop.f32.mrb[0].mxu0
      %2618 = vmatprep.mubr.f32.mxu0 0.0
      %2619 = vmatmul.mubr.f32.gmra.mrb[0].mxu0 %v2190
      %v2620 = vpop.f32.mrb[0].mxu0
      %v2621 = vadd.f32 0.0, %v2620
      %v2622 = vpop.f32.mrb[0].mxu0
      %2623 = vmatprep.mubr.f32.mxu0 0.0
      %2624 = vmatmul.mubr.f32.gmra.mrb[0].mxu0 %v2191
      %v2625 = vpop.f32.mrb[0].mxu0
      %v2626 = vadd.f32 0.0, %v2625
      %v2627 = vpop.f32.mrb[0].mxu0
      %2628 = vmatprep.mubr.f32.mxu0 0.0
      %2629 = vmatmul.mubr.f32.gmra.mrb[0].mxu0 %v2192
      %v2630 = vpop.f32.mrb[0].mxu0
      %v2631 = vadd.f32 0.0, %v2630
      %v2632 = vpop.f32.mrb[0].mxu0
      %2633 = vmatprep.mubr.f32.mxu0 0.0
      %2634 = vmatmul.mubr.f32.gmra.mrb[0].mxu0 %v2193
      %v2635 = vpop.f32.mrb[0].mxu0
      %v2636 = vadd.f32 0.0, %v2635
      %v2637 = vpop.f32.mrb[0].mxu0
      %2638 = vmatprep.mubr.f32.mxu0 0.0
      %2639 = vmatmul.mubr.f32.gmra.mrb[0].mxu0 %v2194
      %v2640 = vpop.f32.mrb[0].mxu0
      %v2641 = vadd.f32 0.0, %v2640
      %v2642 = vpop.f32.mrb[0].mxu0
      %2643 = vmatprep.mubr.f32.mxu0 0.0
      %2644 = vmatmul.mubr.f32.gmra.mrb[0].mxu0 %v2195
      %v2645 = vpop.f32.mrb[0].mxu0
      %v2646 = vadd.f32 0.0, %v2645
      %v2647 = vpop.f32.mrb[0].mxu0
      %2648 = vmatprep.mubr.f32.mxu0 0.0
      %2649 = vmatmul.mubr.f32.gmra.mrb[0].mxu0 %v2196
      %v2650 = vpop.f32.mrb[0].mxu0
      %v2651 = vadd.f32 0.0, %v2650
      %v2652 = vpop.f32.mrb[0].mxu0
      %2653 = vmatprep.mubr.f32.mxu0 0.0
      %2654 = vmatmul.mubr.f32.gmra.mrb[0].mxu0 %v2197
      %v2655 = vpop.f32.mrb[0].mxu0
      %v2656 = vadd.f32 0.0, %v2655
      %v2657 = vpop.f32.mrb[0].mxu0
      %2658 = vmatprep.mubr.f32.mxu0 0.0
      %2659 = vmatmul.mubr.f32.gmra.mrb[0].mxu0 %v2198
      %v2660 = vpop.f32.mrb[0].mxu0
      %v2661 = vadd.f32 0.0, %v2660
      %v2662 = vpop.f32.mrb[0].mxu0
      %2663 = vmatprep.mubr.f32.mxu0 0.0
      %2664 = vmatmul.mubr.f32.gmra.mrb[0].mxu0 %v2199
      %v2665 = vpop.f32.mrb[0].mxu0
      %v2666 = vadd.f32 0.0, %v2665
      %v2667 = vpop.f32.mrb[0].mxu0
      %2668 = vmatprep.mubr.f32.mxu0 0.0
      %2669 = vmatmul.mubr.f32.gmra.mrb[0].mxu0 %v2200
      %v2670 = vpop.f32.mrb[0].mxu0
      %v2671 = vadd.f32 0.0, %v2670
      %v2672 = vpop.f32.mrb[0].mxu0
      %2673 = vmatprep.mubr.f32.mxu0 0.0
      %2674 = vmatmul.mubr.f32.gmra.mrb[0].mxu0 %v2201
      %v2675 = vpop.f32.mrb[0].mxu0
      %v2676 = vadd.f32 0.0, %v2675
      %v2677 = vpop.f32.mrb[0].mxu0
      %2678 = vmatprep.mubr.f32.mxu0 0.0
      %2679 = vmatmul.mubr.f32.gmra.mrb[0].mxu0 %v2202
      %v2680 = vpop.f32.mrb[0].mxu0
      %v2681 = vadd.f32 0.0, %v2680
      %v2682 = vpop.f32.mrb[0].mxu0
      %2683 = vmatprep.mubr.f32.mxu0 0.0
      %2684 = vmatmul.mubr.f32.gmra.mrb[0].mxu0 %v2203
      %v2685 = vpop.f32.mrb[0].mxu0
      %v2686 = vadd.f32 0.0, %v2685
      %v2687 = vpop.f32.mrb[0].mxu0
      %2688 = vmatprep.mubr.f32.mxu0 0.0
      %2689 = vmatmul.mubr.f32.gmra.mrb[0].mxu0 %v2204
      %v2690 = vpop.f32.mrb[0].mxu0
      %v2691 = vadd.f32 0.0, %v2690
      %v2692 = vpop.f32.mrb[0].mxu0
      %2693 = vmatprep.mubr.f32.mxu0 0.0
      %2694 = vmatmul.mubr.f32.gmra.mrb[0].mxu0 %v2205
      %v2695 = vpop.f32.mrb[0].mxu0
      %v2696 = vadd.f32 0.0, %v2695
      %v2697 = vpop.f32.mrb[0].mxu0
      %2698 = vmatprep.mubr.f32.mxu0 0.0
      %2699 = vmatmul.mubr.f32.gmra.mrb[0].mxu0 %v2206
      %v2700 = vpop.f32.mrb[0].mxu0
      %v2701 = vadd.f32 0.0, %v2700
      %v2702 = vpop.f32.mrb[0].mxu0
      %2703 = vmatprep.mubr.f32.mxu0 0.0
      %2704 = vmatmul.mubr.f32.gmra.mrb[0].mxu0 %v2207
      %v2705 = vpop.f32.mrb[0].mxu0
      %v2706 = vadd.f32 0.0, %v2705
      %v2707 = vpop.f32.mrb[0].mxu0
      %2708 = vmatprep.mubr.f32.mxu0 0.0
      %2709 = vmatmul.mubr.f32.gmra.mrb[0].mxu0 %v2208
      %v2710 = vpop.f32.mrb[0].mxu0
      %v2711 = vadd.f32 0.0, %v2710
      %v2712 = vpop.f32.mrb[0].mxu0
      %2713 = vmatprep.mubr.f32.mxu0 0.0
      %2714 = vmatmul.mubr.f32.gmra.mrb[0].mxu0 %v2209
      %v2715 = vpop.f32.mrb[0].mxu0
      %v2716 = vadd.f32 0.0, %v2715
      %v2717 = vpop.f32.mrb[0].mxu0
      %2718 = vmatprep.mubr.f32.mxu0 0.0
      %2719 = vmatmul.mubr.f32.gmra.mrb[0].mxu0 %v2210
      %v2720 = vpop.f32.mrb[0].mxu0
      %v2721 = vadd.f32 0.0, %v2720
      %v2722 = vpop.f32.mrb[0].mxu0
      %2723 = vmatprep.mubr.f32.mxu0 0.0
      %2724 = vmatmul.mubr.f32.gmra.mrb[0].mxu0 %v2211
      %v2725 = vpop.f32.mrb[0].mxu0
      %v2726 = vadd.f32 0.0, %v2725
      %v2727 = vpop.f32.mrb[0].mxu0
      %2728 = vmatprep.mubr.f32.mxu0 0.0
      %2729 = vmatmul.mubr.f32.gmra.mrb[0].mxu0 %v2212
      %v2730 = vpop.f32.mrb[0].mxu0
      %v2731 = vadd.f32 0.0, %v2730
      %v2732 = vpop.f32.mrb[0].mxu0
      %2733 = vmatprep.mubr.f32.mxu0 0.0
      %2734 = vmatmul.mubr.f32.gmra.mrb[0].mxu0 %v2213
      %v2735 = vpop.f32.mrb[0].mxu0
      %v2736 = vadd.f32 0.0, %v2735
      %v2737 = vpop.f32.mrb[0].mxu0
      %2738 = vmatprep.mubr.f32.mxu0 0.0
      %2739 = vmatmul.mubr.f32.gmra.mrb[0].mxu0 %v2214
      %v2740 = vpop.f32.mrb[0].mxu0
      %v2741 = vadd.f32 0.0, %v2740
      %v2742 = vpop.f32.mrb[0].mxu0
      %2743 = vmatprep.mubr.f32.mxu0 0.0
      %2744 = vmatmul.mubr.f32.gmra.mrb[0].mxu0 %v2215
      %v2745 = vpop.f32.mrb[0].mxu0
      %v2746 = vadd.f32 0.0, %v2745
      %v2747 = vpop.f32.mrb[0].mxu0
      %2748 = vmatprep.mubr.f32.mxu0 0.0
      %2749 = vmatmul.mubr.f32.gmra.mrb[0].mxu0 %v2216
      %v2750 = vpop.f32.mrb[0].mxu0
      %v2751 = vadd.f32 0.0, %v2750
      %v2752 = vpop.f32.mrb[0].mxu0
      %2753 = vmatprep.mubr.f32.mxu0 0.0
      %2754 = vmatmul.mubr.f32.gmra.mrb[0].mxu0 %v2217
      %v2755 = vpop.f32.mrb[0].mxu0
      %v2756 = vadd.f32 0.0, %v2755
      %v2757 = vpop.f32.mrb[0].mxu0
      %2758 = vmatprep.mubr.f32.mxu0 0.0
      %2759 = vmatmul.mubr.f32.gmra.mrb[0].mxu0 %v2218
      %v2760 = vpop.f32.mrb[0].mxu0
      %v2761 = vadd.f32 0.0, %v2760
      %v2762 = vpop.f32.mrb[0].mxu0
      %2763 = vmatprep.mubr.f32.mxu0 0.0
      %2764 = vmatmul.mubr.f32.gmra.mrb[0].mxu0 %v2219
      %v2765 = vpop.f32.mrb[0].mxu0
      %v2766 = vadd.f32 0.0, %v2765
      %v2767 = vpop.f32.mrb[0].mxu0
      %2768 = vmatprep.mubr.f32.mxu0 0.0
      %2769 = vmatmul.mubr.f32.gmra.mrb[0].mxu0 %v2220
      %v2770 = vpop.f32.mrb[0].mxu0
      %v2771 = vadd.f32 0.0, %v2770
      %v2772 = vpop.f32.mrb[0].mxu0
      %2773 = vmatprep.mubr.f32.mxu0 0.0
      %2774 = vmatmul.mubr.f32.gmra.mrb[0].mxu0 %v2221
      %v2775 = vpop.f32.mrb[0].mxu0
      %v2776 = vadd.f32 0.0, %v2775
      %v2777 = vpop.f32.mrb[0].mxu0
      %2778 = vmatprep.mubr.f32.mxu0 0.0
      %2779 = vmatmul.mubr.f32.gmra.mrb[0].mxu0 %v2222
      %v2780 = vpop.f32.mrb[0].mxu0
      %v2781 = vadd.f32 0.0, %v2780
      %v2782 = vpop.f32.mrb[0].mxu0
      %2783 = vmatprep.mubr.f32.mxu0 0.0
      %2784 = vmatmul.mubr.f32.gmra.mrb[0].mxu0 %v2223
      %v2785 = vpop.f32.mrb[0].mxu0
      %v2786 = vadd.f32 0.0, %v2785
      %v2787 = vpop.f32.mrb[0].mxu0
      %2788 = vmatprep.mubr.f32.mxu0 0.0
      %2789 = vmatmul.mubr.f32.gmra.mrb[0].mxu0 %v2224
      %v2790 = vpop.f32.mrb[0].mxu0
      %v2791 = vadd.f32 0.0, %v2790
      %v2792 = vpop.f32.mrb[0].mxu0
      %2793 = vmatprep.mubr.f32.mxu0 0.0
      %2794 = vmatmul.mubr.f32.gmra.mrb[0].mxu0 %v2225
      %v2795 = vpop.f32.mrb[0].mxu0
      %v2796 = vadd.f32 0.0, %v2795
      %v2797 = vpop.f32.mrb[0].mxu0
      %2798 = vmatprep.mubr.f32.mxu0 0.0
      %2799 = vmatmul.mubr.f32.gmra.mrb[0].mxu0 %v2226
      %v2800 = vpop.f32.mrb[0].mxu0
      %v2801 = vadd.f32 0.0, %v2800
      %v2802 = vpop.f32.mrb[0].mxu0
      %2803 = vmatprep.mubr.f32.mxu0 0.0
      %2804 = vmatmul.mubr.f32.gmra.mrb[0].mxu0 %v2227
      %v2805 = vpop.f32.mrb[0].mxu0
      %v2806 = vadd.f32 0.0, %v2805
      %v2807 = vpop.f32.mrb[0].mxu0
      %2808 = vmatprep.mubr.f32.mxu0 0.0
      %2809 = vmatmul.mubr.f32.gmra.mrb[0].mxu0 %v2228
      %v2810 = vpop.f32.mrb[0].mxu0
      %v2811 = vadd.f32 0.0, %v2810
      %v2812 = vpop.f32.mrb[0].mxu0
      %2813 = vmatprep.mubr.f32.mxu0 0.0
      %2814 = vmatmul.mubr.f32.gmra.mrb[0].mxu0 %v2229
      %v2815 = vpop.f32.mrb[0].mxu0
      %v2816 = vadd.f32 0.0, %v2815
      %v2817 = vpop.f32.mrb[0].mxu0
      %2818 = vmatprep.mubr.f32.mxu0 0.0
      %2819 = vmatmul.mubr.f32.gmra.mrb[0].mxu0 %v2230
      %v2820 = vpop.f32.mrb[0].mxu0
      %v2821 = vadd.f32 0.0, %v2820
      %v2822 = vpop.f32.mrb[0].mxu0
      %2823 = vmatprep.mubr.f32.mxu0 0.0
      %2824 = vmatmul.mubr.f32.gmra.mrb[0].mxu0 %v2231
      %v2825 = vpop.f32.mrb[0].mxu0
      %v2826 = vadd.f32 0.0, %v2825
      %v2827 = vpop.f32.mrb[0].mxu0
      %2828 = vmatprep.mubr.f32.mxu0 0.0
      %2829 = vmatmul.mubr.f32.gmra.mrb[0].mxu0 %v2232
      %v2830 = vpop.f32.mrb[0].mxu0
      %v2831 = vadd.f32 0.0, %v2830
      %v2832 = vpop.f32.mrb[0].mxu0
      %2833 = vmatprep.mubr.f32.mxu0 0.0
      %2834 = vmatmul.mubr.f32.gmra.mrb[0].mxu0 %v2233
      %v2835 = vpop.f32.mrb[0].mxu0
      %v2836 = vadd.f32 0.0, %v2835
      %v2837 = vpop.f32.mrb[0].mxu0
      %2838 = vmatprep.mubr.f32.mxu0 0.0
      %2839 = vmatmul.mubr.f32.gmra.mrb[0].mxu0 %v2234
      %v2840 = vpop.f32.mrb[0].mxu0
      %v2841 = vadd.f32 0.0, %v2840
      %v2842 = vpop.f32.mrb[0].mxu0
      %2843 = vmatprep.mubr.f32.mxu0 0.0
      %2844 = vmatmul.mubr.f32.gmra.mrb[0].mxu0 %v2235
      %v2845 = vpop.f32.mrb[0].mxu0
      %v2846 = vadd.f32 0.0, %v2845
      %v2847 = vpop.f32.mrb[0].mxu0
      %2848 = vmatprep.mubr.f32.mxu0 0.0
      %2849 = vmatmul.mubr.f32.gmra.mrb[0].mxu0 %v2236
      %v2850 = vpop.f32.mrb[0].mxu0
      %v2851 = vadd.f32 0.0, %v2850
      %v2852 = vpop.f32.mrb[0].mxu0
      %2853 = vmatprep.mubr.f32.mxu0 0.0
      %2854 = vmatmul.mubr.f32.gmra.mrb[0].mxu0 %v2237
      %v2855 = vpop.f32.mrb[0].mxu0
      %v2856 = vadd.f32 0.0, %v2855
      %v2857 = vpop.f32.mrb[0].mxu0
      %2858 = vmatprep.mubr.f32.mxu0 0.0
      %2859 = vmatmul.mubr.f32.gmra.mrb[0].mxu0 %v2238
      %v2860 = vpop.f32.mrb[0].mxu0
      %v2861 = vadd.f32 0.0, %v2860
      %v2862 = vpop.f32.mrb[0].mxu0
      %2863 = vmatprep.mubr.f32.mxu0 0.0
      %2864 = vmatmul.mubr.f32.gmra.mrb[0].mxu0 %v2239
      %v2865 = vpop.f32.mrb[0].mxu0
      %v2866 = vadd.f32 0.0, %v2865
      %v2867 = vpop.f32.mrb[0].mxu0
      %2868 = vmatprep.mubr.f32.mxu0 0.0
      %2869 = vmatmul.mubr.f32.gmra.mrb[0].mxu0 %v2240
      %v2870 = vpop.f32.mrb[0].mxu0
      %v2871 = vadd.f32 0.0, %v2870
      %v2872 = vpop.f32.mrb[0].mxu0
      %2873 = vmatprep.mubr.f32.mxu0 0.0
      %2874 = vmatmul.mubr.f32.gmra.mrb[0].mxu0 %v2241
      %v2875 = vpop.f32.mrb[0].mxu0
      %v2876 = vadd.f32 0.0, %v2875
      %v2877 = vpop.f32.mrb[0].mxu0
      %2878 = vmatprep.mubr.f32.mxu0 0.0
      %2879 = vmatmul.mubr.f32.gmra.mrb[0].mxu0 %v2242
      %v2880 = vpop.f32.mrb[0].mxu0
      %v2881 = vadd.f32 0.0, %v2880
      %v2882 = vpop.f32.mrb[0].mxu0
      %2883 = vmatprep.mubr.f32.mxu0 0.0
      %2884 = vmatmul.mubr.f32.gmra.mrb[0].mxu0 %v2243
      %v2885 = vpop.f32.mrb[0].mxu0
      %v2886 = vadd.f32 0.0, %v2885
      %v2887 = vpop.f32.mrb[0].mxu0
      %2888 = vmatprep.mubr.f32.mxu0 0.0
      %2889 = vmatmul.mubr.f32.gmra.mrb[0].mxu0 %v2244
      %v2890 = vpop.f32.mrb[0].mxu0
      %v2891 = vadd.f32 0.0, %v2890
      %v2892 = vpop.f32.mrb[0].mxu0
      %2893 = vmatprep.mubr.f32.mxu0 0.0
      %2894 = vmatmul.mubr.f32.gmra.mrb[0].mxu0 %v2245
      %v2895 = vpop.f32.mrb[0].mxu0
      %v2896 = vadd.f32 0.0, %v2895
      %v2897 = vpop.f32.mrb[0].mxu0
      %2898 = vmatprep.mubr.f32.mxu0 0.0
      %2899 = vmatmul.mubr.f32.gmra.mrb[0].mxu0 %v2246
      %v2900 = vpop.f32.mrb[0].mxu0
      %v2901 = vadd.f32 0.0, %v2900
      %v2902 = vpop.f32.mrb[0].mxu0
      %2903 = vmatprep.mubr.f32.mxu0 0.0
      %2904 = vmatmul.mubr.f32.gmra.mrb[0].mxu0 %v2247
      %v2905 = vpop.f32.mrb[0].mxu0
      %v2906 = vadd.f32 0.0, %v2905
      %v2907 = vpop.f32.mrb[0].mxu0
      %2908 = vmatprep.mubr.f32.mxu0 0.0
      %2909 = vmatmul.mubr.f32.gmra.mrb[0].mxu0 %v2248
      %v2910 = vpop.f32.mrb[0].mxu0
      %v2911 = vadd.f32 0.0, %v2910
      %v2912 = vpop.f32.mrb[0].mxu0
      %2913 = vmatprep.mubr.f32.mxu0 0.0
      %2914 = vmatmul.mubr.f32.gmra.mrb[0].mxu0 %v2249
      %v2915 = vpop.f32.mrb[0].mxu0
      %v2916 = vadd.f32 0.0, %v2915
      %v2917 = vpop.f32.mrb[0].mxu0
      %2918 = vmatprep.mubr.f32.mxu0 0.0
      %2919 = vmatmul.mubr.f32.gmra.mrb[0].mxu0 %v2250
      %v2920 = vpop.f32.mrb[0].mxu0
      %v2921 = vadd.f32 0.0, %v2920
      %v2922 = vpop.f32.mrb[0].mxu0
      %2923 = vmatprep.mubr.f32.mxu0 0.0
      %2924 = vmatmul.mubr.f32.gmra.mrb[0].mxu0 %v2251
      %v2925 = vpop.f32.mrb[0].mxu0
      %v2926 = vadd.f32 0.0, %v2925
      %v2927 = vpop.f32.mrb[0].mxu0
      %2928 = vmatprep.mubr.f32.mxu0 0.0
      %2929 = vmatmul.mubr.f32.gmra.mrb[0].mxu0 %v2252
      %v2930 = vpop.f32.mrb[0].mxu0
      %v2931 = vadd.f32 0.0, %v2930
      %v2932 = vpop.f32.mrb[0].mxu0
      %2933 = vmatprep.mubr.f32.mxu0 0.0
      %2934 = vmatmul.mubr.f32.gmra.mrb[0].mxu0 %v2253
      %v2935 = vpop.f32.mrb[0].mxu0
      %v2936 = vadd.f32 0.0, %v2935
      %v2937 = vpop.f32.mrb[0].mxu0
      %2938 = vmatprep.mubr.f32.mxu0 0.0
      %2939 = vmatmul.mubr.f32.gmra.mrb[0].mxu0 %v2254
      %v2940 = vpop.f32.mrb[0].mxu0
      %v2941 = vadd.f32 0.0, %v2940
      %v2942 = vpop.f32.mrb[0].mxu0
      %2943 = vmatprep.mubr.f32.mxu0 0.0
      %2944 = vmatmul.mubr.f32.gmra.mrb[0].mxu0 %v2255
      %v2945 = vpop.f32.mrb[0].mxu0
      %v2946 = vadd.f32 0.0, %v2945
      %v2947 = vpop.f32.mrb[0].mxu0
      %2948 = vmatprep.mubr.f32.mxu0 0.0
      %2949 = vmatmul.mubr.f32.gmra.mrb[0].mxu0 %v2256
      %v2950 = vpop.f32.mrb[0].mxu0
      %v2951 = vadd.f32 0.0, %v2950
      %v2952 = vpop.f32.mrb[0].mxu0
      %2953 = vmatprep.mubr.f32.mxu0 0.0
      %2954 = vmatmul.mubr.f32.gmra.mrb[0].mxu0 %v2257
      %v2955 = vpop.f32.mrb[0].mxu0
      %v2956 = vadd.f32 0.0, %v2955
      %v2957 = vpop.f32.mrb[0].mxu0
      %2958 = vmatprep.mubr.f32.mxu0 0.0
      %2959 = vmatmul.mubr.f32.gmra.mrb[0].mxu0 %v2258
      %v2960 = vpop.f32.mrb[0].mxu0
      %v2961 = vadd.f32 0.0, %v2960
      %v2962 = vpop.f32.mrb[0].mxu0
      %2963 = vdwg.mxu0
      %v2964 = vmax.f32 %v2003, %v2326
      %v2965 = vmax.f32 %v2004, %v2331
      %v2966 = vmax.f32 %v2005, %v2336
      %v2967 = vmax.f32 %v2006, %v2341
      %v2968 = vmax.f32 %v2007, %v2346
      %v2969 = vmax.f32 %v2008, %v2351
      %v2970 = vmax.f32 %v2009, %v2356
      %v2971 = vmax.f32 %v2010, %v2361
      %v2972 = vmax.f32 %v2011, %v2366
      %v2973 = vmax.f32 %v2012, %v2371
      %v2974 = vmax.f32 %v2013, %v2376
      %v2975 = vmax.f32 %v2014, %v2381
      %v2976 = vmax.f32 %v2015, %v2386
      %v2977 = vmax.f32 %v2016, %v2391
      %v2978 = vmax.f32 %v2017, %v2396
      %v2979 = vmax.f32 %v2018, %v2401
      %v2980 = vmax.f32 %v2019, %v2406
      %v2981 = vmax.f32 %v2020, %v2411
      %v2982 = vmax.f32 %v2021, %v2416
      %v2983 = vmax.f32 %v2022, %v2421
      %v2984 = vmax.f32 %v2023, %v2426
      %v2985 = vmax.f32 %v2024, %v2431
      %v2986 = vmax.f32 %v2025, %v2436
      %v2987 = vmax.f32 %v2026, %v2441
      %v2988 = vmax.f32 %v2027, %v2446
      %v2989 = vmax.f32 %v2028, %v2451
      %v2990 = vmax.f32 %v2029, %v2456
      %v2991 = vmax.f32 %v2030, %v2461
      %v2992 = vmax.f32 %v2031, %v2466
      %v2993 = vmax.f32 %v2032, %v2471
      %v2994 = vmax.f32 %v2033, %v2476
      %v2995 = vmax.f32 %v2034, %v2481
      %v2996 = vmax.f32 %v2035, %v2486
      %v2997 = vmax.f32 %v2036, %v2491
      %v2998 = vmax.f32 %v2037, %v2496
      %v2999 = vmax.f32 %v2038, %v2501
      %v3000 = vmax.f32 %v2039, %v2506
      %v3001 = vmax.f32 %v2040, %v2511
      %v3002 = vmax.f32 %v2041, %v2516
      %v3003 = vmax.f32 %v2042, %v2521
      %v3004 = vmax.f32 %v2043, %v2526
      %v3005 = vmax.f32 %v2044, %v2531
      %v3006 = vmax.f32 %v2045, %v2536
      %v3007 = vmax.f32 %v2046, %v2541
      %v3008 = vmax.f32 %v2047, %v2546
      %v3009 = vmax.f32 %v2048, %v2551
      %v3010 = vmax.f32 %v2049, %v2556
      %v3011 = vmax.f32 %v2050, %v2561
      %v3012 = vmax.f32 %v2051, %v2566
      %v3013 = vmax.f32 %v2052, %v2571
      %v3014 = vmax.f32 %v2053, %v2576
      %v3015 = vmax.f32 %v2054, %v2581
      %v3016 = vmax.f32 %v2055, %v2586
      %v3017 = vmax.f32 %v2056, %v2591
      %v3018 = vmax.f32 %v2057, %v2596
      %v3019 = vmax.f32 %v2058, %v2601
      %v3020 = vmax.f32 %v2059, %v2606
      %v3021 = vmax.f32 %v2060, %v2611
      %v3022 = vmax.f32 %v2061, %v2616
      %v3023 = vmax.f32 %v2062, %v2621
      %v3024 = vmax.f32 %v2063, %v2626
      %v3025 = vmax.f32 %v2064, %v2631
      %v3026 = vmax.f32 %v2065, %v2636
      %v3027 = vmax.f32 %v2066, %v2641
      %v3028 = vmax.f32 %v2067, %v2646
      %v3029 = vmax.f32 %v2068, %v2651
      %v3030 = vmax.f32 %v2069, %v2656
      %v3031 = vmax.f32 %v2070, %v2661
      %v3032 = vmax.f32 %v2071, %v2666
      %v3033 = vmax.f32 %v2072, %v2671
      %v3034 = vmax.f32 %v2073, %v2676
      %v3035 = vmax.f32 %v2074, %v2681
      %v3036 = vmax.f32 %v2075, %v2686
      %v3037 = vmax.f32 %v2076, %v2691
      %v3038 = vmax.f32 %v2077, %v2696
      %v3039 = vmax.f32 %v2078, %v2701
      %v3040 = vmax.f32 %v2079, %v2706
      %v3041 = vmax.f32 %v2080, %v2711
      %v3042 = vmax.f32 %v2081, %v2716
      %v3043 = vmax.f32 %v2082, %v2721
      %v3044 = vmax.f32 %v2083, %v2726
      %v3045 = vmax.f32 %v2084, %v2731
      %v3046 = vmax.f32 %v2085, %v2736
      %v3047 = vmax.f32 %v2086, %v2741
      %v3048 = vmax.f32 %v2087, %v2746
      %v3049 = vmax.f32 %v2088, %v2751
      %v3050 = vmax.f32 %v2089, %v2756
      %v3051 = vmax.f32 %v2090, %v2761
      %v3052 = vmax.f32 %v2091, %v2766
      %v3053 = vmax.f32 %v2092, %v2771
      %v3054 = vmax.f32 %v2093, %v2776
      %v3055 = vmax.f32 %v2094, %v2781
      %v3056 = vmax.f32 %v2095, %v2786
      %v3057 = vmax.f32 %v2096, %v2791
      %v3058 = vmax.f32 %v2097, %v2796
      %v3059 = vmax.f32 %v2098, %v2801
      %v3060 = vmax.f32 %v2099, %v2806
      %v3061 = vmax.f32 %v2100, %v2811
      %v3062 = vmax.f32 %v2101, %v2816
      %v3063 = vmax.f32 %v2102, %v2821
      %v3064 = vmax.f32 %v2103, %v2826
      %v3065 = vmax.f32 %v2104, %v2831
      %v3066 = vmax.f32 %v2105, %v2836
      %v3067 = vmax.f32 %v2106, %v2841
      %v3068 = vmax.f32 %v2107, %v2846
      %v3069 = vmax.f32 %v2108, %v2851
      %v3070 = vmax.f32 %v2109, %v2856
      %v3071 = vmax.f32 %v2110, %v2861
      %v3072 = vmax.f32 %v2111, %v2866
      %v3073 = vmax.f32 %v2112, %v2871
      %v3074 = vmax.f32 %v2113, %v2876
      %v3075 = vmax.f32 %v2114, %v2881
      %v3076 = vmax.f32 %v2115, %v2886
      %v3077 = vmax.f32 %v2116, %v2891
      %v3078 = vmax.f32 %v2117, %v2896
      %v3079 = vmax.f32 %v2118, %v2901
      %v3080 = vmax.f32 %v2119, %v2906
      %v3081 = vmax.f32 %v2120, %v2911
      %v3082 = vmax.f32 %v2121, %v2916
      %v3083 = vmax.f32 %v2122, %v2921
      %v3084 = vmax.f32 %v2123, %v2926
      %v3085 = vmax.f32 %v2124, %v2931
      %v3086 = vmax.f32 %v2125, %v2936
      %v3087 = vmax.f32 %v2126, %v2941
      %v3088 = vmax.f32 %v2127, %v2946
      %v3089 = vmax.f32 %v2128, %v2951
      %v3090 = vmax.f32 %v2129, %v2956
      %v3091 = vmax.f32 %v2130, %v2961
      %v3092 = vld [vmem:[%s313] sm:$0xff]
      %v3093 = vld [vmem:[%s313 + $0x8] sm:$0xff]
      %v3094 = vld [vmem:[%s313 + $0x10] sm:$0xff]
      %v3095 = vld [vmem:[%s313 + $0x18] sm:$0xff]
      %v3096 = vld [vmem:[%s313 + $0x20] sm:$0xff]
      %v3097 = vld [vmem:[%s313 + $0x28] sm:$0xff]
      %v3098 = vld [vmem:[%s313 + $0x30] sm:$0xff]
      %v3099 = vld [vmem:[%s313 + $0x38] sm:$0xff]
      %v3100 = vld [vmem:[%s313 + $0x40] sm:$0xff]
      %v3101 = vld [vmem:[%s313 + $0x48] sm:$0xff]
      %v3102 = vld [vmem:[%s313 + $0x50] sm:$0xff]
      %v3103 = vld [vmem:[%s313 + $0x58] sm:$0xff]
      %v3104 = vld [vmem:[%s313 + $0x60] sm:$0xff]
      %v3105 = vld [vmem:[%s313 + $0x68] sm:$0xff]
      %v3106 = vld [vmem:[%s313 + $0x70] sm:$0xff]
      %v3107 = vld [vmem:[%s313 + $0x78] sm:$0xff]
      %v3108 = vld [vmem:[%s313 + $0x80] sm:$0xff]
      %v3109 = vld [vmem:[%s313 + $0x88] sm:$0xff]
      %v3110 = vld [vmem:[%s313 + $0x90] sm:$0xff]
      %v3111 = vld [vmem:[%s313 + $0x98] sm:$0xff]
      %v3112 = vld [vmem:[%s313 + $0xa0] sm:$0xff]
      %v3113 = vld [vmem:[%s313 + $0xa8] sm:$0xff]
      %v3114 = vld [vmem:[%s313 + $0xb0] sm:$0xff]
      %v3115 = vld [vmem:[%s313 + $0xb8] sm:$0xff]
      %v3116 = vld [vmem:[%s313 + $0xc0] sm:$0xff]
      %v3117 = vld [vmem:[%s313 + $0xc8] sm:$0xff]
      %v3118 = vld [vmem:[%s313 + $0xd0] sm:$0xff]
      %v3119 = vld [vmem:[%s313 + $0xd8] sm:$0xff]
      %v3120 = vld [vmem:[%s313 + $0xe0] sm:$0xff]
      %v3121 = vld [vmem:[%s313 + $0xe8] sm:$0xff]
      %v3122 = vld [vmem:[%s313 + $0xf0] sm:$0xff]
      %v3123 = vld [vmem:[%s313 + $0xf8] sm:$0xff]
      %v3124 = vld [vmem:[%s313 + $0x100] sm:$0xff]
      %v3125 = vld [vmem:[%s313 + $0x108] sm:$0xff]
      %v3126 = vld [vmem:[%s313 + $0x110] sm:$0xff]
      %v3127 = vld [vmem:[%s313 + $0x118] sm:$0xff]
      %v3128 = vld [vmem:[%s313 + $0x120] sm:$0xff]
      %v3129 = vld [vmem:[%s313 + $0x128] sm:$0xff]
      %v3130 = vld [vmem:[%s313 + $0x130] sm:$0xff]
      %v3131 = vld [vmem:[%s313 + $0x138] sm:$0xff]
      %v3132 = vld [vmem:[%s313 + $0x140] sm:$0xff]
      %v3133 = vld [vmem:[%s313 + $0x148] sm:$0xff]
      %v3134 = vld [vmem:[%s313 + $0x150] sm:$0xff]
      %v3135 = vld [vmem:[%s313 + $0x158] sm:$0xff]
      %v3136 = vld [vmem:[%s313 + $0x160] sm:$0xff]
      %v3137 = vld [vmem:[%s313 + $0x168] sm:$0xff]
      %v3138 = vld [vmem:[%s313 + $0x170] sm:$0xff]
      %v3139 = vld [vmem:[%s313 + $0x178] sm:$0xff]
      %v3140 = vld [vmem:[%s313 + $0x180] sm:$0xff]
      %v3141 = vld [vmem:[%s313 + $0x188] sm:$0xff]
      %v3142 = vld [vmem:[%s313 + $0x190] sm:$0xff]
      %v3143 = vld [vmem:[%s313 + $0x198] sm:$0xff]
      %v3144 = vld [vmem:[%s313 + $0x1a0] sm:$0xff]
      %v3145 = vld [vmem:[%s313 + $0x1a8] sm:$0xff]
      %v3146 = vld [vmem:[%s313 + $0x1b0] sm:$0xff]
      %v3147 = vld [vmem:[%s313 + $0x1b8] sm:$0xff]
      %v3148 = vld [vmem:[%s313 + $0x1c0] sm:$0xff]
      %v3149 = vld [vmem:[%s313 + $0x1c8] sm:$0xff]
      %v3150 = vld [vmem:[%s313 + $0x1d0] sm:$0xff]
      %v3151 = vld [vmem:[%s313 + $0x1d8] sm:$0xff]
      %v3152 = vld [vmem:[%s313 + $0x1e0] sm:$0xff]
      %v3153 = vld [vmem:[%s313 + $0x1e8] sm:$0xff]
      %v3154 = vld [vmem:[%s313 + $0x1f0] sm:$0xff]
      %v3155 = vld [vmem:[%s313 + $0x1f8] sm:$0xff]
      %v3156 = vld [vmem:[%s313 + $0x200] sm:$0xff]
      %v3157 = vld [vmem:[%s313 + $0x208] sm:$0xff]
      %v3158 = vld [vmem:[%s313 + $0x210] sm:$0xff]
      %v3159 = vld [vmem:[%s313 + $0x218] sm:$0xff]
      %v3160 = vld [vmem:[%s313 + $0x220] sm:$0xff]
      %v3161 = vld [vmem:[%s313 + $0x228] sm:$0xff]
      %v3162 = vld [vmem:[%s313 + $0x230] sm:$0xff]
      %v3163 = vld [vmem:[%s313 + $0x238] sm:$0xff]
      %v3164 = vld [vmem:[%s313 + $0x240] sm:$0xff]
      %v3165 = vld [vmem:[%s313 + $0x248] sm:$0xff]
      %v3166 = vld [vmem:[%s313 + $0x250] sm:$0xff]
      %v3167 = vld [vmem:[%s313 + $0x258] sm:$0xff]
      %v3168 = vld [vmem:[%s313 + $0x260] sm:$0xff]
      %v3169 = vld [vmem:[%s313 + $0x268] sm:$0xff]
      %v3170 = vld [vmem:[%s313 + $0x270] sm:$0xff]
      %v3171 = vld [vmem:[%s313 + $0x278] sm:$0xff]
      %v3172 = vld [vmem:[%s313 + $0x280] sm:$0xff]
      %v3173 = vld [vmem:[%s313 + $0x288] sm:$0xff]
      %v3174 = vld [vmem:[%s313 + $0x290] sm:$0xff]
      %v3175 = vld [vmem:[%s313 + $0x298] sm:$0xff]
      %v3176 = vld [vmem:[%s313 + $0x2a0] sm:$0xff]
      %v3177 = vld [vmem:[%s313 + $0x2a8] sm:$0xff]
      %v3178 = vld [vmem:[%s313 + $0x2b0] sm:$0xff]
      %v3179 = vld [vmem:[%s313 + $0x2b8] sm:$0xff]
      %v3180 = vld [vmem:[%s313 + $0x2c0] sm:$0xff]
      %v3181 = vld [vmem:[%s313 + $0x2c8] sm:$0xff]
      %v3182 = vld [vmem:[%s313 + $0x2d0] sm:$0xff]
      %v3183 = vld [vmem:[%s313 + $0x2d8] sm:$0xff]
      %v3184 = vld [vmem:[%s313 + $0x2e0] sm:$0xff]
      %v3185 = vld [vmem:[%s313 + $0x2e8] sm:$0xff]
      %v3186 = vld [vmem:[%s313 + $0x2f0] sm:$0xff]
      %v3187 = vld [vmem:[%s313 + $0x2f8] sm:$0xff]
      %v3188 = vld [vmem:[%s313 + $0x300] sm:$0xff]
      %v3189 = vld [vmem:[%s313 + $0x308] sm:$0xff]
      %v3190 = vld [vmem:[%s313 + $0x310] sm:$0xff]
      %v3191 = vld [vmem:[%s313 + $0x318] sm:$0xff]
      %v3192 = vld [vmem:[%s313 + $0x320] sm:$0xff]
      %v3193 = vld [vmem:[%s313 + $0x328] sm:$0xff]
      %v3194 = vld [vmem:[%s313 + $0x330] sm:$0xff]
      %v3195 = vld [vmem:[%s313 + $0x338] sm:$0xff]
      %v3196 = vld [vmem:[%s313 + $0x340] sm:$0xff]
      %v3197 = vld [vmem:[%s313 + $0x348] sm:$0xff]
      %v3198 = vld [vmem:[%s313 + $0x350] sm:$0xff]
      %v3199 = vld [vmem:[%s313 + $0x358] sm:$0xff]
      %v3200 = vld [vmem:[%s313 + $0x360] sm:$0xff]
      %v3201 = vld [vmem:[%s313 + $0x368] sm:$0xff]
      %v3202 = vld [vmem:[%s313 + $0x370] sm:$0xff]
      %v3203 = vld [vmem:[%s313 + $0x378] sm:$0xff]
      %v3204 = vld [vmem:[%s313 + $0x380] sm:$0xff]
      %v3205 = vld [vmem:[%s313 + $0x388] sm:$0xff]
      %v3206 = vld [vmem:[%s313 + $0x390] sm:$0xff]
      %v3207 = vld [vmem:[%s313 + $0x398] sm:$0xff]
      %v3208 = vld [vmem:[%s313 + $0x3a0] sm:$0xff]
      %v3209 = vld [vmem:[%s313 + $0x3a8] sm:$0xff]
      %v3210 = vld [vmem:[%s313 + $0x3b0] sm:$0xff]
      %v3211 = vld [vmem:[%s313 + $0x3b8] sm:$0xff]
      %v3212 = vld [vmem:[%s313 + $0x3c0] sm:$0xff]
      %v3213 = vld [vmem:[%s313 + $0x3c8] sm:$0xff]
      %v3214 = vld [vmem:[%s313 + $0x3d0] sm:$0xff]
      %v3215 = vld [vmem:[%s313 + $0x3d8] sm:$0xff]
      %v3216 = vld [vmem:[%s313 + $0x3e0] sm:$0xff]
      %v3217 = vld [vmem:[%s313 + $0x3e8] sm:$0xff]
      %v3218 = vld [vmem:[%s313 + $0x3f0] sm:$0xff]
      %v3219 = vld [vmem:[%s313 + $0x3f8] sm:$0xff]
      %3220 = vmatprep.subr.mxu0 0.0
      %3221 = vmatpush1.msra.mxu0 %v321
      %3222 = vmatprep.subr.mxu0 0.0
      %3223 = vmatpush1.msra.mxu0 %v322
      %3224 = vmatprep.subr.mxu0 0.0
      %3225 = vmatpush1.msra.mxu0 %v323
      %3226 = vmatprep.subr.mxu0 0.0
      %3227 = vmatpush1.msra.mxu0 %v324
      %3228 = vmatprep.subr.mxu0 0.0
      %3229 = vmatpush1.msra.mxu0 %v325
      %3230 = vmatprep.subr.mxu0 0.0
      %3231 = vmatpush1.msra.mxu0 %v326
      %3232 = vmatprep.subr.mxu0 0.0
      %3233 = vmatpush1.msra.mxu0 %v327
      %3234 = vmatprep.subr.mxu0 0.0
      %3235 = vmatpush1.msra.mxu0 %v328
      %3236 = vmatprep.subr.mxu0 0.0
      %3237 = vmatpush1.msra.mxu0 %v329
      %3238 = vmatprep.subr.mxu0 0.0
      %3239 = vmatpush1.msra.mxu0 %v330
      %3240 = vmatprep.subr.mxu0 0.0
      %3241 = vmatpush1.msra.mxu0 %v331
      %3242 = vmatprep.subr.mxu0 0.0
      %3243 = vmatpush1.msra.mxu0 %v332
      %3244 = vmatprep.subr.mxu0 0.0
      %3245 = vmatpush1.msra.mxu0 %v333
      %3246 = vmatprep.subr.mxu0 0.0
      %3247 = vmatpush1.msra.mxu0 %v334
      %3248 = vmatprep.subr.mxu0 0.0
      %3249 = vmatpush1.msra.mxu0 %v335
      %3250 = vmatprep.subr.mxu0 0.0
      %3251 = vmatpush1.msra.mxu0 %v336
      %3252 = vmatprep.subr.mxu0 0.0
      %3253 = vmatpush1.msra.mxu0 0.0
      %3254 = vmatprep.subr.mxu0 0.0
      %3255 = vmatpush1.msra.mxu0 0.0
      %3256 = vmatprep.subr.mxu0 0.0
      %3257 = vmatpush1.msra.mxu0 0.0
      %3258 = vmatprep.subr.mxu0 0.0
      %3259 = vmatpush1.msra.mxu0 0.0
      %3260 = vmatprep.subr.mxu0 0.0
      %3261 = vmatpush1.msra.mxu0 0.0
      %3262 = vmatprep.subr.mxu0 0.0
      %3263 = vmatpush1.msra.mxu0 0.0
      %3264 = vmatprep.subr.mxu0 0.0
      %3265 = vmatpush1.msra.mxu0 0.0
      %3266 = vmatprep.subr.mxu0 0.0
      %3267 = vmatpush1.msra.mxu0 0.0
      %3268 = vmatprep.subr.mxu0 0.0
      %3269 = vmatpush1.msra.mxu0 0.0
      %3270 = vmatprep.subr.mxu0 0.0
      %3271 = vmatpush1.msra.mxu0 0.0
      %3272 = vmatprep.subr.mxu0 0.0
      %3273 = vmatpush1.msra.mxu0 0.0
      %3274 = vmatprep.subr.mxu0 0.0
      %3275 = vmatpush1.msra.mxu0 0.0
      %3276 = vmatprep.subr.mxu0 0.0
      %3277 = vmatpush1.msra.mxu0 0.0
      %3278 = vmatprep.subr.mxu0 0.0
      %3279 = vmatpush1.msra.mxu0 0.0
      %3280 = vmatprep.subr.mxu0 0.0
      %3281 = vmatpush1.msra.mxu0 0.0
      %3282 = vmatprep.subr.mxu0 0.0
      %3283 = vmatpush1.msra.mxu0 0.0
      %3284 = vmatprep.mubr.f32.mxu0 0.0
      %3285 = vmatmul.mubr.f32.gmra.mrb[0].mxu0 %v3092
      %v3286 = vpop.f32.mrb[0].mxu0
      %v3287 = vadd.f32 0.0, %v3286
      %v3288 = vpop.f32.mrb[0].mxu0
      %3289 = vmatprep.mubr.f32.mxu0 0.0
      %3290 = vmatmul.mubr.f32.gmra.mrb[0].mxu0 %v3093
      %v3291 = vpop.f32.mrb[0].mxu0
      %v3292 = vadd.f32 0.0, %v3291
      %v3293 = vpop.f32.mrb[0].mxu0
      %3294 = vmatprep.mubr.f32.mxu0 0.0
      %3295 = vmatmul.mubr.f32.gmra.mrb[0].mxu0 %v3094
      %v3296 = vpop.f32.mrb[0].mxu0
      %v3297 = vadd.f32 0.0, %v3296
      %v3298 = vpop.f32.mrb[0].mxu0
      %3299 = vmatprep.mubr.f32.mxu0 0.0
      %3300 = vmatmul.mubr.f32.gmra.mrb[0].mxu0 %v3095
      %v3301 = vpop.f32.mrb[0].mxu0
      %v3302 = vadd.f32 0.0, %v3301
      %v3303 = vpop.f32.mrb[0].mxu0
      %3304 = vmatprep.mubr.f32.mxu0 0.0
      %3305 = vmatmul.mubr.f32.gmra.mrb[0].mxu0 %v3096
      %v3306 = vpop.f32.mrb[0].mxu0
      %v3307 = vadd.f32 0.0, %v3306
      %v3308 = vpop.f32.mrb[0].mxu0
      %3309 = vmatprep.mubr.f32.mxu0 0.0
      %3310 = vmatmul.mubr.f32.gmra.mrb[0].mxu0 %v3097
      %v3311 = vpop.f32.mrb[0].mxu0
      %v3312 = vadd.f32 0.0, %v3311
      %v3313 = vpop.f32.mrb[0].mxu0
      %3314 = vmatprep.mubr.f32.mxu0 0.0
      %3315 = vmatmul.mubr.f32.gmra.mrb[0].mxu0 %v3098
      %v3316 = vpop.f32.mrb[0].mxu0
      %v3317 = vadd.f32 0.0, %v3316
      %v3318 = vpop.f32.mrb[0].mxu0
      %3319 = vmatprep.mubr.f32.mxu0 0.0
      %3320 = vmatmul.mubr.f32.gmra.mrb[0].mxu0 %v3099
      %v3321 = vpop.f32.mrb[0].mxu0
      %v3322 = vadd.f32 0.0, %v3321
      %v3323 = vpop.f32.mrb[0].mxu0
      %3324 = vmatprep.mubr.f32.mxu0 0.0
      %3325 = vmatmul.mubr.f32.gmra.mrb[0].mxu0 %v3100
      %v3326 = vpop.f32.mrb[0].mxu0
      %v3327 = vadd.f32 0.0, %v3326
      %v3328 = vpop.f32.mrb[0].mxu0
      %3329 = vmatprep.mubr.f32.mxu0 0.0
      %3330 = vmatmul.mubr.f32.gmra.mrb[0].mxu0 %v3101
      %v3331 = vpop.f32.mrb[0].mxu0
      %v3332 = vadd.f32 0.0, %v3331
      %v3333 = vpop.f32.mrb[0].mxu0
      %3334 = vmatprep.mubr.f32.mxu0 0.0
      %3335 = vmatmul.mubr.f32.gmra.mrb[0].mxu0 %v3102
      %v3336 = vpop.f32.mrb[0].mxu0
      %v3337 = vadd.f32 0.0, %v3336
      %v3338 = vpop.f32.mrb[0].mxu0
      %3339 = vmatprep.mubr.f32.mxu0 0.0
      %3340 = vmatmul.mubr.f32.gmra.mrb[0].mxu0 %v3103
      %v3341 = vpop.f32.mrb[0].mxu0
      %v3342 = vadd.f32 0.0, %v3341
      %v3343 = vpop.f32.mrb[0].mxu0
      %3344 = vmatprep.mubr.f32.mxu0 0.0
      %3345 = vmatmul.mubr.f32.gmra.mrb[0].mxu0 %v3104
      %v3346 = vpop.f32.mrb[0].mxu0
      %v3347 = vadd.f32 0.0, %v3346
      %v3348 = vpop.f32.mrb[0].mxu0
      %3349 = vmatprep.mubr.f32.mxu0 0.0
      %3350 = vmatmul.mubr.f32.gmra.mrb[0].mxu0 %v3105
      %v3351 = vpop.f32.mrb[0].mxu0
      %v3352 = vadd.f32 0.0, %v3351
      %v3353 = vpop.f32.mrb[0].mxu0
      %3354 = vmatprep.mubr.f32.mxu0 0.0
      %3355 = vmatmul.mubr.f32.gmra.mrb[0].mxu0 %v3106
      %v3356 = vpop.f32.mrb[0].mxu0
      %v3357 = vadd.f32 0.0, %v3356
      %v3358 = vpop.f32.mrb[0].mxu0
      %3359 = vmatprep.mubr.f32.mxu0 0.0
      %3360 = vmatmul.mubr.f32.gmra.mrb[0].mxu0 %v3107
      %v3361 = vpop.f32.mrb[0].mxu0
      %v3362 = vadd.f32 0.0, %v3361
      %v3363 = vpop.f32.mrb[0].mxu0
      %3364 = vmatprep.mubr.f32.mxu0 0.0
      %3365 = vmatmul.mubr.f32.gmra.mrb[0].mxu0 %v3108
      %v3366 = vpop.f32.mrb[0].mxu0
      %v3367 = vadd.f32 0.0, %v3366
      %v3368 = vpop.f32.mrb[0].mxu0
      %3369 = vmatprep.mubr.f32.mxu0 0.0
      %3370 = vmatmul.mubr.f32.gmra.mrb[0].mxu0 %v3109
      %v3371 = vpop.f32.mrb[0].mxu0
      %v3372 = vadd.f32 0.0, %v3371
      %v3373 = vpop.f32.mrb[0].mxu0
      %3374 = vmatprep.mubr.f32.mxu0 0.0
      %3375 = vmatmul.mubr.f32.gmra.mrb[0].mxu0 %v3110
      %v3376 = vpop.f32.mrb[0].mxu0
      %v3377 = vadd.f32 0.0, %v3376
      %v3378 = vpop.f32.mrb[0].mxu0
      %3379 = vmatprep.mubr.f32.mxu0 0.0
      %3380 = vmatmul.mubr.f32.gmra.mrb[0].mxu0 %v3111
      %v3381 = vpop.f32.mrb[0].mxu0
      %v3382 = vadd.f32 0.0, %v3381
      %v3383 = vpop.f32.mrb[0].mxu0
      %3384 = vmatprep.mubr.f32.mxu0 0.0
      %3385 = vmatmul.mubr.f32.gmra.mrb[0].mxu0 %v3112
      %v3386 = vpop.f32.mrb[0].mxu0
      %v3387 = vadd.f32 0.0, %v3386
      %v3388 = vpop.f32.mrb[0].mxu0
      %3389 = vmatprep.mubr.f32.mxu0 0.0
      %3390 = vmatmul.mubr.f32.gmra.mrb[0].mxu0 %v3113
      %v3391 = vpop.f32.mrb[0].mxu0
      %v3392 = vadd.f32 0.0, %v3391
      %v3393 = vpop.f32.mrb[0].mxu0
      %3394 = vmatprep.mubr.f32.mxu0 0.0
      %3395 = vmatmul.mubr.f32.gmra.mrb[0].mxu0 %v3114
      %v3396 = vpop.f32.mrb[0].mxu0
      %v3397 = vadd.f32 0.0, %v3396
      %v3398 = vpop.f32.mrb[0].mxu0
      %3399 = vmatprep.mubr.f32.mxu0 0.0
      %3400 = vmatmul.mubr.f32.gmra.mrb[0].mxu0 %v3115
      %v3401 = vpop.f32.mrb[0].mxu0
      %v3402 = vadd.f32 0.0, %v3401
      %v3403 = vpop.f32.mrb[0].mxu0
      %3404 = vmatprep.mubr.f32.mxu0 0.0
      %3405 = vmatmul.mubr.f32.gmra.mrb[0].mxu0 %v3116
      %v3406 = vpop.f32.mrb[0].mxu0
      %v3407 = vadd.f32 0.0, %v3406
      %v3408 = vpop.f32.mrb[0].mxu0
      %3409 = vmatprep.mubr.f32.mxu0 0.0
      %3410 = vmatmul.mubr.f32.gmra.mrb[0].mxu0 %v3117
      %v3411 = vpop.f32.mrb[0].mxu0
      %v3412 = vadd.f32 0.0, %v3411
      %v3413 = vpop.f32.mrb[0].mxu0
      %3414 = vmatprep.mubr.f32.mxu0 0.0
      %3415 = vmatmul.mubr.f32.gmra.mrb[0].mxu0 %v3118
      %v3416 = vpop.f32.mrb[0].mxu0
      %v3417 = vadd.f32 0.0, %v3416
      %v3418 = vpop.f32.mrb[0].mxu0
      %3419 = vmatprep.mubr.f32.mxu0 0.0
      %3420 = vmatmul.mubr.f32.gmra.mrb[0].mxu0 %v3119
      %v3421 = vpop.f32.mrb[0].mxu0
      %v3422 = vadd.f32 0.0, %v3421
      %v3423 = vpop.f32.mrb[0].mxu0
      %3424 = vmatprep.mubr.f32.mxu0 0.0
      %3425 = vmatmul.mubr.f32.gmra.mrb[0].mxu0 %v3120
      %v3426 = vpop.f32.mrb[0].mxu0
      %v3427 = vadd.f32 0.0, %v3426
      %v3428 = vpop.f32.mrb[0].mxu0
      %3429 = vmatprep.mubr.f32.mxu0 0.0
      %3430 = vmatmul.mubr.f32.gmra.mrb[0].mxu0 %v3121
      %v3431 = vpop.f32.mrb[0].mxu0
      %v3432 = vadd.f32 0.0, %v3431
      %v3433 = vpop.f32.mrb[0].mxu0
      %3434 = vmatprep.mubr.f32.mxu0 0.0
      %3435 = vmatmul.mubr.f32.gmra.mrb[0].mxu0 %v3122
      %v3436 = vpop.f32.mrb[0].mxu0
      %v3437 = vadd.f32 0.0, %v3436
      %v3438 = vpop.f32.mrb[0].mxu0
      %3439 = vmatprep.mubr.f32.mxu0 0.0
      %3440 = vmatmul.mubr.f32.gmra.mrb[0].mxu0 %v3123
      %v3441 = vpop.f32.mrb[0].mxu0
      %v3442 = vadd.f32 0.0, %v3441
      %v3443 = vpop.f32.mrb[0].mxu0
      %3444 = vmatprep.mubr.f32.mxu0 0.0
      %3445 = vmatmul.mubr.f32.gmra.mrb[0].mxu0 %v3124
      %v3446 = vpop.f32.mrb[0].mxu0
      %v3447 = vadd.f32 0.0, %v3446
      %v3448 = vpop.f32.mrb[0].mxu0
      %3449 = vmatprep.mubr.f32.mxu0 0.0
      %3450 = vmatmul.mubr.f32.gmra.mrb[0].mxu0 %v3125
      %v3451 = vpop.f32.mrb[0].mxu0
      %v3452 = vadd.f32 0.0, %v3451
      %v3453 = vpop.f32.mrb[0].mxu0
      %3454 = vmatprep.mubr.f32.mxu0 0.0
      %3455 = vmatmul.mubr.f32.gmra.mrb[0].mxu0 %v3126
      %v3456 = vpop.f32.mrb[0].mxu0
      %v3457 = vadd.f32 0.0, %v3456
      %v3458 = vpop.f32.mrb[0].mxu0
      %3459 = vmatprep.mubr.f32.mxu0 0.0
      %3460 = vmatmul.mubr.f32.gmra.mrb[0].mxu0 %v3127
      %v3461 = vpop.f32.mrb[0].mxu0
      %v3462 = vadd.f32 0.0, %v3461
      %v3463 = vpop.f32.mrb[0].mxu0
      %3464 = vmatprep.mubr.f32.mxu0 0.0
      %3465 = vmatmul.mubr.f32.gmra.mrb[0].mxu0 %v3128
      %v3466 = vpop.f32.mrb[0].mxu0
      %v3467 = vadd.f32 0.0, %v3466
      %v3468 = vpop.f32.mrb[0].mxu0
      %3469 = vmatprep.mubr.f32.mxu0 0.0
      %3470 = vmatmul.mubr.f32.gmra.mrb[0].mxu0 %v3129
      %v3471 = vpop.f32.mrb[0].mxu0
      %v3472 = vadd.f32 0.0, %v3471
      %v3473 = vpop.f32.mrb[0].mxu0
      %3474 = vmatprep.mubr.f32.mxu0 0.0
      %3475 = vmatmul.mubr.f32.gmra.mrb[0].mxu0 %v3130
      %v3476 = vpop.f32.mrb[0].mxu0
      %v3477 = vadd.f32 0.0, %v3476
      %v3478 = vpop.f32.mrb[0].mxu0
      %3479 = vmatprep.mubr.f32.mxu0 0.0
      %3480 = vmatmul.mubr.f32.gmra.mrb[0].mxu0 %v3131
      %v3481 = vpop.f32.mrb[0].mxu0
      %v3482 = vadd.f32 0.0, %v3481
      %v3483 = vpop.f32.mrb[0].mxu0
      %3484 = vmatprep.mubr.f32.mxu0 0.0
      %3485 = vmatmul.mubr.f32.gmra.mrb[0].mxu0 %v3132
      %v3486 = vpop.f32.mrb[0].mxu0
      %v3487 = vadd.f32 0.0, %v3486
      %v3488 = vpop.f32.mrb[0].mxu0
      %3489 = vmatprep.mubr.f32.mxu0 0.0
      %3490 = vmatmul.mubr.f32.gmra.mrb[0].mxu0 %v3133
      %v3491 = vpop.f32.mrb[0].mxu0
      %v3492 = vadd.f32 0.0, %v3491
      %v3493 = vpop.f32.mrb[0].mxu0
      %3494 = vmatprep.mubr.f32.mxu0 0.0
      %3495 = vmatmul.mubr.f32.gmra.mrb[0].mxu0 %v3134
      %v3496 = vpop.f32.mrb[0].mxu0
      %v3497 = vadd.f32 0.0, %v3496
      %v3498 = vpop.f32.mrb[0].mxu0
      %3499 = vmatprep.mubr.f32.mxu0 0.0
      %3500 = vmatmul.mubr.f32.gmra.mrb[0].mxu0 %v3135
      %v3501 = vpop.f32.mrb[0].mxu0
      %v3502 = vadd.f32 0.0, %v3501
      %v3503 = vpop.f32.mrb[0].mxu0
      %3504 = vmatprep.mubr.f32.mxu0 0.0
      %3505 = vmatmul.mubr.f32.gmra.mrb[0].mxu0 %v3136
      %v3506 = vpop.f32.mrb[0].mxu0
      %v3507 = vadd.f32 0.0, %v3506
      %v3508 = vpop.f32.mrb[0].mxu0
      %3509 = vmatprep.mubr.f32.mxu0 0.0
      %3510 = vmatmul.mubr.f32.gmra.mrb[0].mxu0 %v3137
      %v3511 = vpop.f32.mrb[0].mxu0
      %v3512 = vadd.f32 0.0, %v3511
      %v3513 = vpop.f32.mrb[0].mxu0
      %3514 = vmatprep.mubr.f32.mxu0 0.0
      %3515 = vmatmul.mubr.f32.gmra.mrb[0].mxu0 %v3138
      %v3516 = vpop.f32.mrb[0].mxu0
      %v3517 = vadd.f32 0.0, %v3516
      %v3518 = vpop.f32.mrb[0].mxu0
      %3519 = vmatprep.mubr.f32.mxu0 0.0
      %3520 = vmatmul.mubr.f32.gmra.mrb[0].mxu0 %v3139
      %v3521 = vpop.f32.mrb[0].mxu0
      %v3522 = vadd.f32 0.0, %v3521
      %v3523 = vpop.f32.mrb[0].mxu0
      %3524 = vmatprep.mubr.f32.mxu0 0.0
      %3525 = vmatmul.mubr.f32.gmra.mrb[0].mxu0 %v3140
      %v3526 = vpop.f32.mrb[0].mxu0
      %v3527 = vadd.f32 0.0, %v3526
      %v3528 = vpop.f32.mrb[0].mxu0
      %3529 = vmatprep.mubr.f32.mxu0 0.0
      %3530 = vmatmul.mubr.f32.gmra.mrb[0].mxu0 %v3141
      %v3531 = vpop.f32.mrb[0].mxu0
      %v3532 = vadd.f32 0.0, %v3531
      %v3533 = vpop.f32.mrb[0].mxu0
      %3534 = vmatprep.mubr.f32.mxu0 0.0
      %3535 = vmatmul.mubr.f32.gmra.mrb[0].mxu0 %v3142
      %v3536 = vpop.f32.mrb[0].mxu0
      %v3537 = vadd.f32 0.0, %v3536
      %v3538 = vpop.f32.mrb[0].mxu0
      %3539 = vmatprep.mubr.f32.mxu0 0.0
      %3540 = vmatmul.mubr.f32.gmra.mrb[0].mxu0 %v3143
      %v3541 = vpop.f32.mrb[0].mxu0
      %v3542 = vadd.f32 0.0, %v3541
      %v3543 = vpop.f32.mrb[0].mxu0
      %3544 = vmatprep.mubr.f32.mxu0 0.0
      %3545 = vmatmul.mubr.f32.gmra.mrb[0].mxu0 %v3144
      %v3546 = vpop.f32.mrb[0].mxu0
      %v3547 = vadd.f32 0.0, %v3546
      %v3548 = vpop.f32.mrb[0].mxu0
      %3549 = vmatprep.mubr.f32.mxu0 0.0
      %3550 = vmatmul.mubr.f32.gmra.mrb[0].mxu0 %v3145
      %v3551 = vpop.f32.mrb[0].mxu0
      %v3552 = vadd.f32 0.0, %v3551
      %v3553 = vpop.f32.mrb[0].mxu0
      %3554 = vmatprep.mubr.f32.mxu0 0.0
      %3555 = vmatmul.mubr.f32.gmra.mrb[0].mxu0 %v3146
      %v3556 = vpop.f32.mrb[0].mxu0
      %v3557 = vadd.f32 0.0, %v3556
      %v3558 = vpop.f32.mrb[0].mxu0
      %3559 = vmatprep.mubr.f32.mxu0 0.0
      %3560 = vmatmul.mubr.f32.gmra.mrb[0].mxu0 %v3147
      %v3561 = vpop.f32.mrb[0].mxu0
      %v3562 = vadd.f32 0.0, %v3561
      %v3563 = vpop.f32.mrb[0].mxu0
      %3564 = vmatprep.mubr.f32.mxu0 0.0
      %3565 = vmatmul.mubr.f32.gmra.mrb[0].mxu0 %v3148
      %v3566 = vpop.f32.mrb[0].mxu0
      %v3567 = vadd.f32 0.0, %v3566
      %v3568 = vpop.f32.mrb[0].mxu0
      %3569 = vmatprep.mubr.f32.mxu0 0.0
      %3570 = vmatmul.mubr.f32.gmra.mrb[0].mxu0 %v3149
      %v3571 = vpop.f32.mrb[0].mxu0
      %v3572 = vadd.f32 0.0, %v3571
      %v3573 = vpop.f32.mrb[0].mxu0
      %3574 = vmatprep.mubr.f32.mxu0 0.0
      %3575 = vmatmul.mubr.f32.gmra.mrb[0].mxu0 %v3150
      %v3576 = vpop.f32.mrb[0].mxu0
      %v3577 = vadd.f32 0.0, %v3576
      %v3578 = vpop.f32.mrb[0].mxu0
      %3579 = vmatprep.mubr.f32.mxu0 0.0
      %3580 = vmatmul.mubr.f32.gmra.mrb[0].mxu0 %v3151
      %v3581 = vpop.f32.mrb[0].mxu0
      %v3582 = vadd.f32 0.0, %v3581
      %v3583 = vpop.f32.mrb[0].mxu0
      %3584 = vmatprep.mubr.f32.mxu0 0.0
      %3585 = vmatmul.mubr.f32.gmra.mrb[0].mxu0 %v3152
      %v3586 = vpop.f32.mrb[0].mxu0
      %v3587 = vadd.f32 0.0, %v3586
      %v3588 = vpop.f32.mrb[0].mxu0
      %3589 = vmatprep.mubr.f32.mxu0 0.0
      %3590 = vmatmul.mubr.f32.gmra.mrb[0].mxu0 %v3153
      %v3591 = vpop.f32.mrb[0].mxu0
      %v3592 = vadd.f32 0.0, %v3591
      %v3593 = vpop.f32.mrb[0].mxu0
      %3594 = vmatprep.mubr.f32.mxu0 0.0
      %3595 = vmatmul.mubr.f32.gmra.mrb[0].mxu0 %v3154
      %v3596 = vpop.f32.mrb[0].mxu0
      %v3597 = vadd.f32 0.0, %v3596
      %v3598 = vpop.f32.mrb[0].mxu0
      %3599 = vmatprep.mubr.f32.mxu0 0.0
      %3600 = vmatmul.mubr.f32.gmra.mrb[0].mxu0 %v3155
      %v3601 = vpop.f32.mrb[0].mxu0
      %v3602 = vadd.f32 0.0, %v3601
      %v3603 = vpop.f32.mrb[0].mxu0
      %3604 = vmatprep.mubr.f32.mxu0 0.0
      %3605 = vmatmul.mubr.f32.gmra.mrb[0].mxu0 %v3156
      %v3606 = vpop.f32.mrb[0].mxu0
      %v3607 = vadd.f32 0.0, %v3606
      %v3608 = vpop.f32.mrb[0].mxu0
      %3609 = vmatprep.mubr.f32.mxu0 0.0
      %3610 = vmatmul.mubr.f32.gmra.mrb[0].mxu0 %v3157
      %v3611 = vpop.f32.mrb[0].mxu0
      %v3612 = vadd.f32 0.0, %v3611
      %v3613 = vpop.f32.mrb[0].mxu0
      %3614 = vmatprep.mubr.f32.mxu0 0.0
      %3615 = vmatmul.mubr.f32.gmra.mrb[0].mxu0 %v3158
      %v3616 = vpop.f32.mrb[0].mxu0
      %v3617 = vadd.f32 0.0, %v3616
      %v3618 = vpop.f32.mrb[0].mxu0
      %3619 = vmatprep.mubr.f32.mxu0 0.0
      %3620 = vmatmul.mubr.f32.gmra.mrb[0].mxu0 %v3159
      %v3621 = vpop.f32.mrb[0].mxu0
      %v3622 = vadd.f32 0.0, %v3621
      %v3623 = vpop.f32.mrb[0].mxu0
      %3624 = vmatprep.mubr.f32.mxu0 0.0
      %3625 = vmatmul.mubr.f32.gmra.mrb[0].mxu0 %v3160
      %v3626 = vpop.f32.mrb[0].mxu0
      %v3627 = vadd.f32 0.0, %v3626
      %v3628 = vpop.f32.mrb[0].mxu0
      %3629 = vmatprep.mubr.f32.mxu0 0.0
      %3630 = vmatmul.mubr.f32.gmra.mrb[0].mxu0 %v3161
      %v3631 = vpop.f32.mrb[0].mxu0
      %v3632 = vadd.f32 0.0, %v3631
      %v3633 = vpop.f32.mrb[0].mxu0
      %3634 = vmatprep.mubr.f32.mxu0 0.0
      %3635 = vmatmul.mubr.f32.gmra.mrb[0].mxu0 %v3162
      %v3636 = vpop.f32.mrb[0].mxu0
      %v3637 = vadd.f32 0.0, %v3636
      %v3638 = vpop.f32.mrb[0].mxu0
      %3639 = vmatprep.mubr.f32.mxu0 0.0
      %3640 = vmatmul.mubr.f32.gmra.mrb[0].mxu0 %v3163
      %v3641 = vpop.f32.mrb[0].mxu0
      %v3642 = vadd.f32 0.0, %v3641
      %v3643 = vpop.f32.mrb[0].mxu0
      %3644 = vmatprep.mubr.f32.mxu0 0.0
      %3645 = vmatmul.mubr.f32.gmra.mrb[0].mxu0 %v3164
      %v3646 = vpop.f32.mrb[0].mxu0
      %v3647 = vadd.f32 0.0, %v3646
      %v3648 = vpop.f32.mrb[0].mxu0
      %3649 = vmatprep.mubr.f32.mxu0 0.0
      %3650 = vmatmul.mubr.f32.gmra.mrb[0].mxu0 %v3165
      %v3651 = vpop.f32.mrb[0].mxu0
      %v3652 = vadd.f32 0.0, %v3651
      %v3653 = vpop.f32.mrb[0].mxu0
      %3654 = vmatprep.mubr.f32.mxu0 0.0
      %3655 = vmatmul.mubr.f32.gmra.mrb[0].mxu0 %v3166
      %v3656 = vpop.f32.mrb[0].mxu0
      %v3657 = vadd.f32 0.0, %v3656
      %v3658 = vpop.f32.mrb[0].mxu0
      %3659 = vmatprep.mubr.f32.mxu0 0.0
      %3660 = vmatmul.mubr.f32.gmra.mrb[0].mxu0 %v3167
      %v3661 = vpop.f32.mrb[0].mxu0
      %v3662 = vadd.f32 0.0, %v3661
      %v3663 = vpop.f32.mrb[0].mxu0
      %3664 = vmatprep.mubr.f32.mxu0 0.0
      %3665 = vmatmul.mubr.f32.gmra.mrb[0].mxu0 %v3168
      %v3666 = vpop.f32.mrb[0].mxu0
      %v3667 = vadd.f32 0.0, %v3666
      %v3668 = vpop.f32.mrb[0].mxu0
      %3669 = vmatprep.mubr.f32.mxu0 0.0
      %3670 = vmatmul.mubr.f32.gmra.mrb[0].mxu0 %v3169
      %v3671 = vpop.f32.mrb[0].mxu0
      %v3672 = vadd.f32 0.0, %v3671
      %v3673 = vpop.f32.mrb[0].mxu0
      %3674 = vmatprep.mubr.f32.mxu0 0.0
      %3675 = vmatmul.mubr.f32.gmra.mrb[0].mxu0 %v3170
      %v3676 = vpop.f32.mrb[0].mxu0
      %v3677 = vadd.f32 0.0, %v3676
      %v3678 = vpop.f32.mrb[0].mxu0
      %3679 = vmatprep.mubr.f32.mxu0 0.0
      %3680 = vmatmul.mubr.f32.gmra.mrb[0].mxu0 %v3171
      %v3681 = vpop.f32.mrb[0].mxu0
      %v3682 = vadd.f32 0.0, %v3681
      %v3683 = vpop.f32.mrb[0].mxu0
      %3684 = vmatprep.mubr.f32.mxu0 0.0
      %3685 = vmatmul.mubr.f32.gmra.mrb[0].mxu0 %v3172
      %v3686 = vpop.f32.mrb[0].mxu0
      %v3687 = vadd.f32 0.0, %v3686
      %v3688 = vpop.f32.mrb[0].mxu0
      %3689 = vmatprep.mubr.f32.mxu0 0.0
      %3690 = vmatmul.mubr.f32.gmra.mrb[0].mxu0 %v3173
      %v3691 = vpop.f32.mrb[0].mxu0
      %v3692 = vadd.f32 0.0, %v3691
      %v3693 = vpop.f32.mrb[0].mxu0
      %3694 = vmatprep.mubr.f32.mxu0 0.0
      %3695 = vmatmul.mubr.f32.gmra.mrb[0].mxu0 %v3174
      %v3696 = vpop.f32.mrb[0].mxu0
      %v3697 = vadd.f32 0.0, %v3696
      %v3698 = vpop.f32.mrb[0].mxu0
      %3699 = vmatprep.mubr.f32.mxu0 0.0
      %3700 = vmatmul.mubr.f32.gmra.mrb[0].mxu0 %v3175
      %v3701 = vpop.f32.mrb[0].mxu0
      %v3702 = vadd.f32 0.0, %v3701
      %v3703 = vpop.f32.mrb[0].mxu0
      %3704 = vmatprep.mubr.f32.mxu0 0.0
      %3705 = vmatmul.mubr.f32.gmra.mrb[0].mxu0 %v3176
      %v3706 = vpop.f32.mrb[0].mxu0
      %v3707 = vadd.f32 0.0, %v3706
      %v3708 = vpop.f32.mrb[0].mxu0
      %3709 = vmatprep.mubr.f32.mxu0 0.0
      %3710 = vmatmul.mubr.f32.gmra.mrb[0].mxu0 %v3177
      %v3711 = vpop.f32.mrb[0].mxu0
      %v3712 = vadd.f32 0.0, %v3711
      %v3713 = vpop.f32.mrb[0].mxu0
      %3714 = vmatprep.mubr.f32.mxu0 0.0
      %3715 = vmatmul.mubr.f32.gmra.mrb[0].mxu0 %v3178
      %v3716 = vpop.f32.mrb[0].mxu0
      %v3717 = vadd.f32 0.0, %v3716
      %v3718 = vpop.f32.mrb[0].mxu0
      %3719 = vmatprep.mubr.f32.mxu0 0.0
      %3720 = vmatmul.mubr.f32.gmra.mrb[0].mxu0 %v3179
      %v3721 = vpop.f32.mrb[0].mxu0
      %v3722 = vadd.f32 0.0, %v3721
      %v3723 = vpop.f32.mrb[0].mxu0
      %3724 = vmatprep.mubr.f32.mxu0 0.0
      %3725 = vmatmul.mubr.f32.gmra.mrb[0].mxu0 %v3180
      %v3726 = vpop.f32.mrb[0].mxu0
      %v3727 = vadd.f32 0.0, %v3726
      %v3728 = vpop.f32.mrb[0].mxu0
      %3729 = vmatprep.mubr.f32.mxu0 0.0
      %3730 = vmatmul.mubr.f32.gmra.mrb[0].mxu0 %v3181
      %v3731 = vpop.f32.mrb[0].mxu0
      %v3732 = vadd.f32 0.0, %v3731
      %v3733 = vpop.f32.mrb[0].mxu0
      %3734 = vmatprep.mubr.f32.mxu0 0.0
      %3735 = vmatmul.mubr.f32.gmra.mrb[0].mxu0 %v3182
      %v3736 = vpop.f32.mrb[0].mxu0
      %v3737 = vadd.f32 0.0, %v3736
      %v3738 = vpop.f32.mrb[0].mxu0
      %3739 = vmatprep.mubr.f32.mxu0 0.0
      %3740 = vmatmul.mubr.f32.gmra.mrb[0].mxu0 %v3183
      %v3741 = vpop.f32.mrb[0].mxu0
      %v3742 = vadd.f32 0.0, %v3741
      %v3743 = vpop.f32.mrb[0].mxu0
      %3744 = vmatprep.mubr.f32.mxu0 0.0
      %3745 = vmatmul.mubr.f32.gmra.mrb[0].mxu0 %v3184
      %v3746 = vpop.f32.mrb[0].mxu0
      %v3747 = vadd.f32 0.0, %v3746
      %v3748 = vpop.f32.mrb[0].mxu0
      %3749 = vmatprep.mubr.f32.mxu0 0.0
      %3750 = vmatmul.mubr.f32.gmra.mrb[0].mxu0 %v3185
      %v3751 = vpop.f32.mrb[0].mxu0
      %v3752 = vadd.f32 0.0, %v3751
      %v3753 = vpop.f32.mrb[0].mxu0
      %3754 = vmatprep.mubr.f32.mxu0 0.0
      %3755 = vmatmul.mubr.f32.gmra.mrb[0].mxu0 %v3186
      %v3756 = vpop.f32.mrb[0].mxu0
      %v3757 = vadd.f32 0.0, %v3756
      %v3758 = vpop.f32.mrb[0].mxu0
      %3759 = vmatprep.mubr.f32.mxu0 0.0
      %3760 = vmatmul.mubr.f32.gmra.mrb[0].mxu0 %v3187
      %v3761 = vpop.f32.mrb[0].mxu0
      %v3762 = vadd.f32 0.0, %v3761
      %v3763 = vpop.f32.mrb[0].mxu0
      %3764 = vmatprep.mubr.f32.mxu0 0.0
      %3765 = vmatmul.mubr.f32.gmra.mrb[0].mxu0 %v3188
      %v3766 = vpop.f32.mrb[0].mxu0
      %v3767 = vadd.f32 0.0, %v3766
      %v3768 = vpop.f32.mrb[0].mxu0
      %3769 = vmatprep.mubr.f32.mxu0 0.0
      %3770 = vmatmul.mubr.f32.gmra.mrb[0].mxu0 %v3189
      %v3771 = vpop.f32.mrb[0].mxu0
      %v3772 = vadd.f32 0.0, %v3771
      %v3773 = vpop.f32.mrb[0].mxu0
      %3774 = vmatprep.mubr.f32.mxu0 0.0
      %3775 = vmatmul.mubr.f32.gmra.mrb[0].mxu0 %v3190
      %v3776 = vpop.f32.mrb[0].mxu0
      %v3777 = vadd.f32 0.0, %v3776
      %v3778 = vpop.f32.mrb[0].mxu0
      %3779 = vmatprep.mubr.f32.mxu0 0.0
      %3780 = vmatmul.mubr.f32.gmra.mrb[0].mxu0 %v3191
      %v3781 = vpop.f32.mrb[0].mxu0
      %v3782 = vadd.f32 0.0, %v3781
      %v3783 = vpop.f32.mrb[0].mxu0
      %3784 = vmatprep.mubr.f32.mxu0 0.0
      %3785 = vmatmul.mubr.f32.gmra.mrb[0].mxu0 %v3192
      %v3786 = vpop.f32.mrb[0].mxu0
      %v3787 = vadd.f32 0.0, %v3786
      %v3788 = vpop.f32.mrb[0].mxu0
      %3789 = vmatprep.mubr.f32.mxu0 0.0
      %3790 = vmatmul.mubr.f32.gmra.mrb[0].mxu0 %v3193
      %v3791 = vpop.f32.mrb[0].mxu0
      %v3792 = vadd.f32 0.0, %v3791
      %v3793 = vpop.f32.mrb[0].mxu0
      %3794 = vmatprep.mubr.f32.mxu0 0.0
      %3795 = vmatmul.mubr.f32.gmra.mrb[0].mxu0 %v3194
      %v3796 = vpop.f32.mrb[0].mxu0
      %v3797 = vadd.f32 0.0, %v3796
      %v3798 = vpop.f32.mrb[0].mxu0
      %3799 = vmatprep.mubr.f32.mxu0 0.0
      %3800 = vmatmul.mubr.f32.gmra.mrb[0].mxu0 %v3195
      %v3801 = vpop.f32.mrb[0].mxu0
      %v3802 = vadd.f32 0.0, %v3801
      %v3803 = vpop.f32.mrb[0].mxu0
      %3804 = vmatprep.mubr.f32.mxu0 0.0
      %3805 = vmatmul.mubr.f32.gmra.mrb[0].mxu0 %v3196
      %v3806 = vpop.f32.mrb[0].mxu0
      %v3807 = vadd.f32 0.0, %v3806
      %v3808 = vpop.f32.mrb[0].mxu0
      %3809 = vmatprep.mubr.f32.mxu0 0.0
      %3810 = vmatmul.mubr.f32.gmra.mrb[0].mxu0 %v3197
      %v3811 = vpop.f32.mrb[0].mxu0
      %v3812 = vadd.f32 0.0, %v3811
      %v3813 = vpop.f32.mrb[0].mxu0
      %3814 = vmatprep.mubr.f32.mxu0 0.0
      %3815 = vmatmul.mubr.f32.gmra.mrb[0].mxu0 %v3198
      %v3816 = vpop.f32.mrb[0].mxu0
      %v3817 = vadd.f32 0.0, %v3816
      %v3818 = vpop.f32.mrb[0].mxu0
      %3819 = vmatprep.mubr.f32.mxu0 0.0
      %3820 = vmatmul.mubr.f32.gmra.mrb[0].mxu0 %v3199
      %v3821 = vpop.f32.mrb[0].mxu0
      %v3822 = vadd.f32 0.0, %v3821
      %v3823 = vpop.f32.mrb[0].mxu0
      %3824 = vmatprep.mubr.f32.mxu0 0.0
      %3825 = vmatmul.mubr.f32.gmra.mrb[0].mxu0 %v3200
      %v3826 = vpop.f32.mrb[0].mxu0
      %v3827 = vadd.f32 0.0, %v3826
      %v3828 = vpop.f32.mrb[0].mxu0
      %3829 = vmatprep.mubr.f32.mxu0 0.0
      %3830 = vmatmul.mubr.f32.gmra.mrb[0].mxu0 %v3201
      %v3831 = vpop.f32.mrb[0].mxu0
      %v3832 = vadd.f32 0.0, %v3831
      %v3833 = vpop.f32.mrb[0].mxu0
      %3834 = vmatprep.mubr.f32.mxu0 0.0
      %3835 = vmatmul.mubr.f32.gmra.mrb[0].mxu0 %v3202
      %v3836 = vpop.f32.mrb[0].mxu0
      %v3837 = vadd.f32 0.0, %v3836
      %v3838 = vpop.f32.mrb[0].mxu0
      %3839 = vmatprep.mubr.f32.mxu0 0.0
      %3840 = vmatmul.mubr.f32.gmra.mrb[0].mxu0 %v3203
      %v3841 = vpop.f32.mrb[0].mxu0
      %v3842 = vadd.f32 0.0, %v3841
      %v3843 = vpop.f32.mrb[0].mxu0
      %3844 = vmatprep.mubr.f32.mxu0 0.0
      %3845 = vmatmul.mubr.f32.gmra.mrb[0].mxu0 %v3204
      %v3846 = vpop.f32.mrb[0].mxu0
      %v3847 = vadd.f32 0.0, %v3846
      %v3848 = vpop.f32.mrb[0].mxu0
      %3849 = vmatprep.mubr.f32.mxu0 0.0
      %3850 = vmatmul.mubr.f32.gmra.mrb[0].mxu0 %v3205
      %v3851 = vpop.f32.mrb[0].mxu0
      %v3852 = vadd.f32 0.0, %v3851
      %v3853 = vpop.f32.mrb[0].mxu0
      %3854 = vmatprep.mubr.f32.mxu0 0.0
      %3855 = vmatmul.mubr.f32.gmra.mrb[0].mxu0 %v3206
      %v3856 = vpop.f32.mrb[0].mxu0
      %v3857 = vadd.f32 0.0, %v3856
      %v3858 = vpop.f32.mrb[0].mxu0
      %3859 = vmatprep.mubr.f32.mxu0 0.0
      %3860 = vmatmul.mubr.f32.gmra.mrb[0].mxu0 %v3207
      %v3861 = vpop.f32.mrb[0].mxu0
      %v3862 = vadd.f32 0.0, %v3861
      %v3863 = vpop.f32.mrb[0].mxu0
      %3864 = vmatprep.mubr.f32.mxu0 0.0
      %3865 = vmatmul.mubr.f32.gmra.mrb[0].mxu0 %v3208
      %v3866 = vpop.f32.mrb[0].mxu0
      %v3867 = vadd.f32 0.0, %v3866
      %v3868 = vpop.f32.mrb[0].mxu0
      %3869 = vmatprep.mubr.f32.mxu0 0.0
      %3870 = vmatmul.mubr.f32.gmra.mrb[0].mxu0 %v3209
      %v3871 = vpop.f32.mrb[0].mxu0
      %v3872 = vadd.f32 0.0, %v3871
      %v3873 = vpop.f32.mrb[0].mxu0
      %3874 = vmatprep.mubr.f32.mxu0 0.0
      %3875 = vmatmul.mubr.f32.gmra.mrb[0].mxu0 %v3210
      %v3876 = vpop.f32.mrb[0].mxu0
      %v3877 = vadd.f32 0.0, %v3876
      %v3878 = vpop.f32.mrb[0].mxu0
      %3879 = vmatprep.mubr.f32.mxu0 0.0
      %3880 = vmatmul.mubr.f32.gmra.mrb[0].mxu0 %v3211
      %v3881 = vpop.f32.mrb[0].mxu0
      %v3882 = vadd.f32 0.0, %v3881
      %v3883 = vpop.f32.mrb[0].mxu0
      %3884 = vmatprep.mubr.f32.mxu0 0.0
      %3885 = vmatmul.mubr.f32.gmra.mrb[0].mxu0 %v3212
      %v3886 = vpop.f32.mrb[0].mxu0
      %v3887 = vadd.f32 0.0, %v3886
      %v3888 = vpop.f32.mrb[0].mxu0
      %3889 = vmatprep.mubr.f32.mxu0 0.0
      %3890 = vmatmul.mubr.f32.gmra.mrb[0].mxu0 %v3213
      %v3891 = vpop.f32.mrb[0].mxu0
      %v3892 = vadd.f32 0.0, %v3891
      %v3893 = vpop.f32.mrb[0].mxu0
      %3894 = vmatprep.mubr.f32.mxu0 0.0
      %3895 = vmatmul.mubr.f32.gmra.mrb[0].mxu0 %v3214
      %v3896 = vpop.f32.mrb[0].mxu0
      %v3897 = vadd.f32 0.0, %v3896
      %v3898 = vpop.f32.mrb[0].mxu0
      %3899 = vmatprep.mubr.f32.mxu0 0.0
      %3900 = vmatmul.mubr.f32.gmra.mrb[0].mxu0 %v3215
      %v3901 = vpop.f32.mrb[0].mxu0
      %v3902 = vadd.f32 0.0, %v3901
      %v3903 = vpop.f32.mrb[0].mxu0
      %3904 = vmatprep.mubr.f32.mxu0 0.0
      %3905 = vmatmul.mubr.f32.gmra.mrb[0].mxu0 %v3216
      %v3906 = vpop.f32.mrb[0].mxu0
      %v3907 = vadd.f32 0.0, %v3906
      %v3908 = vpop.f32.mrb[0].mxu0
      %3909 = vmatprep.mubr.f32.mxu0 0.0
      %3910 = vmatmul.mubr.f32.gmra.mrb[0].mxu0 %v3217
      %v3911 = vpop.f32.mrb[0].mxu0
      %v3912 = vadd.f32 0.0, %v3911
      %v3913 = vpop.f32.mrb[0].mxu0
      %3914 = vmatprep.mubr.f32.mxu0 0.0
      %3915 = vmatmul.mubr.f32.gmra.mrb[0].mxu0 %v3218
      %v3916 = vpop.f32.mrb[0].mxu0
      %v3917 = vadd.f32 0.0, %v3916
      %v3918 = vpop.f32.mrb[0].mxu0
      %3919 = vmatprep.mubr.f32.mxu0 0.0
      %3920 = vmatmul.mubr.f32.gmra.mrb[0].mxu0 %v3219
      %v3921 = vpop.f32.mrb[0].mxu0
      %v3922 = vadd.f32 0.0, %v3921
      %v3923 = vpop.f32.mrb[0].mxu0
      %3924 = vdwg.mxu0
      %v3925 = vmax.f32 %v2964, %v3287
      %v3926 = vmax.f32 %v2965, %v3292
      %v3927 = vmax.f32 %v2966, %v3297
      %v3928 = vmax.f32 %v2967, %v3302
      %v3929 = vmax.f32 %v2968, %v3307
      %v3930 = vmax.f32 %v2969, %v3312
      %v3931 = vmax.f32 %v2970, %v3317
      %v3932 = vmax.f32 %v2971, %v3322
      %v3933 = vmax.f32 %v2972, %v3327
      %v3934 = vmax.f32 %v2973, %v3332
      %v3935 = vmax.f32 %v2974, %v3337
      %v3936 = vmax.f32 %v2975, %v3342
      %v3937 = vmax.f32 %v2976, %v3347
      %v3938 = vmax.f32 %v2977, %v3352
      %v3939 = vmax.f32 %v2978, %v3357
      %v3940 = vmax.f32 %v2979, %v3362
      %v3941 = vmax.f32 %v2980, %v3367
      %v3942 = vmax.f32 %v2981, %v3372
      %v3943 = vmax.f32 %v2982, %v3377
      %v3944 = vmax.f32 %v2983, %v3382
      %v3945 = vmax.f32 %v2984, %v3387
      %v3946 = vmax.f32 %v2985, %v3392
      %v3947 = vmax.f32 %v2986, %v3397
      %v3948 = vmax.f32 %v2987, %v3402
      %v3949 = vmax.f32 %v2988, %v3407
      %v3950 = vmax.f32 %v2989, %v3412
      %v3951 = vmax.f32 %v2990, %v3417
      %v3952 = vmax.f32 %v2991, %v3422
      %v3953 = vmax.f32 %v2992, %v3427
      %v3954 = vmax.f32 %v2993, %v3432
      %v3955 = vmax.f32 %v2994, %v3437
      %v3956 = vmax.f32 %v2995, %v3442
      %v3957 = vmax.f32 %v2996, %v3447
      %v3958 = vmax.f32 %v2997, %v3452
      %v3959 = vmax.f32 %v2998, %v3457
      %v3960 = vmax.f32 %v2999, %v3462
      %v3961 = vmax.f32 %v3000, %v3467
      %v3962 = vmax.f32 %v3001, %v3472
      %v3963 = vmax.f32 %v3002, %v3477
      %v3964 = vmax.f32 %v3003, %v3482
      %v3965 = vmax.f32 %v3004, %v3487
      %v3966 = vmax.f32 %v3005, %v3492
      %v3967 = vmax.f32 %v3006, %v3497
      %v3968 = vmax.f32 %v3007, %v3502
      %v3969 = vmax.f32 %v3008, %v3507
      %v3970 = vmax.f32 %v3009, %v3512
      %v3971 = vmax.f32 %v3010, %v3517
      %v3972 = vmax.f32 %v3011, %v3522
      %v3973 = vmax.f32 %v3012, %v3527
      %v3974 = vmax.f32 %v3013, %v3532
      %v3975 = vmax.f32 %v3014, %v3537
      %v3976 = vmax.f32 %v3015, %v3542
      %v3977 = vmax.f32 %v3016, %v3547
      %v3978 = vmax.f32 %v3017, %v3552
      %v3979 = vmax.f32 %v3018, %v3557
      %v3980 = vmax.f32 %v3019, %v3562
      %v3981 = vmax.f32 %v3020, %v3567
      %v3982 = vmax.f32 %v3021, %v3572
      %v3983 = vmax.f32 %v3022, %v3577
      %v3984 = vmax.f32 %v3023, %v3582
      %v3985 = vmax.f32 %v3024, %v3587
      %v3986 = vmax.f32 %v3025, %v3592
      %v3987 = vmax.f32 %v3026, %v3597
      %v3988 = vmax.f32 %v3027, %v3602
      %v3989 = vmax.f32 %v3028, %v3607
      %v3990 = vmax.f32 %v3029, %v3612
      %v3991 = vmax.f32 %v3030, %v3617
      %v3992 = vmax.f32 %v3031, %v3622
      %v3993 = vmax.f32 %v3032, %v3627
      %v3994 = vmax.f32 %v3033, %v3632
      %v3995 = vmax.f32 %v3034, %v3637
      %v3996 = vmax.f32 %v3035, %v3642
      %v3997 = vmax.f32 %v3036, %v3647
      %v3998 = vmax.f32 %v3037, %v3652
      %v3999 = vmax.f32 %v3038, %v3657
      %v4000 = vmax.f32 %v3039, %v3662
      %v4001 = vmax.f32 %v3040, %v3667
      %v4002 = vmax.f32 %v3041, %v3672
      %v4003 = vmax.f32 %v3042, %v3677
      %v4004 = vmax.f32 %v3043, %v3682
      %v4005 = vmax.f32 %v3044, %v3687
      %v4006 = vmax.f32 %v3045, %v3692
      %v4007 = vmax.f32 %v3046, %v3697
      %v4008 = vmax.f32 %v3047, %v3702
      %v4009 = vmax.f32 %v3048, %v3707
      %v4010 = vmax.f32 %v3049, %v3712
      %v4011 = vmax.f32 %v3050, %v3717
      %v4012 = vmax.f32 %v3051, %v3722
      %v4013 = vmax.f32 %v3052, %v3727
      %v4014 = vmax.f32 %v3053, %v3732
      %v4015 = vmax.f32 %v3054, %v3737
      %v4016 = vmax.f32 %v3055, %v3742
      %v4017 = vmax.f32 %v3056, %v3747
      %v4018 = vmax.f32 %v3057, %v3752
      %v4019 = vmax.f32 %v3058, %v3757
      %v4020 = vmax.f32 %v3059, %v3762
      %v4021 = vmax.f32 %v3060, %v3767
      %v4022 = vmax.f32 %v3061, %v3772
      %v4023 = vmax.f32 %v3062, %v3777
      %v4024 = vmax.f32 %v3063, %v3782
      %v4025 = vmax.f32 %v3064, %v3787
      %v4026 = vmax.f32 %v3065, %v3792
      %v4027 = vmax.f32 %v3066, %v3797
      %v4028 = vmax.f32 %v3067, %v3802
      %v4029 = vmax.f32 %v3068, %v3807
      %v4030 = vmax.f32 %v3069, %v3812
      %v4031 = vmax.f32 %v3070, %v3817
      %v4032 = vmax.f32 %v3071, %v3822
      %v4033 = vmax.f32 %v3072, %v3827
      %v4034 = vmax.f32 %v3073, %v3832
      %v4035 = vmax.f32 %v3074, %v3837
      %v4036 = vmax.f32 %v3075, %v3842
      %v4037 = vmax.f32 %v3076, %v3847
      %v4038 = vmax.f32 %v3077, %v3852
      %v4039 = vmax.f32 %v3078, %v3857
      %v4040 = vmax.f32 %v3079, %v3862
      %v4041 = vmax.f32 %v3080, %v3867
      %v4042 = vmax.f32 %v3081, %v3872
      %v4043 = vmax.f32 %v3082, %v3877
      %v4044 = vmax.f32 %v3083, %v3882
      %v4045 = vmax.f32 %v3084, %v3887
      %v4046 = vmax.f32 %v3085, %v3892
      %v4047 = vmax.f32 %v3086, %v3897
      %v4048 = vmax.f32 %v3087, %v3902
      %v4049 = vmax.f32 %v3088, %v3907
      %v4050 = vmax.f32 %v3089, %v3912
      %v4051 = vmax.f32 %v3090, %v3917
      %v4052 = vmax.f32 %v3091, %v3922
      %v4053 = vld [vmem:[%s5] sm:$0x1]
      %v4055 = vlaneseq
      %v4056 = vshrl.u32 %v4055, 7
      %v4057 = vsub.s32 0, %v4056
      %v4058 = vrot.slane %v4053, %v4057
      %v4060 = vadd.f32 %v3925, %v4058
      %v4061 = vadd.f32 %v3926, %v4058
      %v4062 = vadd.f32 %v3927, %v4058
      %v4063 = vadd.f32 %v3928, %v4058
      %v4064 = vadd.f32 %v3929, %v4058
      %v4065 = vadd.f32 %v3930, %v4058
      %v4066 = vadd.f32 %v3931, %v4058
      %v4067 = vadd.f32 %v3932, %v4058
      %v4068 = vadd.f32 %v3933, %v4058
      %v4069 = vadd.f32 %v3934, %v4058
      %v4070 = vadd.f32 %v3935, %v4058
      %v4071 = vadd.f32 %v3936, %v4058
      %v4072 = vadd.f32 %v3937, %v4058
      %v4073 = vadd.f32 %v3938, %v4058
      %v4074 = vadd.f32 %v3939, %v4058
      %v4075 = vadd.f32 %v3940, %v4058
      %v4076 = vadd.f32 %v3941, %v4058
      %v4077 = vadd.f32 %v3942, %v4058
      %v4078 = vadd.f32 %v3943, %v4058
      %v4079 = vadd.f32 %v3944, %v4058
      %v4080 = vadd.f32 %v3945, %v4058
      %v4081 = vadd.f32 %v3946, %v4058
      %v4082 = vadd.f32 %v3947, %v4058
      %v4083 = vadd.f32 %v3948, %v4058
      %v4084 = vadd.f32 %v3949, %v4058
      %v4085 = vadd.f32 %v3950, %v4058
      %v4086 = vadd.f32 %v3951, %v4058
      %v4087 = vadd.f32 %v3952, %v4058
      %v4088 = vadd.f32 %v3953, %v4058
      %v4089 = vadd.f32 %v3954, %v4058
      %v4090 = vadd.f32 %v3955, %v4058
      %v4091 = vadd.f32 %v3956, %v4058
      %v4092 = vadd.f32 %v3957, %v4058
      %v4093 = vadd.f32 %v3958, %v4058
      %v4094 = vadd.f32 %v3959, %v4058
      %v4095 = vadd.f32 %v3960, %v4058
      %v4096 = vadd.f32 %v3961, %v4058
      %v4097 = vadd.f32 %v3962, %v4058
      %v4098 = vadd.f32 %v3963, %v4058
      %v4099 = vadd.f32 %v3964, %v4058
      %v4100 = vadd.f32 %v3965, %v4058
      %v4101 = vadd.f32 %v3966, %v4058
      %v4102 = vadd.f32 %v3967, %v4058
      %v4103 = vadd.f32 %v3968, %v4058
      %v4104 = vadd.f32 %v3969, %v4058
      %v4105 = vadd.f32 %v3970, %v4058
      %v4106 = vadd.f32 %v3971, %v4058
      %v4107 = vadd.f32 %v3972, %v4058
      %v4108 = vadd.f32 %v3973, %v4058
      %v4109 = vadd.f32 %v3974, %v4058
      %v4110 = vadd.f32 %v3975, %v4058
      %v4111 = vadd.f32 %v3976, %v4058
      %v4112 = vadd.f32 %v3977, %v4058
      %v4113 = vadd.f32 %v3978, %v4058
      %v4114 = vadd.f32 %v3979, %v4058
      %v4115 = vadd.f32 %v3980, %v4058
      %v4116 = vadd.f32 %v3981, %v4058
      %v4117 = vadd.f32 %v3982, %v4058
      %v4118 = vadd.f32 %v3983, %v4058
      %v4119 = vadd.f32 %v3984, %v4058
      %v4120 = vadd.f32 %v3985, %v4058
      %v4121 = vadd.f32 %v3986, %v4058
      %v4122 = vadd.f32 %v3987, %v4058
      %v4123 = vadd.f32 %v3988, %v4058
      %v4124 = vadd.f32 %v3989, %v4058
      %v4125 = vadd.f32 %v3990, %v4058
      %v4126 = vadd.f32 %v3991, %v4058
      %v4127 = vadd.f32 %v3992, %v4058
      %v4128 = vadd.f32 %v3993, %v4058
      %v4129 = vadd.f32 %v3994, %v4058
      %v4130 = vadd.f32 %v3995, %v4058
      %v4131 = vadd.f32 %v3996, %v4058
      %v4132 = vadd.f32 %v3997, %v4058
      %v4133 = vadd.f32 %v3998, %v4058
      %v4134 = vadd.f32 %v3999, %v4058
      %v4135 = vadd.f32 %v4000, %v4058
      %v4136 = vadd.f32 %v4001, %v4058
      %v4137 = vadd.f32 %v4002, %v4058
      %v4138 = vadd.f32 %v4003, %v4058
      %v4139 = vadd.f32 %v4004, %v4058
      %v4140 = vadd.f32 %v4005, %v4058
      %v4141 = vadd.f32 %v4006, %v4058
      %v4142 = vadd.f32 %v4007, %v4058
      %v4143 = vadd.f32 %v4008, %v4058
      %v4144 = vadd.f32 %v4009, %v4058
      %v4145 = vadd.f32 %v4010, %v4058
      %v4146 = vadd.f32 %v4011, %v4058
      %v4147 = vadd.f32 %v4012, %v4058
      %v4148 = vadd.f32 %v4013, %v4058
      %v4149 = vadd.f32 %v4014, %v4058
      %v4150 = vadd.f32 %v4015, %v4058
      %v4151 = vadd.f32 %v4016, %v4058
      %v4152 = vadd.f32 %v4017, %v4058
      %v4153 = vadd.f32 %v4018, %v4058
      %v4154 = vadd.f32 %v4019, %v4058
      %v4155 = vadd.f32 %v4020, %v4058
      %v4156 = vadd.f32 %v4021, %v4058
      %v4157 = vadd.f32 %v4022, %v4058
      %v4158 = vadd.f32 %v4023, %v4058
      %v4159 = vadd.f32 %v4024, %v4058
      %v4160 = vadd.f32 %v4025, %v4058
      %v4161 = vadd.f32 %v4026, %v4058
      %v4162 = vadd.f32 %v4027, %v4058
      %v4163 = vadd.f32 %v4028, %v4058
      %v4164 = vadd.f32 %v4029, %v4058
      %v4165 = vadd.f32 %v4030, %v4058
      %v4166 = vadd.f32 %v4031, %v4058
      %v4167 = vadd.f32 %v4032, %v4058
      %v4168 = vadd.f32 %v4033, %v4058
      %v4169 = vadd.f32 %v4034, %v4058
      %v4170 = vadd.f32 %v4035, %v4058
      %v4171 = vadd.f32 %v4036, %v4058
      %v4172 = vadd.f32 %v4037, %v4058
      %v4173 = vadd.f32 %v4038, %v4058
      %v4174 = vadd.f32 %v4039, %v4058
      %v4175 = vadd.f32 %v4040, %v4058
      %v4176 = vadd.f32 %v4041, %v4058
      %v4177 = vadd.f32 %v4042, %v4058
      %v4178 = vadd.f32 %v4043, %v4058
      %v4179 = vadd.f32 %v4044, %v4058
      %v4180 = vadd.f32 %v4045, %v4058
      %v4181 = vadd.f32 %v4046, %v4058
      %v4182 = vadd.f32 %v4047, %v4058
      %v4183 = vadd.f32 %v4048, %v4058
      %v4184 = vadd.f32 %v4049, %v4058
      %v4185 = vadd.f32 %v4050, %v4058
      %v4186 = vadd.f32 %v4051, %v4058
      %v4187 = vadd.f32 %v4052, %v4058
      %v4188 = vmax.f32 %v4060, 0.0
      %v4189 = vmax.f32 %v4061, 0.0
      %v4190 = vmax.f32 %v4062, 0.0
      %v4191 = vmax.f32 %v4063, 0.0
      %v4192 = vmax.f32 %v4064, 0.0
      %v4193 = vmax.f32 %v4065, 0.0
      %v4194 = vmax.f32 %v4066, 0.0
      %v4195 = vmax.f32 %v4067, 0.0
      %v4196 = vmax.f32 %v4068, 0.0
      %v4197 = vmax.f32 %v4069, 0.0
      %v4198 = vmax.f32 %v4070, 0.0
      %v4199 = vmax.f32 %v4071, 0.0
      %v4200 = vmax.f32 %v4072, 0.0
      %v4201 = vmax.f32 %v4073, 0.0
      %v4202 = vmax.f32 %v4074, 0.0
      %v4203 = vmax.f32 %v4075, 0.0
      %v4204 = vmax.f32 %v4076, 0.0
      %v4205 = vmax.f32 %v4077, 0.0
      %v4206 = vmax.f32 %v4078, 0.0
      %v4207 = vmax.f32 %v4079, 0.0
      %v4208 = vmax.f32 %v4080, 0.0
      %v4209 = vmax.f32 %v4081, 0.0
      %v4210 = vmax.f32 %v4082, 0.0
      %v4211 = vmax.f32 %v4083, 0.0
      %v4212 = vmax.f32 %v4084, 0.0
      %v4213 = vmax.f32 %v4085, 0.0
      %v4214 = vmax.f32 %v4086, 0.0
      %v4215 = vmax.f32 %v4087, 0.0
      %v4216 = vmax.f32 %v4088, 0.0
      %v4217 = vmax.f32 %v4089, 0.0
      %v4218 = vmax.f32 %v4090, 0.0
      %v4219 = vmax.f32 %v4091, 0.0
      %v4220 = vmax.f32 %v4092, 0.0
      %v4221 = vmax.f32 %v4093, 0.0
      %v4222 = vmax.f32 %v4094, 0.0
      %v4223 = vmax.f32 %v4095, 0.0
      %v4224 = vmax.f32 %v4096, 0.0
      %v4225 = vmax.f32 %v4097, 0.0
      %v4226 = vmax.f32 %v4098, 0.0
      %v4227 = vmax.f32 %v4099, 0.0
      %v4228 = vmax.f32 %v4100, 0.0
      %v4229 = vmax.f32 %v4101, 0.0
      %v4230 = vmax.f32 %v4102, 0.0
      %v4231 = vmax.f32 %v4103, 0.0
      %v4232 = vmax.f32 %v4104, 0.0
      %v4233 = vmax.f32 %v4105, 0.0
      %v4234 = vmax.f32 %v4106, 0.0
      %v4235 = vmax.f32 %v4107, 0.0
      %v4236 = vmax.f32 %v4108, 0.0
      %v4237 = vmax.f32 %v4109, 0.0
      %v4238 = vmax.f32 %v4110, 0.0
      %v4239 = vmax.f32 %v4111, 0.0
      %v4240 = vmax.f32 %v4112, 0.0
      %v4241 = vmax.f32 %v4113, 0.0
      %v4242 = vmax.f32 %v4114, 0.0
      %v4243 = vmax.f32 %v4115, 0.0
      %v4244 = vmax.f32 %v4116, 0.0
      %v4245 = vmax.f32 %v4117, 0.0
      %v4246 = vmax.f32 %v4118, 0.0
      %v4247 = vmax.f32 %v4119, 0.0
      %v4248 = vmax.f32 %v4120, 0.0
      %v4249 = vmax.f32 %v4121, 0.0
      %v4250 = vmax.f32 %v4122, 0.0
      %v4251 = vmax.f32 %v4123, 0.0
      %v4252 = vmax.f32 %v4124, 0.0
      %v4253 = vmax.f32 %v4125, 0.0
      %v4254 = vmax.f32 %v4126, 0.0
      %v4255 = vmax.f32 %v4127, 0.0
      %v4256 = vmax.f32 %v4128, 0.0
      %v4257 = vmax.f32 %v4129, 0.0
      %v4258 = vmax.f32 %v4130, 0.0
      %v4259 = vmax.f32 %v4131, 0.0
      %v4260 = vmax.f32 %v4132, 0.0
      %v4261 = vmax.f32 %v4133, 0.0
      %v4262 = vmax.f32 %v4134, 0.0
      %v4263 = vmax.f32 %v4135, 0.0
      %v4264 = vmax.f32 %v4136, 0.0
      %v4265 = vmax.f32 %v4137, 0.0
      %v4266 = vmax.f32 %v4138, 0.0
      %v4267 = vmax.f32 %v4139, 0.0
      %v4268 = vmax.f32 %v4140, 0.0
      %v4269 = vmax.f32 %v4141, 0.0
      %v4270 = vmax.f32 %v4142, 0.0
      %v4271 = vmax.f32 %v4143, 0.0
      %v4272 = vmax.f32 %v4144, 0.0
      %v4273 = vmax.f32 %v4145, 0.0
      %v4274 = vmax.f32 %v4146, 0.0
      %v4275 = vmax.f32 %v4147, 0.0
      %v4276 = vmax.f32 %v4148, 0.0
      %v4277 = vmax.f32 %v4149, 0.0
      %v4278 = vmax.f32 %v4150, 0.0
      %v4279 = vmax.f32 %v4151, 0.0
      %v4280 = vmax.f32 %v4152, 0.0
      %v4281 = vmax.f32 %v4153, 0.0
      %v4282 = vmax.f32 %v4154, 0.0
      %v4283 = vmax.f32 %v4155, 0.0
      %v4284 = vmax.f32 %v4156, 0.0
      %v4285 = vmax.f32 %v4157, 0.0
      %v4286 = vmax.f32 %v4158, 0.0
      %v4287 = vmax.f32 %v4159, 0.0
      %v4288 = vmax.f32 %v4160, 0.0
      %v4289 = vmax.f32 %v4161, 0.0
      %v4290 = vmax.f32 %v4162, 0.0
      %v4291 = vmax.f32 %v4163, 0.0
      %v4292 = vmax.f32 %v4164, 0.0
      %v4293 = vmax.f32 %v4165, 0.0
      %v4294 = vmax.f32 %v4166, 0.0
      %v4295 = vmax.f32 %v4167, 0.0
      %v4296 = vmax.f32 %v4168, 0.0
      %v4297 = vmax.f32 %v4169, 0.0
      %v4298 = vmax.f32 %v4170, 0.0
      %v4299 = vmax.f32 %v4171, 0.0
      %v4300 = vmax.f32 %v4172, 0.0
      %v4301 = vmax.f32 %v4173, 0.0
      %v4302 = vmax.f32 %v4174, 0.0
      %v4303 = vmax.f32 %v4175, 0.0
      %v4304 = vmax.f32 %v4176, 0.0
      %v4305 = vmax.f32 %v4177, 0.0
      %v4306 = vmax.f32 %v4178, 0.0
      %v4307 = vmax.f32 %v4179, 0.0
      %v4308 = vmax.f32 %v4180, 0.0
      %v4309 = vmax.f32 %v4181, 0.0
      %v4310 = vmax.f32 %v4182, 0.0
      %v4311 = vmax.f32 %v4183, 0.0
      %v4312 = vmax.f32 %v4184, 0.0
      %v4313 = vmax.f32 %v4185, 0.0
      %v4314 = vmax.f32 %v4186, 0.0
      %v4315 = vmax.f32 %v4187, 0.0
      %4316 = vst [vmem:[%s319] sm:$0xff] %v4188
      %4317 = vst [vmem:[%s319 + $0x8] sm:$0xff] %v4189
      %4318 = vst [vmem:[%s319 + $0x10] sm:$0xff] %v4190
      %4319 = vst [vmem:[%s319 + $0x18] sm:$0xff] %v4191
      %4320 = vst [vmem:[%s319 + $0x20] sm:$0xff] %v4192
      %4321 = vst [vmem:[%s319 + $0x28] sm:$0xff] %v4193
      %4322 = vst [vmem:[%s319 + $0x30] sm:$0xff] %v4194
      %4323 = vst [vmem:[%s319 + $0x38] sm:$0xff] %v4195
      %4324 = vst [vmem:[%s319 + $0x40] sm:$0xff] %v4196
      %4325 = vst [vmem:[%s319 + $0x48] sm:$0xff] %v4197
      %4326 = vst [vmem:[%s319 + $0x50] sm:$0xff] %v4198
      %4327 = vst [vmem:[%s319 + $0x58] sm:$0xff] %v4199
      %4328 = vst [vmem:[%s319 + $0x60] sm:$0xff] %v4200
      %4329 = vst [vmem:[%s319 + $0x68] sm:$0xff] %v4201
      %4330 = vst [vmem:[%s319 + $0x70] sm:$0xff] %v4202
      %4331 = vst [vmem:[%s319 + $0x78] sm:$0xff] %v4203
      %4332 = vst [vmem:[%s319 + $0x80] sm:$0xff] %v4204
      %4333 = vst [vmem:[%s319 + $0x88] sm:$0xff] %v4205
      %4334 = vst [vmem:[%s319 + $0x90] sm:$0xff] %v4206
      %4335 = vst [vmem:[%s319 + $0x98] sm:$0xff] %v4207
      %4336 = vst [vmem:[%s319 + $0xa0] sm:$0xff] %v4208
      %4337 = vst [vmem:[%s319 + $0xa8] sm:$0xff] %v4209
      %4338 = vst [vmem:[%s319 + $0xb0] sm:$0xff] %v4210
      %4339 = vst [vmem:[%s319 + $0xb8] sm:$0xff] %v4211
      %4340 = vst [vmem:[%s319 + $0xc0] sm:$0xff] %v4212
      %4341 = vst [vmem:[%s319 + $0xc8] sm:$0xff] %v4213
      %4342 = vst [vmem:[%s319 + $0xd0] sm:$0xff] %v4214
      %4343 = vst [vmem:[%s319 + $0xd8] sm:$0xff] %v4215
      %4344 = vst [vmem:[%s319 + $0xe0] sm:$0xff] %v4216
      %4345 = vst [vmem:[%s319 + $0xe8] sm:$0xff] %v4217
      %4346 = vst [vmem:[%s319 + $0xf0] sm:$0xff] %v4218
      %4347 = vst [vmem:[%s319 + $0xf8] sm:$0xff] %v4219
      %4348 = vst [vmem:[%s319 + $0x100] sm:$0xff] %v4220
      %4349 = vst [vmem:[%s319 + $0x108] sm:$0xff] %v4221
      %4350 = vst [vmem:[%s319 + $0x110] sm:$0xff] %v4222
      %4351 = vst [vmem:[%s319 + $0x118] sm:$0xff] %v4223
      %4352 = vst [vmem:[%s319 + $0x120] sm:$0xff] %v4224
      %4353 = vst [vmem:[%s319 + $0x128] sm:$0xff] %v4225
      %4354 = vst [vmem:[%s319 + $0x130] sm:$0xff] %v4226
      %4355 = vst [vmem:[%s319 + $0x138] sm:$0xff] %v4227
      %4356 = vst [vmem:[%s319 + $0x140] sm:$0xff] %v4228
      %4357 = vst [vmem:[%s319 + $0x148] sm:$0xff] %v4229
      %4358 = vst [vmem:[%s319 + $0x150] sm:$0xff] %v4230
      %4359 = vst [vmem:[%s319 + $0x158] sm:$0xff] %v4231
      %4360 = vst [vmem:[%s319 + $0x160] sm:$0xff] %v4232
      %4361 = vst [vmem:[%s319 + $0x168] sm:$0xff] %v4233
      %4362 = vst [vmem:[%s319 + $0x170] sm:$0xff] %v4234
      %4363 = vst [vmem:[%s319 + $0x178] sm:$0xff] %v4235
      %4364 = vst [vmem:[%s319 + $0x180] sm:$0xff] %v4236
      %4365 = vst [vmem:[%s319 + $0x188] sm:$0xff] %v4237
      %4366 = vst [vmem:[%s319 + $0x190] sm:$0xff] %v4238
      %4367 = vst [vmem:[%s319 + $0x198] sm:$0xff] %v4239
      %4368 = vst [vmem:[%s319 + $0x1a0] sm:$0xff] %v4240
      %4369 = vst [vmem:[%s319 + $0x1a8] sm:$0xff] %v4241
      %4370 = vst [vmem:[%s319 + $0x1b0] sm:$0xff] %v4242
      %4371 = vst [vmem:[%s319 + $0x1b8] sm:$0xff] %v4243
      %4372 = vst [vmem:[%s319 + $0x1c0] sm:$0xff] %v4244
      %4373 = vst [vmem:[%s319 + $0x1c8] sm:$0xff] %v4245
      %4374 = vst [vmem:[%s319 + $0x1d0] sm:$0xff] %v4246
      %4375 = vst [vmem:[%s319 + $0x1d8] sm:$0xff] %v4247
      %4376 = vst [vmem:[%s319 + $0x1e0] sm:$0xff] %v4248
      %4377 = vst [vmem:[%s319 + $0x1e8] sm:$0xff] %v4249
      %4378 = vst [vmem:[%s319 + $0x1f0] sm:$0xff] %v4250
      %4379 = vst [vmem:[%s319 + $0x1f8] sm:$0xff] %v4251
      %4380 = vst [vmem:[%s319 + $0x200] sm:$0xff] %v4252
      %4381 = vst [vmem:[%s319 + $0x208] sm:$0xff] %v4253
      %4382 = vst [vmem:[%s319 + $0x210] sm:$0xff] %v4254
      %4383 = vst [vmem:[%s319 + $0x218] sm:$0xff] %v4255
      %4384 = vst [vmem:[%s319 + $0x220] sm:$0xff] %v4256
      %4385 = vst [vmem:[%s319 + $0x228] sm:$0xff] %v4257
      %4386 = vst [vmem:[%s319 + $0x230] sm:$0xff] %v4258
      %4387 = vst [vmem:[%s319 + $0x238] sm:$0xff] %v4259
      %4388 = vst [vmem:[%s319 + $0x240] sm:$0xff] %v4260
      %4389 = vst [vmem:[%s319 + $0x248] sm:$0xff] %v4261
      %4390 = vst [vmem:[%s319 + $0x250] sm:$0xff] %v4262
      %4391 = vst [vmem:[%s319 + $0x258] sm:$0xff] %v4263
      %4392 = vst [vmem:[%s319 + $0x260] sm:$0xff] %v4264
      %4393 = vst [vmem:[%s319 + $0x268] sm:$0xff] %v4265
      %4394 = vst [vmem:[%s319 + $0x270] sm:$0xff] %v4266
      %4395 = vst [vmem:[%s319 + $0x278] sm:$0xff] %v4267
      %4396 = vst [vmem:[%s319 + $0x280] sm:$0xff] %v4268
      %4397 = vst [vmem:[%s319 + $0x288] sm:$0xff] %v4269
      %4398 = vst [vmem:[%s319 + $0x290] sm:$0xff] %v4270
      %4399 = vst [vmem:[%s319 + $0x298] sm:$0xff] %v4271
      %4400 = vst [vmem:[%s319 + $0x2a0] sm:$0xff] %v4272
      %4401 = vst [vmem:[%s319 + $0x2a8] sm:$0xff] %v4273
      %4402 = vst [vmem:[%s319 + $0x2b0] sm:$0xff] %v4274
      %4403 = vst [vmem:[%s319 + $0x2b8] sm:$0xff] %v4275
      %4404 = vst [vmem:[%s319 + $0x2c0] sm:$0xff] %v4276
      %4405 = vst [vmem:[%s319 + $0x2c8] sm:$0xff] %v4277
      %4406 = vst [vmem:[%s319 + $0x2d0] sm:$0xff] %v4278
      %4407 = vst [vmem:[%s319 + $0x2d8] sm:$0xff] %v4279
      %4408 = vst [vmem:[%s319 + $0x2e0] sm:$0xff] %v4280
      %4409 = vst [vmem:[%s319 + $0x2e8] sm:$0xff] %v4281
      %4410 = vst [vmem:[%s319 + $0x2f0] sm:$0xff] %v4282
      %4411 = vst [vmem:[%s319 + $0x2f8] sm:$0xff] %v4283
      %4412 = vst [vmem:[%s319 + $0x300] sm:$0xff] %v4284
      %4413 = vst [vmem:[%s319 + $0x308] sm:$0xff] %v4285
      %4414 = vst [vmem:[%s319 + $0x310] sm:$0xff] %v4286
      %4415 = vst [vmem:[%s319 + $0x318] sm:$0xff] %v4287
      %4416 = vst [vmem:[%s319 + $0x320] sm:$0xff] %v4288
      %4417 = vst [vmem:[%s319 + $0x328] sm:$0xff] %v4289
      %4418 = vst [vmem:[%s319 + $0x330] sm:$0xff] %v4290
      %4419 = vst [vmem:[%s319 + $0x338] sm:$0xff] %v4291
      %4420 = vst [vmem:[%s319 + $0x340] sm:$0xff] %v4292
      %4421 = vst [vmem:[%s319 + $0x348] sm:$0xff] %v4293
      %4422 = vst [vmem:[%s319 + $0x350] sm:$0xff] %v4294
      %4423 = vst [vmem:[%s319 + $0x358] sm:$0xff] %v4295
      %4424 = vst [vmem:[%s319 + $0x360] sm:$0xff] %v4296
      %4425 = vst [vmem:[%s319 + $0x368] sm:$0xff] %v4297
      %4426 = vst [vmem:[%s319 + $0x370] sm:$0xff] %v4298
      %4427 = vst [vmem:[%s319 + $0x378] sm:$0xff] %v4299
      %4428 = vst [vmem:[%s319 + $0x380] sm:$0xff] %v4300
      %4429 = vst [vmem:[%s319 + $0x388] sm:$0xff] %v4301
      %4430 = vst [vmem:[%s319 + $0x390] sm:$0xff] %v4302
      %4431 = vst [vmem:[%s319 + $0x398] sm:$0xff] %v4303
      %4432 = vst [vmem:[%s319 + $0x3a0] sm:$0xff] %v4304
      %4433 = vst [vmem:[%s319 + $0x3a8] sm:$0xff] %v4305
      %4434 = vst [vmem:[%s319 + $0x3b0] sm:$0xff] %v4306
      %4435 = vst [vmem:[%s319 + $0x3b8] sm:$0xff] %v4307
      %4436 = vst [vmem:[%s319 + $0x3c0] sm:$0xff] %v4308
      %4437 = vst [vmem:[%s319 + $0x3c8] sm:$0xff] %v4309
      %4438 = vst [vmem:[%s319 + $0x3d0] sm:$0xff] %v4310
      %4439 = vst [vmem:[%s319 + $0x3d8] sm:$0xff] %v4311
      %4440 = vst [vmem:[%s319 + $0x3e0] sm:$0xff] %v4312
      %4441 = vst [vmem:[%s319 + $0x3e8] sm:$0xff] %v4313
      %4442 = vst [vmem:[%s319 + $0x3f0] sm:$0xff] %v4314
      %4443 = vst [vmem:[%s319 + $0x3f8] sm:$0xff] %v4315
      %s4444 = smul.u32 128, %s17
      %p4445 = scmp.lt.s32.totalorder %s4444, 255
      %s4446 = scalar_select %p4445, %s4444, 255
      %s4447 = smul.addr %s4446, 8
      %s4448 = scalar_lea.vmem %s6, %s4447
      // Predicated region
      $region45: #{net_forward.4} parent=43 // pred_check
        %p4449 = pneg %p181
      $region46: #{net_forward.4} parent=43 // pred_check_branch
        %4451 = sbr.rel (%p4449) target = $region48
      $region47: #{net_forward.4} parent=43 // pred_region
        %s4452 = smul.u32 128, %s17
      $region48: #{net_forward.4} parent=43 // pred_fallthru
        _
    $region44: #{net_forward.4} parent=5 // pred_fallthru
      _
    %p4453 = scmp.le.s32.totalorder 2, %s12
    // Predicated region
    $region49: #{net_forward.4} parent=5 // pred_check
      %p4454 = pneg %p4453
    $region50: #{net_forward.4} parent=5 // pred_check_branch
      %4456 = sbr.rel (%p4454) target = $region52
    $region51: #{net_forward.4} parent=5 // pred_region
      %s4457 = ssub.s32 %s12, 2
      // Predicated region
      $region53: #{net_forward.4} parent=51 // pred_check
        %p4458 = pneg %p187
      $region54: #{net_forward.4} parent=51 // pred_check_branch
        %4460 = sbr.rel (%p4458) target = $region56
      $region55: #{net_forward.4} parent=51 // pred_region
        %s4461 = smul.u32 128, %s18
        %p4462 = scmp.lt.s32.totalorder %s4461, 255
        %s4463 = scalar_select %p4462, %s4461, 255
        %s4464 = smul.addr %s4463, 8
        %s4465 = scalar_lea.vmem %s6, %s4464
      $region56: #{net_forward.4} parent=51 // pred_fallthru
        _
    $region52: #{net_forward.4} parent=5 // pred_fallthru
      _
  $region6: #{net_forward.4} parent=0 // loop_footer
    %s16 = sadd.s32 1, %s12
  $region7: #{net_forward.4} parent=0 // loop_footer_branch
    %11 = sbr.rel target = $region3
  $region8: #{net_forward.4} parent=0 // loop_exit
    _

// kernel: net_forward.5
$region0: #{net_forward.5}
  #allocation0 [shape = 'u32[]', space=smem, size = 0x4, offset = 0x4, fixed_abs, tag = 'smem constant byte address 0x4 - core index']
  #allocation1 [shape = 'u32[144,128]{1,0:T(1,128)}', space=vmem, size = 0x12000, scoped, tag = 'internal scratch']
  %s0 = inlined_call_operand.vmem [shape: f32[392,256], index: 0, kind: input, shape index: {}]
  %s1 = inlined_call_operand.vmem [shape: f32[392,256], index: 1, kind: input, shape index: {}]
  %s2 = inlined_call_operand.vmem [shape: f32[392,256], index: 2, kind: input, shape index: {}]
  %s3 = inlined_call_operand.vmem [shape: f32[392,256], index: 3, kind: input, shape index: {}]
  %s4 = inlined_call_operand.vmem [shape: f32[256,128], index: 4, kind: input, shape index: {}]
  %s5 = inlined_call_operand.vmem [shape: f32[1,128], index: 5, kind: input, shape index: {}]
  %s6 = inlined_call_operand.vmem [shape: f32[392,128], index: 6, kind: output, shape index: {}]
  %s7 = sld [smem:[#allocation0]]
  $region34: #{net_forward.5} parent=0
    _
  %s9 = ssub.s32 1, %s7
  %s10 = scalar_select 0, %s9, %s7
  // Predicated region
  $region2: #{net_forward.5} parent=0 // pred_check
    _
  $region3: #{net_forward.5} parent=0 // pred_check_branch
    %12 = sbr.rel (0) target = $region5
  $region4: #{net_forward.5} parent=0 // pred_region
    _
  $region5: #{net_forward.5} parent=0 // pred_fallthru
    _
  // Predicated region
  $region6: #{net_forward.5} parent=0 // pred_check
    _
  $region7: #{net_forward.5} parent=0 // pred_check_branch
    %14 = sbr.rel (0) target = $region9
  $region8: #{net_forward.5} parent=0 // pred_region
    _
  $region9: #{net_forward.5} parent=0 // pred_fallthru
    _
  // Predicated region
  $region10: #{net_forward.5} parent=0 // pred_check
    _
  $region11: #{net_forward.5} parent=0 // pred_check_branch
    %16 = sbr.rel (0) target = $region13
  $region12: #{net_forward.5} parent=0 // pred_region
    _
  $region13: #{net_forward.5} parent=0 // pred_fallthru
    _
  // Predicated region
  $region14: #{net_forward.5} parent=0 // pred_check
    _
  $region15: #{net_forward.5} parent=0 // pred_check_branch
    %18 = sbr.rel (0) target = $region17
  $region16: #{net_forward.5} parent=0 // pred_region
    _
  $region17: #{net_forward.5} parent=0 // pred_fallthru
    _
  // Predicated region
  $region18: #{net_forward.5} parent=0 // pred_check
    _
  $region19: #{net_forward.5} parent=0 // pred_check_branch
    %20 = sbr.rel (0) target = $region21
  $region20: #{net_forward.5} parent=0 // pred_region
    _
  $region21: #{net_forward.5} parent=0 // pred_fallthru
    _
  // Predicated region
  $region22: #{net_forward.5} parent=0 // pred_check
    _
  $region23: #{net_forward.5} parent=0 // pred_check_branch
    %22 = sbr.rel (0) target = $region25
  $region24: #{net_forward.5} parent=0 // pred_region
    _
  $region25: #{net_forward.5} parent=0 // pred_fallthru
    _
  %v23 = vld [vmem:[%s4] sm:$0xff]
  %v24 = vld [vmem:[%s4 + $0x8] sm:$0xff]
  %v25 = vld [vmem:[%s4 + $0x10] sm:$0xff]
  %v26 = vld [vmem:[%s4 + $0x18] sm:$0xff]
  %v27 = vld [vmem:[%s4 + $0x20] sm:$0xff]
  %v28 = vld [vmem:[%s4 + $0x28] sm:$0xff]
  %v29 = vld [vmem:[%s4 + $0x30] sm:$0xff]
  %v30 = vld [vmem:[%s4 + $0x38] sm:$0xff]
  %v31 = vld [vmem:[%s4 + $0x40] sm:$0xff]
  %v32 = vld [vmem:[%s4 + $0x48] sm:$0xff]
  %v33 = vld [vmem:[%s4 + $0x50] sm:$0xff]
  %v34 = vld [vmem:[%s4 + $0x58] sm:$0xff]
  %v35 = vld [vmem:[%s4 + $0x60] sm:$0xff]
  %v36 = vld [vmem:[%s4 + $0x68] sm:$0xff]
  %v37 = vld [vmem:[%s4 + $0x70] sm:$0xff]
  %v38 = vld [vmem:[%s4 + $0x78] sm:$0xff]
  %v39 = vld [vmem:[%s4 + $0x80] sm:$0xff]
  %v40 = vld [vmem:[%s4 + $0x88] sm:$0xff]
  %v41 = vld [vmem:[%s4 + $0x90] sm:$0xff]
  %v42 = vld [vmem:[%s4 + $0x98] sm:$0xff]
  %v43 = vld [vmem:[%s4 + $0xa0] sm:$0xff]
  %v44 = vld [vmem:[%s4 + $0xa8] sm:$0xff]
  %v45 = vld [vmem:[%s4 + $0xb0] sm:$0xff]
  %v46 = vld [vmem:[%s4 + $0xb8] sm:$0xff]
  %v47 = vld [vmem:[%s4 + $0xc0] sm:$0xff]
  %v48 = vld [vmem:[%s4 + $0xc8] sm:$0xff]
  %v49 = vld [vmem:[%s4 + $0xd0] sm:$0xff]
  %v50 = vld [vmem:[%s4 + $0xd8] sm:$0xff]
  %v51 = vld [vmem:[%s4 + $0xe0] sm:$0xff]
  %v52 = vld [vmem:[%s4 + $0xe8] sm:$0xff]
  %v53 = vld [vmem:[%s4 + $0xf0] sm:$0xff]
  %v54 = vld [vmem:[%s4 + $0xf8] sm:$0xff]
  %v55 = vld [vmem:[%s0] sm:$0xff]
  %v56 = vld [vmem:[%s0 + $0x8] sm:$0xff]
  %v57 = vld [vmem:[%s0 + $0x10] sm:$0xff]
  %v58 = vld [vmem:[%s0 + $0x18] sm:$0xff]
  %v59 = vld [vmem:[%s0 + $0x20] sm:$0xff]
  %v60 = vld [vmem:[%s0 + $0x28] sm:$0xff]
  %v61 = vld [vmem:[%s0 + $0x30] sm:$0xff]
  %v62 = vld [vmem:[%s0 + $0x38] sm:$0xff]
  %v63 = vld [vmem:[%s0 + $0x40] sm:$0xff]
  %v64 = vld [vmem:[%s0 + $0x48] sm:$0xff]
  %v65 = vld [vmem:[%s0 + $0x50] sm:$0xff]
  %v66 = vld [vmem:[%s0 + $0x58] sm:$0xff]
  %v67 = vld [vmem:[%s0 + $0x60] sm:$0xff]
  %v68 = vld [vmem:[%s0 + $0x68] sm:$0xff]
  %v69 = vld [vmem:[%s0 + $0x70] sm:$0xff]
  %v70 = vld [vmem:[%s0 + $0x78] sm:$0xff]
  %v71 = vld [vmem:[%s0 + $0x80] sm:$0xff]
  %v72 = vld [vmem:[%s0 + $0x88] sm:$0xff]
  %v73 = vld [vmem:[%s0 + $0x90] sm:$0xff]
  %v74 = vld [vmem:[%s0 + $0x98] sm:$0xff]
  %v75 = vld [vmem:[%s0 + $0xa0] sm:$0xff]
  %v76 = vld [vmem:[%s0 + $0xa8] sm:$0xff]
  %v77 = vld [vmem:[%s0 + $0xb0] sm:$0xff]
  %v78 = vld [vmem:[%s0 + $0xb8] sm:$0xff]
  %v79 = vld [vmem:[%s0 + $0xc0] sm:$0xff]
  %v80 = vld [vmem:[%s0 + $0xc8] sm:$0xff]
  %v81 = vld [vmem:[%s0 + $0xd0] sm:$0xff]
  %v82 = vld [vmem:[%s0 + $0xd8] sm:$0xff]
  %v83 = vld [vmem:[%s0 + $0xe0] sm:$0xff]
  %v84 = vld [vmem:[%s0 + $0xe8] sm:$0xff]
  %v85 = vld [vmem:[%s0 + $0xf0] sm:$0xff]
  %v86 = vld [vmem:[%s0 + $0xf8] sm:$0xff]
  %v87 = vld [vmem:[%s0 + $0x100] sm:$0xff]
  %v88 = vld [vmem:[%s0 + $0x108] sm:$0xff]
  %v89 = vld [vmem:[%s0 + $0x110] sm:$0xff]
  %v90 = vld [vmem:[%s0 + $0x118] sm:$0xff]
  %v91 = vld [vmem:[%s0 + $0x120] sm:$0xff]
  %v92 = vld [vmem:[%s0 + $0x128] sm:$0xff]
  %v93 = vld [vmem:[%s0 + $0x130] sm:$0xff]
  %v94 = vld [vmem:[%s0 + $0x138] sm:$0xff]
  %v95 = vld [vmem:[%s0 + $0x140] sm:$0xff]
  %v96 = vld [vmem:[%s0 + $0x148] sm:$0xff]
  %v97 = vld [vmem:[%s0 + $0x150] sm:$0xff]
  %v98 = vld [vmem:[%s0 + $0x158] sm:$0xff]
  %v99 = vld [vmem:[%s0 + $0x160] sm:$0xff]
  %v100 = vld [vmem:[%s0 + $0x168] sm:$0xff]
  %v101 = vld [vmem:[%s0 + $0x170] sm:$0xff]
  %v102 = vld [vmem:[%s0 + $0x178] sm:$0xff]
  %v103 = vld [vmem:[%s0 + $0x180] sm:$0xff]
  %v104 = vld [vmem:[%s0 + $0x188] sm:$0xff]
  %v105 = vld [vmem:[%s0 + $0x190] sm:$0xff]
  %v106 = vld [vmem:[%s0 + $0x198] sm:$0xff]
  %v107 = vld [vmem:[%s0 + $0x1a0] sm:$0xff]
  %v108 = vld [vmem:[%s0 + $0x1a8] sm:$0xff]
  %v109 = vld [vmem:[%s0 + $0x1b0] sm:$0xff]
  %v110 = vld [vmem:[%s0 + $0x1b8] sm:$0xff]
  %v111 = vld [vmem:[%s0 + $0x1c0] sm:$0xff]
  %v112 = vld [vmem:[%s0 + $0x1c8] sm:$0xff]
  %v113 = vld [vmem:[%s0 + $0x1d0] sm:$0xff]
  %v114 = vld [vmem:[%s0 + $0x1d8] sm:$0xff]
  %v115 = vld [vmem:[%s0 + $0x1e0] sm:$0xff]
  %v116 = vld [vmem:[%s0 + $0x1e8] sm:$0xff]
  %v117 = vld [vmem:[%s0 + $0x1f0] sm:$0xff]
  %v118 = vld [vmem:[%s0 + $0x1f8] sm:$0xff]
  %v119 = vld [vmem:[%s0 + $0x200] sm:$0xff]
  %v120 = vld [vmem:[%s0 + $0x208] sm:$0xff]
  %v121 = vld [vmem:[%s0 + $0x210] sm:$0xff]
  %v122 = vld [vmem:[%s0 + $0x218] sm:$0xff]
  %v123 = vld [vmem:[%s0 + $0x220] sm:$0xff]
  %v124 = vld [vmem:[%s0 + $0x228] sm:$0xff]
  %v125 = vld [vmem:[%s0 + $0x230] sm:$0xff]
  %v126 = vld [vmem:[%s0 + $0x238] sm:$0xff]
  %v127 = vld [vmem:[%s0 + $0x240] sm:$0xff]
  %v128 = vld [vmem:[%s0 + $0x248] sm:$0xff]
  %v129 = vld [vmem:[%s0 + $0x250] sm:$0xff]
  %v130 = vld [vmem:[%s0 + $0x258] sm:$0xff]
  %v131 = vld [vmem:[%s0 + $0x260] sm:$0xff]
  %v132 = vld [vmem:[%s0 + $0x268] sm:$0xff]
  %v133 = vld [vmem:[%s0 + $0x270] sm:$0xff]
  %v134 = vld [vmem:[%s0 + $0x278] sm:$0xff]
  %v135 = vld [vmem:[%s0 + $0x280] sm:$0xff]
  %v136 = vld [vmem:[%s0 + $0x288] sm:$0xff]
  %v137 = vld [vmem:[%s0 + $0x290] sm:$0xff]
  %v138 = vld [vmem:[%s0 + $0x298] sm:$0xff]
  %v139 = vld [vmem:[%s0 + $0x2a0] sm:$0xff]
  %v140 = vld [vmem:[%s0 + $0x2a8] sm:$0xff]
  %v141 = vld [vmem:[%s0 + $0x2b0] sm:$0xff]
  %v142 = vld [vmem:[%s0 + $0x2b8] sm:$0xff]
  %v143 = vld [vmem:[%s0 + $0x2c0] sm:$0xff]
  %v144 = vld [vmem:[%s0 + $0x2c8] sm:$0xff]
  %v145 = vld [vmem:[%s0 + $0x2d0] sm:$0xff]
  %v146 = vld [vmem:[%s0 + $0x2d8] sm:$0xff]
  %v147 = vld [vmem:[%s0 + $0x2e0] sm:$0xff]
  %v148 = vld [vmem:[%s0 + $0x2e8] sm:$0xff]
  %v149 = vld [vmem:[%s0 + $0x2f0] sm:$0xff]
  %v150 = vld [vmem:[%s0 + $0x2f8] sm:$0xff]
  %v151 = vld [vmem:[%s0 + $0x300] sm:$0xff]
  %v152 = vld [vmem:[%s0 + $0x308] sm:$0xff]
  %153 = vmatprep.subr.mxu0 0.0
  %154 = vmatpush1.msra.mxu0 %v23
  %155 = vmatprep.subr.mxu0 0.0
  %156 = vmatpush1.msra.mxu0 %v24
  %157 = vmatprep.subr.mxu0 0.0
  %158 = vmatpush1.msra.mxu0 %v25
  %159 = vmatprep.subr.mxu0 0.0
  %160 = vmatpush1.msra.mxu0 %v26
  %161 = vmatprep.subr.mxu0 0.0
  %162 = vmatpush1.msra.mxu0 %v27
  %163 = vmatprep.subr.mxu0 0.0
  %164 = vmatpush1.msra.mxu0 %v28
  %165 = vmatprep.subr.mxu0 0.0
  %166 = vmatpush1.msra.mxu0 %v29
  %167 = vmatprep.subr.mxu0 0.0
  %168 = vmatpush1.msra.mxu0 %v30
  %169 = vmatprep.subr.mxu0 0.0
  %170 = vmatpush1.msra.mxu0 %v31
  %171 = vmatprep.subr.mxu0 0.0
  %172 = vmatpush1.msra.mxu0 %v32
  %173 = vmatprep.subr.mxu0 0.0
  %174 = vmatpush1.msra.mxu0 %v33
  %175 = vmatprep.subr.mxu0 0.0
  %176 = vmatpush1.msra.mxu0 %v34
  %177 = vmatprep.subr.mxu0 0.0
  %178 = vmatpush1.msra.mxu0 %v35
  %179 = vmatprep.subr.mxu0 0.0
  %180 = vmatpush1.msra.mxu0 %v36
  %181 = vmatprep.subr.mxu0 0.0
  %182 = vmatpush1.msra.mxu0 %v37
  %183 = vmatprep.subr.mxu0 0.0
  %184 = vmatpush1.msra.mxu0 %v38
  %185 = vmatprep.subr.mxu0 0.0
  %186 = vmatpush1.msra.mxu0 %v39
  %187 = vmatprep.subr.mxu0 0.0
  %188 = vmatpush1.msra.mxu0 %v40
  %189 = vmatprep.subr.mxu0 0.0
  %190 = vmatpush1.msra.mxu0 %v41
  %191 = vmatprep.subr.mxu0 0.0
  %192 = vmatpush1.msra.mxu0 %v42
  %193 = vmatprep.subr.mxu0 0.0
  %194 = vmatpush1.msra.mxu0 %v43
  %195 = vmatprep.subr.mxu0 0.0
  %196 = vmatpush1.msra.mxu0 %v44
  %197 = vmatprep.subr.mxu0 0.0
  %198 = vmatpush1.msra.mxu0 %v45
  %199 = vmatprep.subr.mxu0 0.0
  %200 = vmatpush1.msra.mxu0 %v46
  %201 = vmatprep.subr.mxu0 0.0
  %202 = vmatpush1.msra.mxu0 %v47
  %203 = vmatprep.subr.mxu0 0.0
  %204 = vmatpush1.msra.mxu0 %v48
  %205 = vmatprep.subr.mxu0 0.0
  %206 = vmatpush1.msra.mxu0 %v49
  %207 = vmatprep.subr.mxu0 0.0
  %208 = vmatpush1.msra.mxu0 %v50
  %209 = vmatprep.subr.mxu0 0.0
  %210 = vmatpush1.msra.mxu0 %v51
  %211 = vmatprep.subr.mxu0 0.0
  %212 = vmatpush1.msra.mxu0 %v52
  %213 = vmatprep.subr.mxu0 0.0
  %214 = vmatpush1.msra.mxu0 %v53
  %215 = vmatprep.subr.mxu0 0.0
  %216 = vmatpush1.msra.mxu0 %v54
  %217 = vmatprep.mubr.f32.mxu0 %v56
  %218 = vmatmul.mubr.f32.gmra.mrb[0].mxu0 %v55
  %v219 = vpop.f32.mrb[0].mxu0
  %v220 = vadd.f32 0.0, %v219
  %v221 = vpop.f32.mrb[0].mxu0
  %222 = vmatprep.mubr.f32.mxu0 %v58
  %223 = vmatmul.mubr.f32.gmra.mrb[0].mxu0 %v57
  %v224 = vpop.f32.mrb[0].mxu0
  %v225 = vadd.f32 0.0, %v224
  %v226 = vpop.f32.mrb[0].mxu0
  %227 = vmatprep.mubr.f32.mxu0 %v60
  %228 = vmatmul.mubr.f32.gmra.mrb[0].mxu0 %v59
  %v229 = vpop.f32.mrb[0].mxu0
  %v230 = vadd.f32 0.0, %v229
  %v231 = vpop.f32.mrb[0].mxu0
  %232 = vmatprep.mubr.f32.mxu0 %v62
  %233 = vmatmul.mubr.f32.gmra.mrb[0].mxu0 %v61
  %v234 = vpop.f32.mrb[0].mxu0
  %v235 = vadd.f32 0.0, %v234
  %v236 = vpop.f32.mrb[0].mxu0
  %237 = vmatprep.mubr.f32.mxu0 %v64
  %238 = vmatmul.mubr.f32.gmra.mrb[0].mxu0 %v63
  %v239 = vpop.f32.mrb[0].mxu0
  %v240 = vadd.f32 0.0, %v239
  %v241 = vpop.f32.mrb[0].mxu0
  %242 = vmatprep.mubr.f32.mxu0 %v66
  %243 = vmatmul.mubr.f32.gmra.mrb[0].mxu0 %v65
  %v244 = vpop.f32.mrb[0].mxu0
  %v245 = vadd.f32 0.0, %v244
  %v246 = vpop.f32.mrb[0].mxu0
  %247 = vmatprep.mubr.f32.mxu0 %v68
  %248 = vmatmul.mubr.f32.gmra.mrb[0].mxu0 %v67
  %v249 = vpop.f32.mrb[0].mxu0
  %v250 = vadd.f32 0.0, %v249
  %v251 = vpop.f32.mrb[0].mxu0
  %252 = vmatprep.mubr.f32.mxu0 %v70
  %253 = vmatmul.mubr.f32.gmra.mrb[0].mxu0 %v69
  %v254 = vpop.f32.mrb[0].mxu0
  %v255 = vadd.f32 0.0, %v254
  %v256 = vpop.f32.mrb[0].mxu0
  %257 = vmatprep.mubr.f32.mxu0 %v72
  %258 = vmatmul.mubr.f32.gmra.mrb[0].mxu0 %v71
  %v259 = vpop.f32.mrb[0].mxu0
  %v260 = vadd.f32 0.0, %v259
  %v261 = vpop.f32.mrb[0].mxu0
  %262 = vmatprep.mubr.f32.mxu0 %v74
  %263 = vmatmul.mubr.f32.gmra.mrb[0].mxu0 %v73
  %v264 = vpop.f32.mrb[0].mxu0
  %v265 = vadd.f32 0.0, %v264
  %v266 = vpop.f32.mrb[0].mxu0
  %267 = vmatprep.mubr.f32.mxu0 %v76
  %268 = vmatmul.mubr.f32.gmra.mrb[0].mxu0 %v75
  %v269 = vpop.f32.mrb[0].mxu0
  %v270 = vadd.f32 0.0, %v269
  %v271 = vpop.f32.mrb[0].mxu0
  %272 = vmatprep.mubr.f32.mxu0 %v78
  %273 = vmatmul.mubr.f32.gmra.mrb[0].mxu0 %v77
  %v274 = vpop.f32.mrb[0].mxu0
  %v275 = vadd.f32 0.0, %v274
  %v276 = vpop.f32.mrb[0].mxu0
  %277 = vmatprep.mubr.f32.mxu0 %v80
  %278 = vmatmul.mubr.f32.gmra.mrb[0].mxu0 %v79
  %v279 = vpop.f32.mrb[0].mxu0
  %v280 = vadd.f32 0.0, %v279
  %v281 = vpop.f32.mrb[0].mxu0
  %282 = vmatprep.mubr.f32.mxu0 %v82
  %283 = vmatmul.mubr.f32.gmra.mrb[0].mxu0 %v81
  %v284 = vpop.f32.mrb[0].mxu0
  %v285 = vadd.f32 0.0, %v284
  %v286 = vpop.f32.mrb[0].mxu0
  %287 = vmatprep.mubr.f32.mxu0 %v84
  %288 = vmatmul.mubr.f32.gmra.mrb[0].mxu0 %v83
  %v289 = vpop.f32.mrb[0].mxu0
  %v290 = vadd.f32 0.0, %v289
  %v291 = vpop.f32.mrb[0].mxu0
  %292 = vmatprep.mubr.f32.mxu0 %v86
  %293 = vmatmul.mubr.f32.gmra.mrb[0].mxu0 %v85
  %v294 = vpop.f32.mrb[0].mxu0
  %v295 = vadd.f32 0.0, %v294
  %v296 = vpop.f32.mrb[0].mxu0
  %297 = vmatprep.mubr.f32.mxu0 %v88
  %298 = vmatmul.mubr.f32.gmra.mrb[0].mxu0 %v87
  %v299 = vpop.f32.mrb[0].mxu0
  %v300 = vadd.f32 0.0, %v299
  %v301 = vpop.f32.mrb[0].mxu0
  %302 = vmatprep.mubr.f32.mxu0 %v90
  %303 = vmatmul.mubr.f32.gmra.mrb[0].mxu0 %v89
  %v304 = vpop.f32.mrb[0].mxu0
  %v305 = vadd.f32 0.0, %v304
  %v306 = vpop.f32.mrb[0].mxu0
  %307 = vmatprep.mubr.f32.mxu0 %v92
  %308 = vmatmul.mubr.f32.gmra.mrb[0].mxu0 %v91
  %v309 = vpop.f32.mrb[0].mxu0
  %v310 = vadd.f32 0.0, %v309
  %v311 = vpop.f32.mrb[0].mxu0
  %312 = vmatprep.mubr.f32.mxu0 %v94
  %313 = vmatmul.mubr.f32.gmra.mrb[0].mxu0 %v93
  %v314 = vpop.f32.mrb[0].mxu0
  %v315 = vadd.f32 0.0, %v314
  %v316 = vpop.f32.mrb[0].mxu0
  %317 = vmatprep.mubr.f32.mxu0 %v96
  %318 = vmatmul.mubr.f32.gmra.mrb[0].mxu0 %v95
  %v319 = vpop.f32.mrb[0].mxu0
  %v320 = vadd.f32 0.0, %v319
  %v321 = vpop.f32.mrb[0].mxu0
  %322 = vmatprep.mubr.f32.mxu0 %v98
  %323 = vmatmul.mubr.f32.gmra.mrb[0].mxu0 %v97
  %v324 = vpop.f32.mrb[0].mxu0
  %v325 = vadd.f32 0.0, %v324
  %v326 = vpop.f32.mrb[0].mxu0
  %327 = vmatprep.mubr.f32.mxu0 %v100
  %328 = vmatmul.mubr.f32.gmra.mrb[0].mxu0 %v99
  %v329 = vpop.f32.mrb[0].mxu0
  %v330 = vadd.f32 0.0, %v329
  %v331 = vpop.f32.mrb[0].mxu0
  %332 = vmatprep.mubr.f32.mxu0 %v102
  %333 = vmatmul.mubr.f32.gmra.mrb[0].mxu0 %v101
  %v334 = vpop.f32.mrb[0].mxu0
  %v335 = vadd.f32 0.0, %v334
  %v336 = vpop.f32.mrb[0].mxu0
  %337 = vmatprep.mubr.f32.mxu0 %v104
  %338 = vmatmul.mubr.f32.gmra.mrb[0].mxu0 %v103
  %v339 = vpop.f32.mrb[0].mxu0
  %v340 = vadd.f32 0.0, %v339
  %v341 = vpop.f32.mrb[0].mxu0
  %342 = vmatprep.mubr.f32.mxu0 %v106
  %343 = vmatmul.mubr.f32.gmra.mrb[0].mxu0 %v105
  %v344 = vpop.f32.mrb[0].mxu0
  %v345 = vadd.f32 0.0, %v344
  %v346 = vpop.f32.mrb[0].mxu0
  %347 = vmatprep.mubr.f32.mxu0 %v108
  %348 = vmatmul.mubr.f32.gmra.mrb[0].mxu0 %v107
  %v349 = vpop.f32.mrb[0].mxu0
  %v350 = vadd.f32 0.0, %v349
  %v351 = vpop.f32.mrb[0].mxu0
  %352 = vmatprep.mubr.f32.mxu0 %v110
  %353 = vmatmul.mubr.f32.gmra.mrb[0].mxu0 %v109
  %v354 = vpop.f32.mrb[0].mxu0
  %v355 = vadd.f32 0.0, %v354
  %v356 = vpop.f32.mrb[0].mxu0
  %357 = vmatprep.mubr.f32.mxu0 %v112
  %358 = vmatmul.mubr.f32.gmra.mrb[0].mxu0 %v111
  %v359 = vpop.f32.mrb[0].mxu0
  %v360 = vadd.f32 0.0, %v359
  %v361 = vpop.f32.mrb[0].mxu0
  %362 = vmatprep.mubr.f32.mxu0 %v114
  %363 = vmatmul.mubr.f32.gmra.mrb[0].mxu0 %v113
  %v364 = vpop.f32.mrb[0].mxu0
  %v365 = vadd.f32 0.0, %v364
  %v366 = vpop.f32.mrb[0].mxu0
  %367 = vmatprep.mubr.f32.mxu0 %v116
  %368 = vmatmul.mubr.f32.gmra.mrb[0].mxu0 %v115
  %v369 = vpop.f32.mrb[0].mxu0
  %v370 = vadd.f32 0.0, %v369
  %v371 = vpop.f32.mrb[0].mxu0
  %372 = vmatprep.mubr.f32.mxu0 %v118
  %373 = vmatmul.mubr.f32.gmra.mrb[0].mxu0 %v117
  %v374 = vpop.f32.mrb[0].mxu0
  %v375 = vadd.f32 0.0, %v374
  %v376 = vpop.f32.mrb[0].mxu0
  %377 = vmatprep.mubr.f32.mxu0 %v120
  %378 = vmatmul.mubr.f32.gmra.mrb[0].mxu0 %v119
  %v379 = vpop.f32.mrb[0].mxu0
  %v380 = vadd.f32 0.0, %v379
  %v381 = vpop.f32.mrb[0].mxu0
  %382 = vmatprep.mubr.f32.mxu0 %v122
  %383 = vmatmul.mubr.f32.gmra.mrb[0].mxu0 %v121
  %v384 = vpop.f32.mrb[0].mxu0
  %v385 = vadd.f32 0.0, %v384
  %v386 = vpop.f32.mrb[0].mxu0
  %387 = vmatprep.mubr.f32.mxu0 %v124
  %388 = vmatmul.mubr.f32.gmra.mrb[0].mxu0 %v123
  %v389 = vpop.f32.mrb[0].mxu0
  %v390 = vadd.f32 0.0, %v389
  %v391 = vpop.f32.mrb[0].mxu0
  %392 = vmatprep.mubr.f32.mxu0 %v126
  %393 = vmatmul.mubr.f32.gmra.mrb[0].mxu0 %v125
  %v394 = vpop.f32.mrb[0].mxu0
  %v395 = vadd.f32 0.0, %v394
  %v396 = vpop.f32.mrb[0].mxu0
  %397 = vmatprep.mubr.f32.mxu0 %v128
  %398 = vmatmul.mubr.f32.gmra.mrb[0].mxu0 %v127
  %v399 = vpop.f32.mrb[0].mxu0
  %v400 = vadd.f32 0.0, %v399
  %v401 = vpop.f32.mrb[0].mxu0
  %402 = vmatprep.mubr.f32.mxu0 %v130
  %403 = vmatmul.mubr.f32.gmra.mrb[0].mxu0 %v129
  %v404 = vpop.f32.mrb[0].mxu0
  %v405 = vadd.f32 0.0, %v404
  %v406 = vpop.f32.mrb[0].mxu0
  %407 = vmatprep.mubr.f32.mxu0 %v132
  %408 = vmatmul.mubr.f32.gmra.mrb[0].mxu0 %v131
  %v409 = vpop.f32.mrb[0].mxu0
  %v410 = vadd.f32 0.0, %v409
  %v411 = vpop.f32.mrb[0].mxu0
  %412 = vmatprep.mubr.f32.mxu0 %v134
  %413 = vmatmul.mubr.f32.gmra.mrb[0].mxu0 %v133
  %v414 = vpop.f32.mrb[0].mxu0
  %v415 = vadd.f32 0.0, %v414
  %v416 = vpop.f32.mrb[0].mxu0
  %417 = vmatprep.mubr.f32.mxu0 %v136
  %418 = vmatmul.mubr.f32.gmra.mrb[0].mxu0 %v135
  %v419 = vpop.f32.mrb[0].mxu0
  %v420 = vadd.f32 0.0, %v419
  %v421 = vpop.f32.mrb[0].mxu0
  %422 = vmatprep.mubr.f32.mxu0 %v138
  %423 = vmatmul.mubr.f32.gmra.mrb[0].mxu0 %v137
  %v424 = vpop.f32.mrb[0].mxu0
  %v425 = vadd.f32 0.0, %v424
  %v426 = vpop.f32.mrb[0].mxu0
  %427 = vmatprep.mubr.f32.mxu0 %v140
  %428 = vmatmul.mubr.f32.gmra.mrb[0].mxu0 %v139
  %v429 = vpop.f32.mrb[0].mxu0
  %v430 = vadd.f32 0.0, %v429
  %v431 = vpop.f32.mrb[0].mxu0
  %432 = vmatprep.mubr.f32.mxu0 %v142
  %433 = vmatmul.mubr.f32.gmra.mrb[0].mxu0 %v141
  %v434 = vpop.f32.mrb[0].mxu0
  %v435 = vadd.f32 0.0, %v434
  %v436 = vpop.f32.mrb[0].mxu0
  %437 = vmatprep.mubr.f32.mxu0 %v144
  %438 = vmatmul.mubr.f32.gmra.mrb[0].mxu0 %v143
  %v439 = vpop.f32.mrb[0].mxu0
  %v440 = vadd.f32 0.0, %v439
  %v441 = vpop.f32.mrb[0].mxu0
  %442 = vmatprep.mubr.f32.mxu0 %v146
  %443 = vmatmul.mubr.f32.gmra.mrb[0].mxu0 %v145
  %v444 = vpop.f32.mrb[0].mxu0
  %v445 = vadd.f32 0.0, %v444
  %v446 = vpop.f32.mrb[0].mxu0
  %447 = vmatprep.mubr.f32.mxu0 %v148
  %448 = vmatmul.mubr.f32.gmra.mrb[0].mxu0 %v147
  %v449 = vpop.f32.mrb[0].mxu0
  %v450 = vadd.f32 0.0, %v449
  %v451 = vpop.f32.mrb[0].mxu0
  %452 = vmatprep.mubr.f32.mxu0 %v150
  %453 = vmatmul.mubr.f32.gmra.mrb[0].mxu0 %v149
  %v454 = vpop.f32.mrb[0].mxu0
  %v455 = vadd.f32 0.0, %v454
  %v456 = vpop.f32.mrb[0].mxu0
  %457 = vmatprep.mubr.f32.mxu0 %v152
  %458 = vmatmul.mubr.f32.gmra.mrb[0].mxu0 %v151
  %v459 = vpop.f32.mrb[0].mxu0
  %v460 = vadd.f32 0.0, %v459
  %v461 = vpop.f32.mrb[0].mxu0
  %462 = vdwg.mxu0
  %v463 = vld [vmem:[%s1] sm:$0xff]
  %v464 = vld [vmem:[%s1 + $0x8] sm:$0xff]
  %v465 = vld [vmem:[%s1 + $0x10] sm:$0xff]
  %v466 = vld [vmem:[%s1 + $0x18] sm:$0xff]
  %v467 = vld [vmem:[%s1 + $0x20] sm:$0xff]
  %v468 = vld [vmem:[%s1 + $0x28] sm:$0xff]
  %v469 = vld [vmem:[%s1 + $0x30] sm:$0xff]
  %v470 = vld [vmem:[%s1 + $0x38] sm:$0xff]
  %v471 = vld [vmem:[%s1 + $0x40] sm:$0xff]
  %v472 = vld [vmem:[%s1 + $0x48] sm:$0xff]
  %v473 = vld [vmem:[%s1 + $0x50] sm:$0xff]
  %v474 = vld [vmem:[%s1 + $0x58] sm:$0xff]
  %v475 = vld [vmem:[%s1 + $0x60] sm:$0xff]
  %v476 = vld [vmem:[%s1 + $0x68] sm:$0xff]
  %v477 = vld [vmem:[%s1 + $0x70] sm:$0xff]
  %v478 = vld [vmem:[%s1 + $0x78] sm:$0xff]
  %v479 = vld [vmem:[%s1 + $0x80] sm:$0xff]
  %v480 = vld [vmem:[%s1 + $0x88] sm:$0xff]
  %v481 = vld [vmem:[%s1 + $0x90] sm:$0xff]
  %v482 = vld [vmem:[%s1 + $0x98] sm:$0xff]
  %v483 = vld [vmem:[%s1 + $0xa0] sm:$0xff]
  %v484 = vld [vmem:[%s1 + $0xa8] sm:$0xff]
  %v485 = vld [vmem:[%s1 + $0xb0] sm:$0xff]
  %v486 = vld [vmem:[%s1 + $0xb8] sm:$0xff]
  %v487 = vld [vmem:[%s1 + $0xc0] sm:$0xff]
  %v488 = vld [vmem:[%s1 + $0xc8] sm:$0xff]
  %v489 = vld [vmem:[%s1 + $0xd0] sm:$0xff]
  %v490 = vld [vmem:[%s1 + $0xd8] sm:$0xff]
  %v491 = vld [vmem:[%s1 + $0xe0] sm:$0xff]
  %v492 = vld [vmem:[%s1 + $0xe8] sm:$0xff]
  %v493 = vld [vmem:[%s1 + $0xf0] sm:$0xff]
  %v494 = vld [vmem:[%s1 + $0xf8] sm:$0xff]
  %v495 = vld [vmem:[%s1 + $0x100] sm:$0xff]
  %v496 = vld [vmem:[%s1 + $0x108] sm:$0xff]
  %v497 = vld [vmem:[%s1 + $0x110] sm:$0xff]
  %v498 = vld [vmem:[%s1 + $0x118] sm:$0xff]
  %v499 = vld [vmem:[%s1 + $0x120] sm:$0xff]
  %v500 = vld [vmem:[%s1 + $0x128] sm:$0xff]
  %v501 = vld [vmem:[%s1 + $0x130] sm:$0xff]
  %v502 = vld [vmem:[%s1 + $0x138] sm:$0xff]
  %v503 = vld [vmem:[%s1 + $0x140] sm:$0xff]
  %v504 = vld [vmem:[%s1 + $0x148] sm:$0xff]
  %v505 = vld [vmem:[%s1 + $0x150] sm:$0xff]
  %v506 = vld [vmem:[%s1 + $0x158] sm:$0xff]
  %v507 = vld [vmem:[%s1 + $0x160] sm:$0xff]
  %v508 = vld [vmem:[%s1 + $0x168] sm:$0xff]
  %v509 = vld [vmem:[%s1 + $0x170] sm:$0xff]
  %v510 = vld [vmem:[%s1 + $0x178] sm:$0xff]
  %v511 = vld [vmem:[%s1 + $0x180] sm:$0xff]
  %v512 = vld [vmem:[%s1 + $0x188] sm:$0xff]
  %v513 = vld [vmem:[%s1 + $0x190] sm:$0xff]
  %v514 = vld [vmem:[%s1 + $0x198] sm:$0xff]
  %v515 = vld [vmem:[%s1 + $0x1a0] sm:$0xff]
  %v516 = vld [vmem:[%s1 + $0x1a8] sm:$0xff]
  %v517 = vld [vmem:[%s1 + $0x1b0] sm:$0xff]
  %v518 = vld [vmem:[%s1 + $0x1b8] sm:$0xff]
  %v519 = vld [vmem:[%s1 + $0x1c0] sm:$0xff]
  %v520 = vld [vmem:[%s1 + $0x1c8] sm:$0xff]
  %v521 = vld [vmem:[%s1 + $0x1d0] sm:$0xff]
  %v522 = vld [vmem:[%s1 + $0x1d8] sm:$0xff]
  %v523 = vld [vmem:[%s1 + $0x1e0] sm:$0xff]
  %v524 = vld [vmem:[%s1 + $0x1e8] sm:$0xff]
  %v525 = vld [vmem:[%s1 + $0x1f0] sm:$0xff]
  %v526 = vld [vmem:[%s1 + $0x1f8] sm:$0xff]
  %v527 = vld [vmem:[%s1 + $0x200] sm:$0xff]
  %v528 = vld [vmem:[%s1 + $0x208] sm:$0xff]
  %v529 = vld [vmem:[%s1 + $0x210] sm:$0xff]
  %v530 = vld [vmem:[%s1 + $0x218] sm:$0xff]
  %v531 = vld [vmem:[%s1 + $0x220] sm:$0xff]
  %v532 = vld [vmem:[%s1 + $0x228] sm:$0xff]
  %v533 = vld [vmem:[%s1 + $0x230] sm:$0xff]
  %v534 = vld [vmem:[%s1 + $0x238] sm:$0xff]
  %v535 = vld [vmem:[%s1 + $0x240] sm:$0xff]
  %v536 = vld [vmem:[%s1 + $0x248] sm:$0xff]
  %v537 = vld [vmem:[%s1 + $0x250] sm:$0xff]
  %v538 = vld [vmem:[%s1 + $0x258] sm:$0xff]
  %v539 = vld [vmem:[%s1 + $0x260] sm:$0xff]
  %v540 = vld [vmem:[%s1 + $0x268] sm:$0xff]
  %v541 = vld [vmem:[%s1 + $0x270] sm:$0xff]
  %v542 = vld [vmem:[%s1 + $0x278] sm:$0xff]
  %v543 = vld [vmem:[%s1 + $0x280] sm:$0xff]
  %v544 = vld [vmem:[%s1 + $0x288] sm:$0xff]
  %v545 = vld [vmem:[%s1 + $0x290] sm:$0xff]
  %v546 = vld [vmem:[%s1 + $0x298] sm:$0xff]
  %v547 = vld [vmem:[%s1 + $0x2a0] sm:$0xff]
  %v548 = vld [vmem:[%s1 + $0x2a8] sm:$0xff]
  %v549 = vld [vmem:[%s1 + $0x2b0] sm:$0xff]
  %v550 = vld [vmem:[%s1 + $0x2b8] sm:$0xff]
  %v551 = vld [vmem:[%s1 + $0x2c0] sm:$0xff]
  %v552 = vld [vmem:[%s1 + $0x2c8] sm:$0xff]
  %v553 = vld [vmem:[%s1 + $0x2d0] sm:$0xff]
  %v554 = vld [vmem:[%s1 + $0x2d8] sm:$0xff]
  %v555 = vld [vmem:[%s1 + $0x2e0] sm:$0xff]
  %v556 = vld [vmem:[%s1 + $0x2e8] sm:$0xff]
  %v557 = vld [vmem:[%s1 + $0x2f0] sm:$0xff]
  %v558 = vld [vmem:[%s1 + $0x2f8] sm:$0xff]
  %v559 = vld [vmem:[%s1 + $0x300] sm:$0xff]
  %v560 = vld [vmem:[%s1 + $0x308] sm:$0xff]
  %561 = vmatprep.subr.mxu0 0.0
  %562 = vmatpush1.msra.mxu0 %v23
  %563 = vmatprep.subr.mxu0 0.0
  %564 = vmatpush1.msra.mxu0 %v24
  %565 = vmatprep.subr.mxu0 0.0
  %566 = vmatpush1.msra.mxu0 %v25
  %567 = vmatprep.subr.mxu0 0.0
  %568 = vmatpush1.msra.mxu0 %v26
  %569 = vmatprep.subr.mxu0 0.0
  %570 = vmatpush1.msra.mxu0 %v27
  %571 = vmatprep.subr.mxu0 0.0
  %572 = vmatpush1.msra.mxu0 %v28
  %573 = vmatprep.subr.mxu0 0.0
  %574 = vmatpush1.msra.mxu0 %v29
  %575 = vmatprep.subr.mxu0 0.0
  %576 = vmatpush1.msra.mxu0 %v30
  %577 = vmatprep.subr.mxu0 0.0
  %578 = vmatpush1.msra.mxu0 %v31
  %579 = vmatprep.subr.mxu0 0.0
  %580 = vmatpush1.msra.mxu0 %v32
  %581 = vmatprep.subr.mxu0 0.0
  %582 = vmatpush1.msra.mxu0 %v33
  %583 = vmatprep.subr.mxu0 0.0
  %584 = vmatpush1.msra.mxu0 %v34
  %585 = vmatprep.subr.mxu0 0.0
  %586 = vmatpush1.msra.mxu0 %v35
  %587 = vmatprep.subr.mxu0 0.0
  %588 = vmatpush1.msra.mxu0 %v36
  %589 = vmatprep.subr.mxu0 0.0
  %590 = vmatpush1.msra.mxu0 %v37
  %591 = vmatprep.subr.mxu0 0.0
  %592 = vmatpush1.msra.mxu0 %v38
  %593 = vmatprep.subr.mxu0 0.0
  %594 = vmatpush1.msra.mxu0 %v39
  %595 = vmatprep.subr.mxu0 0.0
  %596 = vmatpush1.msra.mxu0 %v40
  %597 = vmatprep.subr.mxu0 0.0
  %598 = vmatpush1.msra.mxu0 %v41
  %599 = vmatprep.subr.mxu0 0.0
  %600 = vmatpush1.msra.mxu0 %v42
  %601 = vmatprep.subr.mxu0 0.0
  %602 = vmatpush1.msra.mxu0 %v43
  %603 = vmatprep.subr.mxu0 0.0
  %604 = vmatpush1.msra.mxu0 %v44
  %605 = vmatprep.subr.mxu0 0.0
  %606 = vmatpush1.msra.mxu0 %v45
  %607 = vmatprep.subr.mxu0 0.0
  %608 = vmatpush1.msra.mxu0 %v46
  %609 = vmatprep.subr.mxu0 0.0
  %610 = vmatpush1.msra.mxu0 %v47
  %611 = vmatprep.subr.mxu0 0.0
  %612 = vmatpush1.msra.mxu0 %v48
  %613 = vmatprep.subr.mxu0 0.0
  %614 = vmatpush1.msra.mxu0 %v49
  %615 = vmatprep.subr.mxu0 0.0
  %616 = vmatpush1.msra.mxu0 %v50
  %617 = vmatprep.subr.mxu0 0.0
  %618 = vmatpush1.msra.mxu0 %v51
  %619 = vmatprep.subr.mxu0 0.0
  %620 = vmatpush1.msra.mxu0 %v52
  %621 = vmatprep.subr.mxu0 0.0
  %622 = vmatpush1.msra.mxu0 %v53
  %623 = vmatprep.subr.mxu0 0.0
  %624 = vmatpush1.msra.mxu0 %v54
  %625 = vmatprep.mubr.f32.mxu0 %v464
  %626 = vmatmul.mubr.f32.gmra.mrb[0].mxu0 %v463
  %v627 = vpop.f32.mrb[0].mxu0
  %v628 = vadd.f32 0.0, %v627
  %v629 = vpop.f32.mrb[0].mxu0
  %630 = vmatprep.mubr.f32.mxu0 %v466
  %631 = vmatmul.mubr.f32.gmra.mrb[0].mxu0 %v465
  %v632 = vpop.f32.mrb[0].mxu0
  %v633 = vadd.f32 0.0, %v632
  %v634 = vpop.f32.mrb[0].mxu0
  %635 = vmatprep.mubr.f32.mxu0 %v468
  %636 = vmatmul.mubr.f32.gmra.mrb[0].mxu0 %v467
  %v637 = vpop.f32.mrb[0].mxu0
  %v638 = vadd.f32 0.0, %v637
  %v639 = vpop.f32.mrb[0].mxu0
  %640 = vmatprep.mubr.f32.mxu0 %v470
  %641 = vmatmul.mubr.f32.gmra.mrb[0].mxu0 %v469
  %v642 = vpop.f32.mrb[0].mxu0
  %v643 = vadd.f32 0.0, %v642
  %v644 = vpop.f32.mrb[0].mxu0
  %645 = vmatprep.mubr.f32.mxu0 %v472
  %646 = vmatmul.mubr.f32.gmra.mrb[0].mxu0 %v471
  %v647 = vpop.f32.mrb[0].mxu0
  %v648 = vadd.f32 0.0, %v647
  %v649 = vpop.f32.mrb[0].mxu0
  %650 = vmatprep.mubr.f32.mxu0 %v474
  %651 = vmatmul.mubr.f32.gmra.mrb[0].mxu0 %v473
  %v652 = vpop.f32.mrb[0].mxu0
  %v653 = vadd.f32 0.0, %v652
  %v654 = vpop.f32.mrb[0].mxu0
  %655 = vmatprep.mubr.f32.mxu0 %v476
  %656 = vmatmul.mubr.f32.gmra.mrb[0].mxu0 %v475
  %v657 = vpop.f32.mrb[0].mxu0
  %v658 = vadd.f32 0.0, %v657
  %v659 = vpop.f32.mrb[0].mxu0
  %660 = vmatprep.mubr.f32.mxu0 %v478
  %661 = vmatmul.mubr.f32.gmra.mrb[0].mxu0 %v477
  %v662 = vpop.f32.mrb[0].mxu0
  %v663 = vadd.f32 0.0, %v662
  %v664 = vpop.f32.mrb[0].mxu0
  %665 = vmatprep.mubr.f32.mxu0 %v480
  %666 = vmatmul.mubr.f32.gmra.mrb[0].mxu0 %v479
  %v667 = vpop.f32.mrb[0].mxu0
  %v668 = vadd.f32 0.0, %v667
  %v669 = vpop.f32.mrb[0].mxu0
  %670 = vmatprep.mubr.f32.mxu0 %v482
  %671 = vmatmul.mubr.f32.gmra.mrb[0].mxu0 %v481
  %v672 = vpop.f32.mrb[0].mxu0
  %v673 = vadd.f32 0.0, %v672
  %v674 = vpop.f32.mrb[0].mxu0
  %675 = vmatprep.mubr.f32.mxu0 %v484
  %676 = vmatmul.mubr.f32.gmra.mrb[0].mxu0 %v483
  %v677 = vpop.f32.mrb[0].mxu0
  %v678 = vadd.f32 0.0, %v677
  %v679 = vpop.f32.mrb[0].mxu0
  %680 = vmatprep.mubr.f32.mxu0 %v486
  %681 = vmatmul.mubr.f32.gmra.mrb[0].mxu0 %v485
  %v682 = vpop.f32.mrb[0].mxu0
  %v683 = vadd.f32 0.0, %v682
  %v684 = vpop.f32.mrb[0].mxu0
  %685 = vmatprep.mubr.f32.mxu0 %v488
  %686 = vmatmul.mubr.f32.gmra.mrb[0].mxu0 %v487
  %v687 = vpop.f32.mrb[0].mxu0
  %v688 = vadd.f32 0.0, %v687
  %v689 = vpop.f32.mrb[0].mxu0
  %690 = vmatprep.mubr.f32.mxu0 %v490
  %691 = vmatmul.mubr.f32.gmra.mrb[0].mxu0 %v489
  %v692 = vpop.f32.mrb[0].mxu0
  %v693 = vadd.f32 0.0, %v692
  %v694 = vpop.f32.mrb[0].mxu0
  %695 = vmatprep.mubr.f32.mxu0 %v492
  %696 = vmatmul.mubr.f32.gmra.mrb[0].mxu0 %v491
  %v697 = vpop.f32.mrb[0].mxu0
  %v698 = vadd.f32 0.0, %v697
  %v699 = vpop.f32.mrb[0].mxu0
  %700 = vmatprep.mubr.f32.mxu0 %v494
  %701 = vmatmul.mubr.f32.gmra.mrb[0].mxu0 %v493
  %v702 = vpop.f32.mrb[0].mxu0
  %v703 = vadd.f32 0.0, %v702
  %v704 = vpop.f32.mrb[0].mxu0
  %705 = vmatprep.mubr.f32.mxu0 %v496
  %706 = vmatmul.mubr.f32.gmra.mrb[0].mxu0 %v495
  %v707 = vpop.f32.mrb[0].mxu0
  %v708 = vadd.f32 0.0, %v707
  %v709 = vpop.f32.mrb[0].mxu0
  %710 = vmatprep.mubr.f32.mxu0 %v498
  %711 = vmatmul.mubr.f32.gmra.mrb[0].mxu0 %v497
  %v712 = vpop.f32.mrb[0].mxu0
  %v713 = vadd.f32 0.0, %v712
  %v714 = vpop.f32.mrb[0].mxu0
  %715 = vmatprep.mubr.f32.mxu0 %v500
  %716 = vmatmul.mubr.f32.gmra.mrb[0].mxu0 %v499
  %v717 = vpop.f32.mrb[0].mxu0
  %v718 = vadd.f32 0.0, %v717
  %v719 = vpop.f32.mrb[0].mxu0
  %720 = vmatprep.mubr.f32.mxu0 %v502
  %721 = vmatmul.mubr.f32.gmra.mrb[0].mxu0 %v501
  %v722 = vpop.f32.mrb[0].mxu0
  %v723 = vadd.f32 0.0, %v722
  %v724 = vpop.f32.mrb[0].mxu0
  %725 = vmatprep.mubr.f32.mxu0 %v504
  %726 = vmatmul.mubr.f32.gmra.mrb[0].mxu0 %v503
  %v727 = vpop.f32.mrb[0].mxu0
  %v728 = vadd.f32 0.0, %v727
  %v729 = vpop.f32.mrb[0].mxu0
  %730 = vmatprep.mubr.f32.mxu0 %v506
  %731 = vmatmul.mubr.f32.gmra.mrb[0].mxu0 %v505
  %v732 = vpop.f32.mrb[0].mxu0
  %v733 = vadd.f32 0.0, %v732
  %v734 = vpop.f32.mrb[0].mxu0
  %735 = vmatprep.mubr.f32.mxu0 %v508
  %736 = vmatmul.mubr.f32.gmra.mrb[0].mxu0 %v507
  %v737 = vpop.f32.mrb[0].mxu0
  %v738 = vadd.f32 0.0, %v737
  %v739 = vpop.f32.mrb[0].mxu0
  %740 = vmatprep.mubr.f32.mxu0 %v510
  %741 = vmatmul.mubr.f32.gmra.mrb[0].mxu0 %v509
  %v742 = vpop.f32.mrb[0].mxu0
  %v743 = vadd.f32 0.0, %v742
  %v744 = vpop.f32.mrb[0].mxu0
  %745 = vmatprep.mubr.f32.mxu0 %v512
  %746 = vmatmul.mubr.f32.gmra.mrb[0].mxu0 %v511
  %v747 = vpop.f32.mrb[0].mxu0
  %v748 = vadd.f32 0.0, %v747
  %v749 = vpop.f32.mrb[0].mxu0
  %750 = vmatprep.mubr.f32.mxu0 %v514
  %751 = vmatmul.mubr.f32.gmra.mrb[0].mxu0 %v513
  %v752 = vpop.f32.mrb[0].mxu0
  %v753 = vadd.f32 0.0, %v752
  %v754 = vpop.f32.mrb[0].mxu0
  %755 = vmatprep.mubr.f32.mxu0 %v516
  %756 = vmatmul.mubr.f32.gmra.mrb[0].mxu0 %v515
  %v757 = vpop.f32.mrb[0].mxu0
  %v758 = vadd.f32 0.0, %v757
  %v759 = vpop.f32.mrb[0].mxu0
  %760 = vmatprep.mubr.f32.mxu0 %v518
  %761 = vmatmul.mubr.f32.gmra.mrb[0].mxu0 %v517
  %v762 = vpop.f32.mrb[0].mxu0
  %v763 = vadd.f32 0.0, %v762
  %v764 = vpop.f32.mrb[0].mxu0
  %765 = vmatprep.mubr.f32.mxu0 %v520
  %766 = vmatmul.mubr.f32.gmra.mrb[0].mxu0 %v519
  %v767 = vpop.f32.mrb[0].mxu0
  %v768 = vadd.f32 0.0, %v767
  %v769 = vpop.f32.mrb[0].mxu0
  %770 = vmatprep.mubr.f32.mxu0 %v522
  %771 = vmatmul.mubr.f32.gmra.mrb[0].mxu0 %v521
  %v772 = vpop.f32.mrb[0].mxu0
  %v773 = vadd.f32 0.0, %v772
  %v774 = vpop.f32.mrb[0].mxu0
  %775 = vmatprep.mubr.f32.mxu0 %v524
  %776 = vmatmul.mubr.f32.gmra.mrb[0].mxu0 %v523
  %v777 = vpop.f32.mrb[0].mxu0
  %v778 = vadd.f32 0.0, %v777
  %v779 = vpop.f32.mrb[0].mxu0
  %780 = vmatprep.mubr.f32.mxu0 %v526
  %781 = vmatmul.mubr.f32.gmra.mrb[0].mxu0 %v525
  %v782 = vpop.f32.mrb[0].mxu0
  %v783 = vadd.f32 0.0, %v782
  %v784 = vpop.f32.mrb[0].mxu0
  %785 = vmatprep.mubr.f32.mxu0 %v528
  %786 = vmatmul.mubr.f32.gmra.mrb[0].mxu0 %v527
  %v787 = vpop.f32.mrb[0].mxu0
  %v788 = vadd.f32 0.0, %v787
  %v789 = vpop.f32.mrb[0].mxu0
  %790 = vmatprep.mubr.f32.mxu0 %v530
  %791 = vmatmul.mubr.f32.gmra.mrb[0].mxu0 %v529
  %v792 = vpop.f32.mrb[0].mxu0
  %v793 = vadd.f32 0.0, %v792
  %v794 = vpop.f32.mrb[0].mxu0
  %795 = vmatprep.mubr.f32.mxu0 %v532
  %796 = vmatmul.mubr.f32.gmra.mrb[0].mxu0 %v531
  %v797 = vpop.f32.mrb[0].mxu0
  %v798 = vadd.f32 0.0, %v797
  %v799 = vpop.f32.mrb[0].mxu0
  %800 = vmatprep.mubr.f32.mxu0 %v534
  %801 = vmatmul.mubr.f32.gmra.mrb[0].mxu0 %v533
  %v802 = vpop.f32.mrb[0].mxu0
  %v803 = vadd.f32 0.0, %v802
  %v804 = vpop.f32.mrb[0].mxu0
  %805 = vmatprep.mubr.f32.mxu0 %v536
  %806 = vmatmul.mubr.f32.gmra.mrb[0].mxu0 %v535
  %v807 = vpop.f32.mrb[0].mxu0
  %v808 = vadd.f32 0.0, %v807
  %v809 = vpop.f32.mrb[0].mxu0
  %810 = vmatprep.mubr.f32.mxu0 %v538
  %811 = vmatmul.mubr.f32.gmra.mrb[0].mxu0 %v537
  %v812 = vpop.f32.mrb[0].mxu0
  %v813 = vadd.f32 0.0, %v812
  %v814 = vpop.f32.mrb[0].mxu0
  %815 = vmatprep.mubr.f32.mxu0 %v540
  %816 = vmatmul.mubr.f32.gmra.mrb[0].mxu0 %v539
  %v817 = vpop.f32.mrb[0].mxu0
  %v818 = vadd.f32 0.0, %v817
  %v819 = vpop.f32.mrb[0].mxu0
  %820 = vmatprep.mubr.f32.mxu0 %v542
  %821 = vmatmul.mubr.f32.gmra.mrb[0].mxu0 %v541
  %v822 = vpop.f32.mrb[0].mxu0
  %v823 = vadd.f32 0.0, %v822
  %v824 = vpop.f32.mrb[0].mxu0
  %825 = vmatprep.mubr.f32.mxu0 %v544
  %826 = vmatmul.mubr.f32.gmra.mrb[0].mxu0 %v543
  %v827 = vpop.f32.mrb[0].mxu0
  %v828 = vadd.f32 0.0, %v827
  %v829 = vpop.f32.mrb[0].mxu0
  %830 = vmatprep.mubr.f32.mxu0 %v546
  %831 = vmatmul.mubr.f32.gmra.mrb[0].mxu0 %v545
  %v832 = vpop.f32.mrb[0].mxu0
  %v833 = vadd.f32 0.0, %v832
  %v834 = vpop.f32.mrb[0].mxu0
  %835 = vmatprep.mubr.f32.mxu0 %v548
  %836 = vmatmul.mubr.f32.gmra.mrb[0].mxu0 %v547
  %v837 = vpop.f32.mrb[0].mxu0
  %v838 = vadd.f32 0.0, %v837
  %v839 = vpop.f32.mrb[0].mxu0
  %840 = vmatprep.mubr.f32.mxu0 %v550
  %841 = vmatmul.mubr.f32.gmra.mrb[0].mxu0 %v549
  %v842 = vpop.f32.mrb[0].mxu0
  %v843 = vadd.f32 0.0, %v842
  %v844 = vpop.f32.mrb[0].mxu0
  %845 = vmatprep.mubr.f32.mxu0 %v552
  %846 = vmatmul.mubr.f32.gmra.mrb[0].mxu0 %v551
  %v847 = vpop.f32.mrb[0].mxu0
  %v848 = vadd.f32 0.0, %v847
  %v849 = vpop.f32.mrb[0].mxu0
  %850 = vmatprep.mubr.f32.mxu0 %v554
  %851 = vmatmul.mubr.f32.gmra.mrb[0].mxu0 %v553
  %v852 = vpop.f32.mrb[0].mxu0
  %v853 = vadd.f32 0.0, %v852
  %v854 = vpop.f32.mrb[0].mxu0
  %855 = vmatprep.mubr.f32.mxu0 %v556
  %856 = vmatmul.mubr.f32.gmra.mrb[0].mxu0 %v555
  %v857 = vpop.f32.mrb[0].mxu0
  %v858 = vadd.f32 0.0, %v857
  %v859 = vpop.f32.mrb[0].mxu0
  %860 = vmatprep.mubr.f32.mxu0 %v558
  %861 = vmatmul.mubr.f32.gmra.mrb[0].mxu0 %v557
  %v862 = vpop.f32.mrb[0].mxu0
  %v863 = vadd.f32 0.0, %v862
  %v864 = vpop.f32.mrb[0].mxu0
  %865 = vmatprep.mubr.f32.mxu0 %v560
  %866 = vmatmul.mubr.f32.gmra.mrb[0].mxu0 %v559
  %v867 = vpop.f32.mrb[0].mxu0
  %v868 = vadd.f32 0.0, %v867
  %v869 = vpop.f32.mrb[0].mxu0
  %870 = vdwg.mxu0
  %v871 = vmax.f32 %v220, %v628
  %v872 = vmax.f32 %v225, %v633
  %v873 = vmax.f32 %v230, %v638
  %v874 = vmax.f32 %v235, %v643
  %v875 = vmax.f32 %v240, %v648
  %v876 = vmax.f32 %v245, %v653
  %v877 = vmax.f32 %v250, %v658
  %v878 = vmax.f32 %v255, %v663
  %v879 = vmax.f32 %v260, %v668
  %v880 = vmax.f32 %v265, %v673
  %v881 = vmax.f32 %v270, %v678
  %v882 = vmax.f32 %v275, %v683
  %v883 = vmax.f32 %v280, %v688
  %v884 = vmax.f32 %v285, %v693
  %v885 = vmax.f32 %v290, %v698
  %v886 = vmax.f32 %v295, %v703
  %v887 = vmax.f32 %v300, %v708
  %v888 = vmax.f32 %v305, %v713
  %v889 = vmax.f32 %v310, %v718
  %v890 = vmax.f32 %v315, %v723
  %v891 = vmax.f32 %v320, %v728
  %v892 = vmax.f32 %v325, %v733
  %v893 = vmax.f32 %v330, %v738
  %v894 = vmax.f32 %v335, %v743
  %v895 = vmax.f32 %v340, %v748
  %v896 = vmax.f32 %v345, %v753
  %v897 = vmax.f32 %v350, %v758
  %v898 = vmax.f32 %v355, %v763
  %v899 = vmax.f32 %v360, %v768
  %v900 = vmax.f32 %v365, %v773
  %v901 = vmax.f32 %v370, %v778
  %v902 = vmax.f32 %v375, %v783
  %v903 = vmax.f32 %v380, %v788
  %v904 = vmax.f32 %v385, %v793
  %v905 = vmax.f32 %v390, %v798
  %v906 = vmax.f32 %v395, %v803
  %v907 = vmax.f32 %v400, %v808
  %v908 = vmax.f32 %v405, %v813
  %v909 = vmax.f32 %v410, %v818
  %v910 = vmax.f32 %v415, %v823
  %v911 = vmax.f32 %v420, %v828
  %v912 = vmax.f32 %v425, %v833
  %v913 = vmax.f32 %v430, %v838
  %v914 = vmax.f32 %v435, %v843
  %v915 = vmax.f32 %v440, %v848
  %v916 = vmax.f32 %v445, %v853
  %v917 = vmax.f32 %v450, %v858
  %v918 = vmax.f32 %v455, %v863
  %v919 = vmax.f32 %v460, %v868
  %v920 = vld [vmem:[%s2] sm:$0xff]
  %v921 = vld [vmem:[%s2 + $0x8] sm:$0xff]
  %v922 = vld [vmem:[%s2 + $0x10] sm:$0xff]
  %v923 = vld [vmem:[%s2 + $0x18] sm:$0xff]
  %v924 = vld [vmem:[%s2 + $0x20] sm:$0xff]
  %v925 = vld [vmem:[%s2 + $0x28] sm:$0xff]
  %v926 = vld [vmem:[%s2 + $0x30] sm:$0xff]
  %v927 = vld [vmem:[%s2 + $0x38] sm:$0xff]
  %v928 = vld [vmem:[%s2 + $0x40] sm:$0xff]
  %v929 = vld [vmem:[%s2 + $0x48] sm:$0xff]
  %v930 = vld [vmem:[%s2 + $0x50] sm:$0xff]
  %v931 = vld [vmem:[%s2 + $0x58] sm:$0xff]
  %v932 = vld [vmem:[%s2 + $0x60] sm:$0xff]
  %v933 = vld [vmem:[%s2 + $0x68] sm:$0xff]
  %v934 = vld [vmem:[%s2 + $0x70] sm:$0xff]
  %v935 = vld [vmem:[%s2 + $0x78] sm:$0xff]
  %v936 = vld [vmem:[%s2 + $0x80] sm:$0xff]
  %v937 = vld [vmem:[%s2 + $0x88] sm:$0xff]
  %v938 = vld [vmem:[%s2 + $0x90] sm:$0xff]
  %v939 = vld [vmem:[%s2 + $0x98] sm:$0xff]
  %v940 = vld [vmem:[%s2 + $0xa0] sm:$0xff]
  %v941 = vld [vmem:[%s2 + $0xa8] sm:$0xff]
  %v942 = vld [vmem:[%s2 + $0xb0] sm:$0xff]
  %v943 = vld [vmem:[%s2 + $0xb8] sm:$0xff]
  %v944 = vld [vmem:[%s2 + $0xc0] sm:$0xff]
  %v945 = vld [vmem:[%s2 + $0xc8] sm:$0xff]
  %v946 = vld [vmem:[%s2 + $0xd0] sm:$0xff]
  %v947 = vld [vmem:[%s2 + $0xd8] sm:$0xff]
  %v948 = vld [vmem:[%s2 + $0xe0] sm:$0xff]
  %v949 = vld [vmem:[%s2 + $0xe8] sm:$0xff]
  %v950 = vld [vmem:[%s2 + $0xf0] sm:$0xff]
  %v951 = vld [vmem:[%s2 + $0xf8] sm:$0xff]
  %v952 = vld [vmem:[%s2 + $0x100] sm:$0xff]
  %v953 = vld [vmem:[%s2 + $0x108] sm:$0xff]
  %v954 = vld [vmem:[%s2 + $0x110] sm:$0xff]
  %v955 = vld [vmem:[%s2 + $0x118] sm:$0xff]
  %v956 = vld [vmem:[%s2 + $0x120] sm:$0xff]
  %v957 = vld [vmem:[%s2 + $0x128] sm:$0xff]
  %v958 = vld [vmem:[%s2 + $0x130] sm:$0xff]
  %v959 = vld [vmem:[%s2 + $0x138] sm:$0xff]
  %v960 = vld [vmem:[%s2 + $0x140] sm:$0xff]
  %v961 = vld [vmem:[%s2 + $0x148] sm:$0xff]
  %v962 = vld [vmem:[%s2 + $0x150] sm:$0xff]
  %v963 = vld [vmem:[%s2 + $0x158] sm:$0xff]
  %v964 = vld [vmem:[%s2 + $0x160] sm:$0xff]
  %v965 = vld [vmem:[%s2 + $0x168] sm:$0xff]
  %v966 = vld [vmem:[%s2 + $0x170] sm:$0xff]
  %v967 = vld [vmem:[%s2 + $0x178] sm:$0xff]
  %v968 = vld [vmem:[%s2 + $0x180] sm:$0xff]
  %v969 = vld [vmem:[%s2 + $0x188] sm:$0xff]
  %v970 = vld [vmem:[%s2 + $0x190] sm:$0xff]
  %v971 = vld [vmem:[%s2 + $0x198] sm:$0xff]
  %v972 = vld [vmem:[%s2 + $0x1a0] sm:$0xff]
  %v973 = vld [vmem:[%s2 + $0x1a8] sm:$0xff]
  %v974 = vld [vmem:[%s2 + $0x1b0] sm:$0xff]
  %v975 = vld [vmem:[%s2 + $0x1b8] sm:$0xff]
  %v976 = vld [vmem:[%s2 + $0x1c0] sm:$0xff]
  %v977 = vld [vmem:[%s2 + $0x1c8] sm:$0xff]
  %v978 = vld [vmem:[%s2 + $0x1d0] sm:$0xff]
  %v979 = vld [vmem:[%s2 + $0x1d8] sm:$0xff]
  %v980 = vld [vmem:[%s2 + $0x1e0] sm:$0xff]
  %v981 = vld [vmem:[%s2 + $0x1e8] sm:$0xff]
  %v982 = vld [vmem:[%s2 + $0x1f0] sm:$0xff]
  %v983 = vld [vmem:[%s2 + $0x1f8] sm:$0xff]
  %v984 = vld [vmem:[%s2 + $0x200] sm:$0xff]
  %v985 = vld [vmem:[%s2 + $0x208] sm:$0xff]
  %v986 = vld [vmem:[%s2 + $0x210] sm:$0xff]
  %v987 = vld [vmem:[%s2 + $0x218] sm:$0xff]
  %v988 = vld [vmem:[%s2 + $0x220] sm:$0xff]
  %v989 = vld [vmem:[%s2 + $0x228] sm:$0xff]
  %v990 = vld [vmem:[%s2 + $0x230] sm:$0xff]
  %v991 = vld [vmem:[%s2 + $0x238] sm:$0xff]
  %v992 = vld [vmem:[%s2 + $0x240] sm:$0xff]
  %v993 = vld [vmem:[%s2 + $0x248] sm:$0xff]
  %v994 = vld [vmem:[%s2 + $0x250] sm:$0xff]
  %v995 = vld [vmem:[%s2 + $0x258] sm:$0xff]
  %v996 = vld [vmem:[%s2 + $0x260] sm:$0xff]
  %v997 = vld [vmem:[%s2 + $0x268] sm:$0xff]
  %v998 = vld [vmem:[%s2 + $0x270] sm:$0xff]
  %v999 = vld [vmem:[%s2 + $0x278] sm:$0xff]
  %v1000 = vld [vmem:[%s2 + $0x280] sm:$0xff]
  %v1001 = vld [vmem:[%s2 + $0x288] sm:$0xff]
  %v1002 = vld [vmem:[%s2 + $0x290] sm:$0xff]
  %v1003 = vld [vmem:[%s2 + $0x298] sm:$0xff]
  %v1004 = vld [vmem:[%s2 + $0x2a0] sm:$0xff]
  %v1005 = vld [vmem:[%s2 + $0x2a8] sm:$0xff]
  %v1006 = vld [vmem:[%s2 + $0x2b0] sm:$0xff]
  %v1007 = vld [vmem:[%s2 + $0x2b8] sm:$0xff]
  %v1008 = vld [vmem:[%s2 + $0x2c0] sm:$0xff]
  %v1009 = vld [vmem:[%s2 + $0x2c8] sm:$0xff]
  %v1010 = vld [vmem:[%s2 + $0x2d0] sm:$0xff]
  %v1011 = vld [vmem:[%s2 + $0x2d8] sm:$0xff]
  %v1012 = vld [vmem:[%s2 + $0x2e0] sm:$0xff]
  %v1013 = vld [vmem:[%s2 + $0x2e8] sm:$0xff]
  %v1014 = vld [vmem:[%s2 + $0x2f0] sm:$0xff]
  %v1015 = vld [vmem:[%s2 + $0x2f8] sm:$0xff]
  %v1016 = vld [vmem:[%s2 + $0x300] sm:$0xff]
  %v1017 = vld [vmem:[%s2 + $0x308] sm:$0xff]
  %1018 = vmatprep.subr.mxu0 0.0
  %1019 = vmatpush1.msra.mxu0 %v23
  %1020 = vmatprep.subr.mxu0 0.0
  %1021 = vmatpush1.msra.mxu0 %v24
  %1022 = vmatprep.subr.mxu0 0.0
  %1023 = vmatpush1.msra.mxu0 %v25
  %1024 = vmatprep.subr.mxu0 0.0
  %1025 = vmatpush1.msra.mxu0 %v26
  %1026 = vmatprep.subr.mxu0 0.0
  %1027 = vmatpush1.msra.mxu0 %v27
  %1028 = vmatprep.subr.mxu0 0.0
  %1029 = vmatpush1.msra.mxu0 %v28
  %1030 = vmatprep.subr.mxu0 0.0
  %1031 = vmatpush1.msra.mxu0 %v29
  %1032 = vmatprep.subr.mxu0 0.0
  %1033 = vmatpush1.msra.mxu0 %v30
  %1034 = vmatprep.subr.mxu0 0.0
  %1035 = vmatpush1.msra.mxu0 %v31
  %1036 = vmatprep.subr.mxu0 0.0
  %1037 = vmatpush1.msra.mxu0 %v32
  %1038 = vmatprep.subr.mxu0 0.0
  %1039 = vmatpush1.msra.mxu0 %v33
  %1040 = vmatprep.subr.mxu0 0.0
  %1041 = vmatpush1.msra.mxu0 %v34
  %1042 = vmatprep.subr.mxu0 0.0
  %1043 = vmatpush1.msra.mxu0 %v35
  %1044 = vmatprep.subr.mxu0 0.0
  %1045 = vmatpush1.msra.mxu0 %v36
  %1046 = vmatprep.subr.mxu0 0.0
  %1047 = vmatpush1.msra.mxu0 %v37
  %1048 = vmatprep.subr.mxu0 0.0
  %1049 = vmatpush1.msra.mxu0 %v38
  %1050 = vmatprep.subr.mxu0 0.0
  %1051 = vmatpush1.msra.mxu0 %v39
  %1052 = vmatprep.subr.mxu0 0.0
  %1053 = vmatpush1.msra.mxu0 %v40
  %1054 = vmatprep.subr.mxu0 0.0
  %1055 = vmatpush1.msra.mxu0 %v41
  %1056 = vmatprep.subr.mxu0 0.0
  %1057 = vmatpush1.msra.mxu0 %v42
  %1058 = vmatprep.subr.mxu0 0.0
  %1059 = vmatpush1.msra.mxu0 %v43
  %1060 = vmatprep.subr.mxu0 0.0
  %1061 = vmatpush1.msra.mxu0 %v44
  %1062 = vmatprep.subr.mxu0 0.0
  %1063 = vmatpush1.msra.mxu0 %v45
  %1064 = vmatprep.subr.mxu0 0.0
  %1065 = vmatpush1.msra.mxu0 %v46
  %1066 = vmatprep.subr.mxu0 0.0
  %1067 = vmatpush1.msra.mxu0 %v47
  %1068 = vmatprep.subr.mxu0 0.0
  %1069 = vmatpush1.msra.mxu0 %v48
  %1070 = vmatprep.subr.mxu0 0.0
  %1071 = vmatpush1.msra.mxu0 %v49
  %1072 = vmatprep.subr.mxu0 0.0
  %1073 = vmatpush1.msra.mxu0 %v50
  %1074 = vmatprep.subr.mxu0 0.0
  %1075 = vmatpush1.msra.mxu0 %v51
  %1076 = vmatprep.subr.mxu0 0.0
  %1077 = vmatpush1.msra.mxu0 %v52
  %1078 = vmatprep.subr.mxu0 0.0
  %1079 = vmatpush1.msra.mxu0 %v53
  %1080 = vmatprep.subr.mxu0 0.0
  %1081 = vmatpush1.msra.mxu0 %v54
  %1082 = vmatprep.mubr.f32.mxu0 %v921
  %1083 = vmatmul.mubr.f32.gmra.mrb[0].mxu0 %v920
  %v1084 = vpop.f32.mrb[0].mxu0
  %v1085 = vadd.f32 0.0, %v1084
  %v1086 = vpop.f32.mrb[0].mxu0
  %1087 = vmatprep.mubr.f32.mxu0 %v923
  %1088 = vmatmul.mubr.f32.gmra.mrb[0].mxu0 %v922
  %v1089 = vpop.f32.mrb[0].mxu0
  %v1090 = vadd.f32 0.0, %v1089
  %v1091 = vpop.f32.mrb[0].mxu0
  %1092 = vmatprep.mubr.f32.mxu0 %v925
  %1093 = vmatmul.mubr.f32.gmra.mrb[0].mxu0 %v924
  %v1094 = vpop.f32.mrb[0].mxu0
  %v1095 = vadd.f32 0.0, %v1094
  %v1096 = vpop.f32.mrb[0].mxu0
  %1097 = vmatprep.mubr.f32.mxu0 %v927
  %1098 = vmatmul.mubr.f32.gmra.mrb[0].mxu0 %v926
  %v1099 = vpop.f32.mrb[0].mxu0
  %v1100 = vadd.f32 0.0, %v1099
  %v1101 = vpop.f32.mrb[0].mxu0
  %1102 = vmatprep.mubr.f32.mxu0 %v929
  %1103 = vmatmul.mubr.f32.gmra.mrb[0].mxu0 %v928
  %v1104 = vpop.f32.mrb[0].mxu0
  %v1105 = vadd.f32 0.0, %v1104
  %v1106 = vpop.f32.mrb[0].mxu0
  %1107 = vmatprep.mubr.f32.mxu0 %v931
  %1108 = vmatmul.mubr.f32.gmra.mrb[0].mxu0 %v930
  %v1109 = vpop.f32.mrb[0].mxu0
  %v1110 = vadd.f32 0.0, %v1109
  %v1111 = vpop.f32.mrb[0].mxu0
  %1112 = vmatprep.mubr.f32.mxu0 %v933
  %1113 = vmatmul.mubr.f32.gmra.mrb[0].mxu0 %v932
  %v1114 = vpop.f32.mrb[0].mxu0
  %v1115 = vadd.f32 0.0, %v1114
  %v1116 = vpop.f32.mrb[0].mxu0
  %1117 = vmatprep.mubr.f32.mxu0 %v935
  %1118 = vmatmul.mubr.f32.gmra.mrb[0].mxu0 %v934
  %v1119 = vpop.f32.mrb[0].mxu0
  %v1120 = vadd.f32 0.0, %v1119
  %v1121 = vpop.f32.mrb[0].mxu0
  %1122 = vmatprep.mubr.f32.mxu0 %v937
  %1123 = vmatmul.mubr.f32.gmra.mrb[0].mxu0 %v936
  %v1124 = vpop.f32.mrb[0].mxu0
  %v1125 = vadd.f32 0.0, %v1124
  %v1126 = vpop.f32.mrb[0].mxu0
  %1127 = vmatprep.mubr.f32.mxu0 %v939
  %1128 = vmatmul.mubr.f32.gmra.mrb[0].mxu0 %v938
  %v1129 = vpop.f32.mrb[0].mxu0
  %v1130 = vadd.f32 0.0, %v1129
  %v1131 = vpop.f32.mrb[0].mxu0
  %1132 = vmatprep.mubr.f32.mxu0 %v941
  %1133 = vmatmul.mubr.f32.gmra.mrb[0].mxu0 %v940
  %v1134 = vpop.f32.mrb[0].mxu0
  %v1135 = vadd.f32 0.0, %v1134
  %v1136 = vpop.f32.mrb[0].mxu0
  %1137 = vmatprep.mubr.f32.mxu0 %v943
  %1138 = vmatmul.mubr.f32.gmra.mrb[0].mxu0 %v942
  %v1139 = vpop.f32.mrb[0].mxu0
  %v1140 = vadd.f32 0.0, %v1139
  %v1141 = vpop.f32.mrb[0].mxu0
  %1142 = vmatprep.mubr.f32.mxu0 %v945
  %1143 = vmatmul.mubr.f32.gmra.mrb[0].mxu0 %v944
  %v1144 = vpop.f32.mrb[0].mxu0
  %v1145 = vadd.f32 0.0, %v1144
  %v1146 = vpop.f32.mrb[0].mxu0
  %1147 = vmatprep.mubr.f32.mxu0 %v947
  %1148 = vmatmul.mubr.f32.gmra.mrb[0].mxu0 %v946
  %v1149 = vpop.f32.mrb[0].mxu0
  %v1150 = vadd.f32 0.0, %v1149
  %v1151 = vpop.f32.mrb[0].mxu0
  %1152 = vmatprep.mubr.f32.mxu0 %v949
  %1153 = vmatmul.mubr.f32.gmra.mrb[0].mxu0 %v948
  %v1154 = vpop.f32.mrb[0].mxu0
  %v1155 = vadd.f32 0.0, %v1154
  %v1156 = vpop.f32.mrb[0].mxu0
  %1157 = vmatprep.mubr.f32.mxu0 %v951
  %1158 = vmatmul.mubr.f32.gmra.mrb[0].mxu0 %v950
  %v1159 = vpop.f32.mrb[0].mxu0
  %v1160 = vadd.f32 0.0, %v1159
  %v1161 = vpop.f32.mrb[0].mxu0
  %1162 = vmatprep.mubr.f32.mxu0 %v953
  %1163 = vmatmul.mubr.f32.gmra.mrb[0].mxu0 %v952
  %v1164 = vpop.f32.mrb[0].mxu0
  %v1165 = vadd.f32 0.0, %v1164
  %v1166 = vpop.f32.mrb[0].mxu0
  %1167 = vmatprep.mubr.f32.mxu0 %v955
  %1168 = vmatmul.mubr.f32.gmra.mrb[0].mxu0 %v954
  %v1169 = vpop.f32.mrb[0].mxu0
  %v1170 = vadd.f32 0.0, %v1169
  %v1171 = vpop.f32.mrb[0].mxu0
  %1172 = vmatprep.mubr.f32.mxu0 %v957
  %1173 = vmatmul.mubr.f32.gmra.mrb[0].mxu0 %v956
  %v1174 = vpop.f32.mrb[0].mxu0
  %v1175 = vadd.f32 0.0, %v1174
  %v1176 = vpop.f32.mrb[0].mxu0
  %1177 = vmatprep.mubr.f32.mxu0 %v959
  %1178 = vmatmul.mubr.f32.gmra.mrb[0].mxu0 %v958
  %v1179 = vpop.f32.mrb[0].mxu0
  %v1180 = vadd.f32 0.0, %v1179
  %v1181 = vpop.f32.mrb[0].mxu0
  %1182 = vmatprep.mubr.f32.mxu0 %v961
  %1183 = vmatmul.mubr.f32.gmra.mrb[0].mxu0 %v960
  %v1184 = vpop.f32.mrb[0].mxu0
  %v1185 = vadd.f32 0.0, %v1184
  %v1186 = vpop.f32.mrb[0].mxu0
  %1187 = vmatprep.mubr.f32.mxu0 %v963
  %1188 = vmatmul.mubr.f32.gmra.mrb[0].mxu0 %v962
  %v1189 = vpop.f32.mrb[0].mxu0
  %v1190 = vadd.f32 0.0, %v1189
  %v1191 = vpop.f32.mrb[0].mxu0
  %1192 = vmatprep.mubr.f32.mxu0 %v965
  %1193 = vmatmul.mubr.f32.gmra.mrb[0].mxu0 %v964
  %v1194 = vpop.f32.mrb[0].mxu0
  %v1195 = vadd.f32 0.0, %v1194
  %v1196 = vpop.f32.mrb[0].mxu0
  %1197 = vmatprep.mubr.f32.mxu0 %v967
  %1198 = vmatmul.mubr.f32.gmra.mrb[0].mxu0 %v966
  %v1199 = vpop.f32.mrb[0].mxu0
  %v1200 = vadd.f32 0.0, %v1199
  %v1201 = vpop.f32.mrb[0].mxu0
  %1202 = vmatprep.mubr.f32.mxu0 %v969
  %1203 = vmatmul.mubr.f32.gmra.mrb[0].mxu0 %v968
  %v1204 = vpop.f32.mrb[0].mxu0
  %v1205 = vadd.f32 0.0, %v1204
  %v1206 = vpop.f32.mrb[0].mxu0
  %1207 = vmatprep.mubr.f32.mxu0 %v971
  %1208 = vmatmul.mubr.f32.gmra.mrb[0].mxu0 %v970
  %v1209 = vpop.f32.mrb[0].mxu0
  %v1210 = vadd.f32 0.0, %v1209
  %v1211 = vpop.f32.mrb[0].mxu0
  %1212 = vmatprep.mubr.f32.mxu0 %v973
  %1213 = vmatmul.mubr.f32.gmra.mrb[0].mxu0 %v972
  %v1214 = vpop.f32.mrb[0].mxu0
  %v1215 = vadd.f32 0.0, %v1214
  %v1216 = vpop.f32.mrb[0].mxu0
  %1217 = vmatprep.mubr.f32.mxu0 %v975
  %1218 = vmatmul.mubr.f32.gmra.mrb[0].mxu0 %v974
  %v1219 = vpop.f32.mrb[0].mxu0
  %v1220 = vadd.f32 0.0, %v1219
  %v1221 = vpop.f32.mrb[0].mxu0
  %1222 = vmatprep.mubr.f32.mxu0 %v977
  %1223 = vmatmul.mubr.f32.gmra.mrb[0].mxu0 %v976
  %v1224 = vpop.f32.mrb[0].mxu0
  %v1225 = vadd.f32 0.0, %v1224
  %v1226 = vpop.f32.mrb[0].mxu0
  %1227 = vmatprep.mubr.f32.mxu0 %v979
  %1228 = vmatmul.mubr.f32.gmra.mrb[0].mxu0 %v978
  %v1229 = vpop.f32.mrb[0].mxu0
  %v1230 = vadd.f32 0.0, %v1229
  %v1231 = vpop.f32.mrb[0].mxu0
  %1232 = vmatprep.mubr.f32.mxu0 %v981
  %1233 = vmatmul.mubr.f32.gmra.mrb[0].mxu0 %v980
  %v1234 = vpop.f32.mrb[0].mxu0
  %v1235 = vadd.f32 0.0, %v1234
  %v1236 = vpop.f32.mrb[0].mxu0
  %1237 = vmatprep.mubr.f32.mxu0 %v983
  %1238 = vmatmul.mubr.f32.gmra.mrb[0].mxu0 %v982
  %v1239 = vpop.f32.mrb[0].mxu0
  %v1240 = vadd.f32 0.0, %v1239
  %v1241 = vpop.f32.mrb[0].mxu0
  %1242 = vmatprep.mubr.f32.mxu0 %v985
  %1243 = vmatmul.mubr.f32.gmra.mrb[0].mxu0 %v984
  %v1244 = vpop.f32.mrb[0].mxu0
  %v1245 = vadd.f32 0.0, %v1244
  %v1246 = vpop.f32.mrb[0].mxu0
  %1247 = vmatprep.mubr.f32.mxu0 %v987
  %1248 = vmatmul.mubr.f32.gmra.mrb[0].mxu0 %v986
  %v1249 = vpop.f32.mrb[0].mxu0
  %v1250 = vadd.f32 0.0, %v1249
  %v1251 = vpop.f32.mrb[0].mxu0
  %1252 = vmatprep.mubr.f32.mxu0 %v989
  %1253 = vmatmul.mubr.f32.gmra.mrb[0].mxu0 %v988
  %v1254 = vpop.f32.mrb[0].mxu0
  %v1255 = vadd.f32 0.0, %v1254
  %v1256 = vpop.f32.mrb[0].mxu0
  %1257 = vmatprep.mubr.f32.mxu0 %v991
  %1258 = vmatmul.mubr.f32.gmra.mrb[0].mxu0 %v990
  %v1259 = vpop.f32.mrb[0].mxu0
  %v1260 = vadd.f32 0.0, %v1259
  %v1261 = vpop.f32.mrb[0].mxu0
  %1262 = vmatprep.mubr.f32.mxu0 %v993
  %1263 = vmatmul.mubr.f32.gmra.mrb[0].mxu0 %v992
  %v1264 = vpop.f32.mrb[0].mxu0
  %v1265 = vadd.f32 0.0, %v1264
  %v1266 = vpop.f32.mrb[0].mxu0
  %1267 = vmatprep.mubr.f32.mxu0 %v995
  %1268 = vmatmul.mubr.f32.gmra.mrb[0].mxu0 %v994
  %v1269 = vpop.f32.mrb[0].mxu0
  %v1270 = vadd.f32 0.0, %v1269
  %v1271 = vpop.f32.mrb[0].mxu0
  %1272 = vmatprep.mubr.f32.mxu0 %v997
  %1273 = vmatmul.mubr.f32.gmra.mrb[0].mxu0 %v996
  %v1274 = vpop.f32.mrb[0].mxu0
  %v1275 = vadd.f32 0.0, %v1274
  %v1276 = vpop.f32.mrb[0].mxu0
  %1277 = vmatprep.mubr.f32.mxu0 %v999
  %1278 = vmatmul.mubr.f32.gmra.mrb[0].mxu0 %v998
  %v1279 = vpop.f32.mrb[0].mxu0
  %v1280 = vadd.f32 0.0, %v1279
  %v1281 = vpop.f32.mrb[0].mxu0
  %1282 = vmatprep.mubr.f32.mxu0 %v1001
  %1283 = vmatmul.mubr.f32.gmra.mrb[0].mxu0 %v1000
  %v1284 = vpop.f32.mrb[0].mxu0
  %v1285 = vadd.f32 0.0, %v1284
  %v1286 = vpop.f32.mrb[0].mxu0
  %1287 = vmatprep.mubr.f32.mxu0 %v1003
  %1288 = vmatmul.mubr.f32.gmra.mrb[0].mxu0 %v1002
  %v1289 = vpop.f32.mrb[0].mxu0
  %v1290 = vadd.f32 0.0, %v1289
  %v1291 = vpop.f32.mrb[0].mxu0
  %1292 = vmatprep.mubr.f32.mxu0 %v1005
  %1293 = vmatmul.mubr.f32.gmra.mrb[0].mxu0 %v1004
  %v1294 = vpop.f32.mrb[0].mxu0
  %v1295 = vadd.f32 0.0, %v1294
  %v1296 = vpop.f32.mrb[0].mxu0
  %1297 = vmatprep.mubr.f32.mxu0 %v1007
  %1298 = vmatmul.mubr.f32.gmra.mrb[0].mxu0 %v1006
  %v1299 = vpop.f32.mrb[0].mxu0
  %v1300 = vadd.f32 0.0, %v1299
  %v1301 = vpop.f32.mrb[0].mxu0
  %1302 = vmatprep.mubr.f32.mxu0 %v1009
  %1303 = vmatmul.mubr.f32.gmra.mrb[0].mxu0 %v1008
  %v1304 = vpop.f32.mrb[0].mxu0
  %v1305 = vadd.f32 0.0, %v1304
  %v1306 = vpop.f32.mrb[0].mxu0
  %1307 = vmatprep.mubr.f32.mxu0 %v1011
  %1308 = vmatmul.mubr.f32.gmra.mrb[0].mxu0 %v1010
  %v1309 = vpop.f32.mrb[0].mxu0
  %v1310 = vadd.f32 0.0, %v1309
  %v1311 = vpop.f32.mrb[0].mxu0
  %1312 = vmatprep.mubr.f32.mxu0 %v1013
  %1313 = vmatmul.mubr.f32.gmra.mrb[0].mxu0 %v1012
  %v1314 = vpop.f32.mrb[0].mxu0
  %v1315 = vadd.f32 0.0, %v1314
  %v1316 = vpop.f32.mrb[0].mxu0
  %1317 = vmatprep.mubr.f32.mxu0 %v1015
  %1318 = vmatmul.mubr.f32.gmra.mrb[0].mxu0 %v1014
  %v1319 = vpop.f32.mrb[0].mxu0
  %v1320 = vadd.f32 0.0, %v1319
  %v1321 = vpop.f32.mrb[0].mxu0
  %1322 = vmatprep.mubr.f32.mxu0 %v1017
  %1323 = vmatmul.mubr.f32.gmra.mrb[0].mxu0 %v1016
  %v1324 = vpop.f32.mrb[0].mxu0
  %v1325 = vadd.f32 0.0, %v1324
  %v1326 = vpop.f32.mrb[0].mxu0
  %1327 = vdwg.mxu0
  %v1328 = vmax.f32 %v871, %v1085
  %v1329 = vmax.f32 %v872, %v1090
  %v1330 = vmax.f32 %v873, %v1095
  %v1331 = vmax.f32 %v874, %v1100
  %v1332 = vmax.f32 %v875, %v1105
  %v1333 = vmax.f32 %v876, %v1110
  %v1334 = vmax.f32 %v877, %v1115
  %v1335 = vmax.f32 %v878, %v1120
  %v1336 = vmax.f32 %v879, %v1125
  %v1337 = vmax.f32 %v880, %v1130
  %v1338 = vmax.f32 %v881, %v1135
  %v1339 = vmax.f32 %v882, %v1140
  %v1340 = vmax.f32 %v883, %v1145
  %v1341 = vmax.f32 %v884, %v1150
  %v1342 = vmax.f32 %v885, %v1155
  %v1343 = vmax.f32 %v886, %v1160
  %v1344 = vmax.f32 %v887, %v1165
  %v1345 = vmax.f32 %v888, %v1170
  %v1346 = vmax.f32 %v889, %v1175
  %v1347 = vmax.f32 %v890, %v1180
  %v1348 = vmax.f32 %v891, %v1185
  %v1349 = vmax.f32 %v892, %v1190
  %v1350 = vmax.f32 %v893, %v1195
  %v1351 = vmax.f32 %v894, %v1200
  %v1352 = vmax.f32 %v895, %v1205
  %v1353 = vmax.f32 %v896, %v1210
  %v1354 = vmax.f32 %v897, %v1215
  %v1355 = vmax.f32 %v898, %v1220
  %v1356 = vmax.f32 %v899, %v1225
  %v1357 = vmax.f32 %v900, %v1230
  %v1358 = vmax.f32 %v901, %v1235
  %v1359 = vmax.f32 %v902, %v1240
  %v1360 = vmax.f32 %v903, %v1245
  %v1361 = vmax.f32 %v904, %v1250
  %v1362 = vmax.f32 %v905, %v1255
  %v1363 = vmax.f32 %v906, %v1260
  %v1364 = vmax.f32 %v907, %v1265
  %v1365 = vmax.f32 %v908, %v1270
  %v1366 = vmax.f32 %v909, %v1275
  %v1367 = vmax.f32 %v910, %v1280
  %v1368 = vmax.f32 %v911, %v1285
  %v1369 = vmax.f32 %v912, %v1290
  %v1370 = vmax.f32 %v913, %v1295
  %v1371 = vmax.f32 %v914, %v1300
  %v1372 = vmax.f32 %v915, %v1305
  %v1373 = vmax.f32 %v916, %v1310
  %v1374 = vmax.f32 %v917, %v1315
  %v1375 = vmax.f32 %v918, %v1320
  %v1376 = vmax.f32 %v919, %v1325
  %v1377 = vld [vmem:[%s3] sm:$0xff]
  %v1378 = vld [vmem:[%s3 + $0x8] sm:$0xff]
  %v1379 = vld [vmem:[%s3 + $0x10] sm:$0xff]
  %v1380 = vld [vmem:[%s3 + $0x18] sm:$0xff]
  %v1381 = vld [vmem:[%s3 + $0x20] sm:$0xff]
  %v1382 = vld [vmem:[%s3 + $0x28] sm:$0xff]
  %v1383 = vld [vmem:[%s3 + $0x30] sm:$0xff]
  %v1384 = vld [vmem:[%s3 + $0x38] sm:$0xff]
  %v1385 = vld [vmem:[%s3 + $0x40] sm:$0xff]
  %v1386 = vld [vmem:[%s3 + $0x48] sm:$0xff]
  %v1387 = vld [vmem:[%s3 + $0x50] sm:$0xff]
  %v1388 = vld [vmem:[%s3 + $0x58] sm:$0xff]
  %v1389 = vld [vmem:[%s3 + $0x60] sm:$0xff]
  %v1390 = vld [vmem:[%s3 + $0x68] sm:$0xff]
  %v1391 = vld [vmem:[%s3 + $0x70] sm:$0xff]
  %v1392 = vld [vmem:[%s3 + $0x78] sm:$0xff]
  %v1393 = vld [vmem:[%s3 + $0x80] sm:$0xff]
  %v1394 = vld [vmem:[%s3 + $0x88] sm:$0xff]
  %v1395 = vld [vmem:[%s3 + $0x90] sm:$0xff]
  %v1396 = vld [vmem:[%s3 + $0x98] sm:$0xff]
  %v1397 = vld [vmem:[%s3 + $0xa0] sm:$0xff]
  %v1398 = vld [vmem:[%s3 + $0xa8] sm:$0xff]
  %v1399 = vld [vmem:[%s3 + $0xb0] sm:$0xff]
  %v1400 = vld [vmem:[%s3 + $0xb8] sm:$0xff]
  %v1401 = vld [vmem:[%s3 + $0xc0] sm:$0xff]
  %v1402 = vld [vmem:[%s3 + $0xc8] sm:$0xff]
  %v1403 = vld [vmem:[%s3 + $0xd0] sm:$0xff]
  %v1404 = vld [vmem:[%s3 + $0xd8] sm:$0xff]
  %v1405 = vld [vmem:[%s3 + $0xe0] sm:$0xff]
  %v1406 = vld [vmem:[%s3 + $0xe8] sm:$0xff]
  %v1407 = vld [vmem:[%s3 + $0xf0] sm:$0xff]
  %v1408 = vld [vmem:[%s3 + $0xf8] sm:$0xff]
  %v1409 = vld [vmem:[%s3 + $0x100] sm:$0xff]
  %v1410 = vld [vmem:[%s3 + $0x108] sm:$0xff]
  %v1411 = vld [vmem:[%s3 + $0x110] sm:$0xff]
  %v1412 = vld [vmem:[%s3 + $0x118] sm:$0xff]
  %v1413 = vld [vmem:[%s3 + $0x120] sm:$0xff]
  %v1414 = vld [vmem:[%s3 + $0x128] sm:$0xff]
  %v1415 = vld [vmem:[%s3 + $0x130] sm:$0xff]
  %v1416 = vld [vmem:[%s3 + $0x138] sm:$0xff]
  %v1417 = vld [vmem:[%s3 + $0x140] sm:$0xff]
  %v1418 = vld [vmem:[%s3 + $0x148] sm:$0xff]
  %v1419 = vld [vmem:[%s3 + $0x150] sm:$0xff]
  %v1420 = vld [vmem:[%s3 + $0x158] sm:$0xff]
  %v1421 = vld [vmem:[%s3 + $0x160] sm:$0xff]
  %v1422 = vld [vmem:[%s3 + $0x168] sm:$0xff]
  %v1423 = vld [vmem:[%s3 + $0x170] sm:$0xff]
  %v1424 = vld [vmem:[%s3 + $0x178] sm:$0xff]
  %v1425 = vld [vmem:[%s3 + $0x180] sm:$0xff]
  %v1426 = vld [vmem:[%s3 + $0x188] sm:$0xff]
  %v1427 = vld [vmem:[%s3 + $0x190] sm:$0xff]
  %v1428 = vld [vmem:[%s3 + $0x198] sm:$0xff]
  %v1429 = vld [vmem:[%s3 + $0x1a0] sm:$0xff]
  %v1430 = vld [vmem:[%s3 + $0x1a8] sm:$0xff]
  %v1431 = vld [vmem:[%s3 + $0x1b0] sm:$0xff]
  %v1432 = vld [vmem:[%s3 + $0x1b8] sm:$0xff]
  %v1433 = vld [vmem:[%s3 + $0x1c0] sm:$0xff]
  %v1434 = vld [vmem:[%s3 + $0x1c8] sm:$0xff]
  %v1435 = vld [vmem:[%s3 + $0x1d0] sm:$0xff]
  %v1436 = vld [vmem:[%s3 + $0x1d8] sm:$0xff]
  %v1437 = vld [vmem:[%s3 + $0x1e0] sm:$0xff]
  %v1438 = vld [vmem:[%s3 + $0x1e8] sm:$0xff]
  %v1439 = vld [vmem:[%s3 + $0x1f0] sm:$0xff]
  %v1440 = vld [vmem:[%s3 + $0x1f8] sm:$0xff]
  %v1441 = vld [vmem:[%s3 + $0x200] sm:$0xff]
  %v1442 = vld [vmem:[%s3 + $0x208] sm:$0xff]
  %v1443 = vld [vmem:[%s3 + $0x210] sm:$0xff]
  %v1444 = vld [vmem:[%s3 + $0x218] sm:$0xff]
  %v1445 = vld [vmem:[%s3 + $0x220] sm:$0xff]
  %v1446 = vld [vmem:[%s3 + $0x228] sm:$0xff]
  %v1447 = vld [vmem:[%s3 + $0x230] sm:$0xff]
  %v1448 = vld [vmem:[%s3 + $0x238] sm:$0xff]
  %v1449 = vld [vmem:[%s3 + $0x240] sm:$0xff]
  %v1450 = vld [vmem:[%s3 + $0x248] sm:$0xff]
  %v1451 = vld [vmem:[%s3 + $0x250] sm:$0xff]
  %v1452 = vld [vmem:[%s3 + $0x258] sm:$0xff]
  %v1453 = vld [vmem:[%s3 + $0x260] sm:$0xff]
  %v1454 = vld [vmem:[%s3 + $0x268] sm:$0xff]
  %v1455 = vld [vmem:[%s3 + $0x270] sm:$0xff]
  %v1456 = vld [vmem:[%s3 + $0x278] sm:$0xff]
  %v1457 = vld [vmem:[%s3 + $0x280] sm:$0xff]
  %v1458 = vld [vmem:[%s3 + $0x288] sm:$0xff]
  %v1459 = vld [vmem:[%s3 + $0x290] sm:$0xff]
  %v1460 = vld [vmem:[%s3 + $0x298] sm:$0xff]
  %v1461 = vld [vmem:[%s3 + $0x2a0] sm:$0xff]
  %v1462 = vld [vmem:[%s3 + $0x2a8] sm:$0xff]
  %v1463 = vld [vmem:[%s3 + $0x2b0] sm:$0xff]
  %v1464 = vld [vmem:[%s3 + $0x2b8] sm:$0xff]
  %v1465 = vld [vmem:[%s3 + $0x2c0] sm:$0xff]
  %v1466 = vld [vmem:[%s3 + $0x2c8] sm:$0xff]
  %v1467 = vld [vmem:[%s3 + $0x2d0] sm:$0xff]
  %v1468 = vld [vmem:[%s3 + $0x2d8] sm:$0xff]
  %v1469 = vld [vmem:[%s3 + $0x2e0] sm:$0xff]
  %v1470 = vld [vmem:[%s3 + $0x2e8] sm:$0xff]
  %v1471 = vld [vmem:[%s3 + $0x2f0] sm:$0xff]
  %v1472 = vld [vmem:[%s3 + $0x2f8] sm:$0xff]
  %v1473 = vld [vmem:[%s3 + $0x300] sm:$0xff]
  %v1474 = vld [vmem:[%s3 + $0x308] sm:$0xff]
  %1475 = vmatprep.subr.mxu0 0.0
  %1476 = vmatpush1.msra.mxu0 %v23
  %1477 = vmatprep.subr.mxu0 0.0
  %1478 = vmatpush1.msra.mxu0 %v24
  %1479 = vmatprep.subr.mxu0 0.0
  %1480 = vmatpush1.msra.mxu0 %v25
  %1481 = vmatprep.subr.mxu0 0.0
  %1482 = vmatpush1.msra.mxu0 %v26
  %1483 = vmatprep.subr.mxu0 0.0
  %1484 = vmatpush1.msra.mxu0 %v27
  %1485 = vmatprep.subr.mxu0 0.0
  %1486 = vmatpush1.msra.mxu0 %v28
  %1487 = vmatprep.subr.mxu0 0.0
  %1488 = vmatpush1.msra.mxu0 %v29
  %1489 = vmatprep.subr.mxu0 0.0
  %1490 = vmatpush1.msra.mxu0 %v30
  %1491 = vmatprep.subr.mxu0 0.0
  %1492 = vmatpush1.msra.mxu0 %v31
  %1493 = vmatprep.subr.mxu0 0.0
  %1494 = vmatpush1.msra.mxu0 %v32
  %1495 = vmatprep.subr.mxu0 0.0
  %1496 = vmatpush1.msra.mxu0 %v33
  %1497 = vmatprep.subr.mxu0 0.0
  %1498 = vmatpush1.msra.mxu0 %v34
  %1499 = vmatprep.subr.mxu0 0.0
  %1500 = vmatpush1.msra.mxu0 %v35
  %1501 = vmatprep.subr.mxu0 0.0
  %1502 = vmatpush1.msra.mxu0 %v36
  %1503 = vmatprep.subr.mxu0 0.0
  %1504 = vmatpush1.msra.mxu0 %v37
  %1505 = vmatprep.subr.mxu0 0.0
  %1506 = vmatpush1.msra.mxu0 %v38
  %1507 = vmatprep.subr.mxu0 0.0
  %1508 = vmatpush1.msra.mxu0 %v39
  %1509 = vmatprep.subr.mxu0 0.0
  %1510 = vmatpush1.msra.mxu0 %v40
  %1511 = vmatprep.subr.mxu0 0.0
  %1512 = vmatpush1.msra.mxu0 %v41
  %1513 = vmatprep.subr.mxu0 0.0
  %1514 = vmatpush1.msra.mxu0 %v42
  %1515 = vmatprep.subr.mxu0 0.0
  %1516 = vmatpush1.msra.mxu0 %v43
  %1517 = vmatprep.subr.mxu0 0.0
  %1518 = vmatpush1.msra.mxu0 %v44
  %1519 = vmatprep.subr.mxu0 0.0
  %1520 = vmatpush1.msra.mxu0 %v45
  %1521 = vmatprep.subr.mxu0 0.0
  %1522 = vmatpush1.msra.mxu0 %v46
  %1523 = vmatprep.subr.mxu0 0.0
  %1524 = vmatpush1.msra.mxu0 %v47
  %1525 = vmatprep.subr.mxu0 0.0
  %1526 = vmatpush1.msra.mxu0 %v48
  %1527 = vmatprep.subr.mxu0 0.0
  %1528 = vmatpush1.msra.mxu0 %v49
  %1529 = vmatprep.subr.mxu0 0.0
  %1530 = vmatpush1.msra.mxu0 %v50
  %1531 = vmatprep.subr.mxu0 0.0
  %1532 = vmatpush1.msra.mxu0 %v51
  %1533 = vmatprep.subr.mxu0 0.0
  %1534 = vmatpush1.msra.mxu0 %v52
  %1535 = vmatprep.subr.mxu0 0.0
  %1536 = vmatpush1.msra.mxu0 %v53
  %1537 = vmatprep.subr.mxu0 0.0
  %1538 = vmatpush1.msra.mxu0 %v54
  %1539 = vmatprep.mubr.f32.mxu0 %v1378
  %1540 = vmatmul.mubr.f32.gmra.mrb[0].mxu0 %v1377
  %v1541 = vpop.f32.mrb[0].mxu0
  %v1542 = vadd.f32 0.0, %v1541
  %v1543 = vpop.f32.mrb[0].mxu0
  %1544 = vmatprep.mubr.f32.mxu0 %v1380
  %1545 = vmatmul.mubr.f32.gmra.mrb[0].mxu0 %v1379
  %v1546 = vpop.f32.mrb[0].mxu0
  %v1547 = vadd.f32 0.0, %v1546
  %v1548 = vpop.f32.mrb[0].mxu0
  %1549 = vmatprep.mubr.f32.mxu0 %v1382
  %1550 = vmatmul.mubr.f32.gmra.mrb[0].mxu0 %v1381
  %v1551 = vpop.f32.mrb[0].mxu0
  %v1552 = vadd.f32 0.0, %v1551
  %v1553 = vpop.f32.mrb[0].mxu0
  %1554 = vmatprep.mubr.f32.mxu0 %v1384
  %1555 = vmatmul.mubr.f32.gmra.mrb[0].mxu0 %v1383
  %v1556 = vpop.f32.mrb[0].mxu0
  %v1557 = vadd.f32 0.0, %v1556
  %v1558 = vpop.f32.mrb[0].mxu0
  %1559 = vmatprep.mubr.f32.mxu0 %v1386
  %1560 = vmatmul.mubr.f32.gmra.mrb[0].mxu0 %v1385
  %v1561 = vpop.f32.mrb[0].mxu0
  %v1562 = vadd.f32 0.0, %v1561
  %v1563 = vpop.f32.mrb[0].mxu0
  %1564 = vmatprep.mubr.f32.mxu0 %v1388
  %1565 = vmatmul.mubr.f32.gmra.mrb[0].mxu0 %v1387
  %v1566 = vpop.f32.mrb[0].mxu0
  %v1567 = vadd.f32 0.0, %v1566
  %v1568 = vpop.f32.mrb[0].mxu0
  %1569 = vmatprep.mubr.f32.mxu0 %v1390
  %1570 = vmatmul.mubr.f32.gmra.mrb[0].mxu0 %v1389
  %v1571 = vpop.f32.mrb[0].mxu0
  %v1572 = vadd.f32 0.0, %v1571
  %v1573 = vpop.f32.mrb[0].mxu0
  %1574 = vmatprep.mubr.f32.mxu0 %v1392
  %1575 = vmatmul.mubr.f32.gmra.mrb[0].mxu0 %v1391
  %v1576 = vpop.f32.mrb[0].mxu0
  %v1577 = vadd.f32 0.0, %v1576
  %v1578 = vpop.f32.mrb[0].mxu0
  %1579 = vmatprep.mubr.f32.mxu0 %v1394
  %1580 = vmatmul.mubr.f32.gmra.mrb[0].mxu0 %v1393
  %v1581 = vpop.f32.mrb[0].mxu0
  %v1582 = vadd.f32 0.0, %v1581
  %v1583 = vpop.f32.mrb[0].mxu0
  %1584 = vmatprep.mubr.f32.mxu0 %v1396
  %1585 = vmatmul.mubr.f32.gmra.mrb[0].mxu0 %v1395
  %v1586 = vpop.f32.mrb[0].mxu0
  %v1587 = vadd.f32 0.0, %v1586
  %v1588 = vpop.f32.mrb[0].mxu0
  %1589 = vmatprep.mubr.f32.mxu0 %v1398
  %1590 = vmatmul.mubr.f32.gmra.mrb[0].mxu0 %v1397
  %v1591 = vpop.f32.mrb[0].mxu0
  %v1592 = vadd.f32 0.0, %v1591
  %v1593 = vpop.f32.mrb[0].mxu0
  %1594 = vmatprep.mubr.f32.mxu0 %v1400
  %1595 = vmatmul.mubr.f32.gmra.mrb[0].mxu0 %v1399
  %v1596 = vpop.f32.mrb[0].mxu0
  %v1597 = vadd.f32 0.0, %v1596
  %v1598 = vpop.f32.mrb[0].mxu0
  %1599 = vmatprep.mubr.f32.mxu0 %v1402
  %1600 = vmatmul.mubr.f32.gmra.mrb[0].mxu0 %v1401
  %v1601 = vpop.f32.mrb[0].mxu0
  %v1602 = vadd.f32 0.0, %v1601
  %v1603 = vpop.f32.mrb[0].mxu0
  %1604 = vmatprep.mubr.f32.mxu0 %v1404
  %1605 = vmatmul.mubr.f32.gmra.mrb[0].mxu0 %v1403
  %v1606 = vpop.f32.mrb[0].mxu0
  %v1607 = vadd.f32 0.0, %v1606
  %v1608 = vpop.f32.mrb[0].mxu0
  %1609 = vmatprep.mubr.f32.mxu0 %v1406
  %1610 = vmatmul.mubr.f32.gmra.mrb[0].mxu0 %v1405
  %v1611 = vpop.f32.mrb[0].mxu0
  %v1612 = vadd.f32 0.0, %v1611
  %v1613 = vpop.f32.mrb[0].mxu0
  %1614 = vmatprep.mubr.f32.mxu0 %v1408
  %1615 = vmatmul.mubr.f32.gmra.mrb[0].mxu0 %v1407
  %v1616 = vpop.f32.mrb[0].mxu0
  %v1617 = vadd.f32 0.0, %v1616
  %v1618 = vpop.f32.mrb[0].mxu0
  %1619 = vmatprep.mubr.f32.mxu0 %v1410
  %1620 = vmatmul.mubr.f32.gmra.mrb[0].mxu0 %v1409
  %v1621 = vpop.f32.mrb[0].mxu0
  %v1622 = vadd.f32 0.0, %v1621
  %v1623 = vpop.f32.mrb[0].mxu0
  %1624 = vmatprep.mubr.f32.mxu0 %v1412
  %1625 = vmatmul.mubr.f32.gmra.mrb[0].mxu0 %v1411
  %v1626 = vpop.f32.mrb[0].mxu0
  %v1627 = vadd.f32 0.0, %v1626
  %v1628 = vpop.f32.mrb[0].mxu0
  %1629 = vmatprep.mubr.f32.mxu0 %v1414
  %1630 = vmatmul.mubr.f32.gmra.mrb[0].mxu0 %v1413
  %v1631 = vpop.f32.mrb[0].mxu0
  %v1632 = vadd.f32 0.0, %v1631
  %v1633 = vpop.f32.mrb[0].mxu0
  %1634 = vmatprep.mubr.f32.mxu0 %v1416
  %1635 = vmatmul.mubr.f32.gmra.mrb[0].mxu0 %v1415
  %v1636 = vpop.f32.mrb[0].mxu0
  %v1637 = vadd.f32 0.0, %v1636
  %v1638 = vpop.f32.mrb[0].mxu0
  %1639 = vmatprep.mubr.f32.mxu0 %v1418
  %1640 = vmatmul.mubr.f32.gmra.mrb[0].mxu0 %v1417
  %v1641 = vpop.f32.mrb[0].mxu0
  %v1642 = vadd.f32 0.0, %v1641
  %v1643 = vpop.f32.mrb[0].mxu0
  %1644 = vmatprep.mubr.f32.mxu0 %v1420
  %1645 = vmatmul.mubr.f32.gmra.mrb[0].mxu0 %v1419
  %v1646 = vpop.f32.mrb[0].mxu0
  %v1647 = vadd.f32 0.0, %v1646
  %v1648 = vpop.f32.mrb[0].mxu0
  %1649 = vmatprep.mubr.f32.mxu0 %v1422
  %1650 = vmatmul.mubr.f32.gmra.mrb[0].mxu0 %v1421
  %v1651 = vpop.f32.mrb[0].mxu0
  %v1652 = vadd.f32 0.0, %v1651
  %v1653 = vpop.f32.mrb[0].mxu0
  %1654 = vmatprep.mubr.f32.mxu0 %v1424
  %1655 = vmatmul.mubr.f32.gmra.mrb[0].mxu0 %v1423
  %v1656 = vpop.f32.mrb[0].mxu0
  %v1657 = vadd.f32 0.0, %v1656
  %v1658 = vpop.f32.mrb[0].mxu0
  %1659 = vmatprep.mubr.f32.mxu0 %v1426
  %1660 = vmatmul.mubr.f32.gmra.mrb[0].mxu0 %v1425
  %v1661 = vpop.f32.mrb[0].mxu0
  %v1662 = vadd.f32 0.0, %v1661
  %v1663 = vpop.f32.mrb[0].mxu0
  %1664 = vmatprep.mubr.f32.mxu0 %v1428
  %1665 = vmatmul.mubr.f32.gmra.mrb[0].mxu0 %v1427
  %v1666 = vpop.f32.mrb[0].mxu0
  %v1667 = vadd.f32 0.0, %v1666
  %v1668 = vpop.f32.mrb[0].mxu0
  %1669 = vmatprep.mubr.f32.mxu0 %v1430
  %1670 = vmatmul.mubr.f32.gmra.mrb[0].mxu0 %v1429
  %v1671 = vpop.f32.mrb[0].mxu0
  %v1672 = vadd.f32 0.0, %v1671
  %v1673 = vpop.f32.mrb[0].mxu0
  %1674 = vmatprep.mubr.f32.mxu0 %v1432
  %1675 = vmatmul.mubr.f32.gmra.mrb[0].mxu0 %v1431
  %v1676 = vpop.f32.mrb[0].mxu0
  %v1677 = vadd.f32 0.0, %v1676
  %v1678 = vpop.f32.mrb[0].mxu0
  %1679 = vmatprep.mubr.f32.mxu0 %v1434
  %1680 = vmatmul.mubr.f32.gmra.mrb[0].mxu0 %v1433
  %v1681 = vpop.f32.mrb[0].mxu0
  %v1682 = vadd.f32 0.0, %v1681
  %v1683 = vpop.f32.mrb[0].mxu0
  %1684 = vmatprep.mubr.f32.mxu0 %v1436
  %1685 = vmatmul.mubr.f32.gmra.mrb[0].mxu0 %v1435
  %v1686 = vpop.f32.mrb[0].mxu0
  %v1687 = vadd.f32 0.0, %v1686
  %v1688 = vpop.f32.mrb[0].mxu0
  %1689 = vmatprep.mubr.f32.mxu0 %v1438
  %1690 = vmatmul.mubr.f32.gmra.mrb[0].mxu0 %v1437
  %v1691 = vpop.f32.mrb[0].mxu0
  %v1692 = vadd.f32 0.0, %v1691
  %v1693 = vpop.f32.mrb[0].mxu0
  %1694 = vmatprep.mubr.f32.mxu0 %v1440
  %1695 = vmatmul.mubr.f32.gmra.mrb[0].mxu0 %v1439
  %v1696 = vpop.f32.mrb[0].mxu0
  %v1697 = vadd.f32 0.0, %v1696
  %v1698 = vpop.f32.mrb[0].mxu0
  %1699 = vmatprep.mubr.f32.mxu0 %v1442
  %1700 = vmatmul.mubr.f32.gmra.mrb[0].mxu0 %v1441
  %v1701 = vpop.f32.mrb[0].mxu0
  %v1702 = vadd.f32 0.0, %v1701
  %v1703 = vpop.f32.mrb[0].mxu0
  %1704 = vmatprep.mubr.f32.mxu0 %v1444
  %1705 = vmatmul.mubr.f32.gmra.mrb[0].mxu0 %v1443
  %v1706 = vpop.f32.mrb[0].mxu0
  %v1707 = vadd.f32 0.0, %v1706
  %v1708 = vpop.f32.mrb[0].mxu0
  %1709 = vmatprep.mubr.f32.mxu0 %v1446
  %1710 = vmatmul.mubr.f32.gmra.mrb[0].mxu0 %v1445
  %v1711 = vpop.f32.mrb[0].mxu0
  %v1712 = vadd.f32 0.0, %v1711
  %v1713 = vpop.f32.mrb[0].mxu0
  %1714 = vmatprep.mubr.f32.mxu0 %v1448
  %1715 = vmatmul.mubr.f32.gmra.mrb[0].mxu0 %v1447
  %v1716 = vpop.f32.mrb[0].mxu0
  %v1717 = vadd.f32 0.0, %v1716
  %v1718 = vpop.f32.mrb[0].mxu0
  %1719 = vmatprep.mubr.f32.mxu0 %v1450
  %1720 = vmatmul.mubr.f32.gmra.mrb[0].mxu0 %v1449
  %v1721 = vpop.f32.mrb[0].mxu0
  %v1722 = vadd.f32 0.0, %v1721
  %v1723 = vpop.f32.mrb[0].mxu0
  %1724 = vmatprep.mubr.f32.mxu0 %v1452
  %1725 = vmatmul.mubr.f32.gmra.mrb[0].mxu0 %v1451
  %v1726 = vpop.f32.mrb[0].mxu0
  %v1727 = vadd.f32 0.0, %v1726
  %v1728 = vpop.f32.mrb[0].mxu0
  %1729 = vmatprep.mubr.f32.mxu0 %v1454
  %1730 = vmatmul.mubr.f32.gmra.mrb[0].mxu0 %v1453
  %v1731 = vpop.f32.mrb[0].mxu0
  %v1732 = vadd.f32 0.0, %v1731
  %v1733 = vpop.f32.mrb[0].mxu0
  %1734 = vmatprep.mubr.f32.mxu0 %v1456
  %1735 = vmatmul.mubr.f32.gmra.mrb[0].mxu0 %v1455
  %v1736 = vpop.f32.mrb[0].mxu0
  %v1737 = vadd.f32 0.0, %v1736
  %v1738 = vpop.f32.mrb[0].mxu0
  %1739 = vmatprep.mubr.f32.mxu0 %v1458
  %1740 = vmatmul.mubr.f32.gmra.mrb[0].mxu0 %v1457
  %v1741 = vpop.f32.mrb[0].mxu0
  %v1742 = vadd.f32 0.0, %v1741
  %v1743 = vpop.f32.mrb[0].mxu0
  %1744 = vmatprep.mubr.f32.mxu0 %v1460
  %1745 = vmatmul.mubr.f32.gmra.mrb[0].mxu0 %v1459
  %v1746 = vpop.f32.mrb[0].mxu0
  %v1747 = vadd.f32 0.0, %v1746
  %v1748 = vpop.f32.mrb[0].mxu0
  %1749 = vmatprep.mubr.f32.mxu0 %v1462
  %1750 = vmatmul.mubr.f32.gmra.mrb[0].mxu0 %v1461
  %v1751 = vpop.f32.mrb[0].mxu0
  %v1752 = vadd.f32 0.0, %v1751
  %v1753 = vpop.f32.mrb[0].mxu0
  %1754 = vmatprep.mubr.f32.mxu0 %v1464
  %1755 = vmatmul.mubr.f32.gmra.mrb[0].mxu0 %v1463
  %v1756 = vpop.f32.mrb[0].mxu0
  %v1757 = vadd.f32 0.0, %v1756
  %v1758 = vpop.f32.mrb[0].mxu0
  %1759 = vmatprep.mubr.f32.mxu0 %v1466
  %1760 = vmatmul.mubr.f32.gmra.mrb[0].mxu0 %v1465
  %v1761 = vpop.f32.mrb[0].mxu0
  %v1762 = vadd.f32 0.0, %v1761
  %v1763 = vpop.f32.mrb[0].mxu0
  %1764 = vmatprep.mubr.f32.mxu0 %v1468
  %1765 = vmatmul.mubr.f32.gmra.mrb[0].mxu0 %v1467
  %v1766 = vpop.f32.mrb[0].mxu0
  %v1767 = vadd.f32 0.0, %v1766
  %v1768 = vpop.f32.mrb[0].mxu0
  %1769 = vmatprep.mubr.f32.mxu0 %v1470
  %1770 = vmatmul.mubr.f32.gmra.mrb[0].mxu0 %v1469
  %v1771 = vpop.f32.mrb[0].mxu0
  %v1772 = vadd.f32 0.0, %v1771
  %v1773 = vpop.f32.mrb[0].mxu0
  %1774 = vmatprep.mubr.f32.mxu0 %v1472
  %1775 = vmatmul.mubr.f32.gmra.mrb[0].mxu0 %v1471
  %v1776 = vpop.f32.mrb[0].mxu0
  %v1777 = vadd.f32 0.0, %v1776
  %v1778 = vpop.f32.mrb[0].mxu0
  %1779 = vmatprep.mubr.f32.mxu0 %v1474
  %1780 = vmatmul.mubr.f32.gmra.mrb[0].mxu0 %v1473
  %v1781 = vpop.f32.mrb[0].mxu0
  %v1782 = vadd.f32 0.0, %v1781
  %v1783 = vpop.f32.mrb[0].mxu0
  %1784 = vdwg.mxu0
  %v1785 = vmax.f32 %v1328, %v1542
  %v1786 = vmax.f32 %v1329, %v1547
  %v1787 = vmax.f32 %v1330, %v1552
  %v1788 = vmax.f32 %v1331, %v1557
  %v1789 = vmax.f32 %v1332, %v1562
  %v1790 = vmax.f32 %v1333, %v1567
  %v1791 = vmax.f32 %v1334, %v1572
  %v1792 = vmax.f32 %v1335, %v1577
  %v1793 = vmax.f32 %v1336, %v1582
  %v1794 = vmax.f32 %v1337, %v1587
  %v1795 = vmax.f32 %v1338, %v1592
  %v1796 = vmax.f32 %v1339, %v1597
  %v1797 = vmax.f32 %v1340, %v1602
  %v1798 = vmax.f32 %v1341, %v1607
  %v1799 = vmax.f32 %v1342, %v1612
  %v1800 = vmax.f32 %v1343, %v1617
  %v1801 = vmax.f32 %v1344, %v1622
  %v1802 = vmax.f32 %v1345, %v1627
  %v1803 = vmax.f32 %v1346, %v1632
  %v1804 = vmax.f32 %v1347, %v1637
  %v1805 = vmax.f32 %v1348, %v1642
  %v1806 = vmax.f32 %v1349, %v1647
  %v1807 = vmax.f32 %v1350, %v1652
  %v1808 = vmax.f32 %v1351, %v1657
  %v1809 = vmax.f32 %v1352, %v1662
  %v1810 = vmax.f32 %v1353, %v1667
  %v1811 = vmax.f32 %v1354, %v1672
  %v1812 = vmax.f32 %v1355, %v1677
  %v1813 = vmax.f32 %v1356, %v1682
  %v1814 = vmax.f32 %v1357, %v1687
  %v1815 = vmax.f32 %v1358, %v1692
  %v1816 = vmax.f32 %v1359, %v1697
  %v1817 = vmax.f32 %v1360, %v1702
  %v1818 = vmax.f32 %v1361, %v1707
  %v1819 = vmax.f32 %v1362, %v1712
  %v1820 = vmax.f32 %v1363, %v1717
  %v1821 = vmax.f32 %v1364, %v1722
  %v1822 = vmax.f32 %v1365, %v1727
  %v1823 = vmax.f32 %v1366, %v1732
  %v1824 = vmax.f32 %v1367, %v1737
  %v1825 = vmax.f32 %v1368, %v1742
  %v1826 = vmax.f32 %v1369, %v1747
  %v1827 = vmax.f32 %v1370, %v1752
  %v1828 = vmax.f32 %v1371, %v1757
  %v1829 = vmax.f32 %v1372, %v1762
  %v1830 = vmax.f32 %v1373, %v1767
  %v1831 = vmax.f32 %v1374, %v1772
  %v1832 = vmax.f32 %v1375, %v1777
  %v1833 = vmax.f32 %v1376, %v1782
  %v1834 = vld [vmem:[%s5] sm:$0x1]
  %v1836 = vlaneseq
  %v1837 = vshrl.u32 %v1836, 7
  %v1838 = vsub.s32 0, %v1837
  %v1839 = vrot.slane %v1834, %v1838
  %v1841 = vadd.f32 %v1785, %v1839
  %v1842 = vadd.f32 %v1786, %v1839
  %v1843 = vadd.f32 %v1787, %v1839
  %v1844 = vadd.f32 %v1788, %v1839
  %v1845 = vadd.f32 %v1789, %v1839
  %v1846 = vadd.f32 %v1790, %v1839
  %v1847 = vadd.f32 %v1791, %v1839
  %v1848 = vadd.f32 %v1792, %v1839
  %v1849 = vadd.f32 %v1793, %v1839
  %v1850 = vadd.f32 %v1794, %v1839
  %v1851 = vadd.f32 %v1795, %v1839
  %v1852 = vadd.f32 %v1796, %v1839
  %v1853 = vadd.f32 %v1797, %v1839
  %v1854 = vadd.f32 %v1798, %v1839
  %v1855 = vadd.f32 %v1799, %v1839
  %v1856 = vadd.f32 %v1800, %v1839
  %v1857 = vadd.f32 %v1801, %v1839
  %v1858 = vadd.f32 %v1802, %v1839
  %v1859 = vadd.f32 %v1803, %v1839
  %v1860 = vadd.f32 %v1804, %v1839
  %v1861 = vadd.f32 %v1805, %v1839
  %v1862 = vadd.f32 %v1806, %v1839
  %v1863 = vadd.f32 %v1807, %v1839
  %v1864 = vadd.f32 %v1808, %v1839
  %v1865 = vadd.f32 %v1809, %v1839
  %v1866 = vadd.f32 %v1810, %v1839
  %v1867 = vadd.f32 %v1811, %v1839
  %v1868 = vadd.f32 %v1812, %v1839
  %v1869 = vadd.f32 %v1813, %v1839
  %v1870 = vadd.f32 %v1814, %v1839
  %v1871 = vadd.f32 %v1815, %v1839
  %v1872 = vadd.f32 %v1816, %v1839
  %v1873 = vadd.f32 %v1817, %v1839
  %v1874 = vadd.f32 %v1818, %v1839
  %v1875 = vadd.f32 %v1819, %v1839
  %v1876 = vadd.f32 %v1820, %v1839
  %v1877 = vadd.f32 %v1821, %v1839
  %v1878 = vadd.f32 %v1822, %v1839
  %v1879 = vadd.f32 %v1823, %v1839
  %v1880 = vadd.f32 %v1824, %v1839
  %v1881 = vadd.f32 %v1825, %v1839
  %v1882 = vadd.f32 %v1826, %v1839
  %v1883 = vadd.f32 %v1827, %v1839
  %v1884 = vadd.f32 %v1828, %v1839
  %v1885 = vadd.f32 %v1829, %v1839
  %v1886 = vadd.f32 %v1830, %v1839
  %v1887 = vadd.f32 %v1831, %v1839
  %v1888 = vadd.f32 %v1832, %v1839
  %v1889 = vadd.f32 %v1833, %v1839
  %v1890 = vmax.f32 %v1841, 0.0
  %v1891 = vmax.f32 %v1842, 0.0
  %v1892 = vmax.f32 %v1843, 0.0
  %v1893 = vmax.f32 %v1844, 0.0
  %v1894 = vmax.f32 %v1845, 0.0
  %v1895 = vmax.f32 %v1846, 0.0
  %v1896 = vmax.f32 %v1847, 0.0
  %v1897 = vmax.f32 %v1848, 0.0
  %v1898 = vmax.f32 %v1849, 0.0
  %v1899 = vmax.f32 %v1850, 0.0
  %v1900 = vmax.f32 %v1851, 0.0
  %v1901 = vmax.f32 %v1852, 0.0
  %v1902 = vmax.f32 %v1853, 0.0
  %v1903 = vmax.f32 %v1854, 0.0
  %v1904 = vmax.f32 %v1855, 0.0
  %v1905 = vmax.f32 %v1856, 0.0
  %v1906 = vmax.f32 %v1857, 0.0
  %v1907 = vmax.f32 %v1858, 0.0
  %v1908 = vmax.f32 %v1859, 0.0
  %v1909 = vmax.f32 %v1860, 0.0
  %v1910 = vmax.f32 %v1861, 0.0
  %v1911 = vmax.f32 %v1862, 0.0
  %v1912 = vmax.f32 %v1863, 0.0
  %v1913 = vmax.f32 %v1864, 0.0
  %v1914 = vmax.f32 %v1865, 0.0
  %v1915 = vmax.f32 %v1866, 0.0
  %v1916 = vmax.f32 %v1867, 0.0
  %v1917 = vmax.f32 %v1868, 0.0
  %v1918 = vmax.f32 %v1869, 0.0
  %v1919 = vmax.f32 %v1870, 0.0
  %v1920 = vmax.f32 %v1871, 0.0
  %v1921 = vmax.f32 %v1872, 0.0
  %v1922 = vmax.f32 %v1873, 0.0
  %v1923 = vmax.f32 %v1874, 0.0
  %v1924 = vmax.f32 %v1875, 0.0
  %v1925 = vmax.f32 %v1876, 0.0
  %v1926 = vmax.f32 %v1877, 0.0
  %v1927 = vmax.f32 %v1878, 0.0
  %v1928 = vmax.f32 %v1879, 0.0
  %v1929 = vmax.f32 %v1880, 0.0
  %v1930 = vmax.f32 %v1881, 0.0
  %v1931 = vmax.f32 %v1882, 0.0
  %v1932 = vmax.f32 %v1883, 0.0
  %v1933 = vmax.f32 %v1884, 0.0
  %v1934 = vmax.f32 %v1885, 0.0
  %v1935 = vmax.f32 %v1886, 0.0
  %v1936 = vmax.f32 %v1887, 0.0
  %v1937 = vmax.f32 %v1888, 0.0
  %v1938 = vmax.f32 %v1889, 0.0
  %1939 = vst [vmem:[%s6] sm:$0xff] %v1890
  %1940 = vst [vmem:[%s6 + $0x8] sm:$0xff] %v1891
  %1941 = vst [vmem:[%s6 + $0x10] sm:$0xff] %v1892
  %1942 = vst [vmem:[%s6 + $0x18] sm:$0xff] %v1893
  %1943 = vst [vmem:[%s6 + $0x20] sm:$0xff] %v1894
  %1944 = vst [vmem:[%s6 + $0x28] sm:$0xff] %v1895
  %1945 = vst [vmem:[%s6 + $0x30] sm:$0xff] %v1896
  %1946 = vst [vmem:[%s6 + $0x38] sm:$0xff] %v1897
  %1947 = vst [vmem:[%s6 + $0x40] sm:$0xff] %v1898
  %1948 = vst [vmem:[%s6 + $0x48] sm:$0xff] %v1899
  %1949 = vst [vmem:[%s6 + $0x50] sm:$0xff] %v1900
  %1950 = vst [vmem:[%s6 + $0x58] sm:$0xff] %v1901
  %1951 = vst [vmem:[%s6 + $0x60] sm:$0xff] %v1902
  %1952 = vst [vmem:[%s6 + $0x68] sm:$0xff] %v1903
  %1953 = vst [vmem:[%s6 + $0x70] sm:$0xff] %v1904
  %1954 = vst [vmem:[%s6 + $0x78] sm:$0xff] %v1905
  %1955 = vst [vmem:[%s6 + $0x80] sm:$0xff] %v1906
  %1956 = vst [vmem:[%s6 + $0x88] sm:$0xff] %v1907
  %1957 = vst [vmem:[%s6 + $0x90] sm:$0xff] %v1908
  %1958 = vst [vmem:[%s6 + $0x98] sm:$0xff] %v1909
  %1959 = vst [vmem:[%s6 + $0xa0] sm:$0xff] %v1910
  %1960 = vst [vmem:[%s6 + $0xa8] sm:$0xff] %v1911
  %1961 = vst [vmem:[%s6 + $0xb0] sm:$0xff] %v1912
  %1962 = vst [vmem:[%s6 + $0xb8] sm:$0xff] %v1913
  %1963 = vst [vmem:[%s6 + $0xc0] sm:$0xff] %v1914
  %1964 = vst [vmem:[%s6 + $0xc8] sm:$0xff] %v1915
  %1965 = vst [vmem:[%s6 + $0xd0] sm:$0xff] %v1916
  %1966 = vst [vmem:[%s6 + $0xd8] sm:$0xff] %v1917
  %1967 = vst [vmem:[%s6 + $0xe0] sm:$0xff] %v1918
  %1968 = vst [vmem:[%s6 + $0xe8] sm:$0xff] %v1919
  %1969 = vst [vmem:[%s6 + $0xf0] sm:$0xff] %v1920
  %1970 = vst [vmem:[%s6 + $0xf8] sm:$0xff] %v1921
  %1971 = vst [vmem:[%s6 + $0x100] sm:$0xff] %v1922
  %1972 = vst [vmem:[%s6 + $0x108] sm:$0xff] %v1923
  %1973 = vst [vmem:[%s6 + $0x110] sm:$0xff] %v1924
  %1974 = vst [vmem:[%s6 + $0x118] sm:$0xff] %v1925
  %1975 = vst [vmem:[%s6 + $0x120] sm:$0xff] %v1926
  %1976 = vst [vmem:[%s6 + $0x128] sm:$0xff] %v1927
  %1977 = vst [vmem:[%s6 + $0x130] sm:$0xff] %v1928
  %1978 = vst [vmem:[%s6 + $0x138] sm:$0xff] %v1929
  %1979 = vst [vmem:[%s6 + $0x140] sm:$0xff] %v1930
  %1980 = vst [vmem:[%s6 + $0x148] sm:$0xff] %v1931
  %1981 = vst [vmem:[%s6 + $0x150] sm:$0xff] %v1932
  %1982 = vst [vmem:[%s6 + $0x158] sm:$0xff] %v1933
  %1983 = vst [vmem:[%s6 + $0x160] sm:$0xff] %v1934
  %1984 = vst [vmem:[%s6 + $0x168] sm:$0xff] %v1935
  %1985 = vst [vmem:[%s6 + $0x170] sm:$0xff] %v1936
  %1986 = vst [vmem:[%s6 + $0x178] sm:$0xff] %v1937
  %1987 = vst [vmem:[%s6 + $0x180] sm:$0xff] %v1938
  // Predicated region
  $region26: #{net_forward.5} parent=0 // pred_check
    _
  $region27: #{net_forward.5} parent=0 // pred_check_branch
    %1989 = sbr.rel (0) target = $region29
  $region28: #{net_forward.5} parent=0 // pred_region
    _
  $region29: #{net_forward.5} parent=0 // pred_fallthru
    _
  // Predicated region
  $region30: #{net_forward.5} parent=0 // pred_check
    _
  $region31: #{net_forward.5} parent=0 // pred_check_branch
    %1991 = sbr.rel (0) target = $region33
  $region32: #{net_forward.5} parent=0 // pred_region
    _
  $region33: #{net_forward.5} parent=0 // pred_fallthru
    _

// kernel: net_forward.6
$region0: #{net_forward.6}
  #allocation0 [shape = 'u32[]', space=smem, size = 0x4, offset = 0x4, fixed_abs, tag = 'smem constant byte address 0x4 - core index']
  #allocation1 [shape = 'u32[144,128]{1,0:T(1,128)}', space=vmem, size = 0x12000, scoped, tag = 'internal scratch']
  %s0 = inlined_call_operand.vmem [shape: f32[50,512], index: 0, kind: input, shape index: {}]
  %s1 = inlined_call_operand.vmem [shape: f32[50,512], index: 1, kind: input, shape index: {}]
  %s2 = inlined_call_operand.vmem [shape: f32[50,512], index: 2, kind: input, shape index: {}]
  %s3 = inlined_call_operand.vmem [shape: f32[50,512], index: 3, kind: input, shape index: {}]
  %s4 = inlined_call_operand.vmem [shape: f32[512,128], index: 4, kind: input, shape index: {}]
  %s5 = inlined_call_operand.vmem [shape: f32[1,128], index: 5, kind: input, shape index: {}]
  %s6 = inlined_call_operand.vmem [shape: f32[50,128], index: 6, kind: output, shape index: {}]
  %s7 = sld [smem:[#allocation0]]
  $region34: #{net_forward.6} parent=0
    _
  %s9 = ssub.s32 1, %s7
  %s10 = scalar_select 0, %s9, %s7
  // Predicated region
  $region2: #{net_forward.6} parent=0 // pred_check
    _
  $region3: #{net_forward.6} parent=0 // pred_check_branch
    %12 = sbr.rel (0) target = $region5
  $region4: #{net_forward.6} parent=0 // pred_region
    _
  $region5: #{net_forward.6} parent=0 // pred_fallthru
    _
  // Predicated region
  $region6: #{net_forward.6} parent=0 // pred_check
    _
  $region7: #{net_forward.6} parent=0 // pred_check_branch
    %14 = sbr.rel (0) target = $region9
  $region8: #{net_forward.6} parent=0 // pred_region
    _
  $region9: #{net_forward.6} parent=0 // pred_fallthru
    _
  // Predicated region
  $region10: #{net_forward.6} parent=0 // pred_check
    _
  $region11: #{net_forward.6} parent=0 // pred_check_branch
    %16 = sbr.rel (0) target = $region13
  $region12: #{net_forward.6} parent=0 // pred_region
    _
  $region13: #{net_forward.6} parent=0 // pred_fallthru
    _
  // Predicated region
  $region14: #{net_forward.6} parent=0 // pred_check
    _
  $region15: #{net_forward.6} parent=0 // pred_check_branch
    %18 = sbr.rel (0) target = $region17
  $region16: #{net_forward.6} parent=0 // pred_region
    _
  $region17: #{net_forward.6} parent=0 // pred_fallthru
    _
  // Predicated region
  $region18: #{net_forward.6} parent=0 // pred_check
    _
  $region19: #{net_forward.6} parent=0 // pred_check_branch
    %20 = sbr.rel (0) target = $region21
  $region20: #{net_forward.6} parent=0 // pred_region
    _
  $region21: #{net_forward.6} parent=0 // pred_fallthru
    _
  // Predicated region
  $region22: #{net_forward.6} parent=0 // pred_check
    _
  $region23: #{net_forward.6} parent=0 // pred_check_branch
    %22 = sbr.rel (0) target = $region25
  $region24: #{net_forward.6} parent=0 // pred_region
    _
  $region25: #{net_forward.6} parent=0 // pred_fallthru
    _
  %v23 = vld [vmem:[%s4] sm:$0xff]
  %v24 = vld [vmem:[%s4 + $0x8] sm:$0xff]
  %v25 = vld [vmem:[%s4 + $0x10] sm:$0xff]
  %v26 = vld [vmem:[%s4 + $0x18] sm:$0xff]
  %v27 = vld [vmem:[%s4 + $0x20] sm:$0xff]
  %v28 = vld [vmem:[%s4 + $0x28] sm:$0xff]
  %v29 = vld [vmem:[%s4 + $0x30] sm:$0xff]
  %v30 = vld [vmem:[%s4 + $0x38] sm:$0xff]
  %v31 = vld [vmem:[%s4 + $0x40] sm:$0xff]
  %v32 = vld [vmem:[%s4 + $0x48] sm:$0xff]
  %v33 = vld [vmem:[%s4 + $0x50] sm:$0xff]
  %v34 = vld [vmem:[%s4 + $0x58] sm:$0xff]
  %v35 = vld [vmem:[%s4 + $0x60] sm:$0xff]
  %v36 = vld [vmem:[%s4 + $0x68] sm:$0xff]
  %v37 = vld [vmem:[%s4 + $0x70] sm:$0xff]
  %v38 = vld [vmem:[%s4 + $0x78] sm:$0xff]
  %v39 = vld [vmem:[%s4 + $0x80] sm:$0xff]
  %v40 = vld [vmem:[%s4 + $0x88] sm:$0xff]
  %v41 = vld [vmem:[%s4 + $0x90] sm:$0xff]
  %v42 = vld [vmem:[%s4 + $0x98] sm:$0xff]
  %v43 = vld [vmem:[%s4 + $0xa0] sm:$0xff]
  %v44 = vld [vmem:[%s4 + $0xa8] sm:$0xff]
  %v45 = vld [vmem:[%s4 + $0xb0] sm:$0xff]
  %v46 = vld [vmem:[%s4 + $0xb8] sm:$0xff]
  %v47 = vld [vmem:[%s4 + $0xc0] sm:$0xff]
  %v48 = vld [vmem:[%s4 + $0xc8] sm:$0xff]
  %v49 = vld [vmem:[%s4 + $0xd0] sm:$0xff]
  %v50 = vld [vmem:[%s4 + $0xd8] sm:$0xff]
  %v51 = vld [vmem:[%s4 + $0xe0] sm:$0xff]
  %v52 = vld [vmem:[%s4 + $0xe8] sm:$0xff]
  %v53 = vld [vmem:[%s4 + $0xf0] sm:$0xff]
  %v54 = vld [vmem:[%s4 + $0xf8] sm:$0xff]
  %v55 = vld [vmem:[%s4 + $0x100] sm:$0xff]
  %v56 = vld [vmem:[%s4 + $0x108] sm:$0xff]
  %v57 = vld [vmem:[%s4 + $0x110] sm:$0xff]
  %v58 = vld [vmem:[%s4 + $0x118] sm:$0xff]
  %v59 = vld [vmem:[%s4 + $0x120] sm:$0xff]
  %v60 = vld [vmem:[%s4 + $0x128] sm:$0xff]
  %v61 = vld [vmem:[%s4 + $0x130] sm:$0xff]
  %v62 = vld [vmem:[%s4 + $0x138] sm:$0xff]
  %v63 = vld [vmem:[%s4 + $0x140] sm:$0xff]
  %v64 = vld [vmem:[%s4 + $0x148] sm:$0xff]
  %v65 = vld [vmem:[%s4 + $0x150] sm:$0xff]
  %v66 = vld [vmem:[%s4 + $0x158] sm:$0xff]
  %v67 = vld [vmem:[%s4 + $0x160] sm:$0xff]
  %v68 = vld [vmem:[%s4 + $0x168] sm:$0xff]
  %v69 = vld [vmem:[%s4 + $0x170] sm:$0xff]
  %v70 = vld [vmem:[%s4 + $0x178] sm:$0xff]
  %v71 = vld [vmem:[%s4 + $0x180] sm:$0xff]
  %v72 = vld [vmem:[%s4 + $0x188] sm:$0xff]
  %v73 = vld [vmem:[%s4 + $0x190] sm:$0xff]
  %v74 = vld [vmem:[%s4 + $0x198] sm:$0xff]
  %v75 = vld [vmem:[%s4 + $0x1a0] sm:$0xff]
  %v76 = vld [vmem:[%s4 + $0x1a8] sm:$0xff]
  %v77 = vld [vmem:[%s4 + $0x1b0] sm:$0xff]
  %v78 = vld [vmem:[%s4 + $0x1b8] sm:$0xff]
  %v79 = vld [vmem:[%s4 + $0x1c0] sm:$0xff]
  %v80 = vld [vmem:[%s4 + $0x1c8] sm:$0xff]
  %v81 = vld [vmem:[%s4 + $0x1d0] sm:$0xff]
  %v82 = vld [vmem:[%s4 + $0x1d8] sm:$0xff]
  %v83 = vld [vmem:[%s4 + $0x1e0] sm:$0xff]
  %v84 = vld [vmem:[%s4 + $0x1e8] sm:$0xff]
  %v85 = vld [vmem:[%s4 + $0x1f0] sm:$0xff]
  %v86 = vld [vmem:[%s4 + $0x1f8] sm:$0xff]
  %v87 = vld [vmem:[%s0] sm:$0xff]
  %v88 = vld [vmem:[%s0 + $0x8] sm:$0xff]
  %v89 = vld [vmem:[%s0 + $0x10] sm:$0xff]
  %v90 = vld [vmem:[%s0 + $0x18] sm:$0xff]
  %v91 = vld [vmem:[%s0 + $0x20] sm:$0xff]
  %v92 = vld [vmem:[%s0 + $0x28] sm:$0xff]
  %v93 = vld [vmem:[%s0 + $0x30] sm:$0xff]
  %v94 = vld [vmem:[%s0 + $0x38] sm:$0xff]
  %v95 = vld [vmem:[%s0 + $0x40] sm:$0xff]
  %v96 = vld [vmem:[%s0 + $0x48] sm:$0xff]
  %v97 = vld [vmem:[%s0 + $0x50] sm:$0xff]
  %v98 = vld [vmem:[%s0 + $0x58] sm:$0xff]
  %v99 = vld [vmem:[%s0 + $0x60] sm:$0xff]
  %v100 = vld [vmem:[%s0 + $0x68] sm:$0xff]
  %v101 = vld [vmem:[%s0 + $0x70] sm:$0xff]
  %v102 = vld [vmem:[%s0 + $0x78] sm:$0xff]
  %v103 = vld [vmem:[%s0 + $0x80] sm:$0xff]
  %v104 = vld [vmem:[%s0 + $0x88] sm:$0xff]
  %v105 = vld [vmem:[%s0 + $0x90] sm:$0xff]
  %v106 = vld [vmem:[%s0 + $0x98] sm:$0xff]
  %v107 = vld [vmem:[%s0 + $0xa0] sm:$0xff]
  %v108 = vld [vmem:[%s0 + $0xa8] sm:$0xff]
  %v109 = vld [vmem:[%s0 + $0xb0] sm:$0xff]
  %v110 = vld [vmem:[%s0 + $0xb8] sm:$0xff]
  %v111 = vld [vmem:[%s0 + $0xc0] sm:$0x3]
  %v112 = vld [vmem:[%s0 + $0xc8] sm:$0x3]
  %v113 = vld [vmem:[%s0 + $0xd0] sm:$0x3]
  %v114 = vld [vmem:[%s0 + $0xd8] sm:$0x3]
  %115 = vmatprep.subr.mxu0 0.0
  %116 = vmatpush1.msra.mxu0 %v23
  %117 = vmatprep.subr.mxu0 0.0
  %118 = vmatpush1.msra.mxu0 %v24
  %119 = vmatprep.subr.mxu0 0.0
  %120 = vmatpush1.msra.mxu0 %v25
  %121 = vmatprep.subr.mxu0 0.0
  %122 = vmatpush1.msra.mxu0 %v26
  %123 = vmatprep.subr.mxu0 0.0
  %124 = vmatpush1.msra.mxu0 %v27
  %125 = vmatprep.subr.mxu0 0.0
  %126 = vmatpush1.msra.mxu0 %v28
  %127 = vmatprep.subr.mxu0 0.0
  %128 = vmatpush1.msra.mxu0 %v29
  %129 = vmatprep.subr.mxu0 0.0
  %130 = vmatpush1.msra.mxu0 %v30
  %131 = vmatprep.subr.mxu0 0.0
  %132 = vmatpush1.msra.mxu0 %v31
  %133 = vmatprep.subr.mxu0 0.0
  %134 = vmatpush1.msra.mxu0 %v32
  %135 = vmatprep.subr.mxu0 0.0
  %136 = vmatpush1.msra.mxu0 %v33
  %137 = vmatprep.subr.mxu0 0.0
  %138 = vmatpush1.msra.mxu0 %v34
  %139 = vmatprep.subr.mxu0 0.0
  %140 = vmatpush1.msra.mxu0 %v35
  %141 = vmatprep.subr.mxu0 0.0
  %142 = vmatpush1.msra.mxu0 %v36
  %143 = vmatprep.subr.mxu0 0.0
  %144 = vmatpush1.msra.mxu0 %v37
  %145 = vmatprep.subr.mxu0 0.0
  %146 = vmatpush1.msra.mxu0 %v38
  %147 = vmatprep.subr.mxu0 0.0
  %148 = vmatpush1.msra.mxu0 %v39
  %149 = vmatprep.subr.mxu0 0.0
  %150 = vmatpush1.msra.mxu0 %v40
  %151 = vmatprep.subr.mxu0 0.0
  %152 = vmatpush1.msra.mxu0 %v41
  %153 = vmatprep.subr.mxu0 0.0
  %154 = vmatpush1.msra.mxu0 %v42
  %155 = vmatprep.subr.mxu0 0.0
  %156 = vmatpush1.msra.mxu0 %v43
  %157 = vmatprep.subr.mxu0 0.0
  %158 = vmatpush1.msra.mxu0 %v44
  %159 = vmatprep.subr.mxu0 0.0
  %160 = vmatpush1.msra.mxu0 %v45
  %161 = vmatprep.subr.mxu0 0.0
  %162 = vmatpush1.msra.mxu0 %v46
  %163 = vmatprep.subr.mxu0 0.0
  %164 = vmatpush1.msra.mxu0 %v47
  %165 = vmatprep.subr.mxu0 0.0
  %166 = vmatpush1.msra.mxu0 %v48
  %167 = vmatprep.subr.mxu0 0.0
  %168 = vmatpush1.msra.mxu0 %v49
  %169 = vmatprep.subr.mxu0 0.0
  %170 = vmatpush1.msra.mxu0 %v50
  %171 = vmatprep.subr.mxu0 0.0
  %172 = vmatpush1.msra.mxu0 %v51
  %173 = vmatprep.subr.mxu0 0.0
  %174 = vmatpush1.msra.mxu0 %v52
  %175 = vmatprep.subr.mxu0 0.0
  %176 = vmatpush1.msra.mxu0 %v53
  %177 = vmatprep.subr.mxu0 0.0
  %178 = vmatpush1.msra.mxu0 %v54
  %179 = vmatprep.mubr.f32.mxu0 %v88
  %180 = vmatmul.mubr.f32.gmra.mrb[0].mxu0 %v87
  %v181 = vpop.f32.mrb[0].mxu0
  %v182 = vadd.f32 0.0, %v181
  %v183 = vpop.f32.mrb[0].mxu0
  %184 = vmatprep.mubr.f32.mxu0 %v92
  %185 = vmatmul.mubr.f32.gmra.mrb[0].mxu0 %v91
  %v186 = vpop.f32.mrb[0].mxu0
  %v187 = vadd.f32 0.0, %v186
  %v188 = vpop.f32.mrb[0].mxu0
  %189 = vmatprep.mubr.f32.mxu0 %v96
  %190 = vmatmul.mubr.f32.gmra.mrb[0].mxu0 %v95
  %v191 = vpop.f32.mrb[0].mxu0
  %v192 = vadd.f32 0.0, %v191
  %v193 = vpop.f32.mrb[0].mxu0
  %194 = vmatprep.mubr.f32.mxu0 %v100
  %195 = vmatmul.mubr.f32.gmra.mrb[0].mxu0 %v99
  %v196 = vpop.f32.mrb[0].mxu0
  %v197 = vadd.f32 0.0, %v196
  %v198 = vpop.f32.mrb[0].mxu0
  %199 = vmatprep.mubr.f32.mxu0 %v104
  %200 = vmatmul.mubr.f32.gmra.mrb[0].mxu0 %v103
  %v201 = vpop.f32.mrb[0].mxu0
  %v202 = vadd.f32 0.0, %v201
  %v203 = vpop.f32.mrb[0].mxu0
  %204 = vmatprep.mubr.f32.mxu0 %v108
  %205 = vmatmul.mubr.f32.gmra.mrb[0].mxu0 %v107
  %v206 = vpop.f32.mrb[0].mxu0
  %v207 = vadd.f32 0.0, %v206
  %v208 = vpop.f32.mrb[0].mxu0
  %209 = vmatprep.mubr.f32.mxu0 %v112
  %210 = vmatmul.mubr.f32.gmra.mrb[0].mxu0 %v111
  %v211 = vpop.f32.mrb[0].mxu0
  %v212 = vadd.f32 0.0, %v211
  %v213 = vpop.f32.mrb[0].mxu0
  %214 = vdwg.mxu0
  %215 = vmatprep.subr.mxu0 0.0
  %216 = vmatpush1.msra.mxu0 %v55
  %217 = vmatprep.subr.mxu0 0.0
  %218 = vmatpush1.msra.mxu0 %v56
  %219 = vmatprep.subr.mxu0 0.0
  %220 = vmatpush1.msra.mxu0 %v57
  %221 = vmatprep.subr.mxu0 0.0
  %222 = vmatpush1.msra.mxu0 %v58
  %223 = vmatprep.subr.mxu0 0.0
  %224 = vmatpush1.msra.mxu0 %v59
  %225 = vmatprep.subr.mxu0 0.0
  %226 = vmatpush1.msra.mxu0 %v60
  %227 = vmatprep.subr.mxu0 0.0
  %228 = vmatpush1.msra.mxu0 %v61
  %229 = vmatprep.subr.mxu0 0.0
  %230 = vmatpush1.msra.mxu0 %v62
  %231 = vmatprep.subr.mxu0 0.0
  %232 = vmatpush1.msra.mxu0 %v63
  %233 = vmatprep.subr.mxu0 0.0
  %234 = vmatpush1.msra.mxu0 %v64
  %235 = vmatprep.subr.mxu0 0.0
  %236 = vmatpush1.msra.mxu0 %v65
  %237 = vmatprep.subr.mxu0 0.0
  %238 = vmatpush1.msra.mxu0 %v66
  %239 = vmatprep.subr.mxu0 0.0
  %240 = vmatpush1.msra.mxu0 %v67
  %241 = vmatprep.subr.mxu0 0.0
  %242 = vmatpush1.msra.mxu0 %v68
  %243 = vmatprep.subr.mxu0 0.0
  %244 = vmatpush1.msra.mxu0 %v69
  %245 = vmatprep.subr.mxu0 0.0
  %246 = vmatpush1.msra.mxu0 %v70
  %247 = vmatprep.subr.mxu0 0.0
  %248 = vmatpush1.msra.mxu0 %v71
  %249 = vmatprep.subr.mxu0 0.0
  %250 = vmatpush1.msra.mxu0 %v72
  %251 = vmatprep.subr.mxu0 0.0
  %252 = vmatpush1.msra.mxu0 %v73
  %253 = vmatprep.subr.mxu0 0.0
  %254 = vmatpush1.msra.mxu0 %v74
  %255 = vmatprep.subr.mxu0 0.0
  %256 = vmatpush1.msra.mxu0 %v75
  %257 = vmatprep.subr.mxu0 0.0
  %258 = vmatpush1.msra.mxu0 %v76
  %259 = vmatprep.subr.mxu0 0.0
  %260 = vmatpush1.msra.mxu0 %v77
  %261 = vmatprep.subr.mxu0 0.0
  %262 = vmatpush1.msra.mxu0 %v78
  %263 = vmatprep.subr.mxu0 0.0
  %264 = vmatpush1.msra.mxu0 %v79
  %265 = vmatprep.subr.mxu0 0.0
  %266 = vmatpush1.msra.mxu0 %v80
  %267 = vmatprep.subr.mxu0 0.0
  %268 = vmatpush1.msra.mxu0 %v81
  %269 = vmatprep.subr.mxu0 0.0
  %270 = vmatpush1.msra.mxu0 %v82
  %271 = vmatprep.subr.mxu0 0.0
  %272 = vmatpush1.msra.mxu0 %v83
  %273 = vmatprep.subr.mxu0 0.0
  %274 = vmatpush1.msra.mxu0 %v84
  %275 = vmatprep.subr.mxu0 0.0
  %276 = vmatpush1.msra.mxu0 %v85
  %277 = vmatprep.subr.mxu0 0.0
  %278 = vmatpush1.msra.mxu0 %v86
  %279 = vmatprep.mubr.f32.mxu0 %v90
  %280 = vmatmul.mubr.f32.gmra.mrb[0].mxu0 %v89
  %v281 = vpop.f32.mrb[0].mxu0
  %v282 = vadd.f32 %v182, %v281
  %v283 = vpop.f32.mrb[0].mxu0
  %284 = vmatprep.mubr.f32.mxu0 %v94
  %285 = vmatmul.mubr.f32.gmra.mrb[0].mxu0 %v93
  %v286 = vpop.f32.mrb[0].mxu0
  %v287 = vadd.f32 %v187, %v286
  %v288 = vpop.f32.mrb[0].mxu0
  %289 = vmatprep.mubr.f32.mxu0 %v98
  %290 = vmatmul.mubr.f32.gmra.mrb[0].mxu0 %v97
  %v291 = vpop.f32.mrb[0].mxu0
  %v292 = vadd.f32 %v192, %v291
  %v293 = vpop.f32.mrb[0].mxu0
  %294 = vmatprep.mubr.f32.mxu0 %v102
  %295 = vmatmul.mubr.f32.gmra.mrb[0].mxu0 %v101
  %v296 = vpop.f32.mrb[0].mxu0
  %v297 = vadd.f32 %v197, %v296
  %v298 = vpop.f32.mrb[0].mxu0
  %299 = vmatprep.mubr.f32.mxu0 %v106
  %300 = vmatmul.mubr.f32.gmra.mrb[0].mxu0 %v105
  %v301 = vpop.f32.mrb[0].mxu0
  %v302 = vadd.f32 %v202, %v301
  %v303 = vpop.f32.mrb[0].mxu0
  %304 = vmatprep.mubr.f32.mxu0 %v110
  %305 = vmatmul.mubr.f32.gmra.mrb[0].mxu0 %v109
  %v306 = vpop.f32.mrb[0].mxu0
  %v307 = vadd.f32 %v207, %v306
  %v308 = vpop.f32.mrb[0].mxu0
  %309 = vmatprep.mubr.f32.mxu0 %v114
  %310 = vmatmul.mubr.f32.gmra.mrb[0].mxu0 %v113
  %v311 = vpop.f32.mrb[0].mxu0
  %v312 = vadd.f32 %v212, %v311
  %v313 = vpop.f32.mrb[0].mxu0
  %314 = vdwg.mxu0
  %v315 = vld [vmem:[%s1] sm:$0xff]
  %v316 = vld [vmem:[%s1 + $0x8] sm:$0xff]
  %v317 = vld [vmem:[%s1 + $0x10] sm:$0xff]
  %v318 = vld [vmem:[%s1 + $0x18] sm:$0xff]
  %v319 = vld [vmem:[%s1 + $0x20] sm:$0xff]
  %v320 = vld [vmem:[%s1 + $0x28] sm:$0xff]
  %v321 = vld [vmem:[%s1 + $0x30] sm:$0xff]
  %v322 = vld [vmem:[%s1 + $0x38] sm:$0xff]
  %v323 = vld [vmem:[%s1 + $0x40] sm:$0xff]
  %v324 = vld [vmem:[%s1 + $0x48] sm:$0xff]
  %v325 = vld [vmem:[%s1 + $0x50] sm:$0xff]
  %v326 = vld [vmem:[%s1 + $0x58] sm:$0xff]
  %v327 = vld [vmem:[%s1 + $0x60] sm:$0xff]
  %v328 = vld [vmem:[%s1 + $0x68] sm:$0xff]
  %v329 = vld [vmem:[%s1 + $0x70] sm:$0xff]
  %v330 = vld [vmem:[%s1 + $0x78] sm:$0xff]
  %v331 = vld [vmem:[%s1 + $0x80] sm:$0xff]
  %v332 = vld [vmem:[%s1 + $0x88] sm:$0xff]
  %v333 = vld [vmem:[%s1 + $0x90] sm:$0xff]
  %v334 = vld [vmem:[%s1 + $0x98] sm:$0xff]
  %v335 = vld [vmem:[%s1 + $0xa0] sm:$0xff]
  %v336 = vld [vmem:[%s1 + $0xa8] sm:$0xff]
  %v337 = vld [vmem:[%s1 + $0xb0] sm:$0xff]
  %v338 = vld [vmem:[%s1 + $0xb8] sm:$0xff]
  %v339 = vld [vmem:[%s1 + $0xc0] sm:$0x3]
  %v340 = vld [vmem:[%s1 + $0xc8] sm:$0x3]
  %v341 = vld [vmem:[%s1 + $0xd0] sm:$0x3]
  %v342 = vld [vmem:[%s1 + $0xd8] sm:$0x3]
  %343 = vmatprep.subr.mxu0 0.0
  %344 = vmatpush1.msra.mxu0 %v23
  %345 = vmatprep.subr.mxu0 0.0
  %346 = vmatpush1.msra.mxu0 %v24
  %347 = vmatprep.subr.mxu0 0.0
  %348 = vmatpush1.msra.mxu0 %v25
  %349 = vmatprep.subr.mxu0 0.0
  %350 = vmatpush1.msra.mxu0 %v26
  %351 = vmatprep.subr.mxu0 0.0
  %352 = vmatpush1.msra.mxu0 %v27
  %353 = vmatprep.subr.mxu0 0.0
  %354 = vmatpush1.msra.mxu0 %v28
  %355 = vmatprep.subr.mxu0 0.0
  %356 = vmatpush1.msra.mxu0 %v29
  %357 = vmatprep.subr.mxu0 0.0
  %358 = vmatpush1.msra.mxu0 %v30
  %359 = vmatprep.subr.mxu0 0.0
  %360 = vmatpush1.msra.mxu0 %v31
  %361 = vmatprep.subr.mxu0 0.0
  %362 = vmatpush1.msra.mxu0 %v32
  %363 = vmatprep.subr.mxu0 0.0
  %364 = vmatpush1.msra.mxu0 %v33
  %365 = vmatprep.subr.mxu0 0.0
  %366 = vmatpush1.msra.mxu0 %v34
  %367 = vmatprep.subr.mxu0 0.0
  %368 = vmatpush1.msra.mxu0 %v35
  %369 = vmatprep.subr.mxu0 0.0
  %370 = vmatpush1.msra.mxu0 %v36
  %371 = vmatprep.subr.mxu0 0.0
  %372 = vmatpush1.msra.mxu0 %v37
  %373 = vmatprep.subr.mxu0 0.0
  %374 = vmatpush1.msra.mxu0 %v38
  %375 = vmatprep.subr.mxu0 0.0
  %376 = vmatpush1.msra.mxu0 %v39
  %377 = vmatprep.subr.mxu0 0.0
  %378 = vmatpush1.msra.mxu0 %v40
  %379 = vmatprep.subr.mxu0 0.0
  %380 = vmatpush1.msra.mxu0 %v41
  %381 = vmatprep.subr.mxu0 0.0
  %382 = vmatpush1.msra.mxu0 %v42
  %383 = vmatprep.subr.mxu0 0.0
  %384 = vmatpush1.msra.mxu0 %v43
  %385 = vmatprep.subr.mxu0 0.0
  %386 = vmatpush1.msra.mxu0 %v44
  %387 = vmatprep.subr.mxu0 0.0
  %388 = vmatpush1.msra.mxu0 %v45
  %389 = vmatprep.subr.mxu0 0.0
  %390 = vmatpush1.msra.mxu0 %v46
  %391 = vmatprep.subr.mxu0 0.0
  %392 = vmatpush1.msra.mxu0 %v47
  %393 = vmatprep.subr.mxu0 0.0
  %394 = vmatpush1.msra.mxu0 %v48
  %395 = vmatprep.subr.mxu0 0.0
  %396 = vmatpush1.msra.mxu0 %v49
  %397 = vmatprep.subr.mxu0 0.0
  %398 = vmatpush1.msra.mxu0 %v50
  %399 = vmatprep.subr.mxu0 0.0
  %400 = vmatpush1.msra.mxu0 %v51
  %401 = vmatprep.subr.mxu0 0.0
  %402 = vmatpush1.msra.mxu0 %v52
  %403 = vmatprep.subr.mxu0 0.0
  %404 = vmatpush1.msra.mxu0 %v53
  %405 = vmatprep.subr.mxu0 0.0
  %406 = vmatpush1.msra.mxu0 %v54
  %407 = vmatprep.mubr.f32.mxu0 %v316
  %408 = vmatmul.mubr.f32.gmra.mrb[0].mxu0 %v315
  %v409 = vpop.f32.mrb[0].mxu0
  %v410 = vadd.f32 0.0, %v409
  %v411 = vpop.f32.mrb[0].mxu0
  %412 = vmatprep.mubr.f32.mxu0 %v320
  %413 = vmatmul.mubr.f32.gmra.mrb[0].mxu0 %v319
  %v414 = vpop.f32.mrb[0].mxu0
  %v415 = vadd.f32 0.0, %v414
  %v416 = vpop.f32.mrb[0].mxu0
  %417 = vmatprep.mubr.f32.mxu0 %v324
  %418 = vmatmul.mubr.f32.gmra.mrb[0].mxu0 %v323
  %v419 = vpop.f32.mrb[0].mxu0
  %v420 = vadd.f32 0.0, %v419
  %v421 = vpop.f32.mrb[0].mxu0
  %422 = vmatprep.mubr.f32.mxu0 %v328
  %423 = vmatmul.mubr.f32.gmra.mrb[0].mxu0 %v327
  %v424 = vpop.f32.mrb[0].mxu0
  %v425 = vadd.f32 0.0, %v424
  %v426 = vpop.f32.mrb[0].mxu0
  %427 = vmatprep.mubr.f32.mxu0 %v332
  %428 = vmatmul.mubr.f32.gmra.mrb[0].mxu0 %v331
  %v429 = vpop.f32.mrb[0].mxu0
  %v430 = vadd.f32 0.0, %v429
  %v431 = vpop.f32.mrb[0].mxu0
  %432 = vmatprep.mubr.f32.mxu0 %v336
  %433 = vmatmul.mubr.f32.gmra.mrb[0].mxu0 %v335
  %v434 = vpop.f32.mrb[0].mxu0
  %v435 = vadd.f32 0.0, %v434
  %v436 = vpop.f32.mrb[0].mxu0
  %437 = vmatprep.mubr.f32.mxu0 %v340
  %438 = vmatmul.mubr.f32.gmra.mrb[0].mxu0 %v339
  %v439 = vpop.f32.mrb[0].mxu0
  %v440 = vadd.f32 0.0, %v439
  %v441 = vpop.f32.mrb[0].mxu0
  %442 = vdwg.mxu0
  %443 = vmatprep.subr.mxu0 0.0
  %444 = vmatpush1.msra.mxu0 %v55
  %445 = vmatprep.subr.mxu0 0.0
  %446 = vmatpush1.msra.mxu0 %v56
  %447 = vmatprep.subr.mxu0 0.0
  %448 = vmatpush1.msra.mxu0 %v57
  %449 = vmatprep.subr.mxu0 0.0
  %450 = vmatpush1.msra.mxu0 %v58
  %451 = vmatprep.subr.mxu0 0.0
  %452 = vmatpush1.msra.mxu0 %v59
  %453 = vmatprep.subr.mxu0 0.0
  %454 = vmatpush1.msra.mxu0 %v60
  %455 = vmatprep.subr.mxu0 0.0
  %456 = vmatpush1.msra.mxu0 %v61
  %457 = vmatprep.subr.mxu0 0.0
  %458 = vmatpush1.msra.mxu0 %v62
  %459 = vmatprep.subr.mxu0 0.0
  %460 = vmatpush1.msra.mxu0 %v63
  %461 = vmatprep.subr.mxu0 0.0
  %462 = vmatpush1.msra.mxu0 %v64
  %463 = vmatprep.subr.mxu0 0.0
  %464 = vmatpush1.msra.mxu0 %v65
  %465 = vmatprep.subr.mxu0 0.0
  %466 = vmatpush1.msra.mxu0 %v66
  %467 = vmatprep.subr.mxu0 0.0
  %468 = vmatpush1.msra.mxu0 %v67
  %469 = vmatprep.subr.mxu0 0.0
  %470 = vmatpush1.msra.mxu0 %v68
  %471 = vmatprep.subr.mxu0 0.0
  %472 = vmatpush1.msra.mxu0 %v69
  %473 = vmatprep.subr.mxu0 0.0
  %474 = vmatpush1.msra.mxu0 %v70
  %475 = vmatprep.subr.mxu0 0.0
  %476 = vmatpush1.msra.mxu0 %v71
  %477 = vmatprep.subr.mxu0 0.0
  %478 = vmatpush1.msra.mxu0 %v72
  %479 = vmatprep.subr.mxu0 0.0
  %480 = vmatpush1.msra.mxu0 %v73
  %481 = vmatprep.subr.mxu0 0.0
  %482 = vmatpush1.msra.mxu0 %v74
  %483 = vmatprep.subr.mxu0 0.0
  %484 = vmatpush1.msra.mxu0 %v75
  %485 = vmatprep.subr.mxu0 0.0
  %486 = vmatpush1.msra.mxu0 %v76
  %487 = vmatprep.subr.mxu0 0.0
  %488 = vmatpush1.msra.mxu0 %v77
  %489 = vmatprep.subr.mxu0 0.0
  %490 = vmatpush1.msra.mxu0 %v78
  %491 = vmatprep.subr.mxu0 0.0
  %492 = vmatpush1.msra.mxu0 %v79
  %493 = vmatprep.subr.mxu0 0.0
  %494 = vmatpush1.msra.mxu0 %v80
  %495 = vmatprep.subr.mxu0 0.0
  %496 = vmatpush1.msra.mxu0 %v81
  %497 = vmatprep.subr.mxu0 0.0
  %498 = vmatpush1.msra.mxu0 %v82
  %499 = vmatprep.subr.mxu0 0.0
  %500 = vmatpush1.msra.mxu0 %v83
  %501 = vmatprep.subr.mxu0 0.0
  %502 = vmatpush1.msra.mxu0 %v84
  %503 = vmatprep.subr.mxu0 0.0
  %504 = vmatpush1.msra.mxu0 %v85
  %505 = vmatprep.subr.mxu0 0.0
  %506 = vmatpush1.msra.mxu0 %v86
  %507 = vmatprep.mubr.f32.mxu0 %v318
  %508 = vmatmul.mubr.f32.gmra.mrb[0].mxu0 %v317
  %v509 = vpop.f32.mrb[0].mxu0
  %v510 = vadd.f32 %v410, %v509
  %v511 = vpop.f32.mrb[0].mxu0
  %512 = vmatprep.mubr.f32.mxu0 %v322
  %513 = vmatmul.mubr.f32.gmra.mrb[0].mxu0 %v321
  %v514 = vpop.f32.mrb[0].mxu0
  %v515 = vadd.f32 %v415, %v514
  %v516 = vpop.f32.mrb[0].mxu0
  %517 = vmatprep.mubr.f32.mxu0 %v326
  %518 = vmatmul.mubr.f32.gmra.mrb[0].mxu0 %v325
  %v519 = vpop.f32.mrb[0].mxu0
  %v520 = vadd.f32 %v420, %v519
  %v521 = vpop.f32.mrb[0].mxu0
  %522 = vmatprep.mubr.f32.mxu0 %v330
  %523 = vmatmul.mubr.f32.gmra.mrb[0].mxu0 %v329
  %v524 = vpop.f32.mrb[0].mxu0
  %v525 = vadd.f32 %v425, %v524
  %v526 = vpop.f32.mrb[0].mxu0
  %527 = vmatprep.mubr.f32.mxu0 %v334
  %528 = vmatmul.mubr.f32.gmra.mrb[0].mxu0 %v333
  %v529 = vpop.f32.mrb[0].mxu0
  %v530 = vadd.f32 %v430, %v529
  %v531 = vpop.f32.mrb[0].mxu0
  %532 = vmatprep.mubr.f32.mxu0 %v338
  %533 = vmatmul.mubr.f32.gmra.mrb[0].mxu0 %v337
  %v534 = vpop.f32.mrb[0].mxu0
  %v535 = vadd.f32 %v435, %v534
  %v536 = vpop.f32.mrb[0].mxu0
  %537 = vmatprep.mubr.f32.mxu0 %v342
  %538 = vmatmul.mubr.f32.gmra.mrb[0].mxu0 %v341
  %v539 = vpop.f32.mrb[0].mxu0
  %v540 = vadd.f32 %v440, %v539
  %v541 = vpop.f32.mrb[0].mxu0
  %542 = vdwg.mxu0
  %v543 = vmax.f32 %v282, %v510
  %v544 = vmax.f32 %v287, %v515
  %v545 = vmax.f32 %v292, %v520
  %v546 = vmax.f32 %v297, %v525
  %v547 = vmax.f32 %v302, %v530
  %v548 = vmax.f32 %v307, %v535
  %v549 = vmax.f32 %v312, %v540
  %v550 = vld [vmem:[%s2] sm:$0xff]
  %v551 = vld [vmem:[%s2 + $0x8] sm:$0xff]
  %v552 = vld [vmem:[%s2 + $0x10] sm:$0xff]
  %v553 = vld [vmem:[%s2 + $0x18] sm:$0xff]
  %v554 = vld [vmem:[%s2 + $0x20] sm:$0xff]
  %v555 = vld [vmem:[%s2 + $0x28] sm:$0xff]
  %v556 = vld [vmem:[%s2 + $0x30] sm:$0xff]
  %v557 = vld [vmem:[%s2 + $0x38] sm:$0xff]
  %v558 = vld [vmem:[%s2 + $0x40] sm:$0xff]
  %v559 = vld [vmem:[%s2 + $0x48] sm:$0xff]
  %v560 = vld [vmem:[%s2 + $0x50] sm:$0xff]
  %v561 = vld [vmem:[%s2 + $0x58] sm:$0xff]
  %v562 = vld [vmem:[%s2 + $0x60] sm:$0xff]
  %v563 = vld [vmem:[%s2 + $0x68] sm:$0xff]
  %v564 = vld [vmem:[%s2 + $0x70] sm:$0xff]
  %v565 = vld [vmem:[%s2 + $0x78] sm:$0xff]
  %v566 = vld [vmem:[%s2 + $0x80] sm:$0xff]
  %v567 = vld [vmem:[%s2 + $0x88] sm:$0xff]
  %v568 = vld [vmem:[%s2 + $0x90] sm:$0xff]
  %v569 = vld [vmem:[%s2 + $0x98] sm:$0xff]
  %v570 = vld [vmem:[%s2 + $0xa0] sm:$0xff]
  %v571 = vld [vmem:[%s2 + $0xa8] sm:$0xff]
  %v572 = vld [vmem:[%s2 + $0xb0] sm:$0xff]
  %v573 = vld [vmem:[%s2 + $0xb8] sm:$0xff]
  %v574 = vld [vmem:[%s2 + $0xc0] sm:$0x3]
  %v575 = vld [vmem:[%s2 + $0xc8] sm:$0x3]
  %v576 = vld [vmem:[%s2 + $0xd0] sm:$0x3]
  %v577 = vld [vmem:[%s2 + $0xd8] sm:$0x3]
  %578 = vmatprep.subr.mxu0 0.0
  %579 = vmatpush1.msra.mxu0 %v23
  %580 = vmatprep.subr.mxu0 0.0
  %581 = vmatpush1.msra.mxu0 %v24
  %582 = vmatprep.subr.mxu0 0.0
  %583 = vmatpush1.msra.mxu0 %v25
  %584 = vmatprep.subr.mxu0 0.0
  %585 = vmatpush1.msra.mxu0 %v26
  %586 = vmatprep.subr.mxu0 0.0
  %587 = vmatpush1.msra.mxu0 %v27
  %588 = vmatprep.subr.mxu0 0.0
  %589 = vmatpush1.msra.mxu0 %v28
  %590 = vmatprep.subr.mxu0 0.0
  %591 = vmatpush1.msra.mxu0 %v29
  %592 = vmatprep.subr.mxu0 0.0
  %593 = vmatpush1.msra.mxu0 %v30
  %594 = vmatprep.subr.mxu0 0.0
  %595 = vmatpush1.msra.mxu0 %v31
  %596 = vmatprep.subr.mxu0 0.0
  %597 = vmatpush1.msra.mxu0 %v32
  %598 = vmatprep.subr.mxu0 0.0
  %599 = vmatpush1.msra.mxu0 %v33
  %600 = vmatprep.subr.mxu0 0.0
  %601 = vmatpush1.msra.mxu0 %v34
  %602 = vmatprep.subr.mxu0 0.0
  %603 = vmatpush1.msra.mxu0 %v35
  %604 = vmatprep.subr.mxu0 0.0
  %605 = vmatpush1.msra.mxu0 %v36
  %606 = vmatprep.subr.mxu0 0.0
  %607 = vmatpush1.msra.mxu0 %v37
  %608 = vmatprep.subr.mxu0 0.0
  %609 = vmatpush1.msra.mxu0 %v38
  %610 = vmatprep.subr.mxu0 0.0
  %611 = vmatpush1.msra.mxu0 %v39
  %612 = vmatprep.subr.mxu0 0.0
  %613 = vmatpush1.msra.mxu0 %v40
  %614 = vmatprep.subr.mxu0 0.0
  %615 = vmatpush1.msra.mxu0 %v41
  %616 = vmatprep.subr.mxu0 0.0
  %617 = vmatpush1.msra.mxu0 %v42
  %618 = vmatprep.subr.mxu0 0.0
  %619 = vmatpush1.msra.mxu0 %v43
  %620 = vmatprep.subr.mxu0 0.0
  %621 = vmatpush1.msra.mxu0 %v44
  %622 = vmatprep.subr.mxu0 0.0
  %623 = vmatpush1.msra.mxu0 %v45
  %624 = vmatprep.subr.mxu0 0.0
  %625 = vmatpush1.msra.mxu0 %v46
  %626 = vmatprep.subr.mxu0 0.0
  %627 = vmatpush1.msra.mxu0 %v47
  %628 = vmatprep.subr.mxu0 0.0
  %629 = vmatpush1.msra.mxu0 %v48
  %630 = vmatprep.subr.mxu0 0.0
  %631 = vmatpush1.msra.mxu0 %v49
  %632 = vmatprep.subr.mxu0 0.0
  %633 = vmatpush1.msra.mxu0 %v50
  %634 = vmatprep.subr.mxu0 0.0
  %635 = vmatpush1.msra.mxu0 %v51
  %636 = vmatprep.subr.mxu0 0.0
  %637 = vmatpush1.msra.mxu0 %v52
  %638 = vmatprep.subr.mxu0 0.0
  %639 = vmatpush1.msra.mxu0 %v53
  %640 = vmatprep.subr.mxu0 0.0
  %641 = vmatpush1.msra.mxu0 %v54
  %642 = vmatprep.mubr.f32.mxu0 %v551
  %643 = vmatmul.mubr.f32.gmra.mrb[0].mxu0 %v550
  %v644 = vpop.f32.mrb[0].mxu0
  %v645 = vadd.f32 0.0, %v644
  %v646 = vpop.f32.mrb[0].mxu0
  %647 = vmatprep.mubr.f32.mxu0 %v555
  %648 = vmatmul.mubr.f32.gmra.mrb[0].mxu0 %v554
  %v649 = vpop.f32.mrb[0].mxu0
  %v650 = vadd.f32 0.0, %v649
  %v651 = vpop.f32.mrb[0].mxu0
  %652 = vmatprep.mubr.f32.mxu0 %v559
  %653 = vmatmul.mubr.f32.gmra.mrb[0].mxu0 %v558
  %v654 = vpop.f32.mrb[0].mxu0
  %v655 = vadd.f32 0.0, %v654
  %v656 = vpop.f32.mrb[0].mxu0
  %657 = vmatprep.mubr.f32.mxu0 %v563
  %658 = vmatmul.mubr.f32.gmra.mrb[0].mxu0 %v562
  %v659 = vpop.f32.mrb[0].mxu0
  %v660 = vadd.f32 0.0, %v659
  %v661 = vpop.f32.mrb[0].mxu0
  %662 = vmatprep.mubr.f32.mxu0 %v567
  %663 = vmatmul.mubr.f32.gmra.mrb[0].mxu0 %v566
  %v664 = vpop.f32.mrb[0].mxu0
  %v665 = vadd.f32 0.0, %v664
  %v666 = vpop.f32.mrb[0].mxu0
  %667 = vmatprep.mubr.f32.mxu0 %v571
  %668 = vmatmul.mubr.f32.gmra.mrb[0].mxu0 %v570
  %v669 = vpop.f32.mrb[0].mxu0
  %v670 = vadd.f32 0.0, %v669
  %v671 = vpop.f32.mrb[0].mxu0
  %672 = vmatprep.mubr.f32.mxu0 %v575
  %673 = vmatmul.mubr.f32.gmra.mrb[0].mxu0 %v574
  %v674 = vpop.f32.mrb[0].mxu0
  %v675 = vadd.f32 0.0, %v674
  %v676 = vpop.f32.mrb[0].mxu0
  %677 = vdwg.mxu0
  %678 = vmatprep.subr.mxu0 0.0
  %679 = vmatpush1.msra.mxu0 %v55
  %680 = vmatprep.subr.mxu0 0.0
  %681 = vmatpush1.msra.mxu0 %v56
  %682 = vmatprep.subr.mxu0 0.0
  %683 = vmatpush1.msra.mxu0 %v57
  %684 = vmatprep.subr.mxu0 0.0
  %685 = vmatpush1.msra.mxu0 %v58
  %686 = vmatprep.subr.mxu0 0.0
  %687 = vmatpush1.msra.mxu0 %v59
  %688 = vmatprep.subr.mxu0 0.0
  %689 = vmatpush1.msra.mxu0 %v60
  %690 = vmatprep.subr.mxu0 0.0
  %691 = vmatpush1.msra.mxu0 %v61
  %692 = vmatprep.subr.mxu0 0.0
  %693 = vmatpush1.msra.mxu0 %v62
  %694 = vmatprep.subr.mxu0 0.0
  %695 = vmatpush1.msra.mxu0 %v63
  %696 = vmatprep.subr.mxu0 0.0
  %697 = vmatpush1.msra.mxu0 %v64
  %698 = vmatprep.subr.mxu0 0.0
  %699 = vmatpush1.msra.mxu0 %v65
  %700 = vmatprep.subr.mxu0 0.0
  %701 = vmatpush1.msra.mxu0 %v66
  %702 = vmatprep.subr.mxu0 0.0
  %703 = vmatpush1.msra.mxu0 %v67
  %704 = vmatprep.subr.mxu0 0.0
  %705 = vmatpush1.msra.mxu0 %v68
  %706 = vmatprep.subr.mxu0 0.0
  %707 = vmatpush1.msra.mxu0 %v69
  %708 = vmatprep.subr.mxu0 0.0
  %709 = vmatpush1.msra.mxu0 %v70
  %710 = vmatprep.subr.mxu0 0.0
  %711 = vmatpush1.msra.mxu0 %v71
  %712 = vmatprep.subr.mxu0 0.0
  %713 = vmatpush1.msra.mxu0 %v72
  %714 = vmatprep.subr.mxu0 0.0
  %715 = vmatpush1.msra.mxu0 %v73
  %716 = vmatprep.subr.mxu0 0.0
  %717 = vmatpush1.msra.mxu0 %v74
  %718 = vmatprep.subr.mxu0 0.0
  %719 = vmatpush1.msra.mxu0 %v75
  %720 = vmatprep.subr.mxu0 0.0
  %721 = vmatpush1.msra.mxu0 %v76
  %722 = vmatprep.subr.mxu0 0.0
  %723 = vmatpush1.msra.mxu0 %v77
  %724 = vmatprep.subr.mxu0 0.0
  %725 = vmatpush1.msra.mxu0 %v78
  %726 = vmatprep.subr.mxu0 0.0
  %727 = vmatpush1.msra.mxu0 %v79
  %728 = vmatprep.subr.mxu0 0.0
  %729 = vmatpush1.msra.mxu0 %v80
  %730 = vmatprep.subr.mxu0 0.0
  %731 = vmatpush1.msra.mxu0 %v81
  %732 = vmatprep.subr.mxu0 0.0
  %733 = vmatpush1.msra.mxu0 %v82
  %734 = vmatprep.subr.mxu0 0.0
  %735 = vmatpush1.msra.mxu0 %v83
  %736 = vmatprep.subr.mxu0 0.0
  %737 = vmatpush1.msra.mxu0 %v84
  %738 = vmatprep.subr.mxu0 0.0
  %739 = vmatpush1.msra.mxu0 %v85
  %740 = vmatprep.subr.mxu0 0.0
  %741 = vmatpush1.msra.mxu0 %v86
  %742 = vmatprep.mubr.f32.mxu0 %v553
  %743 = vmatmul.mubr.f32.gmra.mrb[0].mxu0 %v552
  %v744 = vpop.f32.mrb[0].mxu0
  %v745 = vadd.f32 %v645, %v744
  %v746 = vpop.f32.mrb[0].mxu0
  %747 = vmatprep.mubr.f32.mxu0 %v557
  %748 = vmatmul.mubr.f32.gmra.mrb[0].mxu0 %v556
  %v749 = vpop.f32.mrb[0].mxu0
  %v750 = vadd.f32 %v650, %v749
  %v751 = vpop.f32.mrb[0].mxu0
  %752 = vmatprep.mubr.f32.mxu0 %v561
  %753 = vmatmul.mubr.f32.gmra.mrb[0].mxu0 %v560
  %v754 = vpop.f32.mrb[0].mxu0
  %v755 = vadd.f32 %v655, %v754
  %v756 = vpop.f32.mrb[0].mxu0
  %757 = vmatprep.mubr.f32.mxu0 %v565
  %758 = vmatmul.mubr.f32.gmra.mrb[0].mxu0 %v564
  %v759 = vpop.f32.mrb[0].mxu0
  %v760 = vadd.f32 %v660, %v759
  %v761 = vpop.f32.mrb[0].mxu0
  %762 = vmatprep.mubr.f32.mxu0 %v569
  %763 = vmatmul.mubr.f32.gmra.mrb[0].mxu0 %v568
  %v764 = vpop.f32.mrb[0].mxu0
  %v765 = vadd.f32 %v665, %v764
  %v766 = vpop.f32.mrb[0].mxu0
  %767 = vmatprep.mubr.f32.mxu0 %v573
  %768 = vmatmul.mubr.f32.gmra.mrb[0].mxu0 %v572
  %v769 = vpop.f32.mrb[0].mxu0
  %v770 = vadd.f32 %v670, %v769
  %v771 = vpop.f32.mrb[0].mxu0
  %772 = vmatprep.mubr.f32.mxu0 %v577
  %773 = vmatmul.mubr.f32.gmra.mrb[0].mxu0 %v576
  %v774 = vpop.f32.mrb[0].mxu0
  %v775 = vadd.f32 %v675, %v774
  %v776 = vpop.f32.mrb[0].mxu0
  %777 = vdwg.mxu0
  %v778 = vmax.f32 %v543, %v745
  %v779 = vmax.f32 %v544, %v750
  %v780 = vmax.f32 %v545, %v755
  %v781 = vmax.f32 %v546, %v760
  %v782 = vmax.f32 %v547, %v765
  %v783 = vmax.f32 %v548, %v770
  %v784 = vmax.f32 %v549, %v775
  %v785 = vld [vmem:[%s3] sm:$0xff]
  %v786 = vld [vmem:[%s3 + $0x8] sm:$0xff]
  %v787 = vld [vmem:[%s3 + $0x10] sm:$0xff]
  %v788 = vld [vmem:[%s3 + $0x18] sm:$0xff]
  %v789 = vld [vmem:[%s3 + $0x20] sm:$0xff]
  %v790 = vld [vmem:[%s3 + $0x28] sm:$0xff]
  %v791 = vld [vmem:[%s3 + $0x30] sm:$0xff]
  %v792 = vld [vmem:[%s3 + $0x38] sm:$0xff]
  %v793 = vld [vmem:[%s3 + $0x40] sm:$0xff]
  %v794 = vld [vmem:[%s3 + $0x48] sm:$0xff]
  %v795 = vld [vmem:[%s3 + $0x50] sm:$0xff]
  %v796 = vld [vmem:[%s3 + $0x58] sm:$0xff]
  %v797 = vld [vmem:[%s3 + $0x60] sm:$0xff]
  %v798 = vld [vmem:[%s3 + $0x68] sm:$0xff]
  %v799 = vld [vmem:[%s3 + $0x70] sm:$0xff]
  %v800 = vld [vmem:[%s3 + $0x78] sm:$0xff]
  %v801 = vld [vmem:[%s3 + $0x80] sm:$0xff]
  %v802 = vld [vmem:[%s3 + $0x88] sm:$0xff]
  %v803 = vld [vmem:[%s3 + $0x90] sm:$0xff]
  %v804 = vld [vmem:[%s3 + $0x98] sm:$0xff]
  %v805 = vld [vmem:[%s3 + $0xa0] sm:$0xff]
  %v806 = vld [vmem:[%s3 + $0xa8] sm:$0xff]
  %v807 = vld [vmem:[%s3 + $0xb0] sm:$0xff]
  %v808 = vld [vmem:[%s3 + $0xb8] sm:$0xff]
  %v809 = vld [vmem:[%s3 + $0xc0] sm:$0x3]
  %v810 = vld [vmem:[%s3 + $0xc8] sm:$0x3]
  %v811 = vld [vmem:[%s3 + $0xd0] sm:$0x3]
  %v812 = vld [vmem:[%s3 + $0xd8] sm:$0x3]
  %813 = vmatprep.subr.mxu0 0.0
  %814 = vmatpush1.msra.mxu0 %v23
  %815 = vmatprep.subr.mxu0 0.0
  %816 = vmatpush1.msra.mxu0 %v24
  %817 = vmatprep.subr.mxu0 0.0
  %818 = vmatpush1.msra.mxu0 %v25
  %819 = vmatprep.subr.mxu0 0.0
  %820 = vmatpush1.msra.mxu0 %v26
  %821 = vmatprep.subr.mxu0 0.0
  %822 = vmatpush1.msra.mxu0 %v27
  %823 = vmatprep.subr.mxu0 0.0
  %824 = vmatpush1.msra.mxu0 %v28
  %825 = vmatprep.subr.mxu0 0.0
  %826 = vmatpush1.msra.mxu0 %v29
  %827 = vmatprep.subr.mxu0 0.0
  %828 = vmatpush1.msra.mxu0 %v30
  %829 = vmatprep.subr.mxu0 0.0
  %830 = vmatpush1.msra.mxu0 %v31
  %831 = vmatprep.subr.mxu0 0.0
  %832 = vmatpush1.msra.mxu0 %v32
  %833 = vmatprep.subr.mxu0 0.0
  %834 = vmatpush1.msra.mxu0 %v33
  %835 = vmatprep.subr.mxu0 0.0
  %836 = vmatpush1.msra.mxu0 %v34
  %837 = vmatprep.subr.mxu0 0.0
  %838 = vmatpush1.msra.mxu0 %v35
  %839 = vmatprep.subr.mxu0 0.0
  %840 = vmatpush1.msra.mxu0 %v36
  %841 = vmatprep.subr.mxu0 0.0
  %842 = vmatpush1.msra.mxu0 %v37
  %843 = vmatprep.subr.mxu0 0.0
  %844 = vmatpush1.msra.mxu0 %v38
  %845 = vmatprep.subr.mxu0 0.0
  %846 = vmatpush1.msra.mxu0 %v39
  %847 = vmatprep.subr.mxu0 0.0
  %848 = vmatpush1.msra.mxu0 %v40
  %849 = vmatprep.subr.mxu0 0.0
  %850 = vmatpush1.msra.mxu0 %v41
  %851 = vmatprep.subr.mxu0 0.0
  %852 = vmatpush1.msra.mxu0 %v42
  %853 = vmatprep.subr.mxu0 0.0
  %854 = vmatpush1.msra.mxu0 %v43
  %855 = vmatprep.subr.mxu0 0.0
  %856 = vmatpush1.msra.mxu0 %v44
  %857 = vmatprep.subr.mxu0 0.0
  %858 = vmatpush1.msra.mxu0 %v45
  %859 = vmatprep.subr.mxu0 0.0
  %860 = vmatpush1.msra.mxu0 %v46
  %861 = vmatprep.subr.mxu0 0.0
  %862 = vmatpush1.msra.mxu0 %v47
  %863 = vmatprep.subr.mxu0 0.0
  %864 = vmatpush1.msra.mxu0 %v48
  %865 = vmatprep.subr.mxu0 0.0
  %866 = vmatpush1.msra.mxu0 %v49
  %867 = vmatprep.subr.mxu0 0.0
  %868 = vmatpush1.msra.mxu0 %v50
  %869 = vmatprep.subr.mxu0 0.0
  %870 = vmatpush1.msra.mxu0 %v51
  %871 = vmatprep.subr.mxu0 0.0
  %872 = vmatpush1.msra.mxu0 %v52
  %873 = vmatprep.subr.mxu0 0.0
  %874 = vmatpush1.msra.mxu0 %v53
  %875 = vmatprep.subr.mxu0 0.0
  %876 = vmatpush1.msra.mxu0 %v54
  %877 = vmatprep.mubr.f32.mxu0 %v786
  %878 = vmatmul.mubr.f32.gmra.mrb[0].mxu0 %v785
  %v879 = vpop.f32.mrb[0].mxu0
  %v880 = vadd.f32 0.0, %v879
  %v881 = vpop.f32.mrb[0].mxu0
  %882 = vmatprep.mubr.f32.mxu0 %v790
  %883 = vmatmul.mubr.f32.gmra.mrb[0].mxu0 %v789
  %v884 = vpop.f32.mrb[0].mxu0
  %v885 = vadd.f32 0.0, %v884
  %v886 = vpop.f32.mrb[0].mxu0
  %887 = vmatprep.mubr.f32.mxu0 %v794
  %888 = vmatmul.mubr.f32.gmra.mrb[0].mxu0 %v793
  %v889 = vpop.f32.mrb[0].mxu0
  %v890 = vadd.f32 0.0, %v889
  %v891 = vpop.f32.mrb[0].mxu0
  %892 = vmatprep.mubr.f32.mxu0 %v798
  %893 = vmatmul.mubr.f32.gmra.mrb[0].mxu0 %v797
  %v894 = vpop.f32.mrb[0].mxu0
  %v895 = vadd.f32 0.0, %v894
  %v896 = vpop.f32.mrb[0].mxu0
  %897 = vmatprep.mubr.f32.mxu0 %v802
  %898 = vmatmul.mubr.f32.gmra.mrb[0].mxu0 %v801
  %v899 = vpop.f32.mrb[0].mxu0
  %v900 = vadd.f32 0.0, %v899
  %v901 = vpop.f32.mrb[0].mxu0
  %902 = vmatprep.mubr.f32.mxu0 %v806
  %903 = vmatmul.mubr.f32.gmra.mrb[0].mxu0 %v805
  %v904 = vpop.f32.mrb[0].mxu0
  %v905 = vadd.f32 0.0, %v904
  %v906 = vpop.f32.mrb[0].mxu0
  %907 = vmatprep.mubr.f32.mxu0 %v810
  %908 = vmatmul.mubr.f32.gmra.mrb[0].mxu0 %v809
  %v909 = vpop.f32.mrb[0].mxu0
  %v910 = vadd.f32 0.0, %v909
  %v911 = vpop.f32.mrb[0].mxu0
  %912 = vdwg.mxu0
  %913 = vmatprep.subr.mxu0 0.0
  %914 = vmatpush1.msra.mxu0 %v55
  %915 = vmatprep.subr.mxu0 0.0
  %916 = vmatpush1.msra.mxu0 %v56
  %917 = vmatprep.subr.mxu0 0.0
  %918 = vmatpush1.msra.mxu0 %v57
  %919 = vmatprep.subr.mxu0 0.0
  %920 = vmatpush1.msra.mxu0 %v58
  %921 = vmatprep.subr.mxu0 0.0
  %922 = vmatpush1.msra.mxu0 %v59
  %923 = vmatprep.subr.mxu0 0.0
  %924 = vmatpush1.msra.mxu0 %v60
  %925 = vmatprep.subr.mxu0 0.0
  %926 = vmatpush1.msra.mxu0 %v61
  %927 = vmatprep.subr.mxu0 0.0
  %928 = vmatpush1.msra.mxu0 %v62
  %929 = vmatprep.subr.mxu0 0.0
  %930 = vmatpush1.msra.mxu0 %v63
  %931 = vmatprep.subr.mxu0 0.0
  %932 = vmatpush1.msra.mxu0 %v64
  %933 = vmatprep.subr.mxu0 0.0
  %934 = vmatpush1.msra.mxu0 %v65
  %935 = vmatprep.subr.mxu0 0.0
  %936 = vmatpush1.msra.mxu0 %v66
  %937 = vmatprep.subr.mxu0 0.0
  %938 = vmatpush1.msra.mxu0 %v67
  %939 = vmatprep.subr.mxu0 0.0
  %940 = vmatpush1.msra.mxu0 %v68
  %941 = vmatprep.subr.mxu0 0.0
  %942 = vmatpush1.msra.mxu0 %v69
  %943 = vmatprep.subr.mxu0 0.0
  %944 = vmatpush1.msra.mxu0 %v70
  %945 = vmatprep.subr.mxu0 0.0
  %946 = vmatpush1.msra.mxu0 %v71
  %947 = vmatprep.subr.mxu0 0.0
  %948 = vmatpush1.msra.mxu0 %v72
  %949 = vmatprep.subr.mxu0 0.0
  %950 = vmatpush1.msra.mxu0 %v73
  %951 = vmatprep.subr.mxu0 0.0
  %952 = vmatpush1.msra.mxu0 %v74
  %953 = vmatprep.subr.mxu0 0.0
  %954 = vmatpush1.msra.mxu0 %v75
  %955 = vmatprep.subr.mxu0 0.0
  %956 = vmatpush1.msra.mxu0 %v76
  %957 = vmatprep.subr.mxu0 0.0
  %958 = vmatpush1.msra.mxu0 %v77
  %959 = vmatprep.subr.mxu0 0.0
  %960 = vmatpush1.msra.mxu0 %v78
  %961 = vmatprep.subr.mxu0 0.0
  %962 = vmatpush1.msra.mxu0 %v79
  %963 = vmatprep.subr.mxu0 0.0
  %964 = vmatpush1.msra.mxu0 %v80
  %965 = vmatprep.subr.mxu0 0.0
  %966 = vmatpush1.msra.mxu0 %v81
  %967 = vmatprep.subr.mxu0 0.0
  %968 = vmatpush1.msra.mxu0 %v82
  %969 = vmatprep.subr.mxu0 0.0
  %970 = vmatpush1.msra.mxu0 %v83
  %971 = vmatprep.subr.mxu0 0.0
  %972 = vmatpush1.msra.mxu0 %v84
  %973 = vmatprep.subr.mxu0 0.0
  %974 = vmatpush1.msra.mxu0 %v85
  %975 = vmatprep.subr.mxu0 0.0
  %976 = vmatpush1.msra.mxu0 %v86
  %977 = vmatprep.mubr.f32.mxu0 %v788
  %978 = vmatmul.mubr.f32.gmra.mrb[0].mxu0 %v787
  %v979 = vpop.f32.mrb[0].mxu0
  %v980 = vadd.f32 %v880, %v979
  %v981 = vpop.f32.mrb[0].mxu0
  %982 = vmatprep.mubr.f32.mxu0 %v792
  %983 = vmatmul.mubr.f32.gmra.mrb[0].mxu0 %v791
  %v984 = vpop.f32.mrb[0].mxu0
  %v985 = vadd.f32 %v885, %v984
  %v986 = vpop.f32.mrb[0].mxu0
  %987 = vmatprep.mubr.f32.mxu0 %v796
  %988 = vmatmul.mubr.f32.gmra.mrb[0].mxu0 %v795
  %v989 = vpop.f32.mrb[0].mxu0
  %v990 = vadd.f32 %v890, %v989
  %v991 = vpop.f32.mrb[0].mxu0
  %992 = vmatprep.mubr.f32.mxu0 %v800
  %993 = vmatmul.mubr.f32.gmra.mrb[0].mxu0 %v799
  %v994 = vpop.f32.mrb[0].mxu0
  %v995 = vadd.f32 %v895, %v994
  %v996 = vpop.f32.mrb[0].mxu0
  %997 = vmatprep.mubr.f32.mxu0 %v804
  %998 = vmatmul.mubr.f32.gmra.mrb[0].mxu0 %v803
  %v999 = vpop.f32.mrb[0].mxu0
  %v1000 = vadd.f32 %v900, %v999
  %v1001 = vpop.f32.mrb[0].mxu0
  %1002 = vmatprep.mubr.f32.mxu0 %v808
  %1003 = vmatmul.mubr.f32.gmra.mrb[0].mxu0 %v807
  %v1004 = vpop.f32.mrb[0].mxu0
  %v1005 = vadd.f32 %v905, %v1004
  %v1006 = vpop.f32.mrb[0].mxu0
  %1007 = vmatprep.mubr.f32.mxu0 %v812
  %1008 = vmatmul.mubr.f32.gmra.mrb[0].mxu0 %v811
  %v1009 = vpop.f32.mrb[0].mxu0
  %v1010 = vadd.f32 %v910, %v1009
  %v1011 = vpop.f32.mrb[0].mxu0
  %1012 = vdwg.mxu0
  %v1013 = vmax.f32 %v778, %v980
  %v1014 = vmax.f32 %v779, %v985
  %v1015 = vmax.f32 %v780, %v990
  %v1016 = vmax.f32 %v781, %v995
  %v1017 = vmax.f32 %v782, %v1000
  %v1018 = vmax.f32 %v783, %v1005
  %v1019 = vmax.f32 %v784, %v1010
  %v1020 = vld [vmem:[%s5] sm:$0x1]
  %v1022 = vlaneseq
  %v1023 = vshrl.u32 %v1022, 7
  %v1024 = vsub.s32 0, %v1023
  %v1025 = vrot.slane %v1020, %v1024
  %v1027 = vadd.f32 %v1013, %v1025
  %v1028 = vadd.f32 %v1014, %v1025
  %v1029 = vadd.f32 %v1015, %v1025
  %v1030 = vadd.f32 %v1016, %v1025
  %v1031 = vadd.f32 %v1017, %v1025
  %v1032 = vadd.f32 %v1018, %v1025
  %v1033 = vadd.f32 %v1019, %v1025
  %v1034 = vmax.f32 %v1027, 0.0
  %v1035 = vmax.f32 %v1028, 0.0
  %v1036 = vmax.f32 %v1029, 0.0
  %v1037 = vmax.f32 %v1030, 0.0
  %v1038 = vmax.f32 %v1031, 0.0
  %v1039 = vmax.f32 %v1032, 0.0
  %v1040 = vmax.f32 %v1033, 0.0
  %1041 = vst [vmem:[%s6] sm:$0xff] %v1034
  %1042 = vst [vmem:[%s6 + $0x8] sm:$0xff] %v1035
  %1043 = vst [vmem:[%s6 + $0x10] sm:$0xff] %v1036
  %1044 = vst [vmem:[%s6 + $0x18] sm:$0xff] %v1037
  %1045 = vst [vmem:[%s6 + $0x20] sm:$0xff] %v1038
  %1046 = vst [vmem:[%s6 + $0x28] sm:$0xff] %v1039
  %1047 = vst [vmem:[%s6 + $0x30] sm:$0x3] %v1040
  // Predicated region
  $region26: #{net_forward.6} parent=0 // pred_check
    _
  $region27: #{net_forward.6} parent=0 // pred_check_branch
    %1049 = sbr.rel (0) target = $region29
  $region28: #{net_forward.6} parent=0 // pred_region
    _
  $region29: #{net_forward.6} parent=0 // pred_fallthru
    _
  // Predicated region
  $region30: #{net_forward.6} parent=0 // pred_check
    _
  $region31: #{net_forward.6} parent=0 // pred_check_branch
    %1051 = sbr.rel (0) target = $region33
  $region32: #{net_forward.6} parent=0 // pred_region
    _
  $region33: #{net_forward.6} parent=0 // pred_fallthru
    _

// kernel: net_forward.7
$region0: #{net_forward.7}
  #allocation0 [shape = 'u32[]', space=smem, size = 0x4, offset = 0x4, fixed_abs, tag = 'smem constant byte address 0x4 - core index']
  #allocation1 [shape = 'u32[144,128]{1,0:T(1,128)}', space=vmem, size = 0x12000, scoped, tag = 'internal scratch']
  %s0 = inlined_call_operand.vmem [shape: f32[2,512], index: 0, kind: input, shape index: {}]
  %s1 = inlined_call_operand.vmem [shape: f32[512,128], index: 1, kind: input, shape index: {}]
  %s2 = inlined_call_operand.vmem [shape: f32[1,128], index: 2, kind: input, shape index: {}]
  %s3 = inlined_call_operand.vmem [shape: f32[128,128], index: 3, kind: input, shape index: {}]
  %s4 = inlined_call_operand.vmem [shape: f32[1,128], index: 4, kind: input, shape index: {}]
  %s5 = inlined_call_operand.vmem [shape: f32[128,128], index: 5, kind: input, shape index: {}]
  %s6 = inlined_call_operand.vmem [shape: f32[1,128], index: 6, kind: input, shape index: {}]
  %s7 = inlined_call_operand.hbm [shape: f32[2,128], index: 7, kind: output, shape index: {}]
  %s8 = sld [smem:[#allocation0]]
  $region38: #{net_forward.7} parent=0
    _
  %s10 = ssub.s32 1, %s8
  %s11 = scalar_select 0, %s10, %s8
  $region1: #{net_forward.7} parent=0
    #allocation2 [shape = 'u8[1024]{0}', space=vmem, size = 0x400, scoped, tag = 'output window, operand 0, single buffered']
    #allocation3 [shape = 's32[1]{0}', space=sflag, size = 0x4, scoped, tag = 'scoped memory for net_forward.7']
    %12 = vsyncpa [#allocation3], 0
    // Predicated region
    $region2: #{net_forward.7} parent=1 // pred_check
      _
    $region3: #{net_forward.7} parent=1 // pred_check_branch
      %14 = sbr.rel (0) target = $region5
    $region4: #{net_forward.7} parent=1 // pred_region
      _
    $region5: #{net_forward.7} parent=1 // pred_fallthru
      _
    // Predicated region
    $region6: #{net_forward.7} parent=1 // pred_check
      _
    $region7: #{net_forward.7} parent=1 // pred_check_branch
      %16 = sbr.rel (0) target = $region9
    $region8: #{net_forward.7} parent=1 // pred_region
      _
    $region9: #{net_forward.7} parent=1 // pred_fallthru
      _
    // Predicated region
    $region10: #{net_forward.7} parent=1 // pred_check
      _
    $region11: #{net_forward.7} parent=1 // pred_check_branch
      %18 = sbr.rel (0) target = $region13
    $region12: #{net_forward.7} parent=1 // pred_region
      _
    $region13: #{net_forward.7} parent=1 // pred_fallthru
      _
    // Predicated region
    $region14: #{net_forward.7} parent=1 // pred_check
      _
    $region15: #{net_forward.7} parent=1 // pred_check_branch
      %20 = sbr.rel (0) target = $region17
    $region16: #{net_forward.7} parent=1 // pred_region
      _
    $region17: #{net_forward.7} parent=1 // pred_fallthru
      _
    // Predicated region
    $region18: #{net_forward.7} parent=1 // pred_check
      _
    $region19: #{net_forward.7} parent=1 // pred_check_branch
      %22 = sbr.rel (0) target = $region21
    $region20: #{net_forward.7} parent=1 // pred_region
      _
    $region21: #{net_forward.7} parent=1 // pred_fallthru
      _
    // Predicated region
    $region22: #{net_forward.7} parent=1 // pred_check
      _
    $region23: #{net_forward.7} parent=1 // pred_check_branch
      %24 = sbr.rel (0) target = $region25
    $region24: #{net_forward.7} parent=1 // pred_region
      _
    $region25: #{net_forward.7} parent=1 // pred_fallthru
      _
    // Predicated region
    $region26: #{net_forward.7} parent=1 // pred_check
      _
    $region27: #{net_forward.7} parent=1 // pred_check_branch
      %26 = sbr.rel (0) target = $region29
    $region28: #{net_forward.7} parent=1 // pred_region
      _
    $region29: #{net_forward.7} parent=1 // pred_fallthru
      _
    %v27 = vld [vmem:[%s0] sm:$0xff]
    %v28 = vld [vmem:[%s1] sm:$0xff]
    %v29 = vld [vmem:[%s1 + $0x8] sm:$0xff]
    %v30 = vld [vmem:[%s1 + $0x10] sm:$0xff]
    %v31 = vld [vmem:[%s1 + $0x18] sm:$0xff]
    %v32 = vld [vmem:[%s1 + $0x20] sm:$0xff]
    %v33 = vld [vmem:[%s1 + $0x28] sm:$0xff]
    %v34 = vld [vmem:[%s1 + $0x30] sm:$0xff]
    %v35 = vld [vmem:[%s1 + $0x38] sm:$0xff]
    %v36 = vld [vmem:[%s1 + $0x40] sm:$0xff]
    %v37 = vld [vmem:[%s1 + $0x48] sm:$0xff]
    %v38 = vld [vmem:[%s1 + $0x50] sm:$0xff]
    %v39 = vld [vmem:[%s1 + $0x58] sm:$0xff]
    %v40 = vld [vmem:[%s1 + $0x60] sm:$0xff]
    %v41 = vld [vmem:[%s1 + $0x68] sm:$0xff]
    %v42 = vld [vmem:[%s1 + $0x70] sm:$0xff]
    %v43 = vld [vmem:[%s1 + $0x78] sm:$0xff]
    %v44 = vld [vmem:[%s1 + $0x80] sm:$0xff]
    %v45 = vld [vmem:[%s1 + $0x88] sm:$0xff]
    %v46 = vld [vmem:[%s1 + $0x90] sm:$0xff]
    %v47 = vld [vmem:[%s1 + $0x98] sm:$0xff]
    %v48 = vld [vmem:[%s1 + $0xa0] sm:$0xff]
    %v49 = vld [vmem:[%s1 + $0xa8] sm:$0xff]
    %v50 = vld [vmem:[%s1 + $0xb0] sm:$0xff]
    %v51 = vld [vmem:[%s1 + $0xb8] sm:$0xff]
    %v52 = vld [vmem:[%s1 + $0xc0] sm:$0xff]
    %v53 = vld [vmem:[%s1 + $0xc8] sm:$0xff]
    %v54 = vld [vmem:[%s1 + $0xd0] sm:$0xff]
    %v55 = vld [vmem:[%s1 + $0xd8] sm:$0xff]
    %v56 = vld [vmem:[%s1 + $0xe0] sm:$0xff]
    %v57 = vld [vmem:[%s1 + $0xe8] sm:$0xff]
    %v58 = vld [vmem:[%s1 + $0xf0] sm:$0xff]
    %v59 = vld [vmem:[%s1 + $0xf8] sm:$0xff]
    %v60 = vld [vmem:[%s1 + $0x100] sm:$0xff]
    %v61 = vld [vmem:[%s1 + $0x108] sm:$0xff]
    %v62 = vld [vmem:[%s1 + $0x110] sm:$0xff]
    %v63 = vld [vmem:[%s1 + $0x118] sm:$0xff]
    %v64 = vld [vmem:[%s1 + $0x120] sm:$0xff]
    %v65 = vld [vmem:[%s1 + $0x128] sm:$0xff]
    %v66 = vld [vmem:[%s1 + $0x130] sm:$0xff]
    %v67 = vld [vmem:[%s1 + $0x138] sm:$0xff]
    %v68 = vld [vmem:[%s1 + $0x140] sm:$0xff]
    %v69 = vld [vmem:[%s1 + $0x148] sm:$0xff]
    %v70 = vld [vmem:[%s1 + $0x150] sm:$0xff]
    %v71 = vld [vmem:[%s1 + $0x158] sm:$0xff]
    %v72 = vld [vmem:[%s1 + $0x160] sm:$0xff]
    %v73 = vld [vmem:[%s1 + $0x168] sm:$0xff]
    %v74 = vld [vmem:[%s1 + $0x170] sm:$0xff]
    %v75 = vld [vmem:[%s1 + $0x178] sm:$0xff]
    %v76 = vld [vmem:[%s1 + $0x180] sm:$0xff]
    %v77 = vld [vmem:[%s1 + $0x188] sm:$0xff]
    %v78 = vld [vmem:[%s1 + $0x190] sm:$0xff]
    %v79 = vld [vmem:[%s1 + $0x198] sm:$0xff]
    %v80 = vld [vmem:[%s1 + $0x1a0] sm:$0xff]
    %v81 = vld [vmem:[%s1 + $0x1a8] sm:$0xff]
    %v82 = vld [vmem:[%s1 + $0x1b0] sm:$0xff]
    %v83 = vld [vmem:[%s1 + $0x1b8] sm:$0xff]
    %v84 = vld [vmem:[%s1 + $0x1c0] sm:$0xff]
    %v85 = vld [vmem:[%s1 + $0x1c8] sm:$0xff]
    %v86 = vld [vmem:[%s1 + $0x1d0] sm:$0xff]
    %v87 = vld [vmem:[%s1 + $0x1d8] sm:$0xff]
    %v88 = vld [vmem:[%s1 + $0x1e0] sm:$0xff]
    %v89 = vld [vmem:[%s1 + $0x1e8] sm:$0xff]
    %v90 = vld [vmem:[%s1 + $0x1f0] sm:$0xff]
    %v91 = vld [vmem:[%s1 + $0x1f8] sm:$0xff]
    %v92 = vld [vmem:[%s2] sm:$0x1]
    %v94 = vlaneseq
    %v95 = vshrl.u32 %v94, 7
    %v96 = vsub.s32 0, %v95
    %v97 = vrot.slane %v92, %v96
    %v100 = vcombine.high %v27, %v27
    %v102 = vunpack.c.l.s4 1983009808
    %v103 = vunpack.c.0.s8 %v102
    %v104 = vlaneseq
    %v105 = vshrl.u32 %v104, 7
    %v106 = vsub.s32 %v103, %v105
    %v107 = vrot.slane %v27, %v106
    %v109 = vunpack.c.l.s4 1983009808
    %v110 = vunpack.c.0.s8 %v109
    %v111 = vlaneseq
    %v112 = vshrl.u32 %v111, 7
    %v113 = vsub.s32 %v110, %v112
    %v114 = vrot.slane %v100, %v113
    %v115 = vcombine.high %v107, %v107
    %v116 = vcombine.high %v114, %v114
    %121 = vmatprep.subr.mxu0 0.0
    %122 = vmatpush1.msra.mxu0 %v28
    %123 = vmatprep.subr.mxu0 0.0
    %124 = vmatpush1.msra.mxu0 %v29
    %125 = vmatprep.subr.mxu0 0.0
    %126 = vmatpush1.msra.mxu0 %v30
    %127 = vmatprep.subr.mxu0 0.0
    %128 = vmatpush1.msra.mxu0 %v31
    %129 = vmatprep.subr.mxu0 0.0
    %130 = vmatpush1.msra.mxu0 %v32
    %131 = vmatprep.subr.mxu0 0.0
    %132 = vmatpush1.msra.mxu0 %v33
    %133 = vmatprep.subr.mxu0 0.0
    %134 = vmatpush1.msra.mxu0 %v34
    %135 = vmatprep.subr.mxu0 0.0
    %136 = vmatpush1.msra.mxu0 %v35
    %137 = vmatprep.subr.mxu0 0.0
    %138 = vmatpush1.msra.mxu0 %v36
    %139 = vmatprep.subr.mxu0 0.0
    %140 = vmatpush1.msra.mxu0 %v37
    %141 = vmatprep.subr.mxu0 0.0
    %142 = vmatpush1.msra.mxu0 %v38
    %143 = vmatprep.subr.mxu0 0.0
    %144 = vmatpush1.msra.mxu0 %v39
    %145 = vmatprep.subr.mxu0 0.0
    %146 = vmatpush1.msra.mxu0 %v40
    %147 = vmatprep.subr.mxu0 0.0
    %148 = vmatpush1.msra.mxu0 %v41
    %149 = vmatprep.subr.mxu0 0.0
    %150 = vmatpush1.msra.mxu0 %v42
    %151 = vmatprep.subr.mxu0 0.0
    %152 = vmatpush1.msra.mxu0 %v43
    %153 = vmatprep.subr.mxu0 0.0
    %154 = vmatpush1.msra.mxu0 %v44
    %155 = vmatprep.subr.mxu0 0.0
    %156 = vmatpush1.msra.mxu0 %v45
    %157 = vmatprep.subr.mxu0 0.0
    %158 = vmatpush1.msra.mxu0 %v46
    %159 = vmatprep.subr.mxu0 0.0
    %160 = vmatpush1.msra.mxu0 %v47
    %161 = vmatprep.subr.mxu0 0.0
    %162 = vmatpush1.msra.mxu0 %v48
    %163 = vmatprep.subr.mxu0 0.0
    %164 = vmatpush1.msra.mxu0 %v49
    %165 = vmatprep.subr.mxu0 0.0
    %166 = vmatpush1.msra.mxu0 %v50
    %167 = vmatprep.subr.mxu0 0.0
    %168 = vmatpush1.msra.mxu0 %v51
    %169 = vmatprep.subr.mxu0 0.0
    %170 = vmatpush1.msra.mxu0 %v52
    %171 = vmatprep.subr.mxu0 0.0
    %172 = vmatpush1.msra.mxu0 %v53
    %173 = vmatprep.subr.mxu0 0.0
    %174 = vmatpush1.msra.mxu0 %v54
    %175 = vmatprep.subr.mxu0 0.0
    %176 = vmatpush1.msra.mxu0 %v55
    %177 = vmatprep.subr.mxu0 0.0
    %178 = vmatpush1.msra.mxu0 %v56
    %179 = vmatprep.subr.mxu0 0.0
    %180 = vmatpush1.msra.mxu0 %v57
    %181 = vmatprep.subr.mxu0 0.0
    %182 = vmatpush1.msra.mxu0 %v58
    %183 = vmatprep.subr.mxu0 0.0
    %184 = vmatpush1.msra.mxu0 %v59
    %185 = vmatprep.mubr.f32.mxu0 %v115
    %186 = vmatmul.mubr.f32.gmra.mrb[0].mxu0 %v107
    %v187 = vpop.f32.mrb[0].mxu0
    %v188 = vadd.f32 %v97, %v187
    %v189 = vpop.f32.mrb[0].mxu0
    %190 = vdwg.mxu0
    %191 = vmatprep.subr.mxu0 0.0
    %192 = vmatpush1.msra.mxu0 %v60
    %193 = vmatprep.subr.mxu0 0.0
    %194 = vmatpush1.msra.mxu0 %v61
    %195 = vmatprep.subr.mxu0 0.0
    %196 = vmatpush1.msra.mxu0 %v62
    %197 = vmatprep.subr.mxu0 0.0
    %198 = vmatpush1.msra.mxu0 %v63
    %199 = vmatprep.subr.mxu0 0.0
    %200 = vmatpush1.msra.mxu0 %v64
    %201 = vmatprep.subr.mxu0 0.0
    %202 = vmatpush1.msra.mxu0 %v65
    %203 = vmatprep.subr.mxu0 0.0
    %204 = vmatpush1.msra.mxu0 %v66
    %205 = vmatprep.subr.mxu0 0.0
    %206 = vmatpush1.msra.mxu0 %v67
    %207 = vmatprep.subr.mxu0 0.0
    %208 = vmatpush1.msra.mxu0 %v68
    %209 = vmatprep.subr.mxu0 0.0
    %210 = vmatpush1.msra.mxu0 %v69
    %211 = vmatprep.subr.mxu0 0.0
    %212 = vmatpush1.msra.mxu0 %v70
    %213 = vmatprep.subr.mxu0 0.0
    %214 = vmatpush1.msra.mxu0 %v71
    %215 = vmatprep.subr.mxu0 0.0
    %216 = vmatpush1.msra.mxu0 %v72
    %217 = vmatprep.subr.mxu0 0.0
    %218 = vmatpush1.msra.mxu0 %v73
    %219 = vmatprep.subr.mxu0 0.0
    %220 = vmatpush1.msra.mxu0 %v74
    %221 = vmatprep.subr.mxu0 0.0
    %222 = vmatpush1.msra.mxu0 %v75
    %223 = vmatprep.subr.mxu0 0.0
    %224 = vmatpush1.msra.mxu0 %v76
    %225 = vmatprep.subr.mxu0 0.0
    %226 = vmatpush1.msra.mxu0 %v77
    %227 = vmatprep.subr.mxu0 0.0
    %228 = vmatpush1.msra.mxu0 %v78
    %229 = vmatprep.subr.mxu0 0.0
    %230 = vmatpush1.msra.mxu0 %v79
    %231 = vmatprep.subr.mxu0 0.0
    %232 = vmatpush1.msra.mxu0 %v80
    %233 = vmatprep.subr.mxu0 0.0
    %234 = vmatpush1.msra.mxu0 %v81
    %235 = vmatprep.subr.mxu0 0.0
    %236 = vmatpush1.msra.mxu0 %v82
    %237 = vmatprep.subr.mxu0 0.0
    %238 = vmatpush1.msra.mxu0 %v83
    %239 = vmatprep.subr.mxu0 0.0
    %240 = vmatpush1.msra.mxu0 %v84
    %241 = vmatprep.subr.mxu0 0.0
    %242 = vmatpush1.msra.mxu0 %v85
    %243 = vmatprep.subr.mxu0 0.0
    %244 = vmatpush1.msra.mxu0 %v86
    %245 = vmatprep.subr.mxu0 0.0
    %246 = vmatpush1.msra.mxu0 %v87
    %247 = vmatprep.subr.mxu0 0.0
    %248 = vmatpush1.msra.mxu0 %v88
    %249 = vmatprep.subr.mxu0 0.0
    %250 = vmatpush1.msra.mxu0 %v89
    %251 = vmatprep.subr.mxu0 0.0
    %252 = vmatpush1.msra.mxu0 %v90
    %253 = vmatprep.subr.mxu0 0.0
    %254 = vmatpush1.msra.mxu0 %v91
    %255 = vmatprep.mubr.f32.mxu0 %v116
    %256 = vmatmul.mubr.f32.gmra.mrb[0].mxu0 %v114
    %v257 = vpop.f32.mrb[0].mxu0
    %v258 = vadd.f32 %v188, %v257
    %v259 = vpop.f32.mrb[0].mxu0
    %260 = vdwg.mxu0
    %v261 = vmax.f32 %v258, 0.0
    %v262 = vld [vmem:[%s3] sm:$0xff]
    %v263 = vld [vmem:[%s3 + $0x8] sm:$0xff]
    %v264 = vld [vmem:[%s3 + $0x10] sm:$0xff]
    %v265 = vld [vmem:[%s3 + $0x18] sm:$0xff]
    %v266 = vld [vmem:[%s3 + $0x20] sm:$0xff]
    %v267 = vld [vmem:[%s3 + $0x28] sm:$0xff]
    %v268 = vld [vmem:[%s3 + $0x30] sm:$0xff]
    %v269 = vld [vmem:[%s3 + $0x38] sm:$0xff]
    %v270 = vld [vmem:[%s3 + $0x40] sm:$0xff]
    %v271 = vld [vmem:[%s3 + $0x48] sm:$0xff]
    %v272 = vld [vmem:[%s3 + $0x50] sm:$0xff]
    %v273 = vld [vmem:[%s3 + $0x58] sm:$0xff]
    %v274 = vld [vmem:[%s3 + $0x60] sm:$0xff]
    %v275 = vld [vmem:[%s3 + $0x68] sm:$0xff]
    %v276 = vld [vmem:[%s3 + $0x70] sm:$0xff]
    %v277 = vld [vmem:[%s3 + $0x78] sm:$0xff]
    %v278 = vld [vmem:[%s4] sm:$0x1]
    %v280 = vlaneseq
    %v281 = vshrl.u32 %v280, 7
    %v282 = vsub.s32 0, %v281
    %v283 = vrot.slane %v278, %v282
    %285 = vmatprep.subr.mxu0 0.0
    %286 = vmatpush1.msra.mxu0 %v262
    %287 = vmatprep.subr.mxu0 0.0
    %288 = vmatpush1.msra.mxu0 %v263
    %289 = vmatprep.subr.mxu0 0.0
    %290 = vmatpush1.msra.mxu0 %v264
    %291 = vmatprep.subr.mxu0 0.0
    %292 = vmatpush1.msra.mxu0 %v265
    %293 = vmatprep.subr.mxu0 0.0
    %294 = vmatpush1.msra.mxu0 %v266
    %295 = vmatprep.subr.mxu0 0.0
    %296 = vmatpush1.msra.mxu0 %v267
    %297 = vmatprep.subr.mxu0 0.0
    %298 = vmatpush1.msra.mxu0 %v268
    %299 = vmatprep.subr.mxu0 0.0
    %300 = vmatpush1.msra.mxu0 %v269
    %301 = vmatprep.subr.mxu0 0.0
    %302 = vmatpush1.msra.mxu0 %v270
    %303 = vmatprep.subr.mxu0 0.0
    %304 = vmatpush1.msra.mxu0 %v271
    %305 = vmatprep.subr.mxu0 0.0
    %306 = vmatpush1.msra.mxu0 %v272
    %307 = vmatprep.subr.mxu0 0.0
    %308 = vmatpush1.msra.mxu0 %v273
    %309 = vmatprep.subr.mxu0 0.0
    %310 = vmatpush1.msra.mxu0 %v274
    %311 = vmatprep.subr.mxu0 0.0
    %312 = vmatpush1.msra.mxu0 %v275
    %313 = vmatprep.subr.mxu0 0.0
    %314 = vmatpush1.msra.mxu0 %v276
    %315 = vmatprep.subr.mxu0 0.0
    %316 = vmatpush1.msra.mxu0 %v277
    %317 = vmatprep.subr.mxu0 0.0
    %318 = vmatpush1.msra.mxu0 0.0
    %319 = vmatprep.subr.mxu0 0.0
    %320 = vmatpush1.msra.mxu0 0.0
    %321 = vmatprep.subr.mxu0 0.0
    %322 = vmatpush1.msra.mxu0 0.0
    %323 = vmatprep.subr.mxu0 0.0
    %324 = vmatpush1.msra.mxu0 0.0
    %325 = vmatprep.subr.mxu0 0.0
    %326 = vmatpush1.msra.mxu0 0.0
    %327 = vmatprep.subr.mxu0 0.0
    %328 = vmatpush1.msra.mxu0 0.0
    %329 = vmatprep.subr.mxu0 0.0
    %330 = vmatpush1.msra.mxu0 0.0
    %331 = vmatprep.subr.mxu0 0.0
    %332 = vmatpush1.msra.mxu0 0.0
    %333 = vmatprep.subr.mxu0 0.0
    %334 = vmatpush1.msra.mxu0 0.0
    %335 = vmatprep.subr.mxu0 0.0
    %336 = vmatpush1.msra.mxu0 0.0
    %337 = vmatprep.subr.mxu0 0.0
    %338 = vmatpush1.msra.mxu0 0.0
    %339 = vmatprep.subr.mxu0 0.0
    %340 = vmatpush1.msra.mxu0 0.0
    %341 = vmatprep.subr.mxu0 0.0
    %342 = vmatpush1.msra.mxu0 0.0
    %343 = vmatprep.subr.mxu0 0.0
    %344 = vmatpush1.msra.mxu0 0.0
    %345 = vmatprep.subr.mxu0 0.0
    %346 = vmatpush1.msra.mxu0 0.0
    %347 = vmatprep.subr.mxu0 0.0
    %348 = vmatpush1.msra.mxu0 0.0
    %349 = vmatprep.mubr.f32.mxu0 0.0
    %350 = vmatmul.mubr.f32.gmra.mrb[0].mxu0 %v261
    %v351 = vpop.f32.mrb[0].mxu0
    %v352 = vadd.f32 %v283, %v351
    %v353 = vpop.f32.mrb[0].mxu0
    %354 = vdwg.mxu0
    %v355 = vmax.f32 %v352, 0.0
    %v356 = vld [vmem:[%s5] sm:$0xff]
    %v357 = vld [vmem:[%s5 + $0x8] sm:$0xff]
    %v358 = vld [vmem:[%s5 + $0x10] sm:$0xff]
    %v359 = vld [vmem:[%s5 + $0x18] sm:$0xff]
    %v360 = vld [vmem:[%s5 + $0x20] sm:$0xff]
    %v361 = vld [vmem:[%s5 + $0x28] sm:$0xff]
    %v362 = vld [vmem:[%s5 + $0x30] sm:$0xff]
    %v363 = vld [vmem:[%s5 + $0x38] sm:$0xff]
    %v364 = vld [vmem:[%s5 + $0x40] sm:$0xff]
    %v365 = vld [vmem:[%s5 + $0x48] sm:$0xff]
    %v366 = vld [vmem:[%s5 + $0x50] sm:$0xff]
    %v367 = vld [vmem:[%s5 + $0x58] sm:$0xff]
    %v368 = vld [vmem:[%s5 + $0x60] sm:$0xff]
    %v369 = vld [vmem:[%s5 + $0x68] sm:$0xff]
    %v370 = vld [vmem:[%s5 + $0x70] sm:$0xff]
    %v371 = vld [vmem:[%s5 + $0x78] sm:$0xff]
    %v372 = vld [vmem:[%s6] sm:$0x1]
    %v374 = vlaneseq
    %v375 = vshrl.u32 %v374, 7
    %v376 = vsub.s32 0, %v375
    %v377 = vrot.slane %v372, %v376
    %379 = vmatprep.subr.mxu0 0.0
    %380 = vmatpush1.msra.mxu0 %v356
    %381 = vmatprep.subr.mxu0 0.0
    %382 = vmatpush1.msra.mxu0 %v357
    %383 = vmatprep.subr.mxu0 0.0
    %384 = vmatpush1.msra.mxu0 %v358
    %385 = vmatprep.subr.mxu0 0.0
    %386 = vmatpush1.msra.mxu0 %v359
    %387 = vmatprep.subr.mxu0 0.0
    %388 = vmatpush1.msra.mxu0 %v360
    %389 = vmatprep.subr.mxu0 0.0
    %390 = vmatpush1.msra.mxu0 %v361
    %391 = vmatprep.subr.mxu0 0.0
    %392 = vmatpush1.msra.mxu0 %v362
    %393 = vmatprep.subr.mxu0 0.0
    %394 = vmatpush1.msra.mxu0 %v363
    %395 = vmatprep.subr.mxu0 0.0
    %396 = vmatpush1.msra.mxu0 %v364
    %397 = vmatprep.subr.mxu0 0.0
    %398 = vmatpush1.msra.mxu0 %v365
    %399 = vmatprep.subr.mxu0 0.0
    %400 = vmatpush1.msra.mxu0 %v366
    %401 = vmatprep.subr.mxu0 0.0
    %402 = vmatpush1.msra.mxu0 %v367
    %403 = vmatprep.subr.mxu0 0.0
    %404 = vmatpush1.msra.mxu0 %v368
    %405 = vmatprep.subr.mxu0 0.0
    %406 = vmatpush1.msra.mxu0 %v369
    %407 = vmatprep.subr.mxu0 0.0
    %408 = vmatpush1.msra.mxu0 %v370
    %409 = vmatprep.subr.mxu0 0.0
    %410 = vmatpush1.msra.mxu0 %v371
    %411 = vmatprep.subr.mxu0 0.0
    %412 = vmatpush1.msra.mxu0 0.0
    %413 = vmatprep.subr.mxu0 0.0
    %414 = vmatpush1.msra.mxu0 0.0
    %415 = vmatprep.subr.mxu0 0.0
    %416 = vmatpush1.msra.mxu0 0.0
    %417 = vmatprep.subr.mxu0 0.0
    %418 = vmatpush1.msra.mxu0 0.0
    %419 = vmatprep.subr.mxu0 0.0
    %420 = vmatpush1.msra.mxu0 0.0
    %421 = vmatprep.subr.mxu0 0.0
    %422 = vmatpush1.msra.mxu0 0.0
    %423 = vmatprep.subr.mxu0 0.0
    %424 = vmatpush1.msra.mxu0 0.0
    %425 = vmatprep.subr.mxu0 0.0
    %426 = vmatpush1.msra.mxu0 0.0
    %427 = vmatprep.subr.mxu0 0.0
    %428 = vmatpush1.msra.mxu0 0.0
    %429 = vmatprep.subr.mxu0 0.0
    %430 = vmatpush1.msra.mxu0 0.0
    %431 = vmatprep.subr.mxu0 0.0
    %432 = vmatpush1.msra.mxu0 0.0
    %433 = vmatprep.subr.mxu0 0.0
    %434 = vmatpush1.msra.mxu0 0.0
    %435 = vmatprep.subr.mxu0 0.0
    %436 = vmatpush1.msra.mxu0 0.0
    %437 = vmatprep.subr.mxu0 0.0
    %438 = vmatpush1.msra.mxu0 0.0
    %439 = vmatprep.subr.mxu0 0.0
    %440 = vmatpush1.msra.mxu0 0.0
    %441 = vmatprep.subr.mxu0 0.0
    %442 = vmatpush1.msra.mxu0 0.0
    %443 = vmatprep.mubr.f32.mxu0 0.0
    %444 = vmatmul.mubr.f32.gmra.mrb[0].mxu0 %v355
    %v445 = vpop.f32.mrb[0].mxu0
    %v446 = vadd.f32 %v377, %v445
    %v447 = vpop.f32.mrb[0].mxu0
    %448 = vdwg.mxu0
    %v449 = vlaneseq
    %v450 = vand.u32 %v449, 127
    %vm451 = vcmp.lt.s32.totalorder %v450, 2
    %v452 = vsel %vm451, %v446, -1e+30
    %vm453 = vcmask 1041408
    %v454 = vsel %vm453, %v452, -inf
    %455 = vmax.xlane.f32.xlu0 %v454
    %v456 = vpop.xlane.xlu0 %455
    %v457 = vsub.f32 %v452, %v456
    %v458 = vmul.f32 %v457, 1.442695
    %v459 = vpow.pop %v458
    %v460 = vsel %vm453, %v459, 0.0
    %461 = vadd.xlane.f32.xlu0 %v460
    %v462 = vpop.xlane.xlu0 %461
    %v463 = vlog2.pop %v462
    %v464 = vmul.f32 %v463, 0.6931472
    %v465 = vsub.f32 %v457, %v464
    %466 = vst [vmem:[#allocation2] sm:$0x3] %v465
    // Predicated region
    $region30: #{net_forward.7} parent=1 // pred_check
      _
    $region31: #{net_forward.7} parent=1 // pred_check_branch
      %468 = sbr.rel (0) target = $region33
    $region32: #{net_forward.7} parent=1 // pred_region
      %s470 = ssub.s32 32, 32
      %471 = vsyncadd [#allocation3], %s470
      %s473 = sshll.u32 [#allocation2], 4
      %s474 = int_to_ptr.vmem [resolvable:$true] %s473
      %476 = dma.vmem_to_hbm [thread:$0]  %s474, 32, %s7, [#allocation3]
    $region33: #{net_forward.7} parent=1 // pred_fallthru
      _
    // Predicated region
    $region34: #{net_forward.7} parent=1 // pred_check
      _
    $region35: #{net_forward.7} parent=1 // pred_check_branch
      %478 = sbr.rel (0) target = $region37
    $region36: #{net_forward.7} parent=1 // pred_region
      %479 = dma.done [#allocation3], 32
    $region37: #{net_forward.7} parent=1 // pred_fallthru
      _
    %480 = vsyncpa [#allocation3], 1

</llo_original>
